<compile_context>
chip_gen: v7x
topology: tpu7x:2x2x1
jax: 0.10.0
libtpu: 0.0.40
codegen_flags: <defaults>
</compile_context>

<pallas_src>
import functools

import jax
import jax.numpy as jnp
from jax import lax
from jax.experimental import pallas as pl
from jax.experimental.pallas import tpu as pltpu

EPS = 1e-5                       # nn.BatchNorm2d default eps
_COMPUTE_DTYPE = jnp.bfloat16    # MXU operand dtype (f32 accumulation)
_ACT_DTYPE = jnp.bfloat16        # activation storage dtype between layers
_VMEM_LIMIT = 48 * 1024 * 1024   # <= v7x 64 MiB physical, generous on v5e/v6e
_MAX_ROW_TILE = 1024             # large tiles -> near HBM roofline on v5e/v6e


# ----------------------------- helpers -------------------------------------

def _row_tiling(m, max_tile=_MAX_ROW_TILE):
    """(row_tile, padded_rows) for matmul-style kernels (tile multiple of 8)."""
    if m <= max_tile:
        return m, m
    for t in range(max_tile - max_tile % 8, 7, -8):
        if m % t == 0:
            return t, m
    t = max_tile - max_tile % 8                      # awkward m: cdiv + pad
    return t, ((m + t - 1) // t) * t


def _map_row_tile(m, max_tile=_MAX_ROW_TILE):
    """Row tile for the stride-1 tap-map kernels (must divide m exactly)."""
    if m <= max_tile:
        return m
    for t in range(max_tile - max_tile % 8, 7, -8):
        if m % t == 0:
            return t
    # TODO(synk): cdiv + masked tail for awkward map sizes.
    return m


def _bn_scale_shift(x, gamma, beta):
    """One-pass training-mode BatchNorm2d batch stats -> (1,C) scale/shift."""
    x = x.astype(jnp.float32)
    c = x.shape[-1]
    cnt = x.size // c
    red = tuple(range(x.ndim - 1))
    s1 = jnp.sum(x, axis=red)
    s2 = jnp.sum(x * x, axis=red)
    mean = s1 / cnt
    var = jnp.maximum(s2 / cnt - mean * mean, 0.0)   # biased variance, one pass
    scale = gamma.astype(jnp.float32) * lax.rsqrt(var + EPS)
    shift = beta.astype(jnp.float32) - mean * scale
    return scale.reshape(1, c), shift.reshape(1, c)


def _conv_mask(n, h, w, pad):
    """Flat (rows,1) mask: 1 on real pixels, 0 on spatial / tail padding."""
    hp, wp = h + 2 * pad, w + 2 * pad
    return jnp.pad(jnp.ones((n, h, w, 1), jnp.float32),
                   ((0, 1), (pad, pad), (pad, pad), (0, 0))
                   ).reshape((n + 1) * hp * wp, 1)


# ----------------------------- Pallas kernels ------------------------------

def _matmul_kernel(a_ref, w_ref, o_ref):
    """Plain row-tiled matmul (used for conv0 on its K=49 patch operand)."""
    o_ref[...] = jnp.dot(a_ref[...], w_ref[...],
                         preferred_element_type=jnp.float32).astype(o_ref.dtype)


def _make_bn_conv1x1_kernel(nf):
    """Fused per-feature BN-ReLU prologue + 1x1 conv over `nf` feature maps.

    Replaces the concatenated-input 1x1 conv: o = sum_i W_i @ relu(bn_i(a_i)).
    """
    def kernel(*refs):
        a = refs[0:nf]
        sc = refs[nf:2 * nf]
        sh = refs[2 * nf:3 * nf]
        w = refs[3 * nf:4 * nf]
        o_ref = refs[4 * nf]
        acc = jnp.zeros(o_ref.shape, jnp.float32)
        for i in range(nf):
            v = jnp.maximum(a[i][...].astype(jnp.float32) * sc[i][...]
                            + sh[i][...], 0.0)
            acc = acc + jnp.dot(v.astype(_COMPUTE_DTYPE), w[i][...],
                                preferred_element_type=jnp.float32)
        o_ref[...] = acc.astype(o_ref.dtype)
    return kernel


def _bn_relu_conv_tap_kernel(a_ref, mask_ref, scale_ref, shift_ref, w_ref,
                             o_ref, p_ref, *, kh, kw, wp, tm, extra):
    """Fused BN-ReLU prologue (once, into scratch) + KxK conv tap accumulation.

    Output is written exactly once per row tile; the tap loop accumulates into
    an f32 value (no per-tap full-block VMEM read-modify-write).
    """
    base = pl.program_id(0) * tm
    if tm % 8 == 0:
        base = pl.multiple_of(base, 8)
    rows = tm + extra
    a = a_ref[pl.ds(base, rows), :].astype(jnp.float32)
    msk = mask_ref[pl.ds(base, rows), :]
    p_ref[...] = jnp.maximum(a * scale_ref[...] + shift_ref[...], 0.0) * msk

    acc = jnp.zeros(o_ref.shape, jnp.float32)
    for t in range(kh * kw):                         # static, unrolled
        off = (t // kw) * wp + (t % kw)
        acc = acc + jnp.dot(p_ref[pl.ds(off, tm), :].astype(_COMPUTE_DTYPE),
                            w_ref[t], preferred_element_type=jnp.float32)
    o_ref[...] = acc.astype(o_ref.dtype)


def _bn_relu_maxpool_tap_kernel(a_ref, mask_ref, scale_ref, shift_ref,
                                o_ref, p_ref, *, kh, kw, wp, tm, extra):
    """Fused BN-ReLU prologue (once) + 3x3 max over row-shifted scratch slices."""
    base = pl.program_id(0) * tm
    if tm % 8 == 0:
        base = pl.multiple_of(base, 8)
    rows = tm + extra
    a = a_ref[pl.ds(base, rows), :].astype(jnp.float32)
    msk = mask_ref[pl.ds(base, rows), :]
    p_ref[...] = jnp.maximum(a * scale_ref[...] + shift_ref[...], 0.0) * msk

    r = p_ref[pl.ds(0, tm), :]
    for t in range(1, kh * kw):                      # static, unrolled
        off = (t // kw) * wp + (t % kw)
        r = jnp.maximum(r, p_ref[pl.ds(off, tm), :])
    o_ref[...] = r.astype(o_ref.dtype)


def _avgpool4_kernel(a_ref, b_ref, c_ref, d_ref, o_ref):
    """AvgPool2d(2,2) on four stride-2 phase views (exact output geometry)."""
    s = (a_ref[...].astype(jnp.float32) + b_ref[...].astype(jnp.float32)
         + c_ref[...].astype(jnp.float32) + d_ref[...].astype(jnp.float32))
    o_ref[...] = (s * 0.25).astype(o_ref.dtype)


def _head_kernel(x_ref, scale_ref, shift_ref, w_ref, b_ref, o_ref):
    """Fused norm5 + ReLU + adaptive_avg_pool2d((1,1)) + flatten + Linear."""
    x = jnp.maximum(x_ref[...].astype(jnp.float32) * scale_ref[...]
                    + shift_ref[...], 0.0)            # (N, HW, C)
    pooled = jnp.mean(x, axis=1)                      # (N, C)
    o_ref[...] = (jnp.dot(pooled.astype(_COMPUTE_DTYPE), w_ref[...],
                          preferred_element_type=jnp.float32) + b_ref[...])


# ----------------------------- layer wrappers ------------------------------

def conv0_7x7s2(x, w_mat):
    """Conv2d(1, C, 7, stride=2, padding=3, bias=False).

    Stride-aware patch extraction in glue (49 channels, smaller than the conv
    output since cin=1) followed by one row-tiled MXU matmul with K=49.
    """
    n, h, w, cin = x.shape
    cout = w_mat.shape[-1]
    kh = kw = 7
    s, pad = 2, 3
    ho = (h + 2 * pad - kh) // s + 1
    wo = (w + 2 * pad - kw) // s + 1
    xp = jnp.pad(x.astype(jnp.float32), ((0, 0), (pad, pad), (pad, pad), (0, 0)))
    patches = jnp.concatenate(
        [xp[:, dh:dh + s * ho:s, dw:dw + s * wo:s, :]
         for dh in range(kh) for dw in range(kw)], axis=-1)
    m = n * ho * wo
    a = patches.reshape(m, kh * kw * cin).astype(_COMPUTE_DTYPE)
    tm, m_pad = _row_tiling(m)
    if m_pad > m:
        a = jnp.pad(a, ((0, m_pad - m), (0, 0)))
    out = pl.pallas_call(
        _matmul_kernel,
        out_shape=jax.ShapeDtypeStruct((m_pad, cout), _ACT_DTYPE),
        grid=(m_pad // tm,),
        in_specs=[pl.BlockSpec((tm, kh * kw * cin), lambda i: (i, 0)),
                  pl.BlockSpec((kh * kw * cin, cout), lambda i: (0, 0))],
        out_specs=pl.BlockSpec((tm, cout), lambda i: (i, 0)),
        compiler_params=pltpu.CompilerParams(
            dimension_semantics=("parallel",),
            vmem_limit_bytes=_VMEM_LIMIT),
    )(a, w_mat)
    return out[:m].reshape(n, ho, wo, cout)


def fused_bn_conv1x1(feats, gamma, beta, w_cin_cout):
    """BN(batch stats) -> ReLU -> 1x1 conv over a LIST of feature maps.

    Equivalent to conv1x1(relu(bn(concat(feats)))) without materialising the
    concatenation in HBM: per-channel BN and the channel-wise 1x1 conv both
    decompose over the channel split.
    """
    n, h, w, _ = feats[0].shape
    cs = [int(f.shape[-1]) for f in feats]
    cout = w_cin_cout.shape[-1]
    m = n * h * w
    tm, m_pad = _row_tiling(m)

    a_list, sc_list, sh_list, w_list = [], [], [], []
    off = 0
    for f, c in zip(feats, cs):
        sc, sh = _bn_scale_shift(f, gamma[off:off + c], beta[off:off + c])
        a = f.reshape(m, c).astype(_ACT_DTYPE)
        if m_pad > m:
            a = jnp.pad(a, ((0, m_pad - m), (0, 0)))
        a_list.append(a)
        sc_list.append(sc)
        sh_list.append(sh)
        w_list.append(w_cin_cout[off:off + c, :])
        off += c

    nf = len(feats)
    in_specs = ([pl.BlockSpec((tm, c), lambda i: (i, 0)) for c in cs]
                + [pl.BlockSpec((1, c), lambda i: (0, 0)) for c in cs]
                + [pl.BlockSpec((1, c), lambda i: (0, 0)) for c in cs]
                + [pl.BlockSpec((c, cout), lambda i: (0, 0)) for c in cs])
    out = pl.pallas_call(
        _make_bn_conv1x1_kernel(nf),
        out_shape=jax.ShapeDtypeStruct((m_pad, cout), _ACT_DTYPE),
        grid=(m_pad // tm,),
        in_specs=in_specs,
        out_specs=pl.BlockSpec((tm, cout), lambda i: (i, 0)),
        compiler_params=pltpu.CompilerParams(
            dimension_semantics=("parallel",),
            vmem_limit_bytes=_VMEM_LIMIT),
    )(*a_list, *sc_list, *sh_list, *w_list)
    return out[:m].reshape(n, h, w, cout)


def fused_bn_conv3x3(x, gamma, beta, w_taps, mask_flat):
    """BN -> ReLU -> Conv2d(3,3, stride=1, padding=1, bias=False), fused.

    Stride-1 map over the padded geometry (frame rows cropped in glue); tail
    rows are provided by one extra zero image folded into the single jnp.pad.
    """
    n, h, w, cin = x.shape
    cout = w_taps.shape[-1]
    kh = kw = 3
    pad = 1
    hp, wp = h + 2 * pad, w + 2 * pad
    m_map = n * hp * wp
    extra = (kh - 1) * wp + (kw - 1)
    scale, shift = _bn_scale_shift(x, gamma, beta)
    slab = jnp.pad(x.astype(_ACT_DTYPE),
                   ((0, 1), (pad, pad), (pad, pad), (0, 0))
                   ).reshape((n + 1) * hp * wp, cin)
    tm = _map_row_tile(m_map)
    kern = functools.partial(_bn_relu_conv_tap_kernel,
                             kh=kh, kw=kw, wp=wp, tm=tm, extra=extra)
    out = pl.pallas_call(
        kern,
        out_shape=jax.ShapeDtypeStruct((m_map, cout), _ACT_DTYPE),
        grid=(m_map // tm,),
        in_specs=[
            pl.BlockSpec(((n + 1) * hp * wp, cin), lambda i: (0, 0)),
            pl.BlockSpec(((n + 1) * hp * wp, 1), lambda i: (0, 0)),
            pl.BlockSpec((1, cin), lambda i: (0, 0)),
            pl.BlockSpec((1, cin), lambda i: (0, 0)),
            pl.BlockSpec((kh * kw, cin, cout), lambda i: (0, 0, 0)),
        ],
        out_specs=pl.BlockSpec((tm, cout), lambda i: (i, 0)),
        scratch_shapes=[pltpu.VMEM((tm + extra, cin), jnp.float32)],
        compiler_params=pltpu.CompilerParams(
            dimension_semantics=("parallel",),
            vmem_limit_bytes=_VMEM_LIMIT),
    )(slab, mask_flat, scale, shift, w_taps)
    return out.reshape(n, hp, wp, cout)[:, :h, :w, :]


def fused_bn_relu_maxpool3x3s2(x, gamma, beta):
    """BN(batch stats) -> ReLU -> MaxPool2d(3, stride=2, padding=1), fused."""
    n, h, w, c = x.shape
    kh = kw = 3
    s, pad = 2, 1
    hp, wp = h + 2 * pad, w + 2 * pad
    ho = (h + 2 * pad - kh) // s + 1
    wo = (w + 2 * pad - kw) // s + 1
    m_map = n * hp * wp
    extra = (kh - 1) * wp + (kw - 1)
    scale, shift = _bn_scale_shift(x, gamma, beta)
    slab = jnp.pad(x.astype(_ACT_DTYPE),
                   ((0, 1), (pad, pad), (pad, pad), (0, 0))
                   ).reshape((n + 1) * hp * wp, c)
    mask = _conv_mask(n, h, w, pad)
    tm = _map_row_tile(m_map)
    kern = functools.partial(_bn_relu_maxpool_tap_kernel,
                             kh=kh, kw=kw, wp=wp, tm=tm, extra=extra)
    out = pl.pallas_call(
        kern,
        out_shape=jax.ShapeDtypeStruct((m_map, c), _ACT_DTYPE),
        grid=(m_map // tm,),
        in_specs=[
            pl.BlockSpec(((n + 1) * hp * wp, c), lambda i: (0, 0)),
            pl.BlockSpec(((n + 1) * hp * wp, 1), lambda i: (0, 0)),
            pl.BlockSpec((1, c), lambda i: (0, 0)),
            pl.BlockSpec((1, c), lambda i: (0, 0)),
        ],
        out_specs=pl.BlockSpec((tm, c), lambda i: (i, 0)),
        scratch_shapes=[pltpu.VMEM((tm + extra, c), jnp.float32)],
        compiler_params=pltpu.CompilerParams(
            dimension_semantics=("parallel",),
            vmem_limit_bytes=_VMEM_LIMIT),
    )(slab, mask, scale, shift)
    out = out.reshape(n, hp, wp, c)
    # TODO(synk): stride-aware (phase) taps would avoid the discarded rows of
    #             this one-off stride-1 max map.
    return out[:, 0:s * ho:s, 0:s * wo:s, :]


def avgpool2x2(x):
    """AvgPool2d(kernel_size=2, stride=2) via 4 phase views (no wasted rows)."""
    n, h, w, c = x.shape
    ho, wo = h // 2, w // 2
    m = n * ho * wo
    phases = [x[:, dh:dh + 2 * ho:2, dw:dw + 2 * wo:2, :].reshape(m, c)
              for dh in (0, 1) for dw in (0, 1)]
    tm, m_pad = _row_tiling(m)
    if m_pad > m:
        phases = [jnp.pad(p, ((0, m_pad - m), (0, 0))) for p in phases]
    out = pl.pallas_call(
        _avgpool4_kernel,
        out_shape=jax.ShapeDtypeStruct((m_pad, c), _ACT_DTYPE),
        grid=(m_pad // tm,),
        in_specs=[pl.BlockSpec((tm, c), lambda i: (i, 0)) for _ in range(4)],
        out_specs=pl.BlockSpec((tm, c), lambda i: (i, 0)),
        compiler_params=pltpu.CompilerParams(
            dimension_semantics=("parallel",),
            vmem_limit_bytes=_VMEM_LIMIT),
    )(*phases)
    return out[:m].reshape(n, ho, wo, c)


def fused_bn_gap_linear(x, gamma, beta, fc_w, fc_b):
    """norm5 -> ReLU -> global average pool -> flatten -> classifier."""
    n, h, w, c = x.shape
    n_cls = fc_w.shape[-1]
    scale, shift = _bn_scale_shift(x, gamma, beta)
    xf = x.reshape(n, h * w, c).astype(_ACT_DTYPE)
    # TODO(synk): pad the class dim to 128 for a lane-dense output store.
    return pl.pallas_call(
        _head_kernel,
        out_shape=jax.ShapeDtypeStruct((n, n_cls), jnp.float32),
        compiler_params=pltpu.CompilerParams(vmem_limit_bytes=_VMEM_LIMIT),
    )(xf, scale, shift, fc_w, fc_b)


# ----------------------------- parameter init ------------------------------

def _kaiming_conv(key, shape):
    # nn.init.kaiming_normal_ defaults: fan_in, gain = sqrt(2)
    cout, cin, kh, kw = shape
    fan_in = cin * kh * kw
    std = (2.0 / fan_in) ** 0.5
    return std * jax.random.normal(key, shape, jnp.float32)


def _conv_taps(w_oihw):
    """OIHW -> (kh*kw, Cin, Cout) bf16 per-tap matmul weights."""
    cout, cin, kh, kw = w_oihw.shape
    return (jnp.transpose(w_oihw, (2, 3, 1, 0))
            .reshape(kh * kw, cin, cout).astype(_COMPUTE_DTYPE))


def _conv_km(w_oihw):
    """OIHW -> (kh*kw*Cin, Cout) bf16 folded-K matmul weight (im2col order)."""
    cout, cin, kh, kw = w_oihw.shape
    return (jnp.transpose(w_oihw, (2, 3, 1, 0))
            .reshape(kh * kw * cin, cout).astype(_COMPUTE_DTYPE))


def _conv_1x1_mat(w_oihw):
    """OIHW (1x1) -> (Cin, Cout) bf16 matmul weight."""
    cout, cin, _, _ = w_oihw.shape
    return jnp.transpose(w_oihw.reshape(cout, cin), (1, 0)).astype(_COMPUTE_DTYPE)


def init_densenet_params(key, growth_rate, block_config, num_init_features,
                         bn_size, num_classes):
    keys = iter(jax.random.split(key, 4096))
    ones = lambda c: jnp.ones((c,), jnp.float32)
    zeros = lambda c: jnp.zeros((c,), jnp.float32)

    p = {}
    p["conv0_w"] = _conv_km(_kaiming_conv(next(keys),
                                          (num_init_features, 1, 7, 7)))
    p["norm0_g"], p["norm0_b"] = ones(num_init_features), zeros(num_init_features)

    num_features = num_init_features
    blocks = []
    for i, num_layers in enumerate(block_config):
        layers = []
        for j in range(num_layers):
            nin = num_features + j * growth_rate
            nmid = bn_size * growth_rate
            layers.append({
                "norm1_g": ones(nin), "norm1_b": zeros(nin),
                "conv1_w": _conv_1x1_mat(_kaiming_conv(next(keys),
                                                       (nmid, nin, 1, 1))),
                "norm2_g": ones(nmid), "norm2_b": zeros(nmid),
                "conv2_w": _conv_taps(_kaiming_conv(next(keys),
                                                    (growth_rate, nmid, 3, 3))),
            })
        num_features += num_layers * growth_rate
        block = {"layers": layers}
        if i != len(block_config) - 1:
            block["trans"] = {
                "norm_g": ones(num_features), "norm_b": zeros(num_features),
                "conv_w": _conv_1x1_mat(_kaiming_conv(
                    next(keys), (num_features // 2, num_features, 1, 1))),
            }
            num_features //= 2
        blocks.append(block)
    p["blocks"] = blocks
    p["norm5_g"], p["norm5_b"] = ones(num_features), zeros(num_features)

    bound = 1.0 / (num_features ** 0.5)
    p["fc_w"] = jax.random.uniform(next(keys), (num_features, num_classes),
                                   jnp.float32, minval=-bound,
                                   maxval=bound).astype(_COMPUTE_DTYPE)
    p["fc_b"] = jnp.zeros((1, num_classes), jnp.float32)   # constant_(bias, 0)
    return p


# ----------------------------- forward pass --------------------------------

def densenet_forward(params, x_nchw, drop_rate=0.0):
    x = jnp.transpose(x_nchw, (0, 2, 3, 1)).astype(jnp.float32)  # NCHW -> NHWC

    # features.conv0 (7x7/s2/p3), then norm0+relu0 fused into pool0 (3x3/s2)
    x = conv0_7x7s2(x, params["conv0_w"])
    x = fused_bn_relu_maxpool3x3s2(x, params["norm0_g"], params["norm0_b"])

    for block in params["blocks"]:
        n, h, w, _ = x.shape
        mask = _conv_mask(n, h, w, pad=1)          # shared by this block's 3x3s
        feats = [x]
        for layer in block["layers"]:
            # norm1 + relu1 + conv1 (1x1) over the feature LIST (no concat)
            hmid = fused_bn_conv1x1(feats, layer["norm1_g"], layer["norm1_b"],
                                    layer["conv1_w"])
            # norm2 + relu2 + conv2 (3x3, pad 1), fused
            newf = fused_bn_conv3x3(hmid, layer["norm2_g"], layer["norm2_b"],
                                    layer["conv2_w"], mask)
            # drop_rate == 0 by default -> dropout is identity
            # TODO(synk): stochastic dropout for drop_rate > 0 not implemented.
            feats.append(newf)
        if "trans" in block:
            t = block["trans"]
            y = fused_bn_conv1x1(feats, t["norm_g"], t["norm_b"], t["conv_w"])
            x = avgpool2x2(y)
        else:
            x = jnp.concatenate(feats, axis=-1)    # single tiny concat per net

    # norm5 + relu + adaptive_avg_pool2d((1,1)) + flatten + classifier (fused)
    return fused_bn_gap_linear(x, params["norm5_g"], params["norm5_b"],
                               params["fc_w"], params["fc_b"])


# ----------------------------- main -----------------------------------------

if __name__ == "__main__":
    # Small DenseNet config (same module structure, scaled-down hyperparams).
    growth_rate = 8
    block_config = (2, 2)
    num_init_features = 16
    bn_size = 2
    num_classes = 10

    key = jax.random.PRNGKey(0)
    kp, kx = jax.random.split(key)
    params = init_densenet_params(kp, growth_rate, block_config,
                                  num_init_features, bn_size, num_classes)
    # DenseNet.conv0 expects 1 input channel (NCHW in PyTorch).
    x = jax.random.normal(kx, (2, 1, 32, 32), jnp.float32)

    fwd = jax.jit(functools.partial(densenet_forward, drop_rate=0.0))
    out = fwd(params, x)
    out = jax.block_until_ready(out)
    assert out.shape == (2, num_classes), out.shape
    assert jnp.all(jnp.isfinite(out))
    print("KERNEL_OK")
</pallas_src>

<mosaic_0001>
module attributes {stable_mosaic.version = 11 : i64} {
  func.func @_matmul_kernel(%arg0: i32, %arg1: memref<512x49xbf16, #tpu.memory_space<vmem>>, %arg2: memref<49x16xbf16, #tpu.memory_space<vmem>>, %arg3: memref<512x16xbf16, #tpu.memory_space<vmem>>) attributes {dimension_semantics = [#tpu.dimension_semantics<parallel>], iteration_bounds = array<i64: 1>, scalar_prefetch = 0 : i64, scratch_operands = 0 : i64, tpu.core_type = #tpu.core_type<tc>, window_params = [{transform_indices = @transform_0, window_bounds = array<i64: 512, 49>}, {pipeline_mode = #tpu.pipeline_mode<synchronous>, transform_indices = @transform_1, window_bounds = array<i64: 49, 16>}, {transform_indices = @transform_2, window_bounds = array<i64: 512, 16>}]} {
    %c0 = arith.constant 0 : index
    %c0_0 = arith.constant 0 : index
    %0 = vector.load %arg1[%c0, %c0_0] : memref<512x49xbf16, #tpu.memory_space<vmem>>, vector<512x49xbf16>
    %c0_1 = arith.constant 0 : index
    %c0_2 = arith.constant 0 : index
    %1 = vector.load %arg2[%c0_1, %c0_2] : memref<49x16xbf16, #tpu.memory_space<vmem>>, vector<49x16xbf16>
    %cst = arith.constant dense<0.000000e+00> : vector<512x16xf32>
    %2 = tpu.matmul %0, %1, %cst {dimension_numbers = #tpu.dot_dimension_numbers<[1], [0], [0], [1], [0, 0, 1, 1], [], []>} : vector<512x49xbf16>, vector<49x16xbf16>, vector<512x16xf32> -> vector<512x16xf32>
    %3 = arith.truncf %2 : vector<512x16xf32> to vector<512x16xbf16>
    %c0_3 = arith.constant 0 : index
    %c0_4 = arith.constant 0 : index
    %4 = vector.load %arg3[%c0_3, %c0_4] : memref<512x16xbf16, #tpu.memory_space<vmem>>, vector<512x16xbf16>
    tpu.vector_store %arg3[%c0_3, %c0_4], %3 {strides = array<i32>} : memref<512x16xbf16, #tpu.memory_space<vmem>>, vector<512x16xbf16>,
    return
  }
  func.func @transform_0(%arg0: i32) -> (i32, i32) {
    %c0_i32 = arith.constant 0 : i32
    %c0_i32_0 = arith.constant 0 : i32
    return %arg0, %c0_i32 : i32, i32
  }
  func.func @transform_1(%arg0: i32) -> (i32, i32) {
    %c0_i32 = arith.constant 0 : i32
    %c0_i32_0 = arith.constant 0 : i32
    %c0_i32_1 = arith.constant 0 : i32
    return %c0_i32, %c0_i32_0 : i32, i32
  }
  func.func @transform_2(%arg0: i32) -> (i32, i32) {
    %c0_i32 = arith.constant 0 : i32
    %c0_i32_0 = arith.constant 0 : i32
    return %arg0, %c0_i32 : i32, i32
  }
}

module attributes {stable_mosaic.version = 11 : i64} {
  func.func @_bn_relu_maxpool_tap_kernel(%arg0: i32, %arg1: memref<972x16xbf16, #tpu.memory_space<vmem>>, %arg2: memref<972x1xf32, #tpu.memory_space<vmem>>, %arg3: memref<1x16xf32, #tpu.memory_space<vmem>>, %arg4: memref<1x16xf32, #tpu.memory_space<vmem>>, %arg5: memref<648x16xbf16, #tpu.memory_space<vmem>>, %arg6: memref<686x16xf32, #tpu.memory_space<vmem>>) attributes {dimension_semantics = [#tpu.dimension_semantics<parallel>], iteration_bounds = array<i64: 1>, scalar_prefetch = 0 : i64, scratch_operands = 1 : i64, tpu.core_type = #tpu.core_type<tc>, window_params = [{pipeline_mode = #tpu.pipeline_mode<synchronous>, transform_indices = @transform_0, window_bounds = array<i64: 972, 16>}, {pipeline_mode = #tpu.pipeline_mode<synchronous>, transform_indices = @transform_1, window_bounds = array<i64: 972, 1>}, {pipeline_mode = #tpu.pipeline_mode<synchronous>, transform_indices = @transform_2, window_bounds = array<i64: 1, 16>}, {pipeline_mode = #tpu.pipeline_mode<synchronous>, transform_indices = @transform_3, window_bounds = array<i64: 1, 16>}, {transform_indices = @transform_4, window_bounds = array<i64: 648, 16>}]} {
    %c648_i32 = arith.constant 648 : i32
    %0 = arith.muli %arg0, %c648_i32 : i32
    %1 = tpu.assume_multiple %0, 8 : i32
    %2 = arith.index_cast %1 : i32 to index
    %c0 = arith.constant 0 : index
    %3 = vector.load %arg1[%2, %c0] : memref<972x16xbf16, #tpu.memory_space<vmem>>, vector<686x16xbf16>
    %4 = arith.extf %3 : vector<686x16xbf16> to vector<686x16xf32>
    %5 = arith.index_cast %1 : i32 to index
    %c0_0 = arith.constant 0 : index
    %6 = vector.load %arg2[%5, %c0_0] : memref<972x1xf32, #tpu.memory_space<vmem>>, vector<686x1xf32>
    %c0_1 = arith.constant 0 : index
    %c0_2 = arith.constant 0 : index
    %7 = vector.load %arg3[%c0_1, %c0_2] : memref<1x16xf32, #tpu.memory_space<vmem>>, vector<1x16xf32>
    %8 = vector.broadcast %7 : vector<1x16xf32> to vector<686x16xf32>
    %9 = arith.mulf %4, %8 : vector<686x16xf32>
    %c0_3 = arith.constant 0 : index
    %c0_4 = arith.constant 0 : index
    %10 = vector.load %arg4[%c0_3, %c0_4] : memref<1x16xf32, #tpu.memory_space<vmem>>, vector<1x16xf32>
    %11 = vector.broadcast %10 : vector<1x16xf32> to vector<686x16xf32>
    %12 = arith.addf %9, %11 : vector<686x16xf32>
    %cst = arith.constant 0.000000e+00 : f32
    %13 = vector.broadcast %cst : f32 to vector<686x16xf32>
    %14 = arith.maximumf %12, %13 : vector<686x16xf32>
    %15 = vector.broadcast %6 : vector<686x1xf32> to vector<686x16xf32>
    %16 = arith.mulf %14, %15 : vector<686x16xf32>
    %c0_5 = arith.constant 0 : index
    %c0_6 = arith.constant 0 : index
    %17 = vector.load %arg6[%c0_5, %c0_6] : memref<686x16xf32, #tpu.memory_space<vmem>>, vector<686x16xf32>
    tpu.vector_store %arg6[%c0_5, %c0_6], %16 {strides = array<i32>} : memref<686x16xf32, #tpu.memory_space<vmem>>, vector<686x16xf32>,
    %c0_7 = arith.constant 0 : index
    %c0_8 = arith.constant 0 : index
    %18 = vector.load %arg6[%c0_7, %c0_8] : memref<686x16xf32, #tpu.memory_space<vmem>>, vector<648x16xf32>
    %c1 = arith.constant 1 : index
    %c0_9 = arith.constant 0 : index
    %19 = vector.load %arg6[%c1, %c0_9] : memref<686x16xf32, #tpu.memory_space<vmem>>, vector<648x16xf32>
    %20 = arith.maximumf %18, %19 : vector<648x16xf32>
    %c2 = arith.constant 2 : index
    %c0_10 = arith.constant 0 : index
    %21 = vector.load %arg6[%c2, %c0_10] : memref<686x16xf32, #tpu.memory_space<vmem>>, vector<648x16xf32>
    %22 = arith.maximumf %20, %21 : vector<648x16xf32>
    %c18 = arith.constant 18 : index
    %c0_11 = arith.constant 0 : index
    %23 = vector.load %arg6[%c18, %c0_11] : memref<686x16xf32, #tpu.memory_space<vmem>>, vector<648x16xf32>
    %24 = arith.maximumf %22, %23 : vector<648x16xf32>
    %c19 = arith.constant 19 : index
    %c0_12 = arith.constant 0 : index
    %25 = vector.load %arg6[%c19, %c0_12] : memref<686x16xf32, #tpu.memory_space<vmem>>, vector<648x16xf32>
    %26 = arith.maximumf %24, %25 : vector<648x16xf32>
    %c20 = arith.constant 20 : index
    %c0_13 = arith.constant 0 : index
    %27 = vector.load %arg6[%c20, %c0_13] : memref<686x16xf32, #tpu.memory_space<vmem>>, vector<648x16xf32>
    %28 = arith.maximumf %26, %27 : vector<648x16xf32>
    %c36 = arith.constant 36 : index
    %c0_14 = arith.constant 0 : index
    %29 = vector.load %arg6[%c36, %c0_14] : memref<686x16xf32, #tpu.memory_space<vmem>>, vector<648x16xf32>
    %30 = arith.maximumf %28, %29 : vector<648x16xf32>
    %c37 = arith.constant 37 : index
    %c0_15 = arith.constant 0 : index
    %31 = vector.load %arg6[%c37, %c0_15] : memref<686x16xf32, #tpu.memory_space<vmem>>, vector<648x16xf32>
    %32 = arith.maximumf %30, %31 : vector<648x16xf32>
    %c38 = arith.constant 38 : index
    %c0_16 = arith.constant 0 : index
    %33 = vector.load %arg6[%c38, %c0_16] : memref<686x16xf32, #tpu.memory_space<vmem>>, vector<648x16xf32>
    %34 = arith.maximumf %32, %33 : vector<648x16xf32>
    %35 = arith.truncf %34 : vector<648x16xf32> to vector<648x16xbf16>
    %c0_17 = arith.constant 0 : index
    %c0_18 = arith.constant 0 : index
    %36 = vector.load %arg5[%c0_17, %c0_18] : memref<648x16xbf16, #tpu.memory_space<vmem>>, vector<648x16xbf16>
    tpu.vector_store %arg5[%c0_17, %c0_18], %35 {strides = array<i32>} : memref<648x16xbf16, #tpu.memory_space<vmem>>, vector<648x16xbf16>,
    return
  }
  func.func @transform_0(%arg0: i32) -> (i32, i32) {
    %c0_i32 = arith.constant 0 : i32
    %c0_i32_0 = arith.constant 0 : i32
    %c0_i32_1 = arith.constant 0 : i32
    return %c0_i32, %c0_i32_0 : i32, i32
  }
  func.func @transform_1(%arg0: i32) -> (i32, i32) {
    %c0_i32 = arith.constant 0 : i32
    %c0_i32_0 = arith.constant 0 : i32
    %c0_i32_1 = arith.constant 0 : i32
    return %c0_i32, %c0_i32_0 : i32, i32
  }
  func.func @transform_2(%arg0: i32) -> (i32, i32) {
    %c0_i32 = arith.constant 0 : i32
    %c0_i32_0 = arith.constant 0 : i32
    %c0_i32_1 = arith.constant 0 : i32
    return %c0_i32, %c0_i32_0 : i32, i32
  }
  func.func @transform_3(%arg0: i32) -> (i32, i32) {
    %c0_i32 = arith.constant 0 : i32
    %c0_i32_0 = arith.constant 0 : i32
    %c0_i32_1 = arith.constant 0 : i32
    return %c0_i32, %c0_i32_0 : i32, i32
  }
  func.func @transform_4(%arg0: i32) -> (i32, i32) {
    %c0_i32 = arith.constant 0 : i32
    %c0_i32_0 = arith.constant 0 : i32
    return %arg0, %c0_i32 : i32, i32
  }
}

module attributes {stable_mosaic.version = 11 : i64} {
  func.func @kernel(%arg0: i32, %arg1: memref<128x16xbf16, #tpu.memory_space<vmem>>, %arg2: memref<1x16xf32, #tpu.memory_space<vmem>>, %arg3: memref<1x16xf32, #tpu.memory_space<vmem>>, %arg4: memref<16x16xbf16, #tpu.memory_space<vmem>>, %arg5: memref<128x16xbf16, #tpu.memory_space<vmem>>) attributes {dimension_semantics = [#tpu.dimension_semantics<parallel>], iteration_bounds = array<i64: 1>, scalar_prefetch = 0 : i64, scratch_operands = 0 : i64, tpu.core_type = #tpu.core_type<tc>, window_params = [{transform_indices = @transform_0, window_bounds = array<i64: 128, 16>}, {pipeline_mode = #tpu.pipeline_mode<synchronous>, transform_indices = @transform_1, window_bounds = array<i64: 1, 16>}, {pipeline_mode = #tpu.pipeline_mode<synchronous>, transform_indices = @transform_2, window_bounds = array<i64: 1, 16>}, {pipeline_mode = #tpu.pipeline_mode<synchronous>, transform_indices = @transform_3, window_bounds = array<i64: 16, 16>}, {transform_indices = @transform_4, window_bounds = array<i64: 128, 16>}]} {
    %cst = arith.constant 0.000000e+00 : f32
    %0 = vector.broadcast %cst : f32 to vector<128x16xf32>
    %c0 = arith.constant 0 : index
    %c0_0 = arith.constant 0 : index
    %1 = vector.load %arg1[%c0, %c0_0] : memref<128x16xbf16, #tpu.memory_space<vmem>>, vector<128x16xbf16>
    %2 = arith.extf %1 : vector<128x16xbf16> to vector<128x16xf32>
    %c0_1 = arith.constant 0 : index
    %c0_2 = arith.constant 0 : index
    %3 = vector.load %arg2[%c0_1, %c0_2] : memref<1x16xf32, #tpu.memory_space<vmem>>, vector<1x16xf32>
    %4 = vector.broadcast %3 : vector<1x16xf32> to vector<128x16xf32>
    %5 = arith.mulf %2, %4 : vector<128x16xf32>
    %c0_3 = arith.constant 0 : index
    %c0_4 = arith.constant 0 : index
    %6 = vector.load %arg3[%c0_3, %c0_4] : memref<1x16xf32, #tpu.memory_space<vmem>>, vector<1x16xf32>
    %7 = vector.broadcast %6 : vector<1x16xf32> to vector<128x16xf32>
    %8 = arith.addf %5, %7 : vector<128x16xf32>
    %cst_5 = arith.constant 0.000000e+00 : f32
    %9 = vector.broadcast %cst_5 : f32 to vector<128x16xf32>
    %10 = arith.maximumf %8, %9 : vector<128x16xf32>
    %11 = arith.truncf %10 : vector<128x16xf32> to vector<128x16xbf16>
    %c0_6 = arith.constant 0 : index
    %c0_7 = arith.constant 0 : index
    %12 = vector.load %arg4[%c0_6, %c0_7] : memref<16x16xbf16, #tpu.memory_space<vmem>>, vector<16x16xbf16>
    %cst_8 = arith.constant dense<0.000000e+00> : vector<128x16xf32>
    %13 = tpu.matmul %11, %12, %cst_8 {dimension_numbers = #tpu.dot_dimension_numbers<[1], [0], [0], [1], [0, 0, 1, 1], [], []>} : vector<128x16xbf16>, vector<16x16xbf16>, vector<128x16xf32> -> vector<128x16xf32>
    %14 = arith.addf %0, %13 : vector<128x16xf32>
    %15 = arith.truncf %14 : vector<128x16xf32> to vector<128x16xbf16>
    %c0_9 = arith.constant 0 : index
    %c0_10 = arith.constant 0 : index
    %16 = vector.load %arg5[%c0_9, %c0_10] : memref<128x16xbf16, #tpu.memory_space<vmem>>, vector<128x16xbf16>
    tpu.vector_store %arg5[%c0_9, %c0_10], %15 {strides = array<i32>} : memref<128x16xbf16, #tpu.memory_space<vmem>>, vector<128x16xbf16>,
    return
  }
  func.func @transform_0(%arg0: i32) -> (i32, i32) {
    %c0_i32 = arith.constant 0 : i32
    %c0_i32_0 = arith.constant 0 : i32
    return %arg0, %c0_i32 : i32, i32
  }
  func.func @transform_1(%arg0: i32) -> (i32, i32) {
    %c0_i32 = arith.constant 0 : i32
    %c0_i32_0 = arith.constant 0 : i32
    %c0_i32_1 = arith.constant 0 : i32
    return %c0_i32, %c0_i32_0 : i32, i32
  }
  func.func @transform_2(%arg0: i32) -> (i32, i32) {
    %c0_i32 = arith.constant 0 : i32
    %c0_i32_0 = arith.constant 0 : i32
    %c0_i32_1 = arith.constant 0 : i32
    return %c0_i32, %c0_i32_0 : i32, i32
  }
  func.func @transform_3(%arg0: i32) -> (i32, i32) {
    %c0_i32 = arith.constant 0 : i32
    %c0_i32_0 = arith.constant 0 : i32
    %c0_i32_1 = arith.constant 0 : i32
    return %c0_i32, %c0_i32_0 : i32, i32
  }
  func.func @transform_4(%arg0: i32) -> (i32, i32) {
    %c0_i32 = arith.constant 0 : i32
    %c0_i32_0 = arith.constant 0 : i32
    return %arg0, %c0_i32 : i32, i32
  }
}

module attributes {stable_mosaic.version = 11 : i64} {
  func.func @_bn_relu_conv_tap_kernel(%arg0: i32, %arg1: memref<300x16xbf16, #tpu.memory_space<vmem>>, %arg2: memref<300x1xf32, #tpu.memory_space<vmem>>, %arg3: memref<1x16xf32, #tpu.memory_space<vmem>>, %arg4: memref<1x16xf32, #tpu.memory_space<vmem>>, %arg5: memref<9x16x8xbf16, #tpu.memory_space<vmem>>, %arg6: memref<200x8xbf16, #tpu.memory_space<vmem>>, %arg7: memref<222x16xf32, #tpu.memory_space<vmem>>) attributes {dimension_semantics = [#tpu.dimension_semantics<parallel>], iteration_bounds = array<i64: 1>, scalar_prefetch = 0 : i64, scratch_operands = 1 : i64, tpu.core_type = #tpu.core_type<tc>, window_params = [{pipeline_mode = #tpu.pipeline_mode<synchronous>, transform_indices = @transform_0, window_bounds = array<i64: 300, 16>}, {pipeline_mode = #tpu.pipeline_mode<synchronous>, transform_indices = @transform_1, window_bounds = array<i64: 300, 1>}, {pipeline_mode = #tpu.pipeline_mode<synchronous>, transform_indices = @transform_2, window_bounds = array<i64: 1, 16>}, {pipeline_mode = #tpu.pipeline_mode<synchronous>, transform_indices = @transform_3, window_bounds = array<i64: 1, 16>}, {pipeline_mode = #tpu.pipeline_mode<synchronous>, transform_indices = @transform_4, window_bounds = array<i64: 9, 16, 8>}, {transform_indices = @transform_5, window_bounds = array<i64: 200, 8>}]} {
    %c200_i32 = arith.constant 200 : i32
    %0 = arith.muli %arg0, %c200_i32 : i32
    %1 = tpu.assume_multiple %0, 8 : i32
    %2 = arith.index_cast %1 : i32 to index
    %c0 = arith.constant 0 : index
    %3 = vector.load %arg1[%2, %c0] : memref<300x16xbf16, #tpu.memory_space<vmem>>, vector<222x16xbf16>
    %4 = arith.extf %3 : vector<222x16xbf16> to vector<222x16xf32>
    %5 = arith.index_cast %1 : i32 to index
    %c0_0 = arith.constant 0 : index
    %6 = vector.load %arg2[%5, %c0_0] : memref<300x1xf32, #tpu.memory_space<vmem>>, vector<222x1xf32>
    %c0_1 = arith.constant 0 : index
    %c0_2 = arith.constant 0 : index
    %7 = vector.load %arg3[%c0_1, %c0_2] : memref<1x16xf32, #tpu.memory_space<vmem>>, vector<1x16xf32>
    %8 = vector.broadcast %7 : vector<1x16xf32> to vector<222x16xf32>
    %9 = arith.mulf %4, %8 : vector<222x16xf32>
    %c0_3 = arith.constant 0 : index
    %c0_4 = arith.constant 0 : index
    %10 = vector.load %arg4[%c0_3, %c0_4] : memref<1x16xf32, #tpu.memory_space<vmem>>, vector<1x16xf32>
    %11 = vector.broadcast %10 : vector<1x16xf32> to vector<222x16xf32>
    %12 = arith.addf %9, %11 : vector<222x16xf32>
    %cst = arith.constant 0.000000e+00 : f32
    %13 = vector.broadcast %cst : f32 to vector<222x16xf32>
    %14 = arith.maximumf %12, %13 : vector<222x16xf32>
    %15 = vector.broadcast %6 : vector<222x1xf32> to vector<222x16xf32>
    %16 = arith.mulf %14, %15 : vector<222x16xf32>
    %c0_5 = arith.constant 0 : index
    %c0_6 = arith.constant 0 : index
    %17 = vector.load %arg7[%c0_5, %c0_6] : memref<222x16xf32, #tpu.memory_space<vmem>>, vector<222x16xf32>
    tpu.vector_store %arg7[%c0_5, %c0_6], %16 {strides = array<i32>} : memref<222x16xf32, #tpu.memory_space<vmem>>, vector<222x16xf32>,
    %cst_7 = arith.constant 0.000000e+00 : f32
    %18 = vector.broadcast %cst_7 : f32 to vector<200x8xf32>
    %c0_8 = arith.constant 0 : index
    %c0_9 = arith.constant 0 : index
    %19 = vector.load %arg7[%c0_8, %c0_9] : memref<222x16xf32, #tpu.memory_space<vmem>>, vector<200x16xf32>
    %20 = arith.truncf %19 : vector<200x16xf32> to vector<200x16xbf16>
    %c0_10 = arith.constant 0 : index
    %c0_11 = arith.constant 0 : index
    %c0_12 = arith.constant 0 : index
    %21 = vector.load %arg5[%c0_10, %c0_11, %c0_12] : memref<9x16x8xbf16, #tpu.memory_space<vmem>>, vector<1x16x8xbf16>
    %22 = vector.shape_cast %21 : vector<1x16x8xbf16> to vector<16x8xbf16>
    %cst_13 = arith.constant dense<0.000000e+00> : vector<200x8xf32>
    %23 = tpu.matmul %20, %22, %cst_13 {dimension_numbers = #tpu.dot_dimension_numbers<[1], [0], [0], [1], [0, 0, 1, 1], [], []>} : vector<200x16xbf16>, vector<16x8xbf16>, vector<200x8xf32> -> vector<200x8xf32>
    %24 = arith.addf %18, %23 : vector<200x8xf32>
    %c1 = arith.constant 1 : index
    %c0_14 = arith.constant 0 : index
    %25 = vector.load %arg7[%c1, %c0_14] : memref<222x16xf32, #tpu.memory_space<vmem>>, vector<200x16xf32>
    %26 = arith.truncf %25 : vector<200x16xf32> to vector<200x16xbf16>
    %c1_15 = arith.constant 1 : index
    %c0_16 = arith.constant 0 : index
    %c0_17 = arith.constant 0 : index
    %27 = vector.load %arg5[%c1_15, %c0_16, %c0_17] : memref<9x16x8xbf16, #tpu.memory_space<vmem>>, vector<1x16x8xbf16>
    %28 = vector.shape_cast %27 : vector<1x16x8xbf16> to vector<16x8xbf16>
    %cst_18 = arith.constant dense<0.000000e+00> : vector<200x8xf32>
    %29 = tpu.matmul %26, %28, %cst_18 {dimension_numbers = #tpu.dot_dimension_numbers<[1], [0], [0], [1], [0, 0, 1, 1], [], []>} : vector<200x16xbf16>, vector<16x8xbf16>, vector<200x8xf32> -> vector<200x8xf32>
    %30 = arith.addf %24, %29 : vector<200x8xf32>
    %c2 = arith.constant 2 : index
    %c0_19 = arith.constant 0 : index
    %31 = vector.load %arg7[%c2, %c0_19] : memref<222x16xf32, #tpu.memory_space<vmem>>, vector<200x16xf32>
    %32 = arith.truncf %31 : vector<200x16xf32> to vector<200x16xbf16>
    %c2_20 = arith.constant 2 : index
    %c0_21 = arith.constant 0 : index
    %c0_22 = arith.constant 0 : index
    %33 = vector.load %arg5[%c2_20, %c0_21, %c0_22] : memref<9x16x8xbf16, #tpu.memory_space<vmem>>, vector<1x16x8xbf16>
    %34 = vector.shape_cast %33 : vector<1x16x8xbf16> to vector<16x8xbf16>
    %cst_23 = arith.constant dense<0.000000e+00> : vector<200x8xf32>
    %35 = tpu.matmul %32, %34, %cst_23 {dimension_numbers = #tpu.dot_dimension_numbers<[1], [0], [0], [1], [0, 0, 1, 1], [], []>} : vector<200x16xbf16>, vector<16x8xbf16>, vector<200x8xf32> -> vector<200x8xf32>
    %36 = arith.addf %30, %35 : vector<200x8xf32>
    %c10 = arith.constant 10 : index
    %c0_24 = arith.constant 0 : index
    %37 = vector.load %arg7[%c10, %c0_24] : memref<222x16xf32, #tpu.memory_space<vmem>>, vector<200x16xf32>
    %38 = arith.truncf %37 : vector<200x16xf32> to vector<200x16xbf16>
    %c3 = arith.constant 3 : index
    %c0_25 = arith.constant 0 : index
    %c0_26 = arith.constant 0 : index
    %39 = vector.load %arg5[%c3, %c0_25, %c0_26] : memref<9x16x8xbf16, #tpu.memory_space<vmem>>, vector<1x16x8xbf16>
    %40 = vector.shape_cast %39 : vector<1x16x8xbf16> to vector<16x8xbf16>
    %cst_27 = arith.constant dense<0.000000e+00> : vector<200x8xf32>
    %41 = tpu.matmul %38, %40, %cst_27 {dimension_numbers = #tpu.dot_dimension_numbers<[1], [0], [0], [1], [0, 0, 1, 1], [], []>} : vector<200x16xbf16>, vector<16x8xbf16>, vector<200x8xf32> -> vector<200x8xf32>
    %42 = arith.addf %36, %41 : vector<200x8xf32>
    %c11 = arith.constant 11 : index
    %c0_28 = arith.constant 0 : index
    %43 = vector.load %arg7[%c11, %c0_28] : memref<222x16xf32, #tpu.memory_space<vmem>>, vector<200x16xf32>
    %44 = arith.truncf %43 : vector<200x16xf32> to vector<200x16xbf16>
    %c4 = arith.constant 4 : index
    %c0_29 = arith.constant 0 : index
    %c0_30 = arith.constant 0 : index
    %45 = vector.load %arg5[%c4, %c0_29, %c0_30] : memref<9x16x8xbf16, #tpu.memory_space<vmem>>, vector<1x16x8xbf16>
    %46 = vector.shape_cast %45 : vector<1x16x8xbf16> to vector<16x8xbf16>
    %cst_31 = arith.constant dense<0.000000e+00> : vector<200x8xf32>
    %47 = tpu.matmul %44, %46, %cst_31 {dimension_numbers = #tpu.dot_dimension_numbers<[1], [0], [0], [1], [0, 0, 1, 1], [], []>} : vector<200x16xbf16>, vector<16x8xbf16>, vector<200x8xf32> -> vector<200x8xf32>
    %48 = arith.addf %42, %47 : vector<200x8xf32>
    %c12 = arith.constant 12 : index
    %c0_32 = arith.constant 0 : index
    %49 = vector.load %arg7[%c12, %c0_32] : memref<222x16xf32, #tpu.memory_space<vmem>>, vector<200x16xf32>
    %50 = arith.truncf %49 : vector<200x16xf32> to vector<200x16xbf16>
    %c5 = arith.constant 5 : index
    %c0_33 = arith.constant 0 : index
    %c0_34 = arith.constant 0 : index
    %51 = vector.load %arg5[%c5, %c0_33, %c0_34] : memref<9x16x8xbf16, #tpu.memory_space<vmem>>, vector<1x16x8xbf16>
    %52 = vector.shape_cast %51 : vector<1x16x8xbf16> to vector<16x8xbf16>
    %cst_35 = arith.constant dense<0.000000e+00> : vector<200x8xf32>
    %53 = tpu.matmul %50, %52, %cst_35 {dimension_numbers = #tpu.dot_dimension_numbers<[1], [0], [0], [1], [0, 0, 1, 1], [], []>} : vector<200x16xbf16>, vector<16x8xbf16>, vector<200x8xf32> -> vector<200x8xf32>
    %54 = arith.addf %48, %53 : vector<200x8xf32>
    %c20 = arith.constant 20 : index
    %c0_36 = arith.constant 0 : index
    %55 = vector.load %arg7[%c20, %c0_36] : memref<222x16xf32, #tpu.memory_space<vmem>>, vector<200x16xf32>
    %56 = arith.truncf %55 : vector<200x16xf32> to vector<200x16xbf16>
    %c6 = arith.constant 6 : index
    %c0_37 = arith.constant 0 : index
    %c0_38 = arith.constant 0 : index
    %57 = vector.load %arg5[%c6, %c0_37, %c0_38] : memref<9x16x8xbf16, #tpu.memory_space<vmem>>, vector<1x16x8xbf16>
    %58 = vector.shape_cast %57 : vector<1x16x8xbf16> to vector<16x8xbf16>
    %cst_39 = arith.constant dense<0.000000e+00> : vector<200x8xf32>
    %59 = tpu.matmul %56, %58, %cst_39 {dimension_numbers = #tpu.dot_dimension_numbers<[1], [0], [0], [1], [0, 0, 1, 1], [], []>} : vector<200x16xbf16>, vector<16x8xbf16>, vector<200x8xf32> -> vector<200x8xf32>
    %60 = arith.addf %54, %59 : vector<200x8xf32>
    %c21 = arith.constant 21 : index
    %c0_40 = arith.constant 0 : index
    %61 = vector.load %arg7[%c21, %c0_40] : memref<222x16xf32, #tpu.memory_space<vmem>>, vector<200x16xf32>
    %62 = arith.truncf %61 : vector<200x16xf32> to vector<200x16xbf16>
    %c7 = arith.constant 7 : index
    %c0_41 = arith.constant 0 : index
    %c0_42 = arith.constant 0 : index
    %63 = vector.load %arg5[%c7, %c0_41, %c0_42] : memref<9x16x8xbf16, #tpu.memory_space<vmem>>, vector<1x16x8xbf16>
    %64 = vector.shape_cast %63 : vector<1x16x8xbf16> to vector<16x8xbf16>
    %cst_43 = arith.constant dense<0.000000e+00> : vector<200x8xf32>
    %65 = tpu.matmul %62, %64, %cst_43 {dimension_numbers = #tpu.dot_dimension_numbers<[1], [0], [0], [1], [0, 0, 1, 1], [], []>} : vector<200x16xbf16>, vector<16x8xbf16>, vector<200x8xf32> -> vector<200x8xf32>
    %66 = arith.addf %60, %65 : vector<200x8xf32>
    %c22 = arith.constant 22 : index
    %c0_44 = arith.constant 0 : index
    %67 = vector.load %arg7[%c22, %c0_44] : memref<222x16xf32, #tpu.memory_space<vmem>>, vector<200x16xf32>
    %68 = arith.truncf %67 : vector<200x16xf32> to vector<200x16xbf16>
    %c8 = arith.constant 8 : index
    %c0_45 = arith.constant 0 : index
    %c0_46 = arith.constant 0 : index
    %69 = vector.load %arg5[%c8, %c0_45, %c0_46] : memref<9x16x8xbf16, #tpu.memory_space<vmem>>, vector<1x16x8xbf16>
    %70 = vector.shape_cast %69 : vector<1x16x8xbf16> to vector<16x8xbf16>
    %cst_47 = arith.constant dense<0.000000e+00> : vector<200x8xf32>
    %71 = tpu.matmul %68, %70, %cst_47 {dimension_numbers = #tpu.dot_dimension_numbers<[1], [0], [0], [1], [0, 0, 1, 1], [], []>} : vector<200x16xbf16>, vector<16x8xbf16>, vector<200x8xf32> -> vector<200x8xf32>
    %72 = arith.addf %66, %71 : vector<200x8xf32>
    %73 = arith.truncf %72 : vector<200x8xf32> to vector<200x8xbf16>
    %c0_48 = arith.constant 0 : index
    %c0_49 = arith.constant 0 : index
    %74 = vector.load %arg6[%c0_48, %c0_49] : memref<200x8xbf16, #tpu.memory_space<vmem>>, vector<200x8xbf16>
    tpu.vector_store %arg6[%c0_48, %c0_49], %73 {strides = array<i32>} : memref<200x8xbf16, #tpu.memory_space<vmem>>, vector<200x8xbf16>,
    return
  }
  func.func @transform_0(%arg0: i32) -> (i32, i32) {
    %c0_i32 = arith.constant 0 : i32
    %c0_i32_0 = arith.constant 0 : i32
    %c0_i32_1 = arith.constant 0 : i32
    return %c0_i32, %c0_i32_0 : i32, i32
  }
  func.func @transform_1(%arg0: i32) -> (i32, i32) {
    %c0_i32 = arith.constant 0 : i32
    %c0_i32_0 = arith.constant 0 : i32
    %c0_i32_1 = arith.constant 0 : i32
    return %c0_i32, %c0_i32_0 : i32, i32
  }
  func.func @transform_2(%arg0: i32) -> (i32, i32) {
    %c0_i32 = arith.constant 0 : i32
    %c0_i32_0 = arith.constant 0 : i32
    %c0_i32_1 = arith.constant 0 : i32
    return %c0_i32, %c0_i32_0 : i32, i32
  }
  func.func @transform_3(%arg0: i32) -> (i32, i32) {
    %c0_i32 = arith.constant 0 : i32
    %c0_i32_0 = arith.constant 0 : i32
    %c0_i32_1 = arith.constant 0 : i32
    return %c0_i32, %c0_i32_0 : i32, i32
  }
  func.func @transform_4(%arg0: i32) -> (i32, i32, i32) {
    %c0_i32 = arith.constant 0 : i32
    %c0_i32_0 = arith.constant 0 : i32
    %c0_i32_1 = arith.constant 0 : i32
    %c0_i32_2 = arith.constant 0 : i32
    return %c0_i32, %c0_i32_0, %c0_i32_1 : i32, i32, i32
  }
  func.func @transform_5(%arg0: i32) -> (i32, i32) {
    %c0_i32 = arith.constant 0 : i32
    %c0_i32_0 = arith.constant 0 : i32
    return %arg0, %c0_i32 : i32, i32
  }
}

module attributes {stable_mosaic.version = 11 : i64} {
  func.func @kernel(%arg0: i32, %arg1: memref<128x16xbf16, #tpu.memory_space<vmem>>, %arg2: memref<128x8xbf16, #tpu.memory_space<vmem>>, %arg3: memref<1x16xf32, #tpu.memory_space<vmem>>, %arg4: memref<1x8xf32, #tpu.memory_space<vmem>>, %arg5: memref<1x16xf32, #tpu.memory_space<vmem>>, %arg6: memref<1x8xf32, #tpu.memory_space<vmem>>, %arg7: memref<16x16xbf16, #tpu.memory_space<vmem>>, %arg8: memref<8x16xbf16, #tpu.memory_space<vmem>>, %arg9: memref<128x16xbf16, #tpu.memory_space<vmem>>) attributes {dimension_semantics = [#tpu.dimension_semantics<parallel>], iteration_bounds = array<i64: 1>, scalar_prefetch = 0 : i64, scratch_operands = 0 : i64, tpu.core_type = #tpu.core_type<tc>, window_params = [{transform_indices = @transform_0, window_bounds = array<i64: 128, 16>}, {transform_indices = @transform_1, window_bounds = array<i64: 128, 8>}, {pipeline_mode = #tpu.pipeline_mode<synchronous>, transform_indices = @transform_2, window_bounds = array<i64: 1, 16>}, {pipeline_mode = #tpu.pipeline_mode<synchronous>, transform_indices = @transform_3, window_bounds = array<i64: 1, 8>}, {pipeline_mode = #tpu.pipeline_mode<synchronous>, transform_indices = @transform_4, window_bounds = array<i64: 1, 16>}, {pipeline_mode = #tpu.pipeline_mode<synchronous>, transform_indices = @transform_5, window_bounds = array<i64: 1, 8>}, {pipeline_mode = #tpu.pipeline_mode<synchronous>, transform_indices = @transform_6, window_bounds = array<i64: 16, 16>}, {pipeline_mode = #tpu.pipeline_mode<synchronous>, transform_indices = @transform_7, window_bounds = array<i64: 8, 16>}, {transform_indices = @transform_8, window_bounds = array<i64: 128, 16>}]} {
    %cst = arith.constant 0.000000e+00 : f32
    %0 = vector.broadcast %cst : f32 to vector<128x16xf32>
    %c0 = arith.constant 0 : index
    %c0_0 = arith.constant 0 : index
    %1 = vector.load %arg1[%c0, %c0_0] : memref<128x16xbf16, #tpu.memory_space<vmem>>, vector<128x16xbf16>
    %2 = arith.extf %1 : vector<128x16xbf16> to vector<128x16xf32>
    %c0_1 = arith.constant 0 : index
    %c0_2 = arith.constant 0 : index
    %3 = vector.load %arg3[%c0_1, %c0_2] : memref<1x16xf32, #tpu.memory_space<vmem>>, vector<1x16xf32>
    %4 = vector.broadcast %3 : vector<1x16xf32> to vector<128x16xf32>
    %5 = arith.mulf %2, %4 : vector<128x16xf32>
    %c0_3 = arith.constant 0 : index
    %c0_4 = arith.constant 0 : index
    %6 = vector.load %arg5[%c0_3, %c0_4] : memref<1x16xf32, #tpu.memory_space<vmem>>, vector<1x16xf32>
    %7 = vector.broadcast %6 : vector<1x16xf32> to vector<128x16xf32>
    %8 = arith.addf %5, %7 : vector<128x16xf32>
    %cst_5 = arith.constant 0.000000e+00 : f32
    %9 = vector.broadcast %cst_5 : f32 to vector<128x16xf32>
    %10 = arith.maximumf %8, %9 : vector<128x16xf32>
    %11 = arith.truncf %10 : vector<128x16xf32> to vector<128x16xbf16>
    %c0_6 = arith.constant 0 : index
    %c0_7 = arith.constant 0 : index
    %12 = vector.load %arg7[%c0_6, %c0_7] : memref<16x16xbf16, #tpu.memory_space<vmem>>, vector<16x16xbf16>
    %cst_8 = arith.constant dense<0.000000e+00> : vector<128x16xf32>
    %13 = tpu.matmul %11, %12, %cst_8 {dimension_numbers = #tpu.dot_dimension_numbers<[1], [0], [0], [1], [0, 0, 1, 1], [], []>} : vector<128x16xbf16>, vector<16x16xbf16>, vector<128x16xf32> -> vector<128x16xf32>
    %14 = arith.addf %0, %13 : vector<128x16xf32>
    %c0_9 = arith.constant 0 : index
    %c0_10 = arith.constant 0 : index
    %15 = vector.load %arg2[%c0_9, %c0_10] : memref<128x8xbf16, #tpu.memory_space<vmem>>, vector<128x8xbf16>
    %16 = arith.extf %15 : vector<128x8xbf16> to vector<128x8xf32>
    %c0_11 = arith.constant 0 : index
    %c0_12 = arith.constant 0 : index
    %17 = vector.load %arg4[%c0_11, %c0_12] : memref<1x8xf32, #tpu.memory_space<vmem>>, vector<1x8xf32>
    %18 = vector.broadcast %17 : vector<1x8xf32> to vector<128x8xf32>
    %19 = arith.mulf %16, %18 : vector<128x8xf32>
    %c0_13 = arith.constant 0 : index
    %c0_14 = arith.constant 0 : index
    %20 = vector.load %arg6[%c0_13, %c0_14] : memref<1x8xf32, #tpu.memory_space<vmem>>, vector<1x8xf32>
    %21 = vector.broadcast %20 : vector<1x8xf32> to vector<128x8xf32>
    %22 = arith.addf %19, %21 : vector<128x8xf32>
    %cst_15 = arith.constant 0.000000e+00 : f32
    %23 = vector.broadcast %cst_15 : f32 to vector<128x8xf32>
    %24 = arith.maximumf %22, %23 : vector<128x8xf32>
    %25 = arith.truncf %24 : vector<128x8xf32> to vector<128x8xbf16>
    %c0_16 = arith.constant 0 : index
    %c0_17 = arith.constant 0 : index
    %26 = vector.load %arg8[%c0_16, %c0_17] : memref<8x16xbf16, #tpu.memory_space<vmem>>, vector<8x16xbf16>
    %cst_18 = arith.constant dense<0.000000e+00> : vector<128x16xf32>
    %27 = tpu.matmul %25, %26, %cst_18 {dimension_numbers = #tpu.dot_dimension_numbers<[1], [0], [0], [1], [0, 0, 1, 1], [], []>} : vector<128x8xbf16>, vector<8x16xbf16>, vector<128x16xf32> -> vector<128x16xf32>
    %28 = arith.addf %14, %27 : vector<128x16xf32>
    %29 = arith.truncf %28 : vector<128x16xf32> to vector<128x16xbf16>
    %c0_19 = arith.constant 0 : index
    %c0_20 = arith.constant 0 : index
    %30 = vector.load %arg9[%c0_19, %c0_20] : memref<128x16xbf16, #tpu.memory_space<vmem>>, vector<128x16xbf16>
    tpu.vector_store %arg9[%c0_19, %c0_20], %29 {strides = array<i32>} : memref<128x16xbf16, #tpu.memory_space<vmem>>, vector<128x16xbf16>,
    return
  }
  func.func @transform_0(%arg0: i32) -> (i32, i32) {
    %c0_i32 = arith.constant 0 : i32
    %c0_i32_0 = arith.constant 0 : i32
    return %arg0, %c0_i32 : i32, i32
  }
  func.func @transform_1(%arg0: i32) -> (i32, i32) {
    %c0_i32 = arith.constant 0 : i32
    %c0_i32_0 = arith.constant 0 : i32
    return %arg0, %c0_i32 : i32, i32
  }
  func.func @transform_2(%arg0: i32) -> (i32, i32) {
    %c0_i32 = arith.constant 0 : i32
    %c0_i32_0 = arith.constant 0 : i32
    %c0_i32_1 = arith.constant 0 : i32
    return %c0_i32, %c0_i32_0 : i32, i32
  }
  func.func @transform_3(%arg0: i32) -> (i32, i32) {
    %c0_i32 = arith.constant 0 : i32
    %c0_i32_0 = arith.constant 0 : i32
    %c0_i32_1 = arith.constant 0 : i32
    return %c0_i32, %c0_i32_0 : i32, i32
  }
  func.func @transform_4(%arg0: i32) -> (i32, i32) {
    %c0_i32 = arith.constant 0 : i32
    %c0_i32_0 = arith.constant 0 : i32
    %c0_i32_1 = arith.constant 0 : i32
    return %c0_i32, %c0_i32_0 : i32, i32
  }
  func.func @transform_5(%arg0: i32) -> (i32, i32) {
    %c0_i32 = arith.constant 0 : i32
    %c0_i32_0 = arith.constant 0 : i32
    %c0_i32_1 = arith.constant 0 : i32
    return %c0_i32, %c0_i32_0 : i32, i32
  }
  func.func @transform_6(%arg0: i32) -> (i32, i32) {
    %c0_i32 = arith.constant 0 : i32
    %c0_i32_0 = arith.constant 0 : i32
    %c0_i32_1 = arith.constant 0 : i32
    return %c0_i32, %c0_i32_0 : i32, i32
  }
  func.func @transform_7(%arg0: i32) -> (i32, i32) {
    %c0_i32 = arith.constant 0 : i32
    %c0_i32_0 = arith.constant 0 : i32
    %c0_i32_1 = arith.constant 0 : i32
    return %c0_i32, %c0_i32_0 : i32, i32
  }
  func.func @transform_8(%arg0: i32) -> (i32, i32) {
    %c0_i32 = arith.constant 0 : i32
    %c0_i32_0 = arith.constant 0 : i32
    return %arg0, %c0_i32 : i32, i32
  }
}

module attributes {stable_mosaic.version = 11 : i64} {
  func.func @kernel(%arg0: i32, %arg1: memref<128x16xbf16, #tpu.memory_space<vmem>>, %arg2: memref<128x8xbf16, #tpu.memory_space<vmem>>, %arg3: memref<128x8xbf16, #tpu.memory_space<vmem>>, %arg4: memref<1x16xf32, #tpu.memory_space<vmem>>, %arg5: memref<1x8xf32, #tpu.memory_space<vmem>>, %arg6: memref<1x8xf32, #tpu.memory_space<vmem>>, %arg7: memref<1x16xf32, #tpu.memory_space<vmem>>, %arg8: memref<1x8xf32, #tpu.memory_space<vmem>>, %arg9: memref<1x8xf32, #tpu.memory_space<vmem>>, %arg10: memref<16x16xbf16, #tpu.memory_space<vmem>>, %arg11: memref<8x16xbf16, #tpu.memory_space<vmem>>, %arg12: memref<8x16xbf16, #tpu.memory_space<vmem>>, %arg13: memref<128x16xbf16, #tpu.memory_space<vmem>>) attributes {dimension_semantics = [#tpu.dimension_semantics<parallel>], iteration_bounds = array<i64: 1>, scalar_prefetch = 0 : i64, scratch_operands = 0 : i64, tpu.core_type = #tpu.core_type<tc>, window_params = [{transform_indices = @transform_0, window_bounds = array<i64: 128, 16>}, {transform_indices = @transform_1, window_bounds = array<i64: 128, 8>}, {transform_indices = @transform_2, window_bounds = array<i64: 128, 8>}, {pipeline_mode = #tpu.pipeline_mode<synchronous>, transform_indices = @transform_3, window_bounds = array<i64: 1, 16>}, {pipeline_mode = #tpu.pipeline_mode<synchronous>, transform_indices = @transform_4, window_bounds = array<i64: 1, 8>}, {pipeline_mode = #tpu.pipeline_mode<synchronous>, transform_indices = @transform_5, window_bounds = array<i64: 1, 8>}, {pipeline_mode = #tpu.pipeline_mode<synchronous>, transform_indices = @transform_6, window_bounds = array<i64: 1, 16>}, {pipeline_mode = #tpu.pipeline_mode<synchronous>, transform_indices = @transform_7, window_bounds = array<i64: 1, 8>}, {pipeline_mode = #tpu.pipeline_mode<synchronous>, transform_indices = @transform_8, window_bounds = array<i64: 1, 8>}, {pipeline_mode = #tpu.pipeline_mode<synchronous>, transform_indices = @transform_9, window_bounds = array<i64: 16, 16>}, {pipeline_mode = #tpu.pipeline_mode<synchronous>, transform_indices = @transform_10, window_bounds = array<i64: 8, 16>}, {pipeline_mode = #tpu.pipeline_mode<synchronous>, transform_indices = @transform_11, window_bounds = array<i64: 8, 16>}, {transform_indices = @transform_12, window_bounds = array<i64: 128, 16>}]} {
    %cst = arith.constant 0.000000e+00 : f32
    %0 = vector.broadcast %cst : f32 to vector<128x16xf32>
    %c0 = arith.constant 0 : index
    %c0_0 = arith.constant 0 : index
    %1 = vector.load %arg1[%c0, %c0_0] : memref<128x16xbf16, #tpu.memory_space<vmem>>, vector<128x16xbf16>
    %2 = arith.extf %1 : vector<128x16xbf16> to vector<128x16xf32>
    %c0_1 = arith.constant 0 : index
    %c0_2 = arith.constant 0 : index
    %3 = vector.load %arg4[%c0_1, %c0_2] : memref<1x16xf32, #tpu.memory_space<vmem>>, vector<1x16xf32>
    %4 = vector.broadcast %3 : vector<1x16xf32> to vector<128x16xf32>
    %5 = arith.mulf %2, %4 : vector<128x16xf32>
    %c0_3 = arith.constant 0 : index
    %c0_4 = arith.constant 0 : index
    %6 = vector.load %arg7[%c0_3, %c0_4] : memref<1x16xf32, #tpu.memory_space<vmem>>, vector<1x16xf32>
    %7 = vector.broadcast %6 : vector<1x16xf32> to vector<128x16xf32>
    %8 = arith.addf %5, %7 : vector<128x16xf32>
    %cst_5 = arith.constant 0.000000e+00 : f32
    %9 = vector.broadcast %cst_5 : f32 to vector<128x16xf32>
    %10 = arith.maximumf %8, %9 : vector<128x16xf32>
    %11 = arith.truncf %10 : vector<128x16xf32> to vector<128x16xbf16>
    %c0_6 = arith.constant 0 : index
    %c0_7 = arith.constant 0 : index
    %12 = vector.load %arg10[%c0_6, %c0_7] : memref<16x16xbf16, #tpu.memory_space<vmem>>, vector<16x16xbf16>
    %cst_8 = arith.constant dense<0.000000e+00> : vector<128x16xf32>
    %13 = tpu.matmul %11, %12, %cst_8 {dimension_numbers = #tpu.dot_dimension_numbers<[1], [0], [0], [1], [0, 0, 1, 1], [], []>} : vector<128x16xbf16>, vector<16x16xbf16>, vector<128x16xf32> -> vector<128x16xf32>
    %14 = arith.addf %0, %13 : vector<128x16xf32>
    %c0_9 = arith.constant 0 : index
    %c0_10 = arith.constant 0 : index
    %15 = vector.load %arg2[%c0_9, %c0_10] : memref<128x8xbf16, #tpu.memory_space<vmem>>, vector<128x8xbf16>
    %16 = arith.extf %15 : vector<128x8xbf16> to vector<128x8xf32>
    %c0_11 = arith.constant 0 : index
    %c0_12 = arith.constant 0 : index
    %17 = vector.load %arg5[%c0_11, %c0_12] : memref<1x8xf32, #tpu.memory_space<vmem>>, vector<1x8xf32>
    %18 = vector.broadcast %17 : vector<1x8xf32> to vector<128x8xf32>
    %19 = arith.mulf %16, %18 : vector<128x8xf32>
    %c0_13 = arith.constant 0 : index
    %c0_14 = arith.constant 0 : index
    %20 = vector.load %arg8[%c0_13, %c0_14] : memref<1x8xf32, #tpu.memory_space<vmem>>, vector<1x8xf32>
    %21 = vector.broadcast %20 : vector<1x8xf32> to vector<128x8xf32>
    %22 = arith.addf %19, %21 : vector<128x8xf32>
    %cst_15 = arith.constant 0.000000e+00 : f32
    %23 = vector.broadcast %cst_15 : f32 to vector<128x8xf32>
    %24 = arith.maximumf %22, %23 : vector<128x8xf32>
    %25 = arith.truncf %24 : vector<128x8xf32> to vector<128x8xbf16>
    %c0_16 = arith.constant 0 : index
    %c0_17 = arith.constant 0 : index
    %26 = vector.load %arg11[%c0_16, %c0_17] : memref<8x16xbf16, #tpu.memory_space<vmem>>, vector<8x16xbf16>
    %cst_18 = arith.constant dense<0.000000e+00> : vector<128x16xf32>
    %27 = tpu.matmul %25, %26, %cst_18 {dimension_numbers = #tpu.dot_dimension_numbers<[1], [0], [0], [1], [0, 0, 1, 1], [], []>} : vector<128x8xbf16>, vector<8x16xbf16>, vector<128x16xf32> -> vector<128x16xf32>
    %28 = arith.addf %14, %27 : vector<128x16xf32>
    %c0_19 = arith.constant 0 : index
    %c0_20 = arith.constant 0 : index
    %29 = vector.load %arg3[%c0_19, %c0_20] : memref<128x8xbf16, #tpu.memory_space<vmem>>, vector<128x8xbf16>
    %30 = arith.extf %29 : vector<128x8xbf16> to vector<128x8xf32>
    %c0_21 = arith.constant 0 : index
    %c0_22 = arith.constant 0 : index
    %31 = vector.load %arg6[%c0_21, %c0_22] : memref<1x8xf32, #tpu.memory_space<vmem>>, vector<1x8xf32>
    %32 = vector.broadcast %31 : vector<1x8xf32> to vector<128x8xf32>
    %33 = arith.mulf %30, %32 : vector<128x8xf32>
    %c0_23 = arith.constant 0 : index
    %c0_24 = arith.constant 0 : index
    %34 = vector.load %arg9[%c0_23, %c0_24] : memref<1x8xf32, #tpu.memory_space<vmem>>, vector<1x8xf32>
    %35 = vector.broadcast %34 : vector<1x8xf32> to vector<128x8xf32>
    %36 = arith.addf %33, %35 : vector<128x8xf32>
    %cst_25 = arith.constant 0.000000e+00 : f32
    %37 = vector.broadcast %cst_25 : f32 to vector<128x8xf32>
    %38 = arith.maximumf %36, %37 : vector<128x8xf32>
    %39 = arith.truncf %38 : vector<128x8xf32> to vector<128x8xbf16>
    %c0_26 = arith.constant 0 : index
    %c0_27 = arith.constant 0 : index
    %40 = vector.load %arg12[%c0_26, %c0_27] : memref<8x16xbf16, #tpu.memory_space<vmem>>, vector<8x16xbf16>
    %cst_28 = arith.constant dense<0.000000e+00> : vector<128x16xf32>
    %41 = tpu.matmul %39, %40, %cst_28 {dimension_numbers = #tpu.dot_dimension_numbers<[1], [0], [0], [1], [0, 0, 1, 1], [], []>} : vector<128x8xbf16>, vector<8x16xbf16>, vector<128x16xf32> -> vector<128x16xf32>
    %42 = arith.addf %28, %41 : vector<128x16xf32>
    %43 = arith.truncf %42 : vector<128x16xf32> to vector<128x16xbf16>
    %c0_29 = arith.constant 0 : index
    %c0_30 = arith.constant 0 : index
    %44 = vector.load %arg13[%c0_29, %c0_30] : memref<128x16xbf16, #tpu.memory_space<vmem>>, vector<128x16xbf16>
    tpu.vector_store %arg13[%c0_29, %c0_30], %43 {strides = array<i32>} : memref<128x16xbf16, #tpu.memory_space<vmem>>, vector<128x16xbf16>,
    return
  }
  func.func @transform_0(%arg0: i32) -> (i32, i32) {
    %c0_i32 = arith.constant 0 : i32
    %c0_i32_0 = arith.constant 0 : i32
    return %arg0, %c0_i32 : i32, i32
  }
  func.func @transform_1(%arg0: i32) -> (i32, i32) {
    %c0_i32 = arith.constant 0 : i32
    %c0_i32_0 = arith.constant 0 : i32
    return %arg0, %c0_i32 : i32, i32
  }
  func.func @transform_2(%arg0: i32) -> (i32, i32) {
    %c0_i32 = arith.constant 0 : i32
    %c0_i32_0 = arith.constant 0 : i32
    return %arg0, %c0_i32 : i32, i32
  }
  func.func @transform_3(%arg0: i32) -> (i32, i32) {
    %c0_i32 = arith.constant 0 : i32
    %c0_i32_0 = arith.constant 0 : i32
    %c0_i32_1 = arith.constant 0 : i32
    return %c0_i32, %c0_i32_0 : i32, i32
  }
  func.func @transform_4(%arg0: i32) -> (i32, i32) {
    %c0_i32 = arith.constant 0 : i32
    %c0_i32_0 = arith.constant 0 : i32
    %c0_i32_1 = arith.constant 0 : i32
    return %c0_i32, %c0_i32_0 : i32, i32
  }
  func.func @transform_5(%arg0: i32) -> (i32, i32) {
    %c0_i32 = arith.constant 0 : i32
    %c0_i32_0 = arith.constant 0 : i32
    %c0_i32_1 = arith.constant 0 : i32
    return %c0_i32, %c0_i32_0 : i32, i32
  }
  func.func @transform_6(%arg0: i32) -> (i32, i32) {
    %c0_i32 = arith.constant 0 : i32
    %c0_i32_0 = arith.constant 0 : i32
    %c0_i32_1 = arith.constant 0 : i32
    return %c0_i32, %c0_i32_0 : i32, i32
  }
  func.func @transform_7(%arg0: i32) -> (i32, i32) {
    %c0_i32 = arith.constant 0 : i32
    %c0_i32_0 = arith.constant 0 : i32
    %c0_i32_1 = arith.constant 0 : i32
    return %c0_i32, %c0_i32_0 : i32, i32
  }
  func.func @transform_8(%arg0: i32) -> (i32, i32) {
    %c0_i32 = arith.constant 0 : i32
    %c0_i32_0 = arith.constant 0 : i32
    %c0_i32_1 = arith.constant 0 : i32
    return %c0_i32, %c0_i32_0 : i32, i32
  }
  func.func @transform_9(%arg0: i32) -> (i32, i32) {
    %c0_i32 = arith.constant 0 : i32
    %c0_i32_0 = arith.constant 0 : i32
    %c0_i32_1 = arith.constant 0 : i32
    return %c0_i32, %c0_i32_0 : i32, i32
  }
  func.func @transform_10(%arg0: i32) -> (i32, i32) {
    %c0_i32 = arith.constant 0 : i32
    %c0_i32_0 = arith.constant 0 : i32
    %c0_i32_1 = arith.constant 0 : i32
    return %c0_i32, %c0_i32_0 : i32, i32
  }
  func.func @transform_11(%arg0: i32) -> (i32, i32) {
    %c0_i32 = arith.constant 0 : i32
    %c0_i32_0 = arith.constant 0 : i32
    %c0_i32_1 = arith.constant 0 : i32
    return %c0_i32, %c0_i32_0 : i32, i32
  }
  func.func @transform_12(%arg0: i32) -> (i32, i32) {
    %c0_i32 = arith.constant 0 : i32
    %c0_i32_0 = arith.constant 0 : i32
    return %arg0, %c0_i32 : i32, i32
  }
}

module attributes {stable_mosaic.version = 11 : i64} {
  func.func @kernel(%arg0: i32, %arg1: memref<32x16xbf16, #tpu.memory_space<vmem>>, %arg2: memref<1x16xf32, #tpu.memory_space<vmem>>, %arg3: memref<1x16xf32, #tpu.memory_space<vmem>>, %arg4: memref<16x16xbf16, #tpu.memory_space<vmem>>, %arg5: memref<32x16xbf16, #tpu.memory_space<vmem>>) attributes {dimension_semantics = [#tpu.dimension_semantics<parallel>], iteration_bounds = array<i64: 1>, scalar_prefetch = 0 : i64, scratch_operands = 0 : i64, tpu.core_type = #tpu.core_type<tc>, window_params = [{transform_indices = @transform_0, window_bounds = array<i64: 32, 16>}, {pipeline_mode = #tpu.pipeline_mode<synchronous>, transform_indices = @transform_1, window_bounds = array<i64: 1, 16>}, {pipeline_mode = #tpu.pipeline_mode<synchronous>, transform_indices = @transform_2, window_bounds = array<i64: 1, 16>}, {pipeline_mode = #tpu.pipeline_mode<synchronous>, transform_indices = @transform_3, window_bounds = array<i64: 16, 16>}, {transform_indices = @transform_4, window_bounds = array<i64: 32, 16>}]} {
    %cst = arith.constant 0.000000e+00 : f32
    %0 = vector.broadcast %cst : f32 to vector<32x16xf32>
    %c0 = arith.constant 0 : index
    %c0_0 = arith.constant 0 : index
    %1 = vector.load %arg1[%c0, %c0_0] : memref<32x16xbf16, #tpu.memory_space<vmem>>, vector<32x16xbf16>
    %2 = arith.extf %1 : vector<32x16xbf16> to vector<32x16xf32>
    %c0_1 = arith.constant 0 : index
    %c0_2 = arith.constant 0 : index
    %3 = vector.load %arg2[%c0_1, %c0_2] : memref<1x16xf32, #tpu.memory_space<vmem>>, vector<1x16xf32>
    %4 = vector.broadcast %3 : vector<1x16xf32> to vector<32x16xf32>
    %5 = arith.mulf %2, %4 : vector<32x16xf32>
    %c0_3 = arith.constant 0 : index
    %c0_4 = arith.constant 0 : index
    %6 = vector.load %arg3[%c0_3, %c0_4] : memref<1x16xf32, #tpu.memory_space<vmem>>, vector<1x16xf32>
    %7 = vector.broadcast %6 : vector<1x16xf32> to vector<32x16xf32>
    %8 = arith.addf %5, %7 : vector<32x16xf32>
    %cst_5 = arith.constant 0.000000e+00 : f32
    %9 = vector.broadcast %cst_5 : f32 to vector<32x16xf32>
    %10 = arith.maximumf %8, %9 : vector<32x16xf32>
    %11 = arith.truncf %10 : vector<32x16xf32> to vector<32x16xbf16>
    %c0_6 = arith.constant 0 : index
    %c0_7 = arith.constant 0 : index
    %12 = vector.load %arg4[%c0_6, %c0_7] : memref<16x16xbf16, #tpu.memory_space<vmem>>, vector<16x16xbf16>
    %cst_8 = arith.constant dense<0.000000e+00> : vector<32x16xf32>
    %13 = tpu.matmul %11, %12, %cst_8 {dimension_numbers = #tpu.dot_dimension_numbers<[1], [0], [0], [1], [0, 0, 1, 1], [], []>} : vector<32x16xbf16>, vector<16x16xbf16>, vector<32x16xf32> -> vector<32x16xf32>
    %14 = arith.addf %0, %13 : vector<32x16xf32>
    %15 = arith.truncf %14 : vector<32x16xf32> to vector<32x16xbf16>
    %c0_9 = arith.constant 0 : index
    %c0_10 = arith.constant 0 : index
    %16 = vector.load %arg5[%c0_9, %c0_10] : memref<32x16xbf16, #tpu.memory_space<vmem>>, vector<32x16xbf16>
    tpu.vector_store %arg5[%c0_9, %c0_10], %15 {strides = array<i32>} : memref<32x16xbf16, #tpu.memory_space<vmem>>, vector<32x16xbf16>,
    return
  }
  func.func @transform_0(%arg0: i32) -> (i32, i32) {
    %c0_i32 = arith.constant 0 : i32
    %c0_i32_0 = arith.constant 0 : i32
    return %arg0, %c0_i32 : i32, i32
  }
  func.func @transform_1(%arg0: i32) -> (i32, i32) {
    %c0_i32 = arith.constant 0 : i32
    %c0_i32_0 = arith.constant 0 : i32
    %c0_i32_1 = arith.constant 0 : i32
    return %c0_i32, %c0_i32_0 : i32, i32
  }
  func.func @transform_2(%arg0: i32) -> (i32, i32) {
    %c0_i32 = arith.constant 0 : i32
    %c0_i32_0 = arith.constant 0 : i32
    %c0_i32_1 = arith.constant 0 : i32
    return %c0_i32, %c0_i32_0 : i32, i32
  }
  func.func @transform_3(%arg0: i32) -> (i32, i32) {
    %c0_i32 = arith.constant 0 : i32
    %c0_i32_0 = arith.constant 0 : i32
    %c0_i32_1 = arith.constant 0 : i32
    return %c0_i32, %c0_i32_0 : i32, i32
  }
  func.func @transform_4(%arg0: i32) -> (i32, i32) {
    %c0_i32 = arith.constant 0 : i32
    %c0_i32_0 = arith.constant 0 : i32
    return %arg0, %c0_i32 : i32, i32
  }
}

module attributes {stable_mosaic.version = 11 : i64} {
  func.func @_avgpool4_kernel(%arg0: i32, %arg1: memref<32x16xbf16, #tpu.memory_space<vmem>>, %arg2: memref<32x16xbf16, #tpu.memory_space<vmem>>, %arg3: memref<32x16xbf16, #tpu.memory_space<vmem>>, %arg4: memref<32x16xbf16, #tpu.memory_space<vmem>>, %arg5: memref<32x16xbf16, #tpu.memory_space<vmem>>) attributes {dimension_semantics = [#tpu.dimension_semantics<parallel>], iteration_bounds = array<i64: 1>, scalar_prefetch = 0 : i64, scratch_operands = 0 : i64, tpu.core_type = #tpu.core_type<tc>, window_params = [{transform_indices = @transform_0, window_bounds = array<i64: 32, 16>}, {transform_indices = @transform_1, window_bounds = array<i64: 32, 16>}, {transform_indices = @transform_2, window_bounds = array<i64: 32, 16>}, {transform_indices = @transform_3, window_bounds = array<i64: 32, 16>}, {transform_indices = @transform_4, window_bounds = array<i64: 32, 16>}]} {
    %c0 = arith.constant 0 : index
    %c0_0 = arith.constant 0 : index
    %0 = vector.load %arg1[%c0, %c0_0] : memref<32x16xbf16, #tpu.memory_space<vmem>>, vector<32x16xbf16>
    %1 = arith.extf %0 : vector<32x16xbf16> to vector<32x16xf32>
    %c0_1 = arith.constant 0 : index
    %c0_2 = arith.constant 0 : index
    %2 = vector.load %arg2[%c0_1, %c0_2] : memref<32x16xbf16, #tpu.memory_space<vmem>>, vector<32x16xbf16>
    %3 = arith.extf %2 : vector<32x16xbf16> to vector<32x16xf32>
    %4 = arith.addf %1, %3 : vector<32x16xf32>
    %c0_3 = arith.constant 0 : index
    %c0_4 = arith.constant 0 : index
    %5 = vector.load %arg3[%c0_3, %c0_4] : memref<32x16xbf16, #tpu.memory_space<vmem>>, vector<32x16xbf16>
    %6 = arith.extf %5 : vector<32x16xbf16> to vector<32x16xf32>
    %7 = arith.addf %4, %6 : vector<32x16xf32>
    %c0_5 = arith.constant 0 : index
    %c0_6 = arith.constant 0 : index
    %8 = vector.load %arg4[%c0_5, %c0_6] : memref<32x16xbf16, #tpu.memory_space<vmem>>, vector<32x16xbf16>
    %9 = arith.extf %8 : vector<32x16xbf16> to vector<32x16xf32>
    %10 = arith.addf %7, %9 : vector<32x16xf32>
    %cst = arith.constant 2.500000e-01 : f32
    %11 = vector.broadcast %cst : f32 to vector<32x16xf32>
    %12 = arith.mulf %10, %11 : vector<32x16xf32>
    %13 = arith.truncf %12 : vector<32x16xf32> to vector<32x16xbf16>
    %c0_7 = arith.constant 0 : index
    %c0_8 = arith.constant 0 : index
    %14 = vector.load %arg5[%c0_7, %c0_8] : memref<32x16xbf16, #tpu.memory_space<vmem>>, vector<32x16xbf16>
    tpu.vector_store %arg5[%c0_7, %c0_8], %13 {strides = array<i32>} : memref<32x16xbf16, #tpu.memory_space<vmem>>, vector<32x16xbf16>,
    return
  }
  func.func @transform_0(%arg0: i32) -> (i32, i32) {
    %c0_i32 = arith.constant 0 : i32
    %c0_i32_0 = arith.constant 0 : i32
    return %arg0, %c0_i32 : i32, i32
  }
  func.func @transform_1(%arg0: i32) -> (i32, i32) {
    %c0_i32 = arith.constant 0 : i32
    %c0_i32_0 = arith.constant 0 : i32
    return %arg0, %c0_i32 : i32, i32
  }
  func.func @transform_2(%arg0: i32) -> (i32, i32) {
    %c0_i32 = arith.constant 0 : i32
    %c0_i32_0 = arith.constant 0 : i32
    return %arg0, %c0_i32 : i32, i32
  }
  func.func @transform_3(%arg0: i32) -> (i32, i32) {
    %c0_i32 = arith.constant 0 : i32
    %c0_i32_0 = arith.constant 0 : i32
    return %arg0, %c0_i32 : i32, i32
  }
  func.func @transform_4(%arg0: i32) -> (i32, i32) {
    %c0_i32 = arith.constant 0 : i32
    %c0_i32_0 = arith.constant 0 : i32
    return %arg0, %c0_i32 : i32, i32
  }
}

module attributes {stable_mosaic.version = 11 : i64} {
  func.func @_bn_relu_conv_tap_kernel(%arg0: i32, %arg1: memref<108x16xbf16, #tpu.memory_space<vmem>>, %arg2: memref<108x1xf32, #tpu.memory_space<vmem>>, %arg3: memref<1x16xf32, #tpu.memory_space<vmem>>, %arg4: memref<1x16xf32, #tpu.memory_space<vmem>>, %arg5: memref<9x16x8xbf16, #tpu.memory_space<vmem>>, %arg6: memref<72x8xbf16, #tpu.memory_space<vmem>>, %arg7: memref<86x16xf32, #tpu.memory_space<vmem>>) attributes {dimension_semantics = [#tpu.dimension_semantics<parallel>], iteration_bounds = array<i64: 1>, scalar_prefetch = 0 : i64, scratch_operands = 1 : i64, tpu.core_type = #tpu.core_type<tc>, window_params = [{pipeline_mode = #tpu.pipeline_mode<synchronous>, transform_indices = @transform_0, window_bounds = array<i64: 108, 16>}, {pipeline_mode = #tpu.pipeline_mode<synchronous>, transform_indices = @transform_1, window_bounds = array<i64: 108, 1>}, {pipeline_mode = #tpu.pipeline_mode<synchronous>, transform_indices = @transform_2, window_bounds = array<i64: 1, 16>}, {pipeline_mode = #tpu.pipeline_mode<synchronous>, transform_indices = @transform_3, window_bounds = array<i64: 1, 16>}, {pipeline_mode = #tpu.pipeline_mode<synchronous>, transform_indices = @transform_4, window_bounds = array<i64: 9, 16, 8>}, {transform_indices = @transform_5, window_bounds = array<i64: 72, 8>}]} {
    %c72_i32 = arith.constant 72 : i32
    %0 = arith.muli %arg0, %c72_i32 : i32
    %1 = tpu.assume_multiple %0, 8 : i32
    %2 = arith.index_cast %1 : i32 to index
    %c0 = arith.constant 0 : index
    %3 = vector.load %arg1[%2, %c0] : memref<108x16xbf16, #tpu.memory_space<vmem>>, vector<86x16xbf16>
    %4 = arith.extf %3 : vector<86x16xbf16> to vector<86x16xf32>
    %5 = arith.index_cast %1 : i32 to index
    %c0_0 = arith.constant 0 : index
    %6 = vector.load %arg2[%5, %c0_0] : memref<108x1xf32, #tpu.memory_space<vmem>>, vector<86x1xf32>
    %c0_1 = arith.constant 0 : index
    %c0_2 = arith.constant 0 : index
    %7 = vector.load %arg3[%c0_1, %c0_2] : memref<1x16xf32, #tpu.memory_space<vmem>>, vector<1x16xf32>
    %8 = vector.broadcast %7 : vector<1x16xf32> to vector<86x16xf32>
    %9 = arith.mulf %4, %8 : vector<86x16xf32>
    %c0_3 = arith.constant 0 : index
    %c0_4 = arith.constant 0 : index
    %10 = vector.load %arg4[%c0_3, %c0_4] : memref<1x16xf32, #tpu.memory_space<vmem>>, vector<1x16xf32>
    %11 = vector.broadcast %10 : vector<1x16xf32> to vector<86x16xf32>
    %12 = arith.addf %9, %11 : vector<86x16xf32>
    %cst = arith.constant 0.000000e+00 : f32
    %13 = vector.broadcast %cst : f32 to vector<86x16xf32>
    %14 = arith.maximumf %12, %13 : vector<86x16xf32>
    %15 = vector.broadcast %6 : vector<86x1xf32> to vector<86x16xf32>
    %16 = arith.mulf %14, %15 : vector<86x16xf32>
    %c0_5 = arith.constant 0 : index
    %c0_6 = arith.constant 0 : index
    %17 = vector.load %arg7[%c0_5, %c0_6] : memref<86x16xf32, #tpu.memory_space<vmem>>, vector<86x16xf32>
    tpu.vector_store %arg7[%c0_5, %c0_6], %16 {strides = array<i32>} : memref<86x16xf32, #tpu.memory_space<vmem>>, vector<86x16xf32>,
    %cst_7 = arith.constant 0.000000e+00 : f32
    %18 = vector.broadcast %cst_7 : f32 to vector<72x8xf32>
    %c0_8 = arith.constant 0 : index
    %c0_9 = arith.constant 0 : index
    %19 = vector.load %arg7[%c0_8, %c0_9] : memref<86x16xf32, #tpu.memory_space<vmem>>, vector<72x16xf32>
    %20 = arith.truncf %19 : vector<72x16xf32> to vector<72x16xbf16>
    %c0_10 = arith.constant 0 : index
    %c0_11 = arith.constant 0 : index
    %c0_12 = arith.constant 0 : index
    %21 = vector.load %arg5[%c0_10, %c0_11, %c0_12] : memref<9x16x8xbf16, #tpu.memory_space<vmem>>, vector<1x16x8xbf16>
    %22 = vector.shape_cast %21 : vector<1x16x8xbf16> to vector<16x8xbf16>
    %cst_13 = arith.constant dense<0.000000e+00> : vector<72x8xf32>
    %23 = tpu.matmul %20, %22, %cst_13 {dimension_numbers = #tpu.dot_dimension_numbers<[1], [0], [0], [1], [0, 0, 1, 1], [], []>} : vector<72x16xbf16>, vector<16x8xbf16>, vector<72x8xf32> -> vector<72x8xf32>
    %24 = arith.addf %18, %23 : vector<72x8xf32>
    %c1 = arith.constant 1 : index
    %c0_14 = arith.constant 0 : index
    %25 = vector.load %arg7[%c1, %c0_14] : memref<86x16xf32, #tpu.memory_space<vmem>>, vector<72x16xf32>
    %26 = arith.truncf %25 : vector<72x16xf32> to vector<72x16xbf16>
    %c1_15 = arith.constant 1 : index
    %c0_16 = arith.constant 0 : index
    %c0_17 = arith.constant 0 : index
    %27 = vector.load %arg5[%c1_15, %c0_16, %c0_17] : memref<9x16x8xbf16, #tpu.memory_space<vmem>>, vector<1x16x8xbf16>
    %28 = vector.shape_cast %27 : vector<1x16x8xbf16> to vector<16x8xbf16>
    %cst_18 = arith.constant dense<0.000000e+00> : vector<72x8xf32>
    %29 = tpu.matmul %26, %28, %cst_18 {dimension_numbers = #tpu.dot_dimension_numbers<[1], [0], [0], [1], [0, 0, 1, 1], [], []>} : vector<72x16xbf16>, vector<16x8xbf16>, vector<72x8xf32> -> vector<72x8xf32>
    %30 = arith.addf %24, %29 : vector<72x8xf32>
    %c2 = arith.constant 2 : index
    %c0_19 = arith.constant 0 : index
    %31 = vector.load %arg7[%c2, %c0_19] : memref<86x16xf32, #tpu.memory_space<vmem>>, vector<72x16xf32>
    %32 = arith.truncf %31 : vector<72x16xf32> to vector<72x16xbf16>
    %c2_20 = arith.constant 2 : index
    %c0_21 = arith.constant 0 : index
    %c0_22 = arith.constant 0 : index
    %33 = vector.load %arg5[%c2_20, %c0_21, %c0_22] : memref<9x16x8xbf16, #tpu.memory_space<vmem>>, vector<1x16x8xbf16>
    %34 = vector.shape_cast %33 : vector<1x16x8xbf16> to vector<16x8xbf16>
    %cst_23 = arith.constant dense<0.000000e+00> : vector<72x8xf32>
    %35 = tpu.matmul %32, %34, %cst_23 {dimension_numbers = #tpu.dot_dimension_numbers<[1], [0], [0], [1], [0, 0, 1, 1], [], []>} : vector<72x16xbf16>, vector<16x8xbf16>, vector<72x8xf32> -> vector<72x8xf32>
    %36 = arith.addf %30, %35 : vector<72x8xf32>
    %c6 = arith.constant 6 : index
    %c0_24 = arith.constant 0 : index
    %37 = vector.load %arg7[%c6, %c0_24] : memref<86x16xf32, #tpu.memory_space<vmem>>, vector<72x16xf32>
    %38 = arith.truncf %37 : vector<72x16xf32> to vector<72x16xbf16>
    %c3 = arith.constant 3 : index
    %c0_25 = arith.constant 0 : index
    %c0_26 = arith.constant 0 : index
    %39 = vector.load %arg5[%c3, %c0_25, %c0_26] : memref<9x16x8xbf16, #tpu.memory_space<vmem>>, vector<1x16x8xbf16>
    %40 = vector.shape_cast %39 : vector<1x16x8xbf16> to vector<16x8xbf16>
    %cst_27 = arith.constant dense<0.000000e+00> : vector<72x8xf32>
    %41 = tpu.matmul %38, %40, %cst_27 {dimension_numbers = #tpu.dot_dimension_numbers<[1], [0], [0], [1], [0, 0, 1, 1], [], []>} : vector<72x16xbf16>, vector<16x8xbf16>, vector<72x8xf32> -> vector<72x8xf32>
    %42 = arith.addf %36, %41 : vector<72x8xf32>
    %c7 = arith.constant 7 : index
    %c0_28 = arith.constant 0 : index
    %43 = vector.load %arg7[%c7, %c0_28] : memref<86x16xf32, #tpu.memory_space<vmem>>, vector<72x16xf32>
    %44 = arith.truncf %43 : vector<72x16xf32> to vector<72x16xbf16>
    %c4 = arith.constant 4 : index
    %c0_29 = arith.constant 0 : index
    %c0_30 = arith.constant 0 : index
    %45 = vector.load %arg5[%c4, %c0_29, %c0_30] : memref<9x16x8xbf16, #tpu.memory_space<vmem>>, vector<1x16x8xbf16>
    %46 = vector.shape_cast %45 : vector<1x16x8xbf16> to vector<16x8xbf16>
    %cst_31 = arith.constant dense<0.000000e+00> : vector<72x8xf32>
    %47 = tpu.matmul %44, %46, %cst_31 {dimension_numbers = #tpu.dot_dimension_numbers<[1], [0], [0], [1], [0, 0, 1, 1], [], []>} : vector<72x16xbf16>, vector<16x8xbf16>, vector<72x8xf32> -> vector<72x8xf32>
    %48 = arith.addf %42, %47 : vector<72x8xf32>
    %c8 = arith.constant 8 : index
    %c0_32 = arith.constant 0 : index
    %49 = vector.load %arg7[%c8, %c0_32] : memref<86x16xf32, #tpu.memory_space<vmem>>, vector<72x16xf32>
    %50 = arith.truncf %49 : vector<72x16xf32> to vector<72x16xbf16>
    %c5 = arith.constant 5 : index
    %c0_33 = arith.constant 0 : index
    %c0_34 = arith.constant 0 : index
    %51 = vector.load %arg5[%c5, %c0_33, %c0_34] : memref<9x16x8xbf16, #tpu.memory_space<vmem>>, vector<1x16x8xbf16>
    %52 = vector.shape_cast %51 : vector<1x16x8xbf16> to vector<16x8xbf16>
    %cst_35 = arith.constant dense<0.000000e+00> : vector<72x8xf32>
    %53 = tpu.matmul %50, %52, %cst_35 {dimension_numbers = #tpu.dot_dimension_numbers<[1], [0], [0], [1], [0, 0, 1, 1], [], []>} : vector<72x16xbf16>, vector<16x8xbf16>, vector<72x8xf32> -> vector<72x8xf32>
    %54 = arith.addf %48, %53 : vector<72x8xf32>
    %c12 = arith.constant 12 : index
    %c0_36 = arith.constant 0 : index
    %55 = vector.load %arg7[%c12, %c0_36] : memref<86x16xf32, #tpu.memory_space<vmem>>, vector<72x16xf32>
    %56 = arith.truncf %55 : vector<72x16xf32> to vector<72x16xbf16>
    %c6_37 = arith.constant 6 : index
    %c0_38 = arith.constant 0 : index
    %c0_39 = arith.constant 0 : index
    %57 = vector.load %arg5[%c6_37, %c0_38, %c0_39] : memref<9x16x8xbf16, #tpu.memory_space<vmem>>, vector<1x16x8xbf16>
    %58 = vector.shape_cast %57 : vector<1x16x8xbf16> to vector<16x8xbf16>
    %cst_40 = arith.constant dense<0.000000e+00> : vector<72x8xf32>
    %59 = tpu.matmul %56, %58, %cst_40 {dimension_numbers = #tpu.dot_dimension_numbers<[1], [0], [0], [1], [0, 0, 1, 1], [], []>} : vector<72x16xbf16>, vector<16x8xbf16>, vector<72x8xf32> -> vector<72x8xf32>
    %60 = arith.addf %54, %59 : vector<72x8xf32>
    %c13 = arith.constant 13 : index
    %c0_41 = arith.constant 0 : index
    %61 = vector.load %arg7[%c13, %c0_41] : memref<86x16xf32, #tpu.memory_space<vmem>>, vector<72x16xf32>
    %62 = arith.truncf %61 : vector<72x16xf32> to vector<72x16xbf16>
    %c7_42 = arith.constant 7 : index
    %c0_43 = arith.constant 0 : index
    %c0_44 = arith.constant 0 : index
    %63 = vector.load %arg5[%c7_42, %c0_43, %c0_44] : memref<9x16x8xbf16, #tpu.memory_space<vmem>>, vector<1x16x8xbf16>
    %64 = vector.shape_cast %63 : vector<1x16x8xbf16> to vector<16x8xbf16>
    %cst_45 = arith.constant dense<0.000000e+00> : vector<72x8xf32>
    %65 = tpu.matmul %62, %64, %cst_45 {dimension_numbers = #tpu.dot_dimension_numbers<[1], [0], [0], [1], [0, 0, 1, 1], [], []>} : vector<72x16xbf16>, vector<16x8xbf16>, vector<72x8xf32> -> vector<72x8xf32>
    %66 = arith.addf %60, %65 : vector<72x8xf32>
    %c14 = arith.constant 14 : index
    %c0_46 = arith.constant 0 : index
    %67 = vector.load %arg7[%c14, %c0_46] : memref<86x16xf32, #tpu.memory_space<vmem>>, vector<72x16xf32>
    %68 = arith.truncf %67 : vector<72x16xf32> to vector<72x16xbf16>
    %c8_47 = arith.constant 8 : index
    %c0_48 = arith.constant 0 : index
    %c0_49 = arith.constant 0 : index
    %69 = vector.load %arg5[%c8_47, %c0_48, %c0_49] : memref<9x16x8xbf16, #tpu.memory_space<vmem>>, vector<1x16x8xbf16>
    %70 = vector.shape_cast %69 : vector<1x16x8xbf16> to vector<16x8xbf16>
    %cst_50 = arith.constant dense<0.000000e+00> : vector<72x8xf32>
    %71 = tpu.matmul %68, %70, %cst_50 {dimension_numbers = #tpu.dot_dimension_numbers<[1], [0], [0], [1], [0, 0, 1, 1], [], []>} : vector<72x16xbf16>, vector<16x8xbf16>, vector<72x8xf32> -> vector<72x8xf32>
    %72 = arith.addf %66, %71 : vector<72x8xf32>
    %73 = arith.truncf %72 : vector<72x8xf32> to vector<72x8xbf16>
    %c0_51 = arith.constant 0 : index
    %c0_52 = arith.constant 0 : index
    %74 = vector.load %arg6[%c0_51, %c0_52] : memref<72x8xbf16, #tpu.memory_space<vmem>>, vector<72x8xbf16>
    tpu.vector_store %arg6[%c0_51, %c0_52], %73 {strides = array<i32>} : memref<72x8xbf16, #tpu.memory_space<vmem>>, vector<72x8xbf16>,
    return
  }
  func.func @transform_0(%arg0: i32) -> (i32, i32) {
    %c0_i32 = arith.constant 0 : i32
    %c0_i32_0 = arith.constant 0 : i32
    %c0_i32_1 = arith.constant 0 : i32
    return %c0_i32, %c0_i32_0 : i32, i32
  }
  func.func @transform_1(%arg0: i32) -> (i32, i32) {
    %c0_i32 = arith.constant 0 : i32
    %c0_i32_0 = arith.constant 0 : i32
    %c0_i32_1 = arith.constant 0 : i32
    return %c0_i32, %c0_i32_0 : i32, i32
  }
  func.func @transform_2(%arg0: i32) -> (i32, i32) {
    %c0_i32 = arith.constant 0 : i32
    %c0_i32_0 = arith.constant 0 : i32
    %c0_i32_1 = arith.constant 0 : i32
    return %c0_i32, %c0_i32_0 : i32, i32
  }
  func.func @transform_3(%arg0: i32) -> (i32, i32) {
    %c0_i32 = arith.constant 0 : i32
    %c0_i32_0 = arith.constant 0 : i32
    %c0_i32_1 = arith.constant 0 : i32
    return %c0_i32, %c0_i32_0 : i32, i32
  }
  func.func @transform_4(%arg0: i32) -> (i32, i32, i32) {
    %c0_i32 = arith.constant 0 : i32
    %c0_i32_0 = arith.constant 0 : i32
    %c0_i32_1 = arith.constant 0 : i32
    %c0_i32_2 = arith.constant 0 : i32
    return %c0_i32, %c0_i32_0, %c0_i32_1 : i32, i32, i32
  }
  func.func @transform_5(%arg0: i32) -> (i32, i32) {
    %c0_i32 = arith.constant 0 : i32
    %c0_i32_0 = arith.constant 0 : i32
    return %arg0, %c0_i32 : i32, i32
  }
}

module attributes {stable_mosaic.version = 11 : i64} {
  func.func @kernel(%arg0: i32, %arg1: memref<32x16xbf16, #tpu.memory_space<vmem>>, %arg2: memref<32x8xbf16, #tpu.memory_space<vmem>>, %arg3: memref<1x16xf32, #tpu.memory_space<vmem>>, %arg4: memref<1x8xf32, #tpu.memory_space<vmem>>, %arg5: memref<1x16xf32, #tpu.memory_space<vmem>>, %arg6: memref<1x8xf32, #tpu.memory_space<vmem>>, %arg7: memref<16x16xbf16, #tpu.memory_space<vmem>>, %arg8: memref<8x16xbf16, #tpu.memory_space<vmem>>, %arg9: memref<32x16xbf16, #tpu.memory_space<vmem>>) attributes {dimension_semantics = [#tpu.dimension_semantics<parallel>], iteration_bounds = array<i64: 1>, scalar_prefetch = 0 : i64, scratch_operands = 0 : i64, tpu.core_type = #tpu.core_type<tc>, window_params = [{transform_indices = @transform_0, window_bounds = array<i64: 32, 16>}, {transform_indices = @transform_1, window_bounds = array<i64: 32, 8>}, {pipeline_mode = #tpu.pipeline_mode<synchronous>, transform_indices = @transform_2, window_bounds = array<i64: 1, 16>}, {pipeline_mode = #tpu.pipeline_mode<synchronous>, transform_indices = @transform_3, window_bounds = array<i64: 1, 8>}, {pipeline_mode = #tpu.pipeline_mode<synchronous>, transform_indices = @transform_4, window_bounds = array<i64: 1, 16>}, {pipeline_mode = #tpu.pipeline_mode<synchronous>, transform_indices = @transform_5, window_bounds = array<i64: 1, 8>}, {pipeline_mode = #tpu.pipeline_mode<synchronous>, transform_indices = @transform_6, window_bounds = array<i64: 16, 16>}, {pipeline_mode = #tpu.pipeline_mode<synchronous>, transform_indices = @transform_7, window_bounds = array<i64: 8, 16>}, {transform_indices = @transform_8, window_bounds = array<i64: 32, 16>}]} {
    %cst = arith.constant 0.000000e+00 : f32
    %0 = vector.broadcast %cst : f32 to vector<32x16xf32>
    %c0 = arith.constant 0 : index
    %c0_0 = arith.constant 0 : index
    %1 = vector.load %arg1[%c0, %c0_0] : memref<32x16xbf16, #tpu.memory_space<vmem>>, vector<32x16xbf16>
    %2 = arith.extf %1 : vector<32x16xbf16> to vector<32x16xf32>
    %c0_1 = arith.constant 0 : index
    %c0_2 = arith.constant 0 : index
    %3 = vector.load %arg3[%c0_1, %c0_2] : memref<1x16xf32, #tpu.memory_space<vmem>>, vector<1x16xf32>
    %4 = vector.broadcast %3 : vector<1x16xf32> to vector<32x16xf32>
    %5 = arith.mulf %2, %4 : vector<32x16xf32>
    %c0_3 = arith.constant 0 : index
    %c0_4 = arith.constant 0 : index
    %6 = vector.load %arg5[%c0_3, %c0_4] : memref<1x16xf32, #tpu.memory_space<vmem>>, vector<1x16xf32>
    %7 = vector.broadcast %6 : vector<1x16xf32> to vector<32x16xf32>
    %8 = arith.addf %5, %7 : vector<32x16xf32>
    %cst_5 = arith.constant 0.000000e+00 : f32
    %9 = vector.broadcast %cst_5 : f32 to vector<32x16xf32>
    %10 = arith.maximumf %8, %9 : vector<32x16xf32>
    %11 = arith.truncf %10 : vector<32x16xf32> to vector<32x16xbf16>
    %c0_6 = arith.constant 0 : index
    %c0_7 = arith.constant 0 : index
    %12 = vector.load %arg7[%c0_6, %c0_7] : memref<16x16xbf16, #tpu.memory_space<vmem>>, vector<16x16xbf16>
    %cst_8 = arith.constant dense<0.000000e+00> : vector<32x16xf32>
    %13 = tpu.matmul %11, %12, %cst_8 {dimension_numbers = #tpu.dot_dimension_numbers<[1], [0], [0], [1], [0, 0, 1, 1], [], []>} : vector<32x16xbf16>, vector<16x16xbf16>, vector<32x16xf32> -> vector<32x16xf32>
    %14 = arith.addf %0, %13 : vector<32x16xf32>
    %c0_9 = arith.constant 0 : index
    %c0_10 = arith.constant 0 : index
    %15 = vector.load %arg2[%c0_9, %c0_10] : memref<32x8xbf16, #tpu.memory_space<vmem>>, vector<32x8xbf16>
    %16 = arith.extf %15 : vector<32x8xbf16> to vector<32x8xf32>
    %c0_11 = arith.constant 0 : index
    %c0_12 = arith.constant 0 : index
    %17 = vector.load %arg4[%c0_11, %c0_12] : memref<1x8xf32, #tpu.memory_space<vmem>>, vector<1x8xf32>
    %18 = vector.broadcast %17 : vector<1x8xf32> to vector<32x8xf32>
    %19 = arith.mulf %16, %18 : vector<32x8xf32>
    %c0_13 = arith.constant 0 : index
    %c0_14 = arith.constant 0 : index
    %20 = vector.load %arg6[%c0_13, %c0_14] : memref<1x8xf32, #tpu.memory_space<vmem>>, vector<1x8xf32>
    %21 = vector.broadcast %20 : vector<1x8xf32> to vector<32x8xf32>
    %22 = arith.addf %19, %21 : vector<32x8xf32>
    %cst_15 = arith.constant 0.000000e+00 : f32
    %23 = vector.broadcast %cst_15 : f32 to vector<32x8xf32>
    %24 = arith.maximumf %22, %23 : vector<32x8xf32>
    %25 = arith.truncf %24 : vector<32x8xf32> to vector<32x8xbf16>
    %c0_16 = arith.constant 0 : index
    %c0_17 = arith.constant 0 : index
    %26 = vector.load %arg8[%c0_16, %c0_17] : memref<8x16xbf16, #tpu.memory_space<vmem>>, vector<8x16xbf16>
    %cst_18 = arith.constant dense<0.000000e+00> : vector<32x16xf32>
    %27 = tpu.matmul %25, %26, %cst_18 {dimension_numbers = #tpu.dot_dimension_numbers<[1], [0], [0], [1], [0, 0, 1, 1], [], []>} : vector<32x8xbf16>, vector<8x16xbf16>, vector<32x16xf32> -> vector<32x16xf32>
    %28 = arith.addf %14, %27 : vector<32x16xf32>
    %29 = arith.truncf %28 : vector<32x16xf32> to vector<32x16xbf16>
    %c0_19 = arith.constant 0 : index
    %c0_20 = arith.constant 0 : index
    %30 = vector.load %arg9[%c0_19, %c0_20] : memref<32x16xbf16, #tpu.memory_space<vmem>>, vector<32x16xbf16>
    tpu.vector_store %arg9[%c0_19, %c0_20], %29 {strides = array<i32>} : memref<32x16xbf16, #tpu.memory_space<vmem>>, vector<32x16xbf16>,
    return
  }
  func.func @transform_0(%arg0: i32) -> (i32, i32) {
    %c0_i32 = arith.constant 0 : i32
    %c0_i32_0 = arith.constant 0 : i32
    return %arg0, %c0_i32 : i32, i32
  }
  func.func @transform_1(%arg0: i32) -> (i32, i32) {
    %c0_i32 = arith.constant 0 : i32
    %c0_i32_0 = arith.constant 0 : i32
    return %arg0, %c0_i32 : i32, i32
  }
  func.func @transform_2(%arg0: i32) -> (i32, i32) {
    %c0_i32 = arith.constant 0 : i32
    %c0_i32_0 = arith.constant 0 : i32
    %c0_i32_1 = arith.constant 0 : i32
    return %c0_i32, %c0_i32_0 : i32, i32
  }
  func.func @transform_3(%arg0: i32) -> (i32, i32) {
    %c0_i32 = arith.constant 0 : i32
    %c0_i32_0 = arith.constant 0 : i32
    %c0_i32_1 = arith.constant 0 : i32
    return %c0_i32, %c0_i32_0 : i32, i32
  }
  func.func @transform_4(%arg0: i32) -> (i32, i32) {
    %c0_i32 = arith.constant 0 : i32
    %c0_i32_0 = arith.constant 0 : i32
    %c0_i32_1 = arith.constant 0 : i32
    return %c0_i32, %c0_i32_0 : i32, i32
  }
  func.func @transform_5(%arg0: i32) -> (i32, i32) {
    %c0_i32 = arith.constant 0 : i32
    %c0_i32_0 = arith.constant 0 : i32
    %c0_i32_1 = arith.constant 0 : i32
    return %c0_i32, %c0_i32_0 : i32, i32
  }
  func.func @transform_6(%arg0: i32) -> (i32, i32) {
    %c0_i32 = arith.constant 0 : i32
    %c0_i32_0 = arith.constant 0 : i32
    %c0_i32_1 = arith.constant 0 : i32
    return %c0_i32, %c0_i32_0 : i32, i32
  }
  func.func @transform_7(%arg0: i32) -> (i32, i32) {
    %c0_i32 = arith.constant 0 : i32
    %c0_i32_0 = arith.constant 0 : i32
    %c0_i32_1 = arith.constant 0 : i32
    return %c0_i32, %c0_i32_0 : i32, i32
  }
  func.func @transform_8(%arg0: i32) -> (i32, i32) {
    %c0_i32 = arith.constant 0 : i32
    %c0_i32_0 = arith.constant 0 : i32
    return %arg0, %c0_i32 : i32, i32
  }
}

module attributes {stable_mosaic.version = 11 : i64} {
  func.func @_head_kernel(%arg0: memref<2x16x32xbf16, #tpu.memory_space<vmem>>, %arg1: memref<1x32xf32, #tpu.memory_space<vmem>>, %arg2: memref<1x32xf32, #tpu.memory_space<vmem>>, %arg3: memref<32x10xbf16, #tpu.memory_space<vmem>>, %arg4: memref<1x10xf32, #tpu.memory_space<vmem>>, %arg5: memref<2x10xf32, #tpu.memory_space<vmem>>) attributes {dimension_semantics = [], scalar_prefetch = 0 : i64, scratch_operands = 0 : i64, tpu.core_type = #tpu.core_type<tc>} {
    %c0 = arith.constant 0 : index
    %c0_0 = arith.constant 0 : index
    %c0_1 = arith.constant 0 : index
    %0 = vector.load %arg0[%c0, %c0_0, %c0_1] : memref<2x16x32xbf16, #tpu.memory_space<vmem>>, vector<2x16x32xbf16>
    %1 = arith.extf %0 : vector<2x16x32xbf16> to vector<2x16x32xf32>
    %c0_2 = arith.constant 0 : index
    %c0_3 = arith.constant 0 : index
    %2 = vector.load %arg1[%c0_2, %c0_3] : memref<1x32xf32, #tpu.memory_space<vmem>>, vector<1x32xf32>
    %3 = vector.shape_cast %2 : vector<1x32xf32> to vector<1x1x32xf32>
    %4 = vector.broadcast %3 : vector<1x1x32xf32> to vector<2x16x32xf32>
    %5 = arith.mulf %1, %4 : vector<2x16x32xf32>
    %c0_4 = arith.constant 0 : index
    %c0_5 = arith.constant 0 : index
    %6 = vector.load %arg2[%c0_4, %c0_5] : memref<1x32xf32, #tpu.memory_space<vmem>>, vector<1x32xf32>
    %7 = vector.shape_cast %6 : vector<1x32xf32> to vector<1x1x32xf32>
    %8 = vector.broadcast %7 : vector<1x1x32xf32> to vector<2x16x32xf32>
    %9 = arith.addf %5, %8 : vector<2x16x32xf32>
    %cst = arith.constant 0.000000e+00 : f32
    %10 = vector.broadcast %cst : f32 to vector<2x16x32xf32>
    %11 = arith.maximumf %9, %10 : vector<2x16x32xf32>
    %cst_6 = arith.constant dense<0.000000e+00> : vector<2x32xf32>
    %12 = vector.multi_reduction <add>, %11, %cst_6 [1] : vector<2x16x32xf32> to vector<2x32xf32>
    %cst_7 = arith.constant 1.600000e+01 : f32
    %13 = vector.broadcast %cst_7 : f32 to vector<2x32xf32>
    %14 = arith.divf %12, %13 : vector<2x32xf32>
    %15 = arith.truncf %14 : vector<2x32xf32> to vector<2x32xbf16>
    %c0_8 = arith.constant 0 : index
    %c0_9 = arith.constant 0 : index
    %16 = vector.load %arg3[%c0_8, %c0_9] : memref<32x10xbf16, #tpu.memory_space<vmem>>, vector<32x10xbf16>
    %cst_10 = arith.constant dense<0.000000e+00> : vector<2x10xf32>
    %17 = tpu.matmul %15, %16, %cst_10 {dimension_numbers = #tpu.dot_dimension_numbers<[1], [0], [0], [1], [0, 0, 1, 1], [], []>} : vector<2x32xbf16>, vector<32x10xbf16>, vector<2x10xf32> -> vector<2x10xf32>
    %c0_11 = arith.constant 0 : index
    %c0_12 = arith.constant 0 : index
    %18 = vector.load %arg4[%c0_11, %c0_12] : memref<1x10xf32, #tpu.memory_space<vmem>>, vector<1x10xf32>
    %19 = vector.broadcast %18 : vector<1x10xf32> to vector<2x10xf32>
    %20 = arith.addf %17, %19 : vector<2x10xf32>
    %c0_13 = arith.constant 0 : index
    %c0_14 = arith.constant 0 : index
    %21 = vector.load %arg5[%c0_13, %c0_14] : memref<2x10xf32, #tpu.memory_space<vmem>>, vector<2x10xf32>
    tpu.vector_store %arg5[%c0_13, %c0_14], %20 {strides = array<i32>} : memref<2x10xf32, #tpu.memory_space<vmem>>, vector<2x10xf32>,
    return
  }
}

</mosaic_0001>

<llo_original>
// kernel: densenet_forward.13
$region0: #{densenet_forward.13}
  #allocation0 [shape = 'u32[]', space=smem, size = 0x4, offset = 0x4, fixed_abs, tag = 'smem constant byte address 0x4 - core index']
  #allocation1 [shape = 'u32[144,128]{1,0:T(1,128)}', space=vmem, size = 0x12000, scoped, tag = 'internal scratch']
  %s0 = inlined_call_operand.vmem [shape: bf16[512,49], index: 0, kind: input, shape index: {}]
  %s1 = inlined_call_operand.vmem [shape: bf16[49,16], index: 1, kind: input, shape index: {}]
  %s2 = inlined_call_operand.vmem [shape: bf16[512,16], index: 2, kind: output, shape index: {}]
  %s3 = sld [smem:[#allocation0]]
  $region18: #{densenet_forward.13} parent=0
    _
  %s5 = ssub.s32 1, %s3
  %s6 = scalar_select 0, %s5, %s3
  // Predicated region
  $region2: #{densenet_forward.13} parent=0 // pred_check
    _
  $region3: #{densenet_forward.13} parent=0 // pred_check_branch
    %8 = sbr.rel (0) target = $region5
  $region4: #{densenet_forward.13} parent=0 // pred_region
    _
  $region5: #{densenet_forward.13} parent=0 // pred_fallthru
    _
  // Predicated region
  $region6: #{densenet_forward.13} parent=0 // pred_check
    _
  $region7: #{densenet_forward.13} parent=0 // pred_check_branch
    %10 = sbr.rel (0) target = $region9
  $region8: #{densenet_forward.13} parent=0 // pred_region
    _
  $region9: #{densenet_forward.13} parent=0 // pred_fallthru
    _
  %v12 = vld [vmem:[%s0] sm:$0xf]
  %v13 = vld [vmem:[%s0 + $0x4] sm:$0xf]
  %v14 = vld [vmem:[%s0 + $0x8] sm:$0xf]
  %v15 = vld [vmem:[%s0 + $0xc] sm:$0xf]
  %v16 = vld [vmem:[%s0 + $0x10] sm:$0xf]
  %v17 = vld [vmem:[%s0 + $0x14] sm:$0xf]
  %v18 = vld [vmem:[%s0 + $0x18] sm:$0xf]
  %v19 = vld [vmem:[%s0 + $0x1c] sm:$0xf]
  %v20 = vld [vmem:[%s0 + $0x20] sm:$0xf]
  %v21 = vld [vmem:[%s0 + $0x24] sm:$0xf]
  %v22 = vld [vmem:[%s0 + $0x28] sm:$0xf]
  %v23 = vld [vmem:[%s0 + $0x2c] sm:$0xf]
  %v24 = vld [vmem:[%s0 + $0x30] sm:$0xf]
  %v25 = vld [vmem:[%s0 + $0x34] sm:$0xf]
  %v26 = vld [vmem:[%s0 + $0x38] sm:$0xf]
  %v27 = vld [vmem:[%s0 + $0x3c] sm:$0xf]
  %v28 = vld [vmem:[%s0 + $0x40] sm:$0xf]
  %v29 = vld [vmem:[%s0 + $0x44] sm:$0xf]
  %v30 = vld [vmem:[%s0 + $0x48] sm:$0xf]
  %v31 = vld [vmem:[%s0 + $0x4c] sm:$0xf]
  %v32 = vld [vmem:[%s0 + $0x50] sm:$0xf]
  %v33 = vld [vmem:[%s0 + $0x54] sm:$0xf]
  %v34 = vld [vmem:[%s0 + $0x58] sm:$0xf]
  %v35 = vld [vmem:[%s0 + $0x5c] sm:$0xf]
  %v36 = vld [vmem:[%s0 + $0x60] sm:$0xf]
  %v37 = vld [vmem:[%s0 + $0x64] sm:$0xf]
  %v38 = vld [vmem:[%s0 + $0x68] sm:$0xf]
  %v39 = vld [vmem:[%s0 + $0x6c] sm:$0xf]
  %v40 = vld [vmem:[%s0 + $0x70] sm:$0xf]
  %v41 = vld [vmem:[%s0 + $0x74] sm:$0xf]
  %v42 = vld [vmem:[%s0 + $0x78] sm:$0xf]
  %v43 = vld [vmem:[%s0 + $0x7c] sm:$0xf]
  %v44 = vld [vmem:[%s0 + $0x80] sm:$0xf]
  %v45 = vld [vmem:[%s0 + $0x84] sm:$0xf]
  %v46 = vld [vmem:[%s0 + $0x88] sm:$0xf]
  %v47 = vld [vmem:[%s0 + $0x8c] sm:$0xf]
  %v48 = vld [vmem:[%s0 + $0x90] sm:$0xf]
  %v49 = vld [vmem:[%s0 + $0x94] sm:$0xf]
  %v50 = vld [vmem:[%s0 + $0x98] sm:$0xf]
  %v51 = vld [vmem:[%s0 + $0x9c] sm:$0xf]
  %v52 = vld [vmem:[%s0 + $0xa0] sm:$0xf]
  %v53 = vld [vmem:[%s0 + $0xa4] sm:$0xf]
  %v54 = vld [vmem:[%s0 + $0xa8] sm:$0xf]
  %v55 = vld [vmem:[%s0 + $0xac] sm:$0xf]
  %v56 = vld [vmem:[%s0 + $0xb0] sm:$0xf]
  %v57 = vld [vmem:[%s0 + $0xb4] sm:$0xf]
  %v58 = vld [vmem:[%s0 + $0xb8] sm:$0xf]
  %v59 = vld [vmem:[%s0 + $0xbc] sm:$0xf]
  %v60 = vld [vmem:[%s0 + $0xc0] sm:$0xf]
  %v61 = vld [vmem:[%s0 + $0xc4] sm:$0xf]
  %v62 = vld [vmem:[%s0 + $0xc8] sm:$0xf]
  %v63 = vld [vmem:[%s0 + $0xcc] sm:$0xf]
  %v64 = vld [vmem:[%s0 + $0xd0] sm:$0xf]
  %v65 = vld [vmem:[%s0 + $0xd4] sm:$0xf]
  %v66 = vld [vmem:[%s0 + $0xd8] sm:$0xf]
  %v67 = vld [vmem:[%s0 + $0xdc] sm:$0xf]
  %v68 = vld [vmem:[%s0 + $0xe0] sm:$0xf]
  %v69 = vld [vmem:[%s0 + $0xe4] sm:$0xf]
  %v70 = vld [vmem:[%s0 + $0xe8] sm:$0xf]
  %v71 = vld [vmem:[%s0 + $0xec] sm:$0xf]
  %v72 = vld [vmem:[%s0 + $0xf0] sm:$0xf]
  %v73 = vld [vmem:[%s0 + $0xf4] sm:$0xf]
  %v74 = vld [vmem:[%s0 + $0xf8] sm:$0xf]
  %v75 = vld [vmem:[%s0 + $0xfc] sm:$0xf]
  %v76 = vld [vmem:[%s1] sm:$0xf]
  %v77 = vld [vmem:[%s1 + $0x4] sm:$0xf]
  %v78 = vld [vmem:[%s1 + $0x8] sm:$0xf]
  %v79 = vld [vmem:[%s1 + $0xc] sm:$0xf]
  %v80 = vld [vmem:[%s1 + $0x10] sm:$0xf]
  %v81 = vld [vmem:[%s1 + $0x14] sm:$0xf]
  %v82 = vld [vmem:[%s1 + $0x18] sm:$0x1]
  %v147 = vunpack.c.l.b16 %v12
  %v148 = vunpack.c.l.b16 %v13
  %v149 = vunpack.c.l.b16 %v14
  %v150 = vunpack.c.l.b16 %v15
  %v151 = vunpack.c.l.b16 %v16
  %v152 = vunpack.c.l.b16 %v17
  %v153 = vunpack.c.l.b16 %v18
  %v154 = vunpack.c.l.b16 %v19
  %v155 = vunpack.c.l.b16 %v20
  %v156 = vunpack.c.l.b16 %v21
  %v157 = vunpack.c.l.b16 %v22
  %v158 = vunpack.c.l.b16 %v23
  %v159 = vunpack.c.l.b16 %v24
  %v160 = vunpack.c.l.b16 %v25
  %v161 = vunpack.c.l.b16 %v26
  %v162 = vunpack.c.l.b16 %v27
  %v163 = vunpack.c.l.b16 %v28
  %v164 = vunpack.c.l.b16 %v29
  %v165 = vunpack.c.l.b16 %v30
  %v166 = vunpack.c.l.b16 %v31
  %v167 = vunpack.c.l.b16 %v32
  %v168 = vunpack.c.l.b16 %v33
  %v169 = vunpack.c.l.b16 %v34
  %v170 = vunpack.c.l.b16 %v35
  %v171 = vunpack.c.l.b16 %v36
  %v172 = vunpack.c.l.b16 %v37
  %v173 = vunpack.c.l.b16 %v38
  %v174 = vunpack.c.l.b16 %v39
  %v175 = vunpack.c.l.b16 %v40
  %v176 = vunpack.c.l.b16 %v41
  %v177 = vunpack.c.l.b16 %v42
  %v178 = vunpack.c.l.b16 %v43
  %v179 = vunpack.c.l.b16 %v44
  %v180 = vunpack.c.l.b16 %v45
  %v181 = vunpack.c.l.b16 %v46
  %v182 = vunpack.c.l.b16 %v47
  %v183 = vunpack.c.l.b16 %v48
  %v184 = vunpack.c.l.b16 %v49
  %v185 = vunpack.c.l.b16 %v50
  %v186 = vunpack.c.l.b16 %v51
  %v187 = vunpack.c.l.b16 %v52
  %v188 = vunpack.c.l.b16 %v53
  %v189 = vunpack.c.l.b16 %v54
  %v190 = vunpack.c.l.b16 %v55
  %v191 = vunpack.c.l.b16 %v56
  %v192 = vunpack.c.l.b16 %v57
  %v193 = vunpack.c.l.b16 %v58
  %v194 = vunpack.c.l.b16 %v59
  %v195 = vunpack.c.l.b16 %v60
  %v196 = vunpack.c.l.b16 %v61
  %v197 = vunpack.c.l.b16 %v62
  %v198 = vunpack.c.l.b16 %v63
  %v199 = vunpack.c.l.b16 %v64
  %v200 = vunpack.c.l.b16 %v65
  %v201 = vunpack.c.l.b16 %v66
  %v202 = vunpack.c.l.b16 %v67
  %v203 = vunpack.c.l.b16 %v68
  %v204 = vunpack.c.l.b16 %v69
  %v205 = vunpack.c.l.b16 %v70
  %v206 = vunpack.c.l.b16 %v71
  %v207 = vunpack.c.l.b16 %v72
  %v208 = vunpack.c.l.b16 %v73
  %v209 = vunpack.c.l.b16 %v74
  %v210 = vunpack.c.l.b16 %v75
  %v211 = vpack.c.b16 %v148, %v147
  %v212 = vpack.c.b16 %v150, %v149
  %v213 = vpack.c.b16 %v152, %v151
  %v214 = vpack.c.b16 %v154, %v153
  %v215 = vpack.c.b16 %v156, %v155
  %v216 = vpack.c.b16 %v158, %v157
  %v217 = vpack.c.b16 %v160, %v159
  %v218 = vpack.c.b16 %v162, %v161
  %v219 = vpack.c.b16 %v164, %v163
  %v220 = vpack.c.b16 %v166, %v165
  %v221 = vpack.c.b16 %v168, %v167
  %v222 = vpack.c.b16 %v170, %v169
  %v223 = vpack.c.b16 %v172, %v171
  %v224 = vpack.c.b16 %v174, %v173
  %v225 = vpack.c.b16 %v176, %v175
  %v226 = vpack.c.b16 %v178, %v177
  %v227 = vpack.c.b16 %v180, %v179
  %v228 = vpack.c.b16 %v182, %v181
  %v229 = vpack.c.b16 %v184, %v183
  %v230 = vpack.c.b16 %v186, %v185
  %v231 = vpack.c.b16 %v188, %v187
  %v232 = vpack.c.b16 %v190, %v189
  %v233 = vpack.c.b16 %v192, %v191
  %v234 = vpack.c.b16 %v194, %v193
  %v235 = vpack.c.b16 %v196, %v195
  %v236 = vpack.c.b16 %v198, %v197
  %v237 = vpack.c.b16 %v200, %v199
  %v238 = vpack.c.b16 %v202, %v201
  %v239 = vpack.c.b16 %v204, %v203
  %v240 = vpack.c.b16 %v206, %v205
  %v241 = vpack.c.b16 %v208, %v207
  %v242 = vpack.c.b16 %v210, %v209
  %v250 = vunpack.c.l.b16 %v76
  %v251 = vunpack.c.l.b16 %v77
  %v252 = vunpack.c.l.b16 %v78
  %v253 = vunpack.c.l.b16 %v79
  %v254 = vunpack.c.l.b16 %v80
  %v255 = vunpack.c.l.b16 %v81
  %v256 = vunpack.c.l.b16 %v82
  %v257 = vpack.c.b16 %v251, %v250
  %v258 = vpack.c.b16 %v253, %v252
  %v259 = vpack.c.b16 %v255, %v254
  %v260 = vpack.c.b16 %v256, %v256
  %vm264 = vcmask 400384
  %v266 = vsel %vm264, %v211, 0
  %v269 = vsel %vm264, %v212, 0
  %v272 = vsel %vm264, %v213, 0
  %v275 = vsel %vm264, %v214, 0
  %v278 = vsel %vm264, %v215, 0
  %v281 = vsel %vm264, %v216, 0
  %v284 = vsel %vm264, %v217, 0
  %v287 = vsel %vm264, %v218, 0
  %v290 = vsel %vm264, %v219, 0
  %v293 = vsel %vm264, %v220, 0
  %v296 = vsel %vm264, %v221, 0
  %v299 = vsel %vm264, %v222, 0
  %v302 = vsel %vm264, %v223, 0
  %v305 = vsel %vm264, %v224, 0
  %v308 = vsel %vm264, %v225, 0
  %v311 = vsel %vm264, %v226, 0
  %v314 = vsel %vm264, %v227, 0
  %v317 = vsel %vm264, %v228, 0
  %v320 = vsel %vm264, %v229, 0
  %v323 = vsel %vm264, %v230, 0
  %v326 = vsel %vm264, %v231, 0
  %v329 = vsel %vm264, %v232, 0
  %v332 = vsel %vm264, %v233, 0
  %v335 = vsel %vm264, %v234, 0
  %v338 = vsel %vm264, %v235, 0
  %v341 = vsel %vm264, %v236, 0
  %v344 = vsel %vm264, %v237, 0
  %v347 = vsel %vm264, %v238, 0
  %v350 = vsel %vm264, %v239, 0
  %v353 = vsel %vm264, %v240, 0
  %v356 = vsel %vm264, %v241, 0
  %v359 = vsel %vm264, %v242, 0
  %vm361 = vcmask 1040384
  %v362 = vsel 0, 4294967295, 65535
  %v363 = vsel %vm361, %v362, 0
  %v365 = vand.u32 %v260, %v363
  %367 = vmatprep.subr.bf16.mxu0 0
  %368 = vmatpush1.bf16.msra.mxu0 %v257
  %369 = vmatprep.subr.bf16.mxu0 0
  %370 = vmatpush1.bf16.msra.mxu0 %v258
  %371 = vmatprep.subr.bf16.mxu0 0
  %372 = vmatpush1.bf16.msra.mxu0 %v259
  %373 = vmatprep.subr.bf16.mxu0 0
  %374 = vmatpush1.bf16.msra.mxu0 %v365
  %375 = vmatprep.subr.bf16.mxu0 0
  %376 = vmatpush1.bf16.msra.mxu0 0
  %377 = vmatprep.subr.bf16.mxu0 0
  %378 = vmatpush1.bf16.msra.mxu0 0
  %379 = vmatprep.subr.bf16.mxu0 0
  %380 = vmatpush1.bf16.msra.mxu0 0
  %381 = vmatprep.subr.bf16.mxu0 0
  %382 = vmatpush1.bf16.msra.mxu0 0
  %383 = vmatprep.subr.bf16.mxu0 0
  %384 = vmatpush1.bf16.msra.mxu0 0
  %385 = vmatprep.subr.bf16.mxu0 0
  %386 = vmatpush1.bf16.msra.mxu0 0
  %387 = vmatprep.subr.bf16.mxu0 0
  %388 = vmatpush1.bf16.msra.mxu0 0
  %389 = vmatprep.subr.bf16.mxu0 0
  %390 = vmatpush1.bf16.msra.mxu0 0
  %391 = vmatprep.subr.bf16.mxu0 0
  %392 = vmatpush1.bf16.msra.mxu0 0
  %393 = vmatprep.subr.bf16.mxu0 0
  %394 = vmatpush1.bf16.msra.mxu0 0
  %395 = vmatprep.subr.bf16.mxu0 0
  %396 = vmatpush1.bf16.msra.mxu0 0
  %397 = vmatprep.subr.bf16.mxu0 0
  %398 = vmatpush1.bf16.msra.mxu0 0
  %399 = vmatprep.mubr.bf16.mxu0 0
  %400 = vmatmul.mubr.bf16.gmra.mrb[0].mxu0 %v266
  %v401 = vpop.f32.mrb[0].mxu0
  %v402 = vadd.f32 0.0, %v401
  %v403 = vpop.f32.mrb[0].mxu0
  %v404 = vpop.f32.mrb[0].mxu0
  %v405 = vadd.f32 0.0, %v404
  %v406 = vpop.f32.mrb[0].mxu0
  %407 = vmatprep.mubr.bf16.mxu0 0
  %408 = vmatmul.mubr.bf16.gmra.mrb[0].mxu0 %v269
  %v409 = vpop.f32.mrb[0].mxu0
  %v410 = vadd.f32 0.0, %v409
  %v411 = vpop.f32.mrb[0].mxu0
  %v412 = vpop.f32.mrb[0].mxu0
  %v413 = vadd.f32 0.0, %v412
  %v414 = vpop.f32.mrb[0].mxu0
  %415 = vmatprep.mubr.bf16.mxu0 0
  %416 = vmatmul.mubr.bf16.gmra.mrb[0].mxu0 %v272
  %v417 = vpop.f32.mrb[0].mxu0
  %v418 = vadd.f32 0.0, %v417
  %v419 = vpop.f32.mrb[0].mxu0
  %v420 = vpop.f32.mrb[0].mxu0
  %v421 = vadd.f32 0.0, %v420
  %v422 = vpop.f32.mrb[0].mxu0
  %423 = vmatprep.mubr.bf16.mxu0 0
  %424 = vmatmul.mubr.bf16.gmra.mrb[0].mxu0 %v275
  %v425 = vpop.f32.mrb[0].mxu0
  %v426 = vadd.f32 0.0, %v425
  %v427 = vpop.f32.mrb[0].mxu0
  %v428 = vpop.f32.mrb[0].mxu0
  %v429 = vadd.f32 0.0, %v428
  %v430 = vpop.f32.mrb[0].mxu0
  %431 = vmatprep.mubr.bf16.mxu0 0
  %432 = vmatmul.mubr.bf16.gmra.mrb[0].mxu0 %v278
  %v433 = vpop.f32.mrb[0].mxu0
  %v434 = vadd.f32 0.0, %v433
  %v435 = vpop.f32.mrb[0].mxu0
  %v436 = vpop.f32.mrb[0].mxu0
  %v437 = vadd.f32 0.0, %v436
  %v438 = vpop.f32.mrb[0].mxu0
  %439 = vmatprep.mubr.bf16.mxu0 0
  %440 = vmatmul.mubr.bf16.gmra.mrb[0].mxu0 %v281
  %v441 = vpop.f32.mrb[0].mxu0
  %v442 = vadd.f32 0.0, %v441
  %v443 = vpop.f32.mrb[0].mxu0
  %v444 = vpop.f32.mrb[0].mxu0
  %v445 = vadd.f32 0.0, %v444
  %v446 = vpop.f32.mrb[0].mxu0
  %447 = vmatprep.mubr.bf16.mxu0 0
  %448 = vmatmul.mubr.bf16.gmra.mrb[0].mxu0 %v284
  %v449 = vpop.f32.mrb[0].mxu0
  %v450 = vadd.f32 0.0, %v449
  %v451 = vpop.f32.mrb[0].mxu0
  %v452 = vpop.f32.mrb[0].mxu0
  %v453 = vadd.f32 0.0, %v452
  %v454 = vpop.f32.mrb[0].mxu0
  %455 = vmatprep.mubr.bf16.mxu0 0
  %456 = vmatmul.mubr.bf16.gmra.mrb[0].mxu0 %v287
  %v457 = vpop.f32.mrb[0].mxu0
  %v458 = vadd.f32 0.0, %v457
  %v459 = vpop.f32.mrb[0].mxu0
  %v460 = vpop.f32.mrb[0].mxu0
  %v461 = vadd.f32 0.0, %v460
  %v462 = vpop.f32.mrb[0].mxu0
  %463 = vmatprep.mubr.bf16.mxu0 0
  %464 = vmatmul.mubr.bf16.gmra.mrb[0].mxu0 %v290
  %v465 = vpop.f32.mrb[0].mxu0
  %v466 = vadd.f32 0.0, %v465
  %v467 = vpop.f32.mrb[0].mxu0
  %v468 = vpop.f32.mrb[0].mxu0
  %v469 = vadd.f32 0.0, %v468
  %v470 = vpop.f32.mrb[0].mxu0
  %471 = vmatprep.mubr.bf16.mxu0 0
  %472 = vmatmul.mubr.bf16.gmra.mrb[0].mxu0 %v293
  %v473 = vpop.f32.mrb[0].mxu0
  %v474 = vadd.f32 0.0, %v473
  %v475 = vpop.f32.mrb[0].mxu0
  %v476 = vpop.f32.mrb[0].mxu0
  %v477 = vadd.f32 0.0, %v476
  %v478 = vpop.f32.mrb[0].mxu0
  %479 = vmatprep.mubr.bf16.mxu0 0
  %480 = vmatmul.mubr.bf16.gmra.mrb[0].mxu0 %v296
  %v481 = vpop.f32.mrb[0].mxu0
  %v482 = vadd.f32 0.0, %v481
  %v483 = vpop.f32.mrb[0].mxu0
  %v484 = vpop.f32.mrb[0].mxu0
  %v485 = vadd.f32 0.0, %v484
  %v486 = vpop.f32.mrb[0].mxu0
  %487 = vmatprep.mubr.bf16.mxu0 0
  %488 = vmatmul.mubr.bf16.gmra.mrb[0].mxu0 %v299
  %v489 = vpop.f32.mrb[0].mxu0
  %v490 = vadd.f32 0.0, %v489
  %v491 = vpop.f32.mrb[0].mxu0
  %v492 = vpop.f32.mrb[0].mxu0
  %v493 = vadd.f32 0.0, %v492
  %v494 = vpop.f32.mrb[0].mxu0
  %495 = vmatprep.mubr.bf16.mxu0 0
  %496 = vmatmul.mubr.bf16.gmra.mrb[0].mxu0 %v302
  %v497 = vpop.f32.mrb[0].mxu0
  %v498 = vadd.f32 0.0, %v497
  %v499 = vpop.f32.mrb[0].mxu0
  %v500 = vpop.f32.mrb[0].mxu0
  %v501 = vadd.f32 0.0, %v500
  %v502 = vpop.f32.mrb[0].mxu0
  %503 = vmatprep.mubr.bf16.mxu0 0
  %504 = vmatmul.mubr.bf16.gmra.mrb[0].mxu0 %v305
  %v505 = vpop.f32.mrb[0].mxu0
  %v506 = vadd.f32 0.0, %v505
  %v507 = vpop.f32.mrb[0].mxu0
  %v508 = vpop.f32.mrb[0].mxu0
  %v509 = vadd.f32 0.0, %v508
  %v510 = vpop.f32.mrb[0].mxu0
  %511 = vmatprep.mubr.bf16.mxu0 0
  %512 = vmatmul.mubr.bf16.gmra.mrb[0].mxu0 %v308
  %v513 = vpop.f32.mrb[0].mxu0
  %v514 = vadd.f32 0.0, %v513
  %v515 = vpop.f32.mrb[0].mxu0
  %v516 = vpop.f32.mrb[0].mxu0
  %v517 = vadd.f32 0.0, %v516
  %v518 = vpop.f32.mrb[0].mxu0
  %519 = vmatprep.mubr.bf16.mxu0 0
  %520 = vmatmul.mubr.bf16.gmra.mrb[0].mxu0 %v311
  %v521 = vpop.f32.mrb[0].mxu0
  %v522 = vadd.f32 0.0, %v521
  %v523 = vpop.f32.mrb[0].mxu0
  %v524 = vpop.f32.mrb[0].mxu0
  %v525 = vadd.f32 0.0, %v524
  %v526 = vpop.f32.mrb[0].mxu0
  %527 = vmatprep.mubr.bf16.mxu0 0
  %528 = vmatmul.mubr.bf16.gmra.mrb[0].mxu0 %v314
  %v529 = vpop.f32.mrb[0].mxu0
  %v530 = vadd.f32 0.0, %v529
  %v531 = vpop.f32.mrb[0].mxu0
  %v532 = vpop.f32.mrb[0].mxu0
  %v533 = vadd.f32 0.0, %v532
  %v534 = vpop.f32.mrb[0].mxu0
  %535 = vmatprep.mubr.bf16.mxu0 0
  %536 = vmatmul.mubr.bf16.gmra.mrb[0].mxu0 %v317
  %v537 = vpop.f32.mrb[0].mxu0
  %v538 = vadd.f32 0.0, %v537
  %v539 = vpop.f32.mrb[0].mxu0
  %v540 = vpop.f32.mrb[0].mxu0
  %v541 = vadd.f32 0.0, %v540
  %v542 = vpop.f32.mrb[0].mxu0
  %543 = vmatprep.mubr.bf16.mxu0 0
  %544 = vmatmul.mubr.bf16.gmra.mrb[0].mxu0 %v320
  %v545 = vpop.f32.mrb[0].mxu0
  %v546 = vadd.f32 0.0, %v545
  %v547 = vpop.f32.mrb[0].mxu0
  %v548 = vpop.f32.mrb[0].mxu0
  %v549 = vadd.f32 0.0, %v548
  %v550 = vpop.f32.mrb[0].mxu0
  %551 = vmatprep.mubr.bf16.mxu0 0
  %552 = vmatmul.mubr.bf16.gmra.mrb[0].mxu0 %v323
  %v553 = vpop.f32.mrb[0].mxu0
  %v554 = vadd.f32 0.0, %v553
  %v555 = vpop.f32.mrb[0].mxu0
  %v556 = vpop.f32.mrb[0].mxu0
  %v557 = vadd.f32 0.0, %v556
  %v558 = vpop.f32.mrb[0].mxu0
  %559 = vmatprep.mubr.bf16.mxu0 0
  %560 = vmatmul.mubr.bf16.gmra.mrb[0].mxu0 %v326
  %v561 = vpop.f32.mrb[0].mxu0
  %v562 = vadd.f32 0.0, %v561
  %v563 = vpop.f32.mrb[0].mxu0
  %v564 = vpop.f32.mrb[0].mxu0
  %v565 = vadd.f32 0.0, %v564
  %v566 = vpop.f32.mrb[0].mxu0
  %567 = vmatprep.mubr.bf16.mxu0 0
  %568 = vmatmul.mubr.bf16.gmra.mrb[0].mxu0 %v329
  %v569 = vpop.f32.mrb[0].mxu0
  %v570 = vadd.f32 0.0, %v569
  %v571 = vpop.f32.mrb[0].mxu0
  %v572 = vpop.f32.mrb[0].mxu0
  %v573 = vadd.f32 0.0, %v572
  %v574 = vpop.f32.mrb[0].mxu0
  %575 = vmatprep.mubr.bf16.mxu0 0
  %576 = vmatmul.mubr.bf16.gmra.mrb[0].mxu0 %v332
  %v577 = vpop.f32.mrb[0].mxu0
  %v578 = vadd.f32 0.0, %v577
  %v579 = vpop.f32.mrb[0].mxu0
  %v580 = vpop.f32.mrb[0].mxu0
  %v581 = vadd.f32 0.0, %v580
  %v582 = vpop.f32.mrb[0].mxu0
  %583 = vmatprep.mubr.bf16.mxu0 0
  %584 = vmatmul.mubr.bf16.gmra.mrb[0].mxu0 %v335
  %v585 = vpop.f32.mrb[0].mxu0
  %v586 = vadd.f32 0.0, %v585
  %v587 = vpop.f32.mrb[0].mxu0
  %v588 = vpop.f32.mrb[0].mxu0
  %v589 = vadd.f32 0.0, %v588
  %v590 = vpop.f32.mrb[0].mxu0
  %591 = vmatprep.mubr.bf16.mxu0 0
  %592 = vmatmul.mubr.bf16.gmra.mrb[0].mxu0 %v338
  %v593 = vpop.f32.mrb[0].mxu0
  %v594 = vadd.f32 0.0, %v593
  %v595 = vpop.f32.mrb[0].mxu0
  %v596 = vpop.f32.mrb[0].mxu0
  %v597 = vadd.f32 0.0, %v596
  %v598 = vpop.f32.mrb[0].mxu0
  %599 = vmatprep.mubr.bf16.mxu0 0
  %600 = vmatmul.mubr.bf16.gmra.mrb[0].mxu0 %v341
  %v601 = vpop.f32.mrb[0].mxu0
  %v602 = vadd.f32 0.0, %v601
  %v603 = vpop.f32.mrb[0].mxu0
  %v604 = vpop.f32.mrb[0].mxu0
  %v605 = vadd.f32 0.0, %v604
  %v606 = vpop.f32.mrb[0].mxu0
  %607 = vmatprep.mubr.bf16.mxu0 0
  %608 = vmatmul.mubr.bf16.gmra.mrb[0].mxu0 %v344
  %v609 = vpop.f32.mrb[0].mxu0
  %v610 = vadd.f32 0.0, %v609
  %v611 = vpop.f32.mrb[0].mxu0
  %v612 = vpop.f32.mrb[0].mxu0
  %v613 = vadd.f32 0.0, %v612
  %v614 = vpop.f32.mrb[0].mxu0
  %615 = vmatprep.mubr.bf16.mxu0 0
  %616 = vmatmul.mubr.bf16.gmra.mrb[0].mxu0 %v347
  %v617 = vpop.f32.mrb[0].mxu0
  %v618 = vadd.f32 0.0, %v617
  %v619 = vpop.f32.mrb[0].mxu0
  %v620 = vpop.f32.mrb[0].mxu0
  %v621 = vadd.f32 0.0, %v620
  %v622 = vpop.f32.mrb[0].mxu0
  %623 = vmatprep.mubr.bf16.mxu0 0
  %624 = vmatmul.mubr.bf16.gmra.mrb[0].mxu0 %v350
  %v625 = vpop.f32.mrb[0].mxu0
  %v626 = vadd.f32 0.0, %v625
  %v627 = vpop.f32.mrb[0].mxu0
  %v628 = vpop.f32.mrb[0].mxu0
  %v629 = vadd.f32 0.0, %v628
  %v630 = vpop.f32.mrb[0].mxu0
  %631 = vmatprep.mubr.bf16.mxu0 0
  %632 = vmatmul.mubr.bf16.gmra.mrb[0].mxu0 %v353
  %v633 = vpop.f32.mrb[0].mxu0
  %v634 = vadd.f32 0.0, %v633
  %v635 = vpop.f32.mrb[0].mxu0
  %v636 = vpop.f32.mrb[0].mxu0
  %v637 = vadd.f32 0.0, %v636
  %v638 = vpop.f32.mrb[0].mxu0
  %639 = vmatprep.mubr.bf16.mxu0 0
  %640 = vmatmul.mubr.bf16.gmra.mrb[0].mxu0 %v356
  %v641 = vpop.f32.mrb[0].mxu0
  %v642 = vadd.f32 0.0, %v641
  %v643 = vpop.f32.mrb[0].mxu0
  %v644 = vpop.f32.mrb[0].mxu0
  %v645 = vadd.f32 0.0, %v644
  %v646 = vpop.f32.mrb[0].mxu0
  %647 = vmatprep.mubr.bf16.mxu0 0
  %648 = vmatmul.mubr.bf16.gmra.mrb[0].mxu0 %v359
  %v649 = vpop.f32.mrb[0].mxu0
  %v650 = vadd.f32 0.0, %v649
  %v651 = vpop.f32.mrb[0].mxu0
  %v652 = vpop.f32.mrb[0].mxu0
  %v653 = vadd.f32 0.0, %v652
  %v654 = vpop.f32.mrb[0].mxu0
  %655 = vdwg.mxu0
  %v656 = vpack.c.bf16 %v405, %v402
  %v657 = vpack.c.bf16 %v413, %v410
  %v658 = vpack.c.bf16 %v421, %v418
  %v659 = vpack.c.bf16 %v429, %v426
  %v660 = vpack.c.bf16 %v437, %v434
  %v661 = vpack.c.bf16 %v445, %v442
  %v662 = vpack.c.bf16 %v453, %v450
  %v663 = vpack.c.bf16 %v461, %v458
  %v664 = vpack.c.bf16 %v469, %v466
  %v665 = vpack.c.bf16 %v477, %v474
  %v666 = vpack.c.bf16 %v485, %v482
  %v667 = vpack.c.bf16 %v493, %v490
  %v668 = vpack.c.bf16 %v501, %v498
  %v669 = vpack.c.bf16 %v509, %v506
  %v670 = vpack.c.bf16 %v517, %v514
  %v671 = vpack.c.bf16 %v525, %v522
  %v672 = vpack.c.bf16 %v533, %v530
  %v673 = vpack.c.bf16 %v541, %v538
  %v674 = vpack.c.bf16 %v549, %v546
  %v675 = vpack.c.bf16 %v557, %v554
  %v676 = vpack.c.bf16 %v565, %v562
  %v677 = vpack.c.bf16 %v573, %v570
  %v678 = vpack.c.bf16 %v581, %v578
  %v679 = vpack.c.bf16 %v589, %v586
  %v680 = vpack.c.bf16 %v597, %v594
  %v681 = vpack.c.bf16 %v605, %v602
  %v682 = vpack.c.bf16 %v613, %v610
  %v683 = vpack.c.bf16 %v621, %v618
  %v684 = vpack.c.bf16 %v629, %v626
  %v685 = vpack.c.bf16 %v637, %v634
  %v686 = vpack.c.bf16 %v645, %v642
  %v687 = vpack.c.bf16 %v653, %v650
  %v720 = vunpack.c.l.b16 %v656
  %v721 = vunpack.c.h.b16 %v656
  %v722 = vunpack.c.l.b16 %v657
  %v723 = vunpack.c.h.b16 %v657
  %v724 = vunpack.c.l.b16 %v658
  %v725 = vunpack.c.h.b16 %v658
  %v726 = vunpack.c.l.b16 %v659
  %v727 = vunpack.c.h.b16 %v659
  %v728 = vunpack.c.l.b16 %v660
  %v729 = vunpack.c.h.b16 %v660
  %v730 = vunpack.c.l.b16 %v661
  %v731 = vunpack.c.h.b16 %v661
  %v732 = vunpack.c.l.b16 %v662
  %v733 = vunpack.c.h.b16 %v662
  %v734 = vunpack.c.l.b16 %v663
  %v735 = vunpack.c.h.b16 %v663
  %v736 = vunpack.c.l.b16 %v664
  %v737 = vunpack.c.h.b16 %v664
  %v738 = vunpack.c.l.b16 %v665
  %v739 = vunpack.c.h.b16 %v665
  %v740 = vunpack.c.l.b16 %v666
  %v741 = vunpack.c.h.b16 %v666
  %v742 = vunpack.c.l.b16 %v667
  %v743 = vunpack.c.h.b16 %v667
  %v744 = vunpack.c.l.b16 %v668
  %v745 = vunpack.c.h.b16 %v668
  %v746 = vunpack.c.l.b16 %v669
  %v747 = vunpack.c.h.b16 %v669
  %v748 = vunpack.c.l.b16 %v670
  %v749 = vunpack.c.h.b16 %v670
  %v750 = vunpack.c.l.b16 %v671
  %v751 = vunpack.c.h.b16 %v671
  %v752 = vunpack.c.l.b16 %v672
  %v753 = vunpack.c.h.b16 %v672
  %v754 = vunpack.c.l.b16 %v673
  %v755 = vunpack.c.h.b16 %v673
  %v756 = vunpack.c.l.b16 %v674
  %v757 = vunpack.c.h.b16 %v674
  %v758 = vunpack.c.l.b16 %v675
  %v759 = vunpack.c.h.b16 %v675
  %v760 = vunpack.c.l.b16 %v676
  %v761 = vunpack.c.h.b16 %v676
  %v762 = vunpack.c.l.b16 %v677
  %v763 = vunpack.c.h.b16 %v677
  %v764 = vunpack.c.l.b16 %v678
  %v765 = vunpack.c.h.b16 %v678
  %v766 = vunpack.c.l.b16 %v679
  %v767 = vunpack.c.h.b16 %v679
  %v768 = vunpack.c.l.b16 %v680
  %v769 = vunpack.c.h.b16 %v680
  %v770 = vunpack.c.l.b16 %v681
  %v771 = vunpack.c.h.b16 %v681
  %v772 = vunpack.c.l.b16 %v682
  %v773 = vunpack.c.h.b16 %v682
  %v774 = vunpack.c.l.b16 %v683
  %v775 = vunpack.c.h.b16 %v683
  %v776 = vunpack.c.l.b16 %v684
  %v777 = vunpack.c.h.b16 %v684
  %v778 = vunpack.c.l.b16 %v685
  %v779 = vunpack.c.h.b16 %v685
  %v780 = vunpack.c.l.b16 %v686
  %v781 = vunpack.c.h.b16 %v686
  %v782 = vunpack.c.l.b16 %v687
  %v783 = vunpack.c.h.b16 %v687
  %v784 = vpack.c.b16 %v720, %v720
  %v785 = vpack.c.b16 %v721, %v721
  %v786 = vpack.c.b16 %v722, %v722
  %v787 = vpack.c.b16 %v723, %v723
  %v788 = vpack.c.b16 %v724, %v724
  %v789 = vpack.c.b16 %v725, %v725
  %v790 = vpack.c.b16 %v726, %v726
  %v791 = vpack.c.b16 %v727, %v727
  %v792 = vpack.c.b16 %v728, %v728
  %v793 = vpack.c.b16 %v729, %v729
  %v794 = vpack.c.b16 %v730, %v730
  %v795 = vpack.c.b16 %v731, %v731
  %v796 = vpack.c.b16 %v732, %v732
  %v797 = vpack.c.b16 %v733, %v733
  %v798 = vpack.c.b16 %v734, %v734
  %v799 = vpack.c.b16 %v735, %v735
  %v800 = vpack.c.b16 %v736, %v736
  %v801 = vpack.c.b16 %v737, %v737
  %v802 = vpack.c.b16 %v738, %v738
  %v803 = vpack.c.b16 %v739, %v739
  %v804 = vpack.c.b16 %v740, %v740
  %v805 = vpack.c.b16 %v741, %v741
  %v806 = vpack.c.b16 %v742, %v742
  %v807 = vpack.c.b16 %v743, %v743
  %v808 = vpack.c.b16 %v744, %v744
  %v809 = vpack.c.b16 %v745, %v745
  %v810 = vpack.c.b16 %v746, %v746
  %v811 = vpack.c.b16 %v747, %v747
  %v812 = vpack.c.b16 %v748, %v748
  %v813 = vpack.c.b16 %v749, %v749
  %v814 = vpack.c.b16 %v750, %v750
  %v815 = vpack.c.b16 %v751, %v751
  %v816 = vpack.c.b16 %v752, %v752
  %v817 = vpack.c.b16 %v753, %v753
  %v818 = vpack.c.b16 %v754, %v754
  %v819 = vpack.c.b16 %v755, %v755
  %v820 = vpack.c.b16 %v756, %v756
  %v821 = vpack.c.b16 %v757, %v757
  %v822 = vpack.c.b16 %v758, %v758
  %v823 = vpack.c.b16 %v759, %v759
  %v824 = vpack.c.b16 %v760, %v760
  %v825 = vpack.c.b16 %v761, %v761
  %v826 = vpack.c.b16 %v762, %v762
  %v827 = vpack.c.b16 %v763, %v763
  %v828 = vpack.c.b16 %v764, %v764
  %v829 = vpack.c.b16 %v765, %v765
  %v830 = vpack.c.b16 %v766, %v766
  %v831 = vpack.c.b16 %v767, %v767
  %v832 = vpack.c.b16 %v768, %v768
  %v833 = vpack.c.b16 %v769, %v769
  %v834 = vpack.c.b16 %v770, %v770
  %v835 = vpack.c.b16 %v771, %v771
  %v836 = vpack.c.b16 %v772, %v772
  %v837 = vpack.c.b16 %v773, %v773
  %v838 = vpack.c.b16 %v774, %v774
  %v839 = vpack.c.b16 %v775, %v775
  %v840 = vpack.c.b16 %v776, %v776
  %v841 = vpack.c.b16 %v777, %v777
  %v842 = vpack.c.b16 %v778, %v778
  %v843 = vpack.c.b16 %v779, %v779
  %v844 = vpack.c.b16 %v780, %v780
  %v845 = vpack.c.b16 %v781, %v781
  %v846 = vpack.c.b16 %v782, %v782
  %v847 = vpack.c.b16 %v783, %v783
  %vm912 = vcmask 125952
  %913 = vst.msk [vmem:[%s2] sm:$0xf] %vm912, %v784
  %914 = vst.msk [vmem:[%s2 + $0x4] sm:$0xf] %vm912, %v785
  %915 = vst.msk [vmem:[%s2 + $0x8] sm:$0xf] %vm912, %v786
  %916 = vst.msk [vmem:[%s2 + $0xc] sm:$0xf] %vm912, %v787
  %917 = vst.msk [vmem:[%s2 + $0x10] sm:$0xf] %vm912, %v788
  %918 = vst.msk [vmem:[%s2 + $0x14] sm:$0xf] %vm912, %v789
  %919 = vst.msk [vmem:[%s2 + $0x18] sm:$0xf] %vm912, %v790
  %920 = vst.msk [vmem:[%s2 + $0x1c] sm:$0xf] %vm912, %v791
  %921 = vst.msk [vmem:[%s2 + $0x20] sm:$0xf] %vm912, %v792
  %922 = vst.msk [vmem:[%s2 + $0x24] sm:$0xf] %vm912, %v793
  %923 = vst.msk [vmem:[%s2 + $0x28] sm:$0xf] %vm912, %v794
  %924 = vst.msk [vmem:[%s2 + $0x2c] sm:$0xf] %vm912, %v795
  %925 = vst.msk [vmem:[%s2 + $0x30] sm:$0xf] %vm912, %v796
  %926 = vst.msk [vmem:[%s2 + $0x34] sm:$0xf] %vm912, %v797
  %927 = vst.msk [vmem:[%s2 + $0x38] sm:$0xf] %vm912, %v798
  %928 = vst.msk [vmem:[%s2 + $0x3c] sm:$0xf] %vm912, %v799
  %929 = vst.msk [vmem:[%s2 + $0x40] sm:$0xf] %vm912, %v800
  %930 = vst.msk [vmem:[%s2 + $0x44] sm:$0xf] %vm912, %v801
  %931 = vst.msk [vmem:[%s2 + $0x48] sm:$0xf] %vm912, %v802
  %932 = vst.msk [vmem:[%s2 + $0x4c] sm:$0xf] %vm912, %v803
  %933 = vst.msk [vmem:[%s2 + $0x50] sm:$0xf] %vm912, %v804
  %934 = vst.msk [vmem:[%s2 + $0x54] sm:$0xf] %vm912, %v805
  %935 = vst.msk [vmem:[%s2 + $0x58] sm:$0xf] %vm912, %v806
  %936 = vst.msk [vmem:[%s2 + $0x5c] sm:$0xf] %vm912, %v807
  %937 = vst.msk [vmem:[%s2 + $0x60] sm:$0xf] %vm912, %v808
  %938 = vst.msk [vmem:[%s2 + $0x64] sm:$0xf] %vm912, %v809
  %939 = vst.msk [vmem:[%s2 + $0x68] sm:$0xf] %vm912, %v810
  %940 = vst.msk [vmem:[%s2 + $0x6c] sm:$0xf] %vm912, %v811
  %941 = vst.msk [vmem:[%s2 + $0x70] sm:$0xf] %vm912, %v812
  %942 = vst.msk [vmem:[%s2 + $0x74] sm:$0xf] %vm912, %v813
  %943 = vst.msk [vmem:[%s2 + $0x78] sm:$0xf] %vm912, %v814
  %944 = vst.msk [vmem:[%s2 + $0x7c] sm:$0xf] %vm912, %v815
  %945 = vst.msk [vmem:[%s2 + $0x80] sm:$0xf] %vm912, %v816
  %946 = vst.msk [vmem:[%s2 + $0x84] sm:$0xf] %vm912, %v817
  %947 = vst.msk [vmem:[%s2 + $0x88] sm:$0xf] %vm912, %v818
  %948 = vst.msk [vmem:[%s2 + $0x8c] sm:$0xf] %vm912, %v819
  %949 = vst.msk [vmem:[%s2 + $0x90] sm:$0xf] %vm912, %v820
  %950 = vst.msk [vmem:[%s2 + $0x94] sm:$0xf] %vm912, %v821
  %951 = vst.msk [vmem:[%s2 + $0x98] sm:$0xf] %vm912, %v822
  %952 = vst.msk [vmem:[%s2 + $0x9c] sm:$0xf] %vm912, %v823
  %953 = vst.msk [vmem:[%s2 + $0xa0] sm:$0xf] %vm912, %v824
  %954 = vst.msk [vmem:[%s2 + $0xa4] sm:$0xf] %vm912, %v825
  %955 = vst.msk [vmem:[%s2 + $0xa8] sm:$0xf] %vm912, %v826
  %956 = vst.msk [vmem:[%s2 + $0xac] sm:$0xf] %vm912, %v827
  %957 = vst.msk [vmem:[%s2 + $0xb0] sm:$0xf] %vm912, %v828
  %958 = vst.msk [vmem:[%s2 + $0xb4] sm:$0xf] %vm912, %v829
  %959 = vst.msk [vmem:[%s2 + $0xb8] sm:$0xf] %vm912, %v830
  %960 = vst.msk [vmem:[%s2 + $0xbc] sm:$0xf] %vm912, %v831
  %961 = vst.msk [vmem:[%s2 + $0xc0] sm:$0xf] %vm912, %v832
  %962 = vst.msk [vmem:[%s2 + $0xc4] sm:$0xf] %vm912, %v833
  %963 = vst.msk [vmem:[%s2 + $0xc8] sm:$0xf] %vm912, %v834
  %964 = vst.msk [vmem:[%s2 + $0xcc] sm:$0xf] %vm912, %v835
  %965 = vst.msk [vmem:[%s2 + $0xd0] sm:$0xf] %vm912, %v836
  %966 = vst.msk [vmem:[%s2 + $0xd4] sm:$0xf] %vm912, %v837
  %967 = vst.msk [vmem:[%s2 + $0xd8] sm:$0xf] %vm912, %v838
  %968 = vst.msk [vmem:[%s2 + $0xdc] sm:$0xf] %vm912, %v839
  %969 = vst.msk [vmem:[%s2 + $0xe0] sm:$0xf] %vm912, %v840
  %970 = vst.msk [vmem:[%s2 + $0xe4] sm:$0xf] %vm912, %v841
  %971 = vst.msk [vmem:[%s2 + $0xe8] sm:$0xf] %vm912, %v842
  %972 = vst.msk [vmem:[%s2 + $0xec] sm:$0xf] %vm912, %v843
  %973 = vst.msk [vmem:[%s2 + $0xf0] sm:$0xf] %vm912, %v844
  %974 = vst.msk [vmem:[%s2 + $0xf4] sm:$0xf] %vm912, %v845
  %975 = vst.msk [vmem:[%s2 + $0xf8] sm:$0xf] %vm912, %v846
  %976 = vst.msk [vmem:[%s2 + $0xfc] sm:$0xf] %vm912, %v847
  // Predicated region
  $region10: #{densenet_forward.13} parent=0 // pred_check
    _
  $region11: #{densenet_forward.13} parent=0 // pred_check_branch
    %978 = sbr.rel (0) target = $region13
  $region12: #{densenet_forward.13} parent=0 // pred_region
    _
  $region13: #{densenet_forward.13} parent=0 // pred_fallthru
    _
  // Predicated region
  $region14: #{densenet_forward.13} parent=0 // pred_check
    _
  $region15: #{densenet_forward.13} parent=0 // pred_check_branch
    %980 = sbr.rel (0) target = $region17
  $region16: #{densenet_forward.13} parent=0 // pred_region
    _
  $region17: #{densenet_forward.13} parent=0 // pred_fallthru
    _

// kernel: densenet_forward.15
$region0: #{densenet_forward.15}
  #allocation0 [shape = 'u32[]', space=smem, size = 0x4, offset = 0x4, fixed_abs, tag = 'smem constant byte address 0x4 - core index']
  #allocation1 [shape = 'u32[144,128]{1,0:T(1,128)}', space=vmem, size = 0x12000, scoped, tag = 'internal scratch']
  %s0 = inlined_call_operand.vmem [shape: bf16[128,16], index: 0, kind: input, shape index: {}]
  %s1 = inlined_call_operand.vmem [shape: f32[1,16], index: 1, kind: input, shape index: {}]
  %s2 = inlined_call_operand.vmem [shape: f32[1,16], index: 2, kind: input, shape index: {}]
  %s3 = inlined_call_operand.vmem [shape: bf16[16,16], index: 3, kind: input, shape index: {}]
  %s4 = inlined_call_operand.vmem [shape: bf16[128,16], index: 4, kind: output, shape index: {}]
  %s5 = sld [smem:[#allocation0]]
  $region26: #{densenet_forward.15} parent=0
    _
  %s7 = ssub.s32 1, %s5
  %s8 = scalar_select 0, %s7, %s5
  // Predicated region
  $region2: #{densenet_forward.15} parent=0 // pred_check
    _
  $region3: #{densenet_forward.15} parent=0 // pred_check_branch
    %10 = sbr.rel (0) target = $region5
  $region4: #{densenet_forward.15} parent=0 // pred_region
    _
  $region5: #{densenet_forward.15} parent=0 // pred_fallthru
    _
  // Predicated region
  $region6: #{densenet_forward.15} parent=0 // pred_check
    _
  $region7: #{densenet_forward.15} parent=0 // pred_check_branch
    %12 = sbr.rel (0) target = $region9
  $region8: #{densenet_forward.15} parent=0 // pred_region
    _
  $region9: #{densenet_forward.15} parent=0 // pred_fallthru
    _
  // Predicated region
  $region10: #{densenet_forward.15} parent=0 // pred_check
    _
  $region11: #{densenet_forward.15} parent=0 // pred_check_branch
    %14 = sbr.rel (0) target = $region13
  $region12: #{densenet_forward.15} parent=0 // pred_region
    _
  $region13: #{densenet_forward.15} parent=0 // pred_fallthru
    _
  // Predicated region
  $region14: #{densenet_forward.15} parent=0 // pred_check
    _
  $region15: #{densenet_forward.15} parent=0 // pred_check_branch
    %16 = sbr.rel (0) target = $region17
  $region16: #{densenet_forward.15} parent=0 // pred_region
    _
  $region17: #{densenet_forward.15} parent=0 // pred_fallthru
    _
  %v18 = vld [vmem:[%s0] sm:$0xf]
  %v19 = vld [vmem:[%s0 + $0x4] sm:$0xf]
  %v20 = vld [vmem:[%s0 + $0x8] sm:$0xf]
  %v21 = vld [vmem:[%s0 + $0xc] sm:$0xf]
  %v22 = vld [vmem:[%s0 + $0x10] sm:$0xf]
  %v23 = vld [vmem:[%s0 + $0x14] sm:$0xf]
  %v24 = vld [vmem:[%s0 + $0x18] sm:$0xf]
  %v25 = vld [vmem:[%s0 + $0x1c] sm:$0xf]
  %v26 = vld [vmem:[%s0 + $0x20] sm:$0xf]
  %v27 = vld [vmem:[%s0 + $0x24] sm:$0xf]
  %v28 = vld [vmem:[%s0 + $0x28] sm:$0xf]
  %v29 = vld [vmem:[%s0 + $0x2c] sm:$0xf]
  %v30 = vld [vmem:[%s0 + $0x30] sm:$0xf]
  %v31 = vld [vmem:[%s0 + $0x34] sm:$0xf]
  %v32 = vld [vmem:[%s0 + $0x38] sm:$0xf]
  %v33 = vld [vmem:[%s0 + $0x3c] sm:$0xf]
  %v34 = vunpack.c.l.bf16 %v18
  %v35 = vunpack.c.l.bf16 %v19
  %v36 = vunpack.c.l.bf16 %v20
  %v37 = vunpack.c.l.bf16 %v21
  %v38 = vunpack.c.l.bf16 %v22
  %v39 = vunpack.c.l.bf16 %v23
  %v40 = vunpack.c.l.bf16 %v24
  %v41 = vunpack.c.l.bf16 %v25
  %v42 = vunpack.c.l.bf16 %v26
  %v43 = vunpack.c.l.bf16 %v27
  %v44 = vunpack.c.l.bf16 %v28
  %v45 = vunpack.c.l.bf16 %v29
  %v46 = vunpack.c.l.bf16 %v30
  %v47 = vunpack.c.l.bf16 %v31
  %v48 = vunpack.c.l.bf16 %v32
  %v49 = vunpack.c.l.bf16 %v33
  %v50 = vld [vmem:[%s1] sm:$0x1]
  %v52 = vlaneseq
  %v53 = vshrl.u32 %v52, 7
  %v54 = vsub.s32 0, %v53
  %v55 = vrot.slane %v50, %v54
  %v57 = vmul.f32 %v34, %v55
  %v58 = vmul.f32 %v35, %v55
  %v59 = vmul.f32 %v36, %v55
  %v60 = vmul.f32 %v37, %v55
  %v61 = vmul.f32 %v38, %v55
  %v62 = vmul.f32 %v39, %v55
  %v63 = vmul.f32 %v40, %v55
  %v64 = vmul.f32 %v41, %v55
  %v65 = vmul.f32 %v42, %v55
  %v66 = vmul.f32 %v43, %v55
  %v67 = vmul.f32 %v44, %v55
  %v68 = vmul.f32 %v45, %v55
  %v69 = vmul.f32 %v46, %v55
  %v70 = vmul.f32 %v47, %v55
  %v71 = vmul.f32 %v48, %v55
  %v72 = vmul.f32 %v49, %v55
  %v73 = vld [vmem:[%s2] sm:$0x1]
  %v75 = vlaneseq
  %v76 = vshrl.u32 %v75, 7
  %v77 = vsub.s32 0, %v76
  %v78 = vrot.slane %v73, %v77
  %v80 = vadd.f32 %v57, %v78
  %v81 = vadd.f32 %v58, %v78
  %v82 = vadd.f32 %v59, %v78
  %v83 = vadd.f32 %v60, %v78
  %v84 = vadd.f32 %v61, %v78
  %v85 = vadd.f32 %v62, %v78
  %v86 = vadd.f32 %v63, %v78
  %v87 = vadd.f32 %v64, %v78
  %v88 = vadd.f32 %v65, %v78
  %v89 = vadd.f32 %v66, %v78
  %v90 = vadd.f32 %v67, %v78
  %v91 = vadd.f32 %v68, %v78
  %v92 = vadd.f32 %v69, %v78
  %v93 = vadd.f32 %v70, %v78
  %v94 = vadd.f32 %v71, %v78
  %v95 = vadd.f32 %v72, %v78
  %v96 = vmax.f32 %v80, 0.0
  %v97 = vmax.f32 %v81, 0.0
  %v98 = vmax.f32 %v82, 0.0
  %v99 = vmax.f32 %v83, 0.0
  %v100 = vmax.f32 %v84, 0.0
  %v101 = vmax.f32 %v85, 0.0
  %v102 = vmax.f32 %v86, 0.0
  %v103 = vmax.f32 %v87, 0.0
  %v104 = vmax.f32 %v88, 0.0
  %v105 = vmax.f32 %v89, 0.0
  %v106 = vmax.f32 %v90, 0.0
  %v107 = vmax.f32 %v91, 0.0
  %v108 = vmax.f32 %v92, 0.0
  %v109 = vmax.f32 %v93, 0.0
  %v110 = vmax.f32 %v94, 0.0
  %v111 = vmax.f32 %v95, 0.0
  %v112 = vpack.c.bf16 %v97, %v96
  %v113 = vpack.c.bf16 %v99, %v98
  %v114 = vpack.c.bf16 %v101, %v100
  %v115 = vpack.c.bf16 %v103, %v102
  %v116 = vpack.c.bf16 %v105, %v104
  %v117 = vpack.c.bf16 %v107, %v106
  %v118 = vpack.c.bf16 %v109, %v108
  %v119 = vpack.c.bf16 %v111, %v110
  %v120 = vld [vmem:[%s3] sm:$0xf]
  %v121 = vld [vmem:[%s3 + $0x4] sm:$0xf]
  %v124 = vunpack.c.l.b16 %v120
  %v125 = vunpack.c.l.b16 %v121
  %v126 = vpack.c.b16 %v125, %v124
  %vm128 = vcmask 130048
  %v130 = vsel %vm128, %v112, 0
  %v133 = vsel %vm128, %v113, 0
  %v136 = vsel %vm128, %v114, 0
  %v139 = vsel %vm128, %v115, 0
  %v142 = vsel %vm128, %v116, 0
  %v145 = vsel %vm128, %v117, 0
  %v148 = vsel %vm128, %v118, 0
  %v151 = vsel %vm128, %v119, 0
  %153 = vmatprep.subr.bf16.mxu0 0
  %154 = vmatpush1.bf16.msra.mxu0 %v126
  %155 = vmatprep.subr.bf16.mxu0 0
  %156 = vmatpush1.bf16.msra.mxu0 0
  %157 = vmatprep.subr.bf16.mxu0 0
  %158 = vmatpush1.bf16.msra.mxu0 0
  %159 = vmatprep.subr.bf16.mxu0 0
  %160 = vmatpush1.bf16.msra.mxu0 0
  %161 = vmatprep.subr.bf16.mxu0 0
  %162 = vmatpush1.bf16.msra.mxu0 0
  %163 = vmatprep.subr.bf16.mxu0 0
  %164 = vmatpush1.bf16.msra.mxu0 0
  %165 = vmatprep.subr.bf16.mxu0 0
  %166 = vmatpush1.bf16.msra.mxu0 0
  %167 = vmatprep.subr.bf16.mxu0 0
  %168 = vmatpush1.bf16.msra.mxu0 0
  %169 = vmatprep.subr.bf16.mxu0 0
  %170 = vmatpush1.bf16.msra.mxu0 0
  %171 = vmatprep.subr.bf16.mxu0 0
  %172 = vmatpush1.bf16.msra.mxu0 0
  %173 = vmatprep.subr.bf16.mxu0 0
  %174 = vmatpush1.bf16.msra.mxu0 0
  %175 = vmatprep.subr.bf16.mxu0 0
  %176 = vmatpush1.bf16.msra.mxu0 0
  %177 = vmatprep.subr.bf16.mxu0 0
  %178 = vmatpush1.bf16.msra.mxu0 0
  %179 = vmatprep.subr.bf16.mxu0 0
  %180 = vmatpush1.bf16.msra.mxu0 0
  %181 = vmatprep.subr.bf16.mxu0 0
  %182 = vmatpush1.bf16.msra.mxu0 0
  %183 = vmatprep.subr.bf16.mxu0 0
  %184 = vmatpush1.bf16.msra.mxu0 0
  %185 = vmatprep.mubr.bf16.mxu0 0
  %186 = vmatmul.mubr.bf16.gmra.mrb[0].mxu0 %v130
  %v187 = vpop.f32.mrb[0].mxu0
  %v188 = vadd.f32 0.0, %v187
  %v189 = vpop.f32.mrb[0].mxu0
  %v190 = vpop.f32.mrb[0].mxu0
  %v191 = vadd.f32 0.0, %v190
  %v192 = vpop.f32.mrb[0].mxu0
  %193 = vmatprep.mubr.bf16.mxu0 0
  %194 = vmatmul.mubr.bf16.gmra.mrb[0].mxu0 %v133
  %v195 = vpop.f32.mrb[0].mxu0
  %v196 = vadd.f32 0.0, %v195
  %v197 = vpop.f32.mrb[0].mxu0
  %v198 = vpop.f32.mrb[0].mxu0
  %v199 = vadd.f32 0.0, %v198
  %v200 = vpop.f32.mrb[0].mxu0
  %201 = vmatprep.mubr.bf16.mxu0 0
  %202 = vmatmul.mubr.bf16.gmra.mrb[0].mxu0 %v136
  %v203 = vpop.f32.mrb[0].mxu0
  %v204 = vadd.f32 0.0, %v203
  %v205 = vpop.f32.mrb[0].mxu0
  %v206 = vpop.f32.mrb[0].mxu0
  %v207 = vadd.f32 0.0, %v206
  %v208 = vpop.f32.mrb[0].mxu0
  %209 = vmatprep.mubr.bf16.mxu0 0
  %210 = vmatmul.mubr.bf16.gmra.mrb[0].mxu0 %v139
  %v211 = vpop.f32.mrb[0].mxu0
  %v212 = vadd.f32 0.0, %v211
  %v213 = vpop.f32.mrb[0].mxu0
  %v214 = vpop.f32.mrb[0].mxu0
  %v215 = vadd.f32 0.0, %v214
  %v216 = vpop.f32.mrb[0].mxu0
  %217 = vmatprep.mubr.bf16.mxu0 0
  %218 = vmatmul.mubr.bf16.gmra.mrb[0].mxu0 %v142
  %v219 = vpop.f32.mrb[0].mxu0
  %v220 = vadd.f32 0.0, %v219
  %v221 = vpop.f32.mrb[0].mxu0
  %v222 = vpop.f32.mrb[0].mxu0
  %v223 = vadd.f32 0.0, %v222
  %v224 = vpop.f32.mrb[0].mxu0
  %225 = vmatprep.mubr.bf16.mxu0 0
  %226 = vmatmul.mubr.bf16.gmra.mrb[0].mxu0 %v145
  %v227 = vpop.f32.mrb[0].mxu0
  %v228 = vadd.f32 0.0, %v227
  %v229 = vpop.f32.mrb[0].mxu0
  %v230 = vpop.f32.mrb[0].mxu0
  %v231 = vadd.f32 0.0, %v230
  %v232 = vpop.f32.mrb[0].mxu0
  %233 = vmatprep.mubr.bf16.mxu0 0
  %234 = vmatmul.mubr.bf16.gmra.mrb[0].mxu0 %v148
  %v235 = vpop.f32.mrb[0].mxu0
  %v236 = vadd.f32 0.0, %v235
  %v237 = vpop.f32.mrb[0].mxu0
  %v238 = vpop.f32.mrb[0].mxu0
  %v239 = vadd.f32 0.0, %v238
  %v240 = vpop.f32.mrb[0].mxu0
  %241 = vmatprep.mubr.bf16.mxu0 0
  %242 = vmatmul.mubr.bf16.gmra.mrb[0].mxu0 %v151
  %v243 = vpop.f32.mrb[0].mxu0
  %v244 = vadd.f32 0.0, %v243
  %v245 = vpop.f32.mrb[0].mxu0
  %v246 = vpop.f32.mrb[0].mxu0
  %v247 = vadd.f32 0.0, %v246
  %v248 = vpop.f32.mrb[0].mxu0
  %249 = vdwg.mxu0
  %v250 = vpack.c.bf16 %v191, %v188
  %v251 = vpack.c.bf16 %v199, %v196
  %v252 = vpack.c.bf16 %v207, %v204
  %v253 = vpack.c.bf16 %v215, %v212
  %v254 = vpack.c.bf16 %v223, %v220
  %v255 = vpack.c.bf16 %v231, %v228
  %v256 = vpack.c.bf16 %v239, %v236
  %v257 = vpack.c.bf16 %v247, %v244
  %v266 = vunpack.c.l.b16 %v250
  %v267 = vunpack.c.h.b16 %v250
  %v268 = vunpack.c.l.b16 %v251
  %v269 = vunpack.c.h.b16 %v251
  %v270 = vunpack.c.l.b16 %v252
  %v271 = vunpack.c.h.b16 %v252
  %v272 = vunpack.c.l.b16 %v253
  %v273 = vunpack.c.h.b16 %v253
  %v274 = vunpack.c.l.b16 %v254
  %v275 = vunpack.c.h.b16 %v254
  %v276 = vunpack.c.l.b16 %v255
  %v277 = vunpack.c.h.b16 %v255
  %v278 = vunpack.c.l.b16 %v256
  %v279 = vunpack.c.h.b16 %v256
  %v280 = vunpack.c.l.b16 %v257
  %v281 = vunpack.c.h.b16 %v257
  %v282 = vpack.c.b16 %v266, %v266
  %v283 = vpack.c.b16 %v267, %v267
  %v284 = vpack.c.b16 %v268, %v268
  %v285 = vpack.c.b16 %v269, %v269
  %v286 = vpack.c.b16 %v270, %v270
  %v287 = vpack.c.b16 %v271, %v271
  %v288 = vpack.c.b16 %v272, %v272
  %v289 = vpack.c.b16 %v273, %v273
  %v290 = vpack.c.b16 %v274, %v274
  %v291 = vpack.c.b16 %v275, %v275
  %v292 = vpack.c.b16 %v276, %v276
  %v293 = vpack.c.b16 %v277, %v277
  %v294 = vpack.c.b16 %v278, %v278
  %v295 = vpack.c.b16 %v279, %v279
  %v296 = vpack.c.b16 %v280, %v280
  %v297 = vpack.c.b16 %v281, %v281
  %vm314 = vcmask 125952
  %315 = vst.msk [vmem:[%s4] sm:$0xf] %vm314, %v282
  %316 = vst.msk [vmem:[%s4 + $0x4] sm:$0xf] %vm314, %v283
  %317 = vst.msk [vmem:[%s4 + $0x8] sm:$0xf] %vm314, %v284
  %318 = vst.msk [vmem:[%s4 + $0xc] sm:$0xf] %vm314, %v285
  %319 = vst.msk [vmem:[%s4 + $0x10] sm:$0xf] %vm314, %v286
  %320 = vst.msk [vmem:[%s4 + $0x14] sm:$0xf] %vm314, %v287
  %321 = vst.msk [vmem:[%s4 + $0x18] sm:$0xf] %vm314, %v288
  %322 = vst.msk [vmem:[%s4 + $0x1c] sm:$0xf] %vm314, %v289
  %323 = vst.msk [vmem:[%s4 + $0x20] sm:$0xf] %vm314, %v290
  %324 = vst.msk [vmem:[%s4 + $0x24] sm:$0xf] %vm314, %v291
  %325 = vst.msk [vmem:[%s4 + $0x28] sm:$0xf] %vm314, %v292
  %326 = vst.msk [vmem:[%s4 + $0x2c] sm:$0xf] %vm314, %v293
  %327 = vst.msk [vmem:[%s4 + $0x30] sm:$0xf] %vm314, %v294
  %328 = vst.msk [vmem:[%s4 + $0x34] sm:$0xf] %vm314, %v295
  %329 = vst.msk [vmem:[%s4 + $0x38] sm:$0xf] %vm314, %v296
  %330 = vst.msk [vmem:[%s4 + $0x3c] sm:$0xf] %vm314, %v297
  // Predicated region
  $region18: #{densenet_forward.15} parent=0 // pred_check
    _
  $region19: #{densenet_forward.15} parent=0 // pred_check_branch
    %332 = sbr.rel (0) target = $region21
  $region20: #{densenet_forward.15} parent=0 // pred_region
    _
  $region21: #{densenet_forward.15} parent=0 // pred_fallthru
    _
  // Predicated region
  $region22: #{densenet_forward.15} parent=0 // pred_check
    _
  $region23: #{densenet_forward.15} parent=0 // pred_check_branch
    %334 = sbr.rel (0) target = $region25
  $region24: #{densenet_forward.15} parent=0 // pred_region
    _
  $region25: #{densenet_forward.15} parent=0 // pred_fallthru
    _

// kernel: densenet_forward.14
$region0: #{densenet_forward.14}
  #allocation0 [shape = 'u32[]', space=smem, size = 0x4, offset = 0x4, fixed_abs, tag = 'smem constant byte address 0x4 - core index']
  #allocation1 [shape = 'u32[144,128]{1,0:T(1,128)}', space=vmem, size = 0x12000, scoped, tag = 'internal scratch']
  #allocation2 [shape = 'f32[686,16]{1,0:T(8,128)}', space=vmem, size = 0x56000, scoped, tag = 'scratch operand']
  %s0 = inlined_call_operand.vmem [shape: bf16[972,16], index: 0, kind: input, shape index: {}]
  %s1 = inlined_call_operand.vmem [shape: f32[972,1], index: 1, kind: input, shape index: {}]
  %s2 = inlined_call_operand.vmem [shape: f32[1,16], index: 2, kind: input, shape index: {}]
  %s3 = inlined_call_operand.vmem [shape: f32[1,16], index: 3, kind: input, shape index: {}]
  %s4 = inlined_call_operand.vmem [shape: bf16[648,16], index: 4, kind: output, shape index: {}]
  %s5 = sld [smem:[#allocation0]]
  $region26: #{densenet_forward.14} parent=0
    _
  %s7 = ssub.s32 1, %s5
  %s8 = scalar_select 0, %s7, %s5
  // Predicated region
  $region2: #{densenet_forward.14} parent=0 // pred_check
    _
  $region3: #{densenet_forward.14} parent=0 // pred_check_branch
    %10 = sbr.rel (0) target = $region5
  $region4: #{densenet_forward.14} parent=0 // pred_region
    _
  $region5: #{densenet_forward.14} parent=0 // pred_fallthru
    _
  // Predicated region
  $region6: #{densenet_forward.14} parent=0 // pred_check
    _
  $region7: #{densenet_forward.14} parent=0 // pred_check_branch
    %12 = sbr.rel (0) target = $region9
  $region8: #{densenet_forward.14} parent=0 // pred_region
    _
  $region9: #{densenet_forward.14} parent=0 // pred_fallthru
    _
  // Predicated region
  $region10: #{densenet_forward.14} parent=0 // pred_check
    _
  $region11: #{densenet_forward.14} parent=0 // pred_check_branch
    %14 = sbr.rel (0) target = $region13
  $region12: #{densenet_forward.14} parent=0 // pred_region
    _
  $region13: #{densenet_forward.14} parent=0 // pred_fallthru
    _
  // Predicated region
  $region14: #{densenet_forward.14} parent=0 // pred_check
    _
  $region15: #{densenet_forward.14} parent=0 // pred_check_branch
    %16 = sbr.rel (0) target = $region17
  $region16: #{densenet_forward.14} parent=0 // pred_region
    _
  $region17: #{densenet_forward.14} parent=0 // pred_fallthru
    _
  %s17 = smul.u32 0, 648
  %s18 = sshra.s32 %s17, 3
  %s19 = sand.u32 %s17, 7
  %s20 = smul.addr %s18, 4
  %s21 = scalar_lea.vmem %s0, %s20
  %v22 = vld [vmem:[%s21] sm:$0xf]
  %v23 = vld [vmem:[%s21 + $0x4] sm:$0xf]
  %v24 = vld [vmem:[%s21 + $0x8] sm:$0xf]
  %v25 = vld [vmem:[%s21 + $0xc] sm:$0xf]
  %v26 = vld [vmem:[%s21 + $0x10] sm:$0xf]
  %v27 = vld [vmem:[%s21 + $0x14] sm:$0xf]
  %v28 = vld [vmem:[%s21 + $0x18] sm:$0xf]
  %v29 = vld [vmem:[%s21 + $0x1c] sm:$0xf]
  %v30 = vld [vmem:[%s21 + $0x20] sm:$0xf]
  %v31 = vld [vmem:[%s21 + $0x24] sm:$0xf]
  %v32 = vld [vmem:[%s21 + $0x28] sm:$0xf]
  %v33 = vld [vmem:[%s21 + $0x2c] sm:$0xf]
  %v34 = vld [vmem:[%s21 + $0x30] sm:$0xf]
  %v35 = vld [vmem:[%s21 + $0x34] sm:$0xf]
  %v36 = vld [vmem:[%s21 + $0x38] sm:$0xf]
  %v37 = vld [vmem:[%s21 + $0x3c] sm:$0xf]
  %v38 = vld [vmem:[%s21 + $0x40] sm:$0xf]
  %v39 = vld [vmem:[%s21 + $0x44] sm:$0xf]
  %v40 = vld [vmem:[%s21 + $0x48] sm:$0xf]
  %v41 = vld [vmem:[%s21 + $0x4c] sm:$0xf]
  %v42 = vld [vmem:[%s21 + $0x50] sm:$0xf]
  %v43 = vld [vmem:[%s21 + $0x54] sm:$0xf]
  %v44 = vld [vmem:[%s21 + $0x58] sm:$0xf]
  %v45 = vld [vmem:[%s21 + $0x5c] sm:$0xf]
  %v46 = vld [vmem:[%s21 + $0x60] sm:$0xf]
  %v47 = vld [vmem:[%s21 + $0x64] sm:$0xf]
  %v48 = vld [vmem:[%s21 + $0x68] sm:$0xf]
  %v49 = vld [vmem:[%s21 + $0x6c] sm:$0xf]
  %v50 = vld [vmem:[%s21 + $0x70] sm:$0xf]
  %v51 = vld [vmem:[%s21 + $0x74] sm:$0xf]
  %v52 = vld [vmem:[%s21 + $0x78] sm:$0xf]
  %v53 = vld [vmem:[%s21 + $0x7c] sm:$0xf]
  %v54 = vld [vmem:[%s21 + $0x80] sm:$0xf]
  %v55 = vld [vmem:[%s21 + $0x84] sm:$0xf]
  %v56 = vld [vmem:[%s21 + $0x88] sm:$0xf]
  %v57 = vld [vmem:[%s21 + $0x8c] sm:$0xf]
  %v58 = vld [vmem:[%s21 + $0x90] sm:$0xf]
  %v59 = vld [vmem:[%s21 + $0x94] sm:$0xf]
  %v60 = vld [vmem:[%s21 + $0x98] sm:$0xf]
  %v61 = vld [vmem:[%s21 + $0x9c] sm:$0xf]
  %v62 = vld [vmem:[%s21 + $0xa0] sm:$0xf]
  %v63 = vld [vmem:[%s21 + $0xa4] sm:$0xf]
  %v64 = vld [vmem:[%s21 + $0xa8] sm:$0xf]
  %v65 = vld [vmem:[%s21 + $0xac] sm:$0xf]
  %v66 = vld [vmem:[%s21 + $0xb0] sm:$0xf]
  %v67 = vld [vmem:[%s21 + $0xb4] sm:$0xf]
  %v68 = vld [vmem:[%s21 + $0xb8] sm:$0xf]
  %v69 = vld [vmem:[%s21 + $0xbc] sm:$0xf]
  %v70 = vld [vmem:[%s21 + $0xc0] sm:$0xf]
  %v71 = vld [vmem:[%s21 + $0xc4] sm:$0xf]
  %v72 = vld [vmem:[%s21 + $0xc8] sm:$0xf]
  %v73 = vld [vmem:[%s21 + $0xcc] sm:$0xf]
  %v74 = vld [vmem:[%s21 + $0xd0] sm:$0xf]
  %v75 = vld [vmem:[%s21 + $0xd4] sm:$0xf]
  %v76 = vld [vmem:[%s21 + $0xd8] sm:$0xf]
  %v77 = vld [vmem:[%s21 + $0xdc] sm:$0xf]
  %v78 = vld [vmem:[%s21 + $0xe0] sm:$0xf]
  %v79 = vld [vmem:[%s21 + $0xe4] sm:$0xf]
  %v80 = vld [vmem:[%s21 + $0xe8] sm:$0xf]
  %v81 = vld [vmem:[%s21 + $0xec] sm:$0xf]
  %v82 = vld [vmem:[%s21 + $0xf0] sm:$0xf]
  %v83 = vld [vmem:[%s21 + $0xf4] sm:$0xf]
  %v84 = vld [vmem:[%s21 + $0xf8] sm:$0xf]
  %v85 = vld [vmem:[%s21 + $0xfc] sm:$0xf]
  %v86 = vld [vmem:[%s21 + $0x100] sm:$0xf]
  %v87 = vld [vmem:[%s21 + $0x104] sm:$0xf]
  %v88 = vld [vmem:[%s21 + $0x108] sm:$0xf]
  %v89 = vld [vmem:[%s21 + $0x10c] sm:$0xf]
  %v90 = vld [vmem:[%s21 + $0x110] sm:$0xf]
  %v91 = vld [vmem:[%s21 + $0x114] sm:$0xf]
  %v92 = vld [vmem:[%s21 + $0x118] sm:$0xf]
  %v93 = vld [vmem:[%s21 + $0x11c] sm:$0xf]
  %v94 = vld [vmem:[%s21 + $0x120] sm:$0xf]
  %v95 = vld [vmem:[%s21 + $0x124] sm:$0xf]
  %v96 = vld [vmem:[%s21 + $0x128] sm:$0xf]
  %v97 = vld [vmem:[%s21 + $0x12c] sm:$0xf]
  %v98 = vld [vmem:[%s21 + $0x130] sm:$0xf]
  %v99 = vld [vmem:[%s21 + $0x134] sm:$0xf]
  %v100 = vld [vmem:[%s21 + $0x138] sm:$0xf]
  %v101 = vld [vmem:[%s21 + $0x13c] sm:$0xf]
  %v102 = vld [vmem:[%s21 + $0x140] sm:$0xf]
  %v103 = vld [vmem:[%s21 + $0x144] sm:$0xf]
  %v104 = vld [vmem:[%s21 + $0x148] sm:$0xf]
  %v105 = vld [vmem:[%s21 + $0x14c] sm:$0xf]
  %v106 = vld [vmem:[%s21 + $0x150] sm:$0xf]
  %v107 = vld [vmem:[%s21 + $0x154] sm:$0x7]
  %v108 = vunpack.c.l.bf16 %v22
  %v109 = vunpack.c.l.bf16 %v23
  %v110 = vunpack.c.l.bf16 %v24
  %v111 = vunpack.c.l.bf16 %v25
  %v112 = vunpack.c.l.bf16 %v26
  %v113 = vunpack.c.l.bf16 %v27
  %v114 = vunpack.c.l.bf16 %v28
  %v115 = vunpack.c.l.bf16 %v29
  %v116 = vunpack.c.l.bf16 %v30
  %v117 = vunpack.c.l.bf16 %v31
  %v118 = vunpack.c.l.bf16 %v32
  %v119 = vunpack.c.l.bf16 %v33
  %v120 = vunpack.c.l.bf16 %v34
  %v121 = vunpack.c.l.bf16 %v35
  %v122 = vunpack.c.l.bf16 %v36
  %v123 = vunpack.c.l.bf16 %v37
  %v124 = vunpack.c.l.bf16 %v38
  %v125 = vunpack.c.l.bf16 %v39
  %v126 = vunpack.c.l.bf16 %v40
  %v127 = vunpack.c.l.bf16 %v41
  %v128 = vunpack.c.l.bf16 %v42
  %v129 = vunpack.c.l.bf16 %v43
  %v130 = vunpack.c.l.bf16 %v44
  %v131 = vunpack.c.l.bf16 %v45
  %v132 = vunpack.c.l.bf16 %v46
  %v133 = vunpack.c.l.bf16 %v47
  %v134 = vunpack.c.l.bf16 %v48
  %v135 = vunpack.c.l.bf16 %v49
  %v136 = vunpack.c.l.bf16 %v50
  %v137 = vunpack.c.l.bf16 %v51
  %v138 = vunpack.c.l.bf16 %v52
  %v139 = vunpack.c.l.bf16 %v53
  %v140 = vunpack.c.l.bf16 %v54
  %v141 = vunpack.c.l.bf16 %v55
  %v142 = vunpack.c.l.bf16 %v56
  %v143 = vunpack.c.l.bf16 %v57
  %v144 = vunpack.c.l.bf16 %v58
  %v145 = vunpack.c.l.bf16 %v59
  %v146 = vunpack.c.l.bf16 %v60
  %v147 = vunpack.c.l.bf16 %v61
  %v148 = vunpack.c.l.bf16 %v62
  %v149 = vunpack.c.l.bf16 %v63
  %v150 = vunpack.c.l.bf16 %v64
  %v151 = vunpack.c.l.bf16 %v65
  %v152 = vunpack.c.l.bf16 %v66
  %v153 = vunpack.c.l.bf16 %v67
  %v154 = vunpack.c.l.bf16 %v68
  %v155 = vunpack.c.l.bf16 %v69
  %v156 = vunpack.c.l.bf16 %v70
  %v157 = vunpack.c.l.bf16 %v71
  %v158 = vunpack.c.l.bf16 %v72
  %v159 = vunpack.c.l.bf16 %v73
  %v160 = vunpack.c.l.bf16 %v74
  %v161 = vunpack.c.l.bf16 %v75
  %v162 = vunpack.c.l.bf16 %v76
  %v163 = vunpack.c.l.bf16 %v77
  %v164 = vunpack.c.l.bf16 %v78
  %v165 = vunpack.c.l.bf16 %v79
  %v166 = vunpack.c.l.bf16 %v80
  %v167 = vunpack.c.l.bf16 %v81
  %v168 = vunpack.c.l.bf16 %v82
  %v169 = vunpack.c.l.bf16 %v83
  %v170 = vunpack.c.l.bf16 %v84
  %v171 = vunpack.c.l.bf16 %v85
  %v172 = vunpack.c.l.bf16 %v86
  %v173 = vunpack.c.l.bf16 %v87
  %v174 = vunpack.c.l.bf16 %v88
  %v175 = vunpack.c.l.bf16 %v89
  %v176 = vunpack.c.l.bf16 %v90
  %v177 = vunpack.c.l.bf16 %v91
  %v178 = vunpack.c.l.bf16 %v92
  %v179 = vunpack.c.l.bf16 %v93
  %v180 = vunpack.c.l.bf16 %v94
  %v181 = vunpack.c.l.bf16 %v95
  %v182 = vunpack.c.l.bf16 %v96
  %v183 = vunpack.c.l.bf16 %v97
  %v184 = vunpack.c.l.bf16 %v98
  %v185 = vunpack.c.l.bf16 %v99
  %v186 = vunpack.c.l.bf16 %v100
  %v187 = vunpack.c.l.bf16 %v101
  %v188 = vunpack.c.l.bf16 %v102
  %v189 = vunpack.c.l.bf16 %v103
  %v190 = vunpack.c.l.bf16 %v104
  %v191 = vunpack.c.l.bf16 %v105
  %v192 = vunpack.c.l.bf16 %v106
  %v193 = vunpack.c.l.bf16 %v107
  %s194 = scalar_lea.vmem %s1, %s17
  %v195 = vld [vmem:[%s194] sm:$0xff]
  %v196 = vld [vmem:[%s194 + $0x8] sm:$0xff]
  %v197 = vld [vmem:[%s194 + $0x10] sm:$0xff]
  %v198 = vld [vmem:[%s194 + $0x18] sm:$0xff]
  %v199 = vld [vmem:[%s194 + $0x20] sm:$0xff]
  %v200 = vld [vmem:[%s194 + $0x28] sm:$0xff]
  %v201 = vld [vmem:[%s194 + $0x30] sm:$0xff]
  %v202 = vld [vmem:[%s194 + $0x38] sm:$0xff]
  %v203 = vld [vmem:[%s194 + $0x40] sm:$0xff]
  %v204 = vld [vmem:[%s194 + $0x48] sm:$0xff]
  %v205 = vld [vmem:[%s194 + $0x50] sm:$0xff]
  %v206 = vld [vmem:[%s194 + $0x58] sm:$0xff]
  %v207 = vld [vmem:[%s194 + $0x60] sm:$0xff]
  %v208 = vld [vmem:[%s194 + $0x68] sm:$0xff]
  %v209 = vld [vmem:[%s194 + $0x70] sm:$0xff]
  %v210 = vld [vmem:[%s194 + $0x78] sm:$0xff]
  %v211 = vld [vmem:[%s194 + $0x80] sm:$0xff]
  %v212 = vld [vmem:[%s194 + $0x88] sm:$0xff]
  %v213 = vld [vmem:[%s194 + $0x90] sm:$0xff]
  %v214 = vld [vmem:[%s194 + $0x98] sm:$0xff]
  %v215 = vld [vmem:[%s194 + $0xa0] sm:$0xff]
  %v216 = vld [vmem:[%s194 + $0xa8] sm:$0xff]
  %v217 = vld [vmem:[%s194 + $0xb0] sm:$0xff]
  %v218 = vld [vmem:[%s194 + $0xb8] sm:$0xff]
  %v219 = vld [vmem:[%s194 + $0xc0] sm:$0xff]
  %v220 = vld [vmem:[%s194 + $0xc8] sm:$0xff]
  %v221 = vld [vmem:[%s194 + $0xd0] sm:$0xff]
  %v222 = vld [vmem:[%s194 + $0xd8] sm:$0xff]
  %v223 = vld [vmem:[%s194 + $0xe0] sm:$0xff]
  %v224 = vld [vmem:[%s194 + $0xe8] sm:$0xff]
  %v225 = vld [vmem:[%s194 + $0xf0] sm:$0xff]
  %v226 = vld [vmem:[%s194 + $0xf8] sm:$0xff]
  %v227 = vld [vmem:[%s194 + $0x100] sm:$0xff]
  %v228 = vld [vmem:[%s194 + $0x108] sm:$0xff]
  %v229 = vld [vmem:[%s194 + $0x110] sm:$0xff]
  %v230 = vld [vmem:[%s194 + $0x118] sm:$0xff]
  %v231 = vld [vmem:[%s194 + $0x120] sm:$0xff]
  %v232 = vld [vmem:[%s194 + $0x128] sm:$0xff]
  %v233 = vld [vmem:[%s194 + $0x130] sm:$0xff]
  %v234 = vld [vmem:[%s194 + $0x138] sm:$0xff]
  %v235 = vld [vmem:[%s194 + $0x140] sm:$0xff]
  %v236 = vld [vmem:[%s194 + $0x148] sm:$0xff]
  %v237 = vld [vmem:[%s194 + $0x150] sm:$0xff]
  %v238 = vld [vmem:[%s194 + $0x158] sm:$0xff]
  %v239 = vld [vmem:[%s194 + $0x160] sm:$0xff]
  %v240 = vld [vmem:[%s194 + $0x168] sm:$0xff]
  %v241 = vld [vmem:[%s194 + $0x170] sm:$0xff]
  %v242 = vld [vmem:[%s194 + $0x178] sm:$0xff]
  %v243 = vld [vmem:[%s194 + $0x180] sm:$0xff]
  %v244 = vld [vmem:[%s194 + $0x188] sm:$0xff]
  %v245 = vld [vmem:[%s194 + $0x190] sm:$0xff]
  %v246 = vld [vmem:[%s194 + $0x198] sm:$0xff]
  %v247 = vld [vmem:[%s194 + $0x1a0] sm:$0xff]
  %v248 = vld [vmem:[%s194 + $0x1a8] sm:$0xff]
  %v249 = vld [vmem:[%s194 + $0x1b0] sm:$0xff]
  %v250 = vld [vmem:[%s194 + $0x1b8] sm:$0xff]
  %v251 = vld [vmem:[%s194 + $0x1c0] sm:$0xff]
  %v252 = vld [vmem:[%s194 + $0x1c8] sm:$0xff]
  %v253 = vld [vmem:[%s194 + $0x1d0] sm:$0xff]
  %v254 = vld [vmem:[%s194 + $0x1d8] sm:$0xff]
  %v255 = vld [vmem:[%s194 + $0x1e0] sm:$0xff]
  %v256 = vld [vmem:[%s194 + $0x1e8] sm:$0xff]
  %v257 = vld [vmem:[%s194 + $0x1f0] sm:$0xff]
  %v258 = vld [vmem:[%s194 + $0x1f8] sm:$0xff]
  %v259 = vld [vmem:[%s194 + $0x200] sm:$0xff]
  %v260 = vld [vmem:[%s194 + $0x208] sm:$0xff]
  %v261 = vld [vmem:[%s194 + $0x210] sm:$0xff]
  %v262 = vld [vmem:[%s194 + $0x218] sm:$0xff]
  %v263 = vld [vmem:[%s194 + $0x220] sm:$0xff]
  %v264 = vld [vmem:[%s194 + $0x228] sm:$0xff]
  %v265 = vld [vmem:[%s194 + $0x230] sm:$0xff]
  %v266 = vld [vmem:[%s194 + $0x238] sm:$0xff]
  %v267 = vld [vmem:[%s194 + $0x240] sm:$0xff]
  %v268 = vld [vmem:[%s194 + $0x248] sm:$0xff]
  %v269 = vld [vmem:[%s194 + $0x250] sm:$0xff]
  %v270 = vld [vmem:[%s194 + $0x258] sm:$0xff]
  %v271 = vld [vmem:[%s194 + $0x260] sm:$0xff]
  %v272 = vld [vmem:[%s194 + $0x268] sm:$0xff]
  %v273 = vld [vmem:[%s194 + $0x270] sm:$0xff]
  %v274 = vld [vmem:[%s194 + $0x278] sm:$0xff]
  %v275 = vld [vmem:[%s194 + $0x280] sm:$0xff]
  %v276 = vld [vmem:[%s194 + $0x288] sm:$0xff]
  %v277 = vld [vmem:[%s194 + $0x290] sm:$0xff]
  %v278 = vld [vmem:[%s194 + $0x298] sm:$0xff]
  %v279 = vld [vmem:[%s194 + $0x2a0] sm:$0xff]
  %v280 = vld [vmem:[%s194 + $0x2a8] sm:$0x3f]
  %v281 = vld [vmem:[%s2] sm:$0x1]
  %v283 = vlaneseq
  %v284 = vshrl.u32 %v283, 7
  %v285 = vsub.s32 0, %v284
  %v286 = vrot.slane %v281, %v285
  %v288 = vmul.f32 %v108, %v286
  %v289 = vmul.f32 %v109, %v286
  %v290 = vmul.f32 %v110, %v286
  %v291 = vmul.f32 %v111, %v286
  %v292 = vmul.f32 %v112, %v286
  %v293 = vmul.f32 %v113, %v286
  %v294 = vmul.f32 %v114, %v286
  %v295 = vmul.f32 %v115, %v286
  %v296 = vmul.f32 %v116, %v286
  %v297 = vmul.f32 %v117, %v286
  %v298 = vmul.f32 %v118, %v286
  %v299 = vmul.f32 %v119, %v286
  %v300 = vmul.f32 %v120, %v286
  %v301 = vmul.f32 %v121, %v286
  %v302 = vmul.f32 %v122, %v286
  %v303 = vmul.f32 %v123, %v286
  %v304 = vmul.f32 %v124, %v286
  %v305 = vmul.f32 %v125, %v286
  %v306 = vmul.f32 %v126, %v286
  %v307 = vmul.f32 %v127, %v286
  %v308 = vmul.f32 %v128, %v286
  %v309 = vmul.f32 %v129, %v286
  %v310 = vmul.f32 %v130, %v286
  %v311 = vmul.f32 %v131, %v286
  %v312 = vmul.f32 %v132, %v286
  %v313 = vmul.f32 %v133, %v286
  %v314 = vmul.f32 %v134, %v286
  %v315 = vmul.f32 %v135, %v286
  %v316 = vmul.f32 %v136, %v286
  %v317 = vmul.f32 %v137, %v286
  %v318 = vmul.f32 %v138, %v286
  %v319 = vmul.f32 %v139, %v286
  %v320 = vmul.f32 %v140, %v286
  %v321 = vmul.f32 %v141, %v286
  %v322 = vmul.f32 %v142, %v286
  %v323 = vmul.f32 %v143, %v286
  %v324 = vmul.f32 %v144, %v286
  %v325 = vmul.f32 %v145, %v286
  %v326 = vmul.f32 %v146, %v286
  %v327 = vmul.f32 %v147, %v286
  %v328 = vmul.f32 %v148, %v286
  %v329 = vmul.f32 %v149, %v286
  %v330 = vmul.f32 %v150, %v286
  %v331 = vmul.f32 %v151, %v286
  %v332 = vmul.f32 %v152, %v286
  %v333 = vmul.f32 %v153, %v286
  %v334 = vmul.f32 %v154, %v286
  %v335 = vmul.f32 %v155, %v286
  %v336 = vmul.f32 %v156, %v286
  %v337 = vmul.f32 %v157, %v286
  %v338 = vmul.f32 %v158, %v286
  %v339 = vmul.f32 %v159, %v286
  %v340 = vmul.f32 %v160, %v286
  %v341 = vmul.f32 %v161, %v286
  %v342 = vmul.f32 %v162, %v286
  %v343 = vmul.f32 %v163, %v286
  %v344 = vmul.f32 %v164, %v286
  %v345 = vmul.f32 %v165, %v286
  %v346 = vmul.f32 %v166, %v286
  %v347 = vmul.f32 %v167, %v286
  %v348 = vmul.f32 %v168, %v286
  %v349 = vmul.f32 %v169, %v286
  %v350 = vmul.f32 %v170, %v286
  %v351 = vmul.f32 %v171, %v286
  %v352 = vmul.f32 %v172, %v286
  %v353 = vmul.f32 %v173, %v286
  %v354 = vmul.f32 %v174, %v286
  %v355 = vmul.f32 %v175, %v286
  %v356 = vmul.f32 %v176, %v286
  %v357 = vmul.f32 %v177, %v286
  %v358 = vmul.f32 %v178, %v286
  %v359 = vmul.f32 %v179, %v286
  %v360 = vmul.f32 %v180, %v286
  %v361 = vmul.f32 %v181, %v286
  %v362 = vmul.f32 %v182, %v286
  %v363 = vmul.f32 %v183, %v286
  %v364 = vmul.f32 %v184, %v286
  %v365 = vmul.f32 %v185, %v286
  %v366 = vmul.f32 %v186, %v286
  %v367 = vmul.f32 %v187, %v286
  %v368 = vmul.f32 %v188, %v286
  %v369 = vmul.f32 %v189, %v286
  %v370 = vmul.f32 %v190, %v286
  %v371 = vmul.f32 %v191, %v286
  %v372 = vmul.f32 %v192, %v286
  %v373 = vmul.f32 %v193, %v286
  %v374 = vld [vmem:[%s3] sm:$0x1]
  %v376 = vlaneseq
  %v377 = vshrl.u32 %v376, 7
  %v378 = vsub.s32 0, %v377
  %v379 = vrot.slane %v374, %v378
  %v381 = vadd.f32 %v288, %v379
  %v382 = vadd.f32 %v289, %v379
  %v383 = vadd.f32 %v290, %v379
  %v384 = vadd.f32 %v291, %v379
  %v385 = vadd.f32 %v292, %v379
  %v386 = vadd.f32 %v293, %v379
  %v387 = vadd.f32 %v294, %v379
  %v388 = vadd.f32 %v295, %v379
  %v389 = vadd.f32 %v296, %v379
  %v390 = vadd.f32 %v297, %v379
  %v391 = vadd.f32 %v298, %v379
  %v392 = vadd.f32 %v299, %v379
  %v393 = vadd.f32 %v300, %v379
  %v394 = vadd.f32 %v301, %v379
  %v395 = vadd.f32 %v302, %v379
  %v396 = vadd.f32 %v303, %v379
  %v397 = vadd.f32 %v304, %v379
  %v398 = vadd.f32 %v305, %v379
  %v399 = vadd.f32 %v306, %v379
  %v400 = vadd.f32 %v307, %v379
  %v401 = vadd.f32 %v308, %v379
  %v402 = vadd.f32 %v309, %v379
  %v403 = vadd.f32 %v310, %v379
  %v404 = vadd.f32 %v311, %v379
  %v405 = vadd.f32 %v312, %v379
  %v406 = vadd.f32 %v313, %v379
  %v407 = vadd.f32 %v314, %v379
  %v408 = vadd.f32 %v315, %v379
  %v409 = vadd.f32 %v316, %v379
  %v410 = vadd.f32 %v317, %v379
  %v411 = vadd.f32 %v318, %v379
  %v412 = vadd.f32 %v319, %v379
  %v413 = vadd.f32 %v320, %v379
  %v414 = vadd.f32 %v321, %v379
  %v415 = vadd.f32 %v322, %v379
  %v416 = vadd.f32 %v323, %v379
  %v417 = vadd.f32 %v324, %v379
  %v418 = vadd.f32 %v325, %v379
  %v419 = vadd.f32 %v326, %v379
  %v420 = vadd.f32 %v327, %v379
  %v421 = vadd.f32 %v328, %v379
  %v422 = vadd.f32 %v329, %v379
  %v423 = vadd.f32 %v330, %v379
  %v424 = vadd.f32 %v331, %v379
  %v425 = vadd.f32 %v332, %v379
  %v426 = vadd.f32 %v333, %v379
  %v427 = vadd.f32 %v334, %v379
  %v428 = vadd.f32 %v335, %v379
  %v429 = vadd.f32 %v336, %v379
  %v430 = vadd.f32 %v337, %v379
  %v431 = vadd.f32 %v338, %v379
  %v432 = vadd.f32 %v339, %v379
  %v433 = vadd.f32 %v340, %v379
  %v434 = vadd.f32 %v341, %v379
  %v435 = vadd.f32 %v342, %v379
  %v436 = vadd.f32 %v343, %v379
  %v437 = vadd.f32 %v344, %v379
  %v438 = vadd.f32 %v345, %v379
  %v439 = vadd.f32 %v346, %v379
  %v440 = vadd.f32 %v347, %v379
  %v441 = vadd.f32 %v348, %v379
  %v442 = vadd.f32 %v349, %v379
  %v443 = vadd.f32 %v350, %v379
  %v444 = vadd.f32 %v351, %v379
  %v445 = vadd.f32 %v352, %v379
  %v446 = vadd.f32 %v353, %v379
  %v447 = vadd.f32 %v354, %v379
  %v448 = vadd.f32 %v355, %v379
  %v449 = vadd.f32 %v356, %v379
  %v450 = vadd.f32 %v357, %v379
  %v451 = vadd.f32 %v358, %v379
  %v452 = vadd.f32 %v359, %v379
  %v453 = vadd.f32 %v360, %v379
  %v454 = vadd.f32 %v361, %v379
  %v455 = vadd.f32 %v362, %v379
  %v456 = vadd.f32 %v363, %v379
  %v457 = vadd.f32 %v364, %v379
  %v458 = vadd.f32 %v365, %v379
  %v459 = vadd.f32 %v366, %v379
  %v460 = vadd.f32 %v367, %v379
  %v461 = vadd.f32 %v368, %v379
  %v462 = vadd.f32 %v369, %v379
  %v463 = vadd.f32 %v370, %v379
  %v464 = vadd.f32 %v371, %v379
  %v465 = vadd.f32 %v372, %v379
  %v466 = vadd.f32 %v373, %v379
  %v467 = vmax.f32 %v381, 0.0
  %v468 = vmax.f32 %v382, 0.0
  %v469 = vmax.f32 %v383, 0.0
  %v470 = vmax.f32 %v384, 0.0
  %v471 = vmax.f32 %v385, 0.0
  %v472 = vmax.f32 %v386, 0.0
  %v473 = vmax.f32 %v387, 0.0
  %v474 = vmax.f32 %v388, 0.0
  %v475 = vmax.f32 %v389, 0.0
  %v476 = vmax.f32 %v390, 0.0
  %v477 = vmax.f32 %v391, 0.0
  %v478 = vmax.f32 %v392, 0.0
  %v479 = vmax.f32 %v393, 0.0
  %v480 = vmax.f32 %v394, 0.0
  %v481 = vmax.f32 %v395, 0.0
  %v482 = vmax.f32 %v396, 0.0
  %v483 = vmax.f32 %v397, 0.0
  %v484 = vmax.f32 %v398, 0.0
  %v485 = vmax.f32 %v399, 0.0
  %v486 = vmax.f32 %v400, 0.0
  %v487 = vmax.f32 %v401, 0.0
  %v488 = vmax.f32 %v402, 0.0
  %v489 = vmax.f32 %v403, 0.0
  %v490 = vmax.f32 %v404, 0.0
  %v491 = vmax.f32 %v405, 0.0
  %v492 = vmax.f32 %v406, 0.0
  %v493 = vmax.f32 %v407, 0.0
  %v494 = vmax.f32 %v408, 0.0
  %v495 = vmax.f32 %v409, 0.0
  %v496 = vmax.f32 %v410, 0.0
  %v497 = vmax.f32 %v411, 0.0
  %v498 = vmax.f32 %v412, 0.0
  %v499 = vmax.f32 %v413, 0.0
  %v500 = vmax.f32 %v414, 0.0
  %v501 = vmax.f32 %v415, 0.0
  %v502 = vmax.f32 %v416, 0.0
  %v503 = vmax.f32 %v417, 0.0
  %v504 = vmax.f32 %v418, 0.0
  %v505 = vmax.f32 %v419, 0.0
  %v506 = vmax.f32 %v420, 0.0
  %v507 = vmax.f32 %v421, 0.0
  %v508 = vmax.f32 %v422, 0.0
  %v509 = vmax.f32 %v423, 0.0
  %v510 = vmax.f32 %v424, 0.0
  %v511 = vmax.f32 %v425, 0.0
  %v512 = vmax.f32 %v426, 0.0
  %v513 = vmax.f32 %v427, 0.0
  %v514 = vmax.f32 %v428, 0.0
  %v515 = vmax.f32 %v429, 0.0
  %v516 = vmax.f32 %v430, 0.0
  %v517 = vmax.f32 %v431, 0.0
  %v518 = vmax.f32 %v432, 0.0
  %v519 = vmax.f32 %v433, 0.0
  %v520 = vmax.f32 %v434, 0.0
  %v521 = vmax.f32 %v435, 0.0
  %v522 = vmax.f32 %v436, 0.0
  %v523 = vmax.f32 %v437, 0.0
  %v524 = vmax.f32 %v438, 0.0
  %v525 = vmax.f32 %v439, 0.0
  %v526 = vmax.f32 %v440, 0.0
  %v527 = vmax.f32 %v441, 0.0
  %v528 = vmax.f32 %v442, 0.0
  %v529 = vmax.f32 %v443, 0.0
  %v530 = vmax.f32 %v444, 0.0
  %v531 = vmax.f32 %v445, 0.0
  %v532 = vmax.f32 %v446, 0.0
  %v533 = vmax.f32 %v447, 0.0
  %v534 = vmax.f32 %v448, 0.0
  %v535 = vmax.f32 %v449, 0.0
  %v536 = vmax.f32 %v450, 0.0
  %v537 = vmax.f32 %v451, 0.0
  %v538 = vmax.f32 %v452, 0.0
  %v539 = vmax.f32 %v453, 0.0
  %v540 = vmax.f32 %v454, 0.0
  %v541 = vmax.f32 %v455, 0.0
  %v542 = vmax.f32 %v456, 0.0
  %v543 = vmax.f32 %v457, 0.0
  %v544 = vmax.f32 %v458, 0.0
  %v545 = vmax.f32 %v459, 0.0
  %v546 = vmax.f32 %v460, 0.0
  %v547 = vmax.f32 %v461, 0.0
  %v548 = vmax.f32 %v462, 0.0
  %v549 = vmax.f32 %v463, 0.0
  %v550 = vmax.f32 %v464, 0.0
  %v551 = vmax.f32 %v465, 0.0
  %v552 = vmax.f32 %v466, 0.0
  %554 = vset.pattern.permute.xlu0 0
  %555 = vperm.xlu0 %554, %v195
  %v556 = vpop.permute.xlu0 %555
  %559 = vset.pattern.permute.xlu0 0
  %560 = vperm.xlu0 %559, %v196
  %v561 = vpop.permute.xlu0 %560
  %564 = vset.pattern.permute.xlu0 0
  %565 = vperm.xlu0 %564, %v197
  %v566 = vpop.permute.xlu0 %565
  %569 = vset.pattern.permute.xlu0 0
  %570 = vperm.xlu0 %569, %v198
  %v571 = vpop.permute.xlu0 %570
  %574 = vset.pattern.permute.xlu0 0
  %575 = vperm.xlu0 %574, %v199
  %v576 = vpop.permute.xlu0 %575
  %579 = vset.pattern.permute.xlu0 0
  %580 = vperm.xlu0 %579, %v200
  %v581 = vpop.permute.xlu0 %580
  %584 = vset.pattern.permute.xlu0 0
  %585 = vperm.xlu0 %584, %v201
  %v586 = vpop.permute.xlu0 %585
  %589 = vset.pattern.permute.xlu0 0
  %590 = vperm.xlu0 %589, %v202
  %v591 = vpop.permute.xlu0 %590
  %594 = vset.pattern.permute.xlu0 0
  %595 = vperm.xlu0 %594, %v203
  %v596 = vpop.permute.xlu0 %595
  %599 = vset.pattern.permute.xlu0 0
  %600 = vperm.xlu0 %599, %v204
  %v601 = vpop.permute.xlu0 %600
  %604 = vset.pattern.permute.xlu0 0
  %605 = vperm.xlu0 %604, %v205
  %v606 = vpop.permute.xlu0 %605
  %609 = vset.pattern.permute.xlu0 0
  %610 = vperm.xlu0 %609, %v206
  %v611 = vpop.permute.xlu0 %610
  %614 = vset.pattern.permute.xlu0 0
  %615 = vperm.xlu0 %614, %v207
  %v616 = vpop.permute.xlu0 %615
  %619 = vset.pattern.permute.xlu0 0
  %620 = vperm.xlu0 %619, %v208
  %v621 = vpop.permute.xlu0 %620
  %624 = vset.pattern.permute.xlu0 0
  %625 = vperm.xlu0 %624, %v209
  %v626 = vpop.permute.xlu0 %625
  %629 = vset.pattern.permute.xlu0 0
  %630 = vperm.xlu0 %629, %v210
  %v631 = vpop.permute.xlu0 %630
  %634 = vset.pattern.permute.xlu0 0
  %635 = vperm.xlu0 %634, %v211
  %v636 = vpop.permute.xlu0 %635
  %639 = vset.pattern.permute.xlu0 0
  %640 = vperm.xlu0 %639, %v212
  %v641 = vpop.permute.xlu0 %640
  %644 = vset.pattern.permute.xlu0 0
  %645 = vperm.xlu0 %644, %v213
  %v646 = vpop.permute.xlu0 %645
  %649 = vset.pattern.permute.xlu0 0
  %650 = vperm.xlu0 %649, %v214
  %v651 = vpop.permute.xlu0 %650
  %654 = vset.pattern.permute.xlu0 0
  %655 = vperm.xlu0 %654, %v215
  %v656 = vpop.permute.xlu0 %655
  %659 = vset.pattern.permute.xlu0 0
  %660 = vperm.xlu0 %659, %v216
  %v661 = vpop.permute.xlu0 %660
  %664 = vset.pattern.permute.xlu0 0
  %665 = vperm.xlu0 %664, %v217
  %v666 = vpop.permute.xlu0 %665
  %669 = vset.pattern.permute.xlu0 0
  %670 = vperm.xlu0 %669, %v218
  %v671 = vpop.permute.xlu0 %670
  %674 = vset.pattern.permute.xlu0 0
  %675 = vperm.xlu0 %674, %v219
  %v676 = vpop.permute.xlu0 %675
  %679 = vset.pattern.permute.xlu0 0
  %680 = vperm.xlu0 %679, %v220
  %v681 = vpop.permute.xlu0 %680
  %684 = vset.pattern.permute.xlu0 0
  %685 = vperm.xlu0 %684, %v221
  %v686 = vpop.permute.xlu0 %685
  %689 = vset.pattern.permute.xlu0 0
  %690 = vperm.xlu0 %689, %v222
  %v691 = vpop.permute.xlu0 %690
  %694 = vset.pattern.permute.xlu0 0
  %695 = vperm.xlu0 %694, %v223
  %v696 = vpop.permute.xlu0 %695
  %699 = vset.pattern.permute.xlu0 0
  %700 = vperm.xlu0 %699, %v224
  %v701 = vpop.permute.xlu0 %700
  %704 = vset.pattern.permute.xlu0 0
  %705 = vperm.xlu0 %704, %v225
  %v706 = vpop.permute.xlu0 %705
  %709 = vset.pattern.permute.xlu0 0
  %710 = vperm.xlu0 %709, %v226
  %v711 = vpop.permute.xlu0 %710
  %714 = vset.pattern.permute.xlu0 0
  %715 = vperm.xlu0 %714, %v227
  %v716 = vpop.permute.xlu0 %715
  %719 = vset.pattern.permute.xlu0 0
  %720 = vperm.xlu0 %719, %v228
  %v721 = vpop.permute.xlu0 %720
  %724 = vset.pattern.permute.xlu0 0
  %725 = vperm.xlu0 %724, %v229
  %v726 = vpop.permute.xlu0 %725
  %729 = vset.pattern.permute.xlu0 0
  %730 = vperm.xlu0 %729, %v230
  %v731 = vpop.permute.xlu0 %730
  %734 = vset.pattern.permute.xlu0 0
  %735 = vperm.xlu0 %734, %v231
  %v736 = vpop.permute.xlu0 %735
  %739 = vset.pattern.permute.xlu0 0
  %740 = vperm.xlu0 %739, %v232
  %v741 = vpop.permute.xlu0 %740
  %744 = vset.pattern.permute.xlu0 0
  %745 = vperm.xlu0 %744, %v233
  %v746 = vpop.permute.xlu0 %745
  %749 = vset.pattern.permute.xlu0 0
  %750 = vperm.xlu0 %749, %v234
  %v751 = vpop.permute.xlu0 %750
  %754 = vset.pattern.permute.xlu0 0
  %755 = vperm.xlu0 %754, %v235
  %v756 = vpop.permute.xlu0 %755
  %759 = vset.pattern.permute.xlu0 0
  %760 = vperm.xlu0 %759, %v236
  %v761 = vpop.permute.xlu0 %760
  %764 = vset.pattern.permute.xlu0 0
  %765 = vperm.xlu0 %764, %v237
  %v766 = vpop.permute.xlu0 %765
  %769 = vset.pattern.permute.xlu0 0
  %770 = vperm.xlu0 %769, %v238
  %v771 = vpop.permute.xlu0 %770
  %774 = vset.pattern.permute.xlu0 0
  %775 = vperm.xlu0 %774, %v239
  %v776 = vpop.permute.xlu0 %775
  %779 = vset.pattern.permute.xlu0 0
  %780 = vperm.xlu0 %779, %v240
  %v781 = vpop.permute.xlu0 %780
  %784 = vset.pattern.permute.xlu0 0
  %785 = vperm.xlu0 %784, %v241
  %v786 = vpop.permute.xlu0 %785
  %789 = vset.pattern.permute.xlu0 0
  %790 = vperm.xlu0 %789, %v242
  %v791 = vpop.permute.xlu0 %790
  %794 = vset.pattern.permute.xlu0 0
  %795 = vperm.xlu0 %794, %v243
  %v796 = vpop.permute.xlu0 %795
  %799 = vset.pattern.permute.xlu0 0
  %800 = vperm.xlu0 %799, %v244
  %v801 = vpop.permute.xlu0 %800
  %804 = vset.pattern.permute.xlu0 0
  %805 = vperm.xlu0 %804, %v245
  %v806 = vpop.permute.xlu0 %805
  %809 = vset.pattern.permute.xlu0 0
  %810 = vperm.xlu0 %809, %v246
  %v811 = vpop.permute.xlu0 %810
  %814 = vset.pattern.permute.xlu0 0
  %815 = vperm.xlu0 %814, %v247
  %v816 = vpop.permute.xlu0 %815
  %819 = vset.pattern.permute.xlu0 0
  %820 = vperm.xlu0 %819, %v248
  %v821 = vpop.permute.xlu0 %820
  %824 = vset.pattern.permute.xlu0 0
  %825 = vperm.xlu0 %824, %v249
  %v826 = vpop.permute.xlu0 %825
  %829 = vset.pattern.permute.xlu0 0
  %830 = vperm.xlu0 %829, %v250
  %v831 = vpop.permute.xlu0 %830
  %834 = vset.pattern.permute.xlu0 0
  %835 = vperm.xlu0 %834, %v251
  %v836 = vpop.permute.xlu0 %835
  %839 = vset.pattern.permute.xlu0 0
  %840 = vperm.xlu0 %839, %v252
  %v841 = vpop.permute.xlu0 %840
  %844 = vset.pattern.permute.xlu0 0
  %845 = vperm.xlu0 %844, %v253
  %v846 = vpop.permute.xlu0 %845
  %849 = vset.pattern.permute.xlu0 0
  %850 = vperm.xlu0 %849, %v254
  %v851 = vpop.permute.xlu0 %850
  %854 = vset.pattern.permute.xlu0 0
  %855 = vperm.xlu0 %854, %v255
  %v856 = vpop.permute.xlu0 %855
  %859 = vset.pattern.permute.xlu0 0
  %860 = vperm.xlu0 %859, %v256
  %v861 = vpop.permute.xlu0 %860
  %864 = vset.pattern.permute.xlu0 0
  %865 = vperm.xlu0 %864, %v257
  %v866 = vpop.permute.xlu0 %865
  %869 = vset.pattern.permute.xlu0 0
  %870 = vperm.xlu0 %869, %v258
  %v871 = vpop.permute.xlu0 %870
  %874 = vset.pattern.permute.xlu0 0
  %875 = vperm.xlu0 %874, %v259
  %v876 = vpop.permute.xlu0 %875
  %879 = vset.pattern.permute.xlu0 0
  %880 = vperm.xlu0 %879, %v260
  %v881 = vpop.permute.xlu0 %880
  %884 = vset.pattern.permute.xlu0 0
  %885 = vperm.xlu0 %884, %v261
  %v886 = vpop.permute.xlu0 %885
  %889 = vset.pattern.permute.xlu0 0
  %890 = vperm.xlu0 %889, %v262
  %v891 = vpop.permute.xlu0 %890
  %894 = vset.pattern.permute.xlu0 0
  %895 = vperm.xlu0 %894, %v263
  %v896 = vpop.permute.xlu0 %895
  %899 = vset.pattern.permute.xlu0 0
  %900 = vperm.xlu0 %899, %v264
  %v901 = vpop.permute.xlu0 %900
  %904 = vset.pattern.permute.xlu0 0
  %905 = vperm.xlu0 %904, %v265
  %v906 = vpop.permute.xlu0 %905
  %909 = vset.pattern.permute.xlu0 0
  %910 = vperm.xlu0 %909, %v266
  %v911 = vpop.permute.xlu0 %910
  %914 = vset.pattern.permute.xlu0 0
  %915 = vperm.xlu0 %914, %v267
  %v916 = vpop.permute.xlu0 %915
  %919 = vset.pattern.permute.xlu0 0
  %920 = vperm.xlu0 %919, %v268
  %v921 = vpop.permute.xlu0 %920
  %924 = vset.pattern.permute.xlu0 0
  %925 = vperm.xlu0 %924, %v269
  %v926 = vpop.permute.xlu0 %925
  %929 = vset.pattern.permute.xlu0 0
  %930 = vperm.xlu0 %929, %v270
  %v931 = vpop.permute.xlu0 %930
  %934 = vset.pattern.permute.xlu0 0
  %935 = vperm.xlu0 %934, %v271
  %v936 = vpop.permute.xlu0 %935
  %939 = vset.pattern.permute.xlu0 0
  %940 = vperm.xlu0 %939, %v272
  %v941 = vpop.permute.xlu0 %940
  %944 = vset.pattern.permute.xlu0 0
  %945 = vperm.xlu0 %944, %v273
  %v946 = vpop.permute.xlu0 %945
  %949 = vset.pattern.permute.xlu0 0
  %950 = vperm.xlu0 %949, %v274
  %v951 = vpop.permute.xlu0 %950
  %954 = vset.pattern.permute.xlu0 0
  %955 = vperm.xlu0 %954, %v275
  %v956 = vpop.permute.xlu0 %955
  %959 = vset.pattern.permute.xlu0 0
  %960 = vperm.xlu0 %959, %v276
  %v961 = vpop.permute.xlu0 %960
  %964 = vset.pattern.permute.xlu0 0
  %965 = vperm.xlu0 %964, %v277
  %v966 = vpop.permute.xlu0 %965
  %969 = vset.pattern.permute.xlu0 0
  %970 = vperm.xlu0 %969, %v278
  %v971 = vpop.permute.xlu0 %970
  %974 = vset.pattern.permute.xlu0 0
  %975 = vperm.xlu0 %974, %v279
  %v976 = vpop.permute.xlu0 %975
  %979 = vset.pattern.permute.xlu0 0
  %980 = vperm.xlu0 %979, %v280
  %v981 = vpop.permute.xlu0 %980
  %v983 = vmul.f32 %v467, %v556
  %v984 = vmul.f32 %v468, %v561
  %v985 = vmul.f32 %v469, %v566
  %v986 = vmul.f32 %v470, %v571
  %v987 = vmul.f32 %v471, %v576
  %v988 = vmul.f32 %v472, %v581
  %v989 = vmul.f32 %v473, %v586
  %v990 = vmul.f32 %v474, %v591
  %v991 = vmul.f32 %v475, %v596
  %v992 = vmul.f32 %v476, %v601
  %v993 = vmul.f32 %v477, %v606
  %v994 = vmul.f32 %v478, %v611
  %v995 = vmul.f32 %v479, %v616
  %v996 = vmul.f32 %v480, %v621
  %v997 = vmul.f32 %v481, %v626
  %v998 = vmul.f32 %v482, %v631
  %v999 = vmul.f32 %v483, %v636
  %v1000 = vmul.f32 %v484, %v641
  %v1001 = vmul.f32 %v485, %v646
  %v1002 = vmul.f32 %v486, %v651
  %v1003 = vmul.f32 %v487, %v656
  %v1004 = vmul.f32 %v488, %v661
  %v1005 = vmul.f32 %v489, %v666
  %v1006 = vmul.f32 %v490, %v671
  %v1007 = vmul.f32 %v491, %v676
  %v1008 = vmul.f32 %v492, %v681
  %v1009 = vmul.f32 %v493, %v686
  %v1010 = vmul.f32 %v494, %v691
  %v1011 = vmul.f32 %v495, %v696
  %v1012 = vmul.f32 %v496, %v701
  %v1013 = vmul.f32 %v497, %v706
  %v1014 = vmul.f32 %v498, %v711
  %v1015 = vmul.f32 %v499, %v716
  %v1016 = vmul.f32 %v500, %v721
  %v1017 = vmul.f32 %v501, %v726
  %v1018 = vmul.f32 %v502, %v731
  %v1019 = vmul.f32 %v503, %v736
  %v1020 = vmul.f32 %v504, %v741
  %v1021 = vmul.f32 %v505, %v746
  %v1022 = vmul.f32 %v506, %v751
  %v1023 = vmul.f32 %v507, %v756
  %v1024 = vmul.f32 %v508, %v761
  %v1025 = vmul.f32 %v509, %v766
  %v1026 = vmul.f32 %v510, %v771
  %v1027 = vmul.f32 %v511, %v776
  %v1028 = vmul.f32 %v512, %v781
  %v1029 = vmul.f32 %v513, %v786
  %v1030 = vmul.f32 %v514, %v791
  %v1031 = vmul.f32 %v515, %v796
  %v1032 = vmul.f32 %v516, %v801
  %v1033 = vmul.f32 %v517, %v806
  %v1034 = vmul.f32 %v518, %v811
  %v1035 = vmul.f32 %v519, %v816
  %v1036 = vmul.f32 %v520, %v821
  %v1037 = vmul.f32 %v521, %v826
  %v1038 = vmul.f32 %v522, %v831
  %v1039 = vmul.f32 %v523, %v836
  %v1040 = vmul.f32 %v524, %v841
  %v1041 = vmul.f32 %v525, %v846
  %v1042 = vmul.f32 %v526, %v851
  %v1043 = vmul.f32 %v527, %v856
  %v1044 = vmul.f32 %v528, %v861
  %v1045 = vmul.f32 %v529, %v866
  %v1046 = vmul.f32 %v530, %v871
  %v1047 = vmul.f32 %v531, %v876
  %v1048 = vmul.f32 %v532, %v881
  %v1049 = vmul.f32 %v533, %v886
  %v1050 = vmul.f32 %v534, %v891
  %v1051 = vmul.f32 %v535, %v896
  %v1052 = vmul.f32 %v536, %v901
  %v1053 = vmul.f32 %v537, %v906
  %v1054 = vmul.f32 %v538, %v911
  %v1055 = vmul.f32 %v539, %v916
  %v1056 = vmul.f32 %v540, %v921
  %v1057 = vmul.f32 %v541, %v926
  %v1058 = vmul.f32 %v542, %v931
  %v1059 = vmul.f32 %v543, %v936
  %v1060 = vmul.f32 %v544, %v941
  %v1061 = vmul.f32 %v545, %v946
  %v1062 = vmul.f32 %v546, %v951
  %v1063 = vmul.f32 %v547, %v956
  %v1064 = vmul.f32 %v548, %v961
  %v1065 = vmul.f32 %v549, %v966
  %v1066 = vmul.f32 %v550, %v971
  %v1067 = vmul.f32 %v551, %v976
  %v1068 = vmul.f32 %v552, %v981
  %vm1069 = vcmask 130048
  %1070 = vst.msk [vmem:[#allocation2] sm:$0xff] %vm1069, %v983
  %1071 = vst.msk [vmem:[#allocation2 + $0x8] sm:$0xff] %vm1069, %v984
  %1072 = vst.msk [vmem:[#allocation2 + $0x10] sm:$0xff] %vm1069, %v985
  %1073 = vst.msk [vmem:[#allocation2 + $0x18] sm:$0xff] %vm1069, %v986
  %1074 = vst.msk [vmem:[#allocation2 + $0x20] sm:$0xff] %vm1069, %v987
  %1075 = vst.msk [vmem:[#allocation2 + $0x28] sm:$0xff] %vm1069, %v988
  %1076 = vst.msk [vmem:[#allocation2 + $0x30] sm:$0xff] %vm1069, %v989
  %1077 = vst.msk [vmem:[#allocation2 + $0x38] sm:$0xff] %vm1069, %v990
  %1078 = vst.msk [vmem:[#allocation2 + $0x40] sm:$0xff] %vm1069, %v991
  %1079 = vst.msk [vmem:[#allocation2 + $0x48] sm:$0xff] %vm1069, %v992
  %1080 = vst.msk [vmem:[#allocation2 + $0x50] sm:$0xff] %vm1069, %v993
  %1081 = vst.msk [vmem:[#allocation2 + $0x58] sm:$0xff] %vm1069, %v994
  %1082 = vst.msk [vmem:[#allocation2 + $0x60] sm:$0xff] %vm1069, %v995
  %1083 = vst.msk [vmem:[#allocation2 + $0x68] sm:$0xff] %vm1069, %v996
  %1084 = vst.msk [vmem:[#allocation2 + $0x70] sm:$0xff] %vm1069, %v997
  %1085 = vst.msk [vmem:[#allocation2 + $0x78] sm:$0xff] %vm1069, %v998
  %1086 = vst.msk [vmem:[#allocation2 + $0x80] sm:$0xff] %vm1069, %v999
  %1087 = vst.msk [vmem:[#allocation2 + $0x88] sm:$0xff] %vm1069, %v1000
  %1088 = vst.msk [vmem:[#allocation2 + $0x90] sm:$0xff] %vm1069, %v1001
  %1089 = vst.msk [vmem:[#allocation2 + $0x98] sm:$0xff] %vm1069, %v1002
  %1090 = vst.msk [vmem:[#allocation2 + $0xa0] sm:$0xff] %vm1069, %v1003
  %1091 = vst.msk [vmem:[#allocation2 + $0xa8] sm:$0xff] %vm1069, %v1004
  %1092 = vst.msk [vmem:[#allocation2 + $0xb0] sm:$0xff] %vm1069, %v1005
  %1093 = vst.msk [vmem:[#allocation2 + $0xb8] sm:$0xff] %vm1069, %v1006
  %1094 = vst.msk [vmem:[#allocation2 + $0xc0] sm:$0xff] %vm1069, %v1007
  %1095 = vst.msk [vmem:[#allocation2 + $0xc8] sm:$0xff] %vm1069, %v1008
  %1096 = vst.msk [vmem:[#allocation2 + $0xd0] sm:$0xff] %vm1069, %v1009
  %1097 = vst.msk [vmem:[#allocation2 + $0xd8] sm:$0xff] %vm1069, %v1010
  %1098 = vst.msk [vmem:[#allocation2 + $0xe0] sm:$0xff] %vm1069, %v1011
  %1099 = vst.msk [vmem:[#allocation2 + $0xe8] sm:$0xff] %vm1069, %v1012
  %1100 = vst.msk [vmem:[#allocation2 + $0xf0] sm:$0xff] %vm1069, %v1013
  %1101 = vst.msk [vmem:[#allocation2 + $0xf8] sm:$0xff] %vm1069, %v1014
  %1102 = vst.msk [vmem:[#allocation2 + $0x100] sm:$0xff] %vm1069, %v1015
  %1103 = vst.msk [vmem:[#allocation2 + $0x108] sm:$0xff] %vm1069, %v1016
  %1104 = vst.msk [vmem:[#allocation2 + $0x110] sm:$0xff] %vm1069, %v1017
  %1105 = vst.msk [vmem:[#allocation2 + $0x118] sm:$0xff] %vm1069, %v1018
  %1106 = vst.msk [vmem:[#allocation2 + $0x120] sm:$0xff] %vm1069, %v1019
  %1107 = vst.msk [vmem:[#allocation2 + $0x128] sm:$0xff] %vm1069, %v1020
  %1108 = vst.msk [vmem:[#allocation2 + $0x130] sm:$0xff] %vm1069, %v1021
  %1109 = vst.msk [vmem:[#allocation2 + $0x138] sm:$0xff] %vm1069, %v1022
  %1110 = vst.msk [vmem:[#allocation2 + $0x140] sm:$0xff] %vm1069, %v1023
  %1111 = vst.msk [vmem:[#allocation2 + $0x148] sm:$0xff] %vm1069, %v1024
  %1112 = vst.msk [vmem:[#allocation2 + $0x150] sm:$0xff] %vm1069, %v1025
  %1113 = vst.msk [vmem:[#allocation2 + $0x158] sm:$0xff] %vm1069, %v1026
  %1114 = vst.msk [vmem:[#allocation2 + $0x160] sm:$0xff] %vm1069, %v1027
  %1115 = vst.msk [vmem:[#allocation2 + $0x168] sm:$0xff] %vm1069, %v1028
  %1116 = vst.msk [vmem:[#allocation2 + $0x170] sm:$0xff] %vm1069, %v1029
  %1117 = vst.msk [vmem:[#allocation2 + $0x178] sm:$0xff] %vm1069, %v1030
  %1118 = vst.msk [vmem:[#allocation2 + $0x180] sm:$0xff] %vm1069, %v1031
  %1119 = vst.msk [vmem:[#allocation2 + $0x188] sm:$0xff] %vm1069, %v1032
  %1120 = vst.msk [vmem:[#allocation2 + $0x190] sm:$0xff] %vm1069, %v1033
  %1121 = vst.msk [vmem:[#allocation2 + $0x198] sm:$0xff] %vm1069, %v1034
  %1122 = vst.msk [vmem:[#allocation2 + $0x1a0] sm:$0xff] %vm1069, %v1035
  %1123 = vst.msk [vmem:[#allocation2 + $0x1a8] sm:$0xff] %vm1069, %v1036
  %1124 = vst.msk [vmem:[#allocation2 + $0x1b0] sm:$0xff] %vm1069, %v1037
  %1125 = vst.msk [vmem:[#allocation2 + $0x1b8] sm:$0xff] %vm1069, %v1038
  %1126 = vst.msk [vmem:[#allocation2 + $0x1c0] sm:$0xff] %vm1069, %v1039
  %1127 = vst.msk [vmem:[#allocation2 + $0x1c8] sm:$0xff] %vm1069, %v1040
  %1128 = vst.msk [vmem:[#allocation2 + $0x1d0] sm:$0xff] %vm1069, %v1041
  %1129 = vst.msk [vmem:[#allocation2 + $0x1d8] sm:$0xff] %vm1069, %v1042
  %1130 = vst.msk [vmem:[#allocation2 + $0x1e0] sm:$0xff] %vm1069, %v1043
  %1131 = vst.msk [vmem:[#allocation2 + $0x1e8] sm:$0xff] %vm1069, %v1044
  %1132 = vst.msk [vmem:[#allocation2 + $0x1f0] sm:$0xff] %vm1069, %v1045
  %1133 = vst.msk [vmem:[#allocation2 + $0x1f8] sm:$0xff] %vm1069, %v1046
  %1134 = vst.msk [vmem:[#allocation2 + $0x200] sm:$0xff] %vm1069, %v1047
  %1135 = vst.msk [vmem:[#allocation2 + $0x208] sm:$0xff] %vm1069, %v1048
  %1136 = vst.msk [vmem:[#allocation2 + $0x210] sm:$0xff] %vm1069, %v1049
  %1137 = vst.msk [vmem:[#allocation2 + $0x218] sm:$0xff] %vm1069, %v1050
  %1138 = vst.msk [vmem:[#allocation2 + $0x220] sm:$0xff] %vm1069, %v1051
  %1139 = vst.msk [vmem:[#allocation2 + $0x228] sm:$0xff] %vm1069, %v1052
  %1140 = vst.msk [vmem:[#allocation2 + $0x230] sm:$0xff] %vm1069, %v1053
  %1141 = vst.msk [vmem:[#allocation2 + $0x238] sm:$0xff] %vm1069, %v1054
  %1142 = vst.msk [vmem:[#allocation2 + $0x240] sm:$0xff] %vm1069, %v1055
  %1143 = vst.msk [vmem:[#allocation2 + $0x248] sm:$0xff] %vm1069, %v1056
  %1144 = vst.msk [vmem:[#allocation2 + $0x250] sm:$0xff] %vm1069, %v1057
  %1145 = vst.msk [vmem:[#allocation2 + $0x258] sm:$0xff] %vm1069, %v1058
  %1146 = vst.msk [vmem:[#allocation2 + $0x260] sm:$0xff] %vm1069, %v1059
  %1147 = vst.msk [vmem:[#allocation2 + $0x268] sm:$0xff] %vm1069, %v1060
  %1148 = vst.msk [vmem:[#allocation2 + $0x270] sm:$0xff] %vm1069, %v1061
  %1149 = vst.msk [vmem:[#allocation2 + $0x278] sm:$0xff] %vm1069, %v1062
  %1150 = vst.msk [vmem:[#allocation2 + $0x280] sm:$0xff] %vm1069, %v1063
  %1151 = vst.msk [vmem:[#allocation2 + $0x288] sm:$0xff] %vm1069, %v1064
  %1152 = vst.msk [vmem:[#allocation2 + $0x290] sm:$0xff] %vm1069, %v1065
  %1153 = vst.msk [vmem:[#allocation2 + $0x298] sm:$0xff] %vm1069, %v1066
  %1154 = vst.msk [vmem:[#allocation2 + $0x2a0] sm:$0xff] %vm1069, %v1067
  %vm1155 = vcmask 128000
  %1156 = vst.msk [vmem:[#allocation2 + $0x2a8] sm:$0x3f] %vm1155, %v1068
  %v1157 = vld [vmem:[#allocation2] sm:$0xff]
  %v1158 = vld [vmem:[#allocation2 + $0x8] sm:$0xff]
  %v1159 = vld [vmem:[#allocation2 + $0x10] sm:$0xff]
  %v1160 = vld [vmem:[#allocation2 + $0x18] sm:$0xff]
  %v1161 = vld [vmem:[#allocation2 + $0x20] sm:$0xff]
  %v1162 = vld [vmem:[#allocation2 + $0x28] sm:$0xff]
  %v1163 = vld [vmem:[#allocation2 + $0x30] sm:$0xff]
  %v1164 = vld [vmem:[#allocation2 + $0x38] sm:$0xff]
  %v1165 = vld [vmem:[#allocation2 + $0x40] sm:$0xff]
  %v1166 = vld [vmem:[#allocation2 + $0x48] sm:$0xff]
  %v1167 = vld [vmem:[#allocation2 + $0x50] sm:$0xff]
  %v1168 = vld [vmem:[#allocation2 + $0x58] sm:$0xff]
  %v1169 = vld [vmem:[#allocation2 + $0x60] sm:$0xff]
  %v1170 = vld [vmem:[#allocation2 + $0x68] sm:$0xff]
  %v1171 = vld [vmem:[#allocation2 + $0x70] sm:$0xff]
  %v1172 = vld [vmem:[#allocation2 + $0x78] sm:$0xff]
  %v1173 = vld [vmem:[#allocation2 + $0x80] sm:$0xff]
  %v1174 = vld [vmem:[#allocation2 + $0x88] sm:$0xff]
  %v1175 = vld [vmem:[#allocation2 + $0x90] sm:$0xff]
  %v1176 = vld [vmem:[#allocation2 + $0x98] sm:$0xff]
  %v1177 = vld [vmem:[#allocation2 + $0xa0] sm:$0xff]
  %v1178 = vld [vmem:[#allocation2 + $0xa8] sm:$0xff]
  %v1179 = vld [vmem:[#allocation2 + $0xb0] sm:$0xff]
  %v1180 = vld [vmem:[#allocation2 + $0xb8] sm:$0xff]
  %v1181 = vld [vmem:[#allocation2 + $0xc0] sm:$0xff]
  %v1182 = vld [vmem:[#allocation2 + $0xc8] sm:$0xff]
  %v1183 = vld [vmem:[#allocation2 + $0xd0] sm:$0xff]
  %v1184 = vld [vmem:[#allocation2 + $0xd8] sm:$0xff]
  %v1185 = vld [vmem:[#allocation2 + $0xe0] sm:$0xff]
  %v1186 = vld [vmem:[#allocation2 + $0xe8] sm:$0xff]
  %v1187 = vld [vmem:[#allocation2 + $0xf0] sm:$0xff]
  %v1188 = vld [vmem:[#allocation2 + $0xf8] sm:$0xff]
  %v1189 = vld [vmem:[#allocation2 + $0x100] sm:$0xff]
  %v1190 = vld [vmem:[#allocation2 + $0x108] sm:$0xff]
  %v1191 = vld [vmem:[#allocation2 + $0x110] sm:$0xff]
  %v1192 = vld [vmem:[#allocation2 + $0x118] sm:$0xff]
  %v1193 = vld [vmem:[#allocation2 + $0x120] sm:$0xff]
  %v1194 = vld [vmem:[#allocation2 + $0x128] sm:$0xff]
  %v1195 = vld [vmem:[#allocation2 + $0x130] sm:$0xff]
  %v1196 = vld [vmem:[#allocation2 + $0x138] sm:$0xff]
  %v1197 = vld [vmem:[#allocation2 + $0x140] sm:$0xff]
  %v1198 = vld [vmem:[#allocation2 + $0x148] sm:$0xff]
  %v1199 = vld [vmem:[#allocation2 + $0x150] sm:$0xff]
  %v1200 = vld [vmem:[#allocation2 + $0x158] sm:$0xff]
  %v1201 = vld [vmem:[#allocation2 + $0x160] sm:$0xff]
  %v1202 = vld [vmem:[#allocation2 + $0x168] sm:$0xff]
  %v1203 = vld [vmem:[#allocation2 + $0x170] sm:$0xff]
  %v1204 = vld [vmem:[#allocation2 + $0x178] sm:$0xff]
  %v1205 = vld [vmem:[#allocation2 + $0x180] sm:$0xff]
  %v1206 = vld [vmem:[#allocation2 + $0x188] sm:$0xff]
  %v1207 = vld [vmem:[#allocation2 + $0x190] sm:$0xff]
  %v1208 = vld [vmem:[#allocation2 + $0x198] sm:$0xff]
  %v1209 = vld [vmem:[#allocation2 + $0x1a0] sm:$0xff]
  %v1210 = vld [vmem:[#allocation2 + $0x1a8] sm:$0xff]
  %v1211 = vld [vmem:[#allocation2 + $0x1b0] sm:$0xff]
  %v1212 = vld [vmem:[#allocation2 + $0x1b8] sm:$0xff]
  %v1213 = vld [vmem:[#allocation2 + $0x1c0] sm:$0xff]
  %v1214 = vld [vmem:[#allocation2 + $0x1c8] sm:$0xff]
  %v1215 = vld [vmem:[#allocation2 + $0x1d0] sm:$0xff]
  %v1216 = vld [vmem:[#allocation2 + $0x1d8] sm:$0xff]
  %v1217 = vld [vmem:[#allocation2 + $0x1e0] sm:$0xff]
  %v1218 = vld [vmem:[#allocation2 + $0x1e8] sm:$0xff]
  %v1219 = vld [vmem:[#allocation2 + $0x1f0] sm:$0xff]
  %v1220 = vld [vmem:[#allocation2 + $0x1f8] sm:$0xff]
  %v1221 = vld [vmem:[#allocation2 + $0x200] sm:$0xff]
  %v1222 = vld [vmem:[#allocation2 + $0x208] sm:$0xff]
  %v1223 = vld [vmem:[#allocation2 + $0x210] sm:$0xff]
  %v1224 = vld [vmem:[#allocation2 + $0x218] sm:$0xff]
  %v1225 = vld [vmem:[#allocation2 + $0x220] sm:$0xff]
  %v1226 = vld [vmem:[#allocation2 + $0x228] sm:$0xff]
  %v1227 = vld [vmem:[#allocation2 + $0x230] sm:$0xff]
  %v1228 = vld [vmem:[#allocation2 + $0x238] sm:$0xff]
  %v1229 = vld [vmem:[#allocation2 + $0x240] sm:$0xff]
  %v1230 = vld [vmem:[#allocation2 + $0x248] sm:$0xff]
  %v1231 = vld [vmem:[#allocation2 + $0x250] sm:$0xff]
  %v1232 = vld [vmem:[#allocation2 + $0x258] sm:$0xff]
  %v1233 = vld [vmem:[#allocation2 + $0x260] sm:$0xff]
  %v1234 = vld [vmem:[#allocation2 + $0x268] sm:$0xff]
  %v1235 = vld [vmem:[#allocation2 + $0x270] sm:$0xff]
  %v1236 = vld [vmem:[#allocation2 + $0x278] sm:$0xff]
  %v1237 = vld [vmem:[#allocation2 + $0x280] sm:$0xff]
  %v1238 = vld [vmem:[#allocation2 + $0x1] sm:$0xff]
  %v1239 = vld [vmem:[#allocation2 + $0x9] sm:$0xff]
  %v1240 = vld [vmem:[#allocation2 + $0x11] sm:$0xff]
  %v1241 = vld [vmem:[#allocation2 + $0x19] sm:$0xff]
  %v1242 = vld [vmem:[#allocation2 + $0x21] sm:$0xff]
  %v1243 = vld [vmem:[#allocation2 + $0x29] sm:$0xff]
  %v1244 = vld [vmem:[#allocation2 + $0x31] sm:$0xff]
  %v1245 = vld [vmem:[#allocation2 + $0x39] sm:$0xff]
  %v1246 = vld [vmem:[#allocation2 + $0x41] sm:$0xff]
  %v1247 = vld [vmem:[#allocation2 + $0x49] sm:$0xff]
  %v1248 = vld [vmem:[#allocation2 + $0x51] sm:$0xff]
  %v1249 = vld [vmem:[#allocation2 + $0x59] sm:$0xff]
  %v1250 = vld [vmem:[#allocation2 + $0x61] sm:$0xff]
  %v1251 = vld [vmem:[#allocation2 + $0x69] sm:$0xff]
  %v1252 = vld [vmem:[#allocation2 + $0x71] sm:$0xff]
  %v1253 = vld [vmem:[#allocation2 + $0x79] sm:$0xff]
  %v1254 = vld [vmem:[#allocation2 + $0x81] sm:$0xff]
  %v1255 = vld [vmem:[#allocation2 + $0x89] sm:$0xff]
  %v1256 = vld [vmem:[#allocation2 + $0x91] sm:$0xff]
  %v1257 = vld [vmem:[#allocation2 + $0x99] sm:$0xff]
  %v1258 = vld [vmem:[#allocation2 + $0xa1] sm:$0xff]
  %v1259 = vld [vmem:[#allocation2 + $0xa9] sm:$0xff]
  %v1260 = vld [vmem:[#allocation2 + $0xb1] sm:$0xff]
  %v1261 = vld [vmem:[#allocation2 + $0xb9] sm:$0xff]
  %v1262 = vld [vmem:[#allocation2 + $0xc1] sm:$0xff]
  %v1263 = vld [vmem:[#allocation2 + $0xc9] sm:$0xff]
  %v1264 = vld [vmem:[#allocation2 + $0xd1] sm:$0xff]
  %v1265 = vld [vmem:[#allocation2 + $0xd9] sm:$0xff]
  %v1266 = vld [vmem:[#allocation2 + $0xe1] sm:$0xff]
  %v1267 = vld [vmem:[#allocation2 + $0xe9] sm:$0xff]
  %v1268 = vld [vmem:[#allocation2 + $0xf1] sm:$0xff]
  %v1269 = vld [vmem:[#allocation2 + $0xf9] sm:$0xff]
  %v1270 = vld [vmem:[#allocation2 + $0x101] sm:$0xff]
  %v1271 = vld [vmem:[#allocation2 + $0x109] sm:$0xff]
  %v1272 = vld [vmem:[#allocation2 + $0x111] sm:$0xff]
  %v1273 = vld [vmem:[#allocation2 + $0x119] sm:$0xff]
  %v1274 = vld [vmem:[#allocation2 + $0x121] sm:$0xff]
  %v1275 = vld [vmem:[#allocation2 + $0x129] sm:$0xff]
  %v1276 = vld [vmem:[#allocation2 + $0x131] sm:$0xff]
  %v1277 = vld [vmem:[#allocation2 + $0x139] sm:$0xff]
  %v1278 = vld [vmem:[#allocation2 + $0x141] sm:$0xff]
  %v1279 = vld [vmem:[#allocation2 + $0x149] sm:$0xff]
  %v1280 = vld [vmem:[#allocation2 + $0x151] sm:$0xff]
  %v1281 = vld [vmem:[#allocation2 + $0x159] sm:$0xff]
  %v1282 = vld [vmem:[#allocation2 + $0x161] sm:$0xff]
  %v1283 = vld [vmem:[#allocation2 + $0x169] sm:$0xff]
  %v1284 = vld [vmem:[#allocation2 + $0x171] sm:$0xff]
  %v1285 = vld [vmem:[#allocation2 + $0x179] sm:$0xff]
  %v1286 = vld [vmem:[#allocation2 + $0x181] sm:$0xff]
  %v1287 = vld [vmem:[#allocation2 + $0x189] sm:$0xff]
  %v1288 = vld [vmem:[#allocation2 + $0x191] sm:$0xff]
  %v1289 = vld [vmem:[#allocation2 + $0x199] sm:$0xff]
  %v1290 = vld [vmem:[#allocation2 + $0x1a1] sm:$0xff]
  %v1291 = vld [vmem:[#allocation2 + $0x1a9] sm:$0xff]
  %v1292 = vld [vmem:[#allocation2 + $0x1b1] sm:$0xff]
  %v1293 = vld [vmem:[#allocation2 + $0x1b9] sm:$0xff]
  %v1294 = vld [vmem:[#allocation2 + $0x1c1] sm:$0xff]
  %v1295 = vld [vmem:[#allocation2 + $0x1c9] sm:$0xff]
  %v1296 = vld [vmem:[#allocation2 + $0x1d1] sm:$0xff]
  %v1297 = vld [vmem:[#allocation2 + $0x1d9] sm:$0xff]
  %v1298 = vld [vmem:[#allocation2 + $0x1e1] sm:$0xff]
  %v1299 = vld [vmem:[#allocation2 + $0x1e9] sm:$0xff]
  %v1300 = vld [vmem:[#allocation2 + $0x1f1] sm:$0xff]
  %v1301 = vld [vmem:[#allocation2 + $0x1f9] sm:$0xff]
  %v1302 = vld [vmem:[#allocation2 + $0x201] sm:$0xff]
  %v1303 = vld [vmem:[#allocation2 + $0x209] sm:$0xff]
  %v1304 = vld [vmem:[#allocation2 + $0x211] sm:$0xff]
  %v1305 = vld [vmem:[#allocation2 + $0x219] sm:$0xff]
  %v1306 = vld [vmem:[#allocation2 + $0x221] sm:$0xff]
  %v1307 = vld [vmem:[#allocation2 + $0x229] sm:$0xff]
  %v1308 = vld [vmem:[#allocation2 + $0x231] sm:$0xff]
  %v1309 = vld [vmem:[#allocation2 + $0x239] sm:$0xff]
  %v1310 = vld [vmem:[#allocation2 + $0x241] sm:$0xff]
  %v1311 = vld [vmem:[#allocation2 + $0x249] sm:$0xff]
  %v1312 = vld [vmem:[#allocation2 + $0x251] sm:$0xff]
  %v1313 = vld [vmem:[#allocation2 + $0x259] sm:$0xff]
  %v1314 = vld [vmem:[#allocation2 + $0x261] sm:$0xff]
  %v1315 = vld [vmem:[#allocation2 + $0x269] sm:$0xff]
  %v1316 = vld [vmem:[#allocation2 + $0x271] sm:$0xff]
  %v1317 = vld [vmem:[#allocation2 + $0x279] sm:$0xff]
  %v1318 = vld [vmem:[#allocation2 + $0x281] sm:$0xff]
  %v1319 = vmax.f32 %v1157, %v1238
  %v1320 = vmax.f32 %v1158, %v1239
  %v1321 = vmax.f32 %v1159, %v1240
  %v1322 = vmax.f32 %v1160, %v1241
  %v1323 = vmax.f32 %v1161, %v1242
  %v1324 = vmax.f32 %v1162, %v1243
  %v1325 = vmax.f32 %v1163, %v1244
  %v1326 = vmax.f32 %v1164, %v1245
  %v1327 = vmax.f32 %v1165, %v1246
  %v1328 = vmax.f32 %v1166, %v1247
  %v1329 = vmax.f32 %v1167, %v1248
  %v1330 = vmax.f32 %v1168, %v1249
  %v1331 = vmax.f32 %v1169, %v1250
  %v1332 = vmax.f32 %v1170, %v1251
  %v1333 = vmax.f32 %v1171, %v1252
  %v1334 = vmax.f32 %v1172, %v1253
  %v1335 = vmax.f32 %v1173, %v1254
  %v1336 = vmax.f32 %v1174, %v1255
  %v1337 = vmax.f32 %v1175, %v1256
  %v1338 = vmax.f32 %v1176, %v1257
  %v1339 = vmax.f32 %v1177, %v1258
  %v1340 = vmax.f32 %v1178, %v1259
  %v1341 = vmax.f32 %v1179, %v1260
  %v1342 = vmax.f32 %v1180, %v1261
  %v1343 = vmax.f32 %v1181, %v1262
  %v1344 = vmax.f32 %v1182, %v1263
  %v1345 = vmax.f32 %v1183, %v1264
  %v1346 = vmax.f32 %v1184, %v1265
  %v1347 = vmax.f32 %v1185, %v1266
  %v1348 = vmax.f32 %v1186, %v1267
  %v1349 = vmax.f32 %v1187, %v1268
  %v1350 = vmax.f32 %v1188, %v1269
  %v1351 = vmax.f32 %v1189, %v1270
  %v1352 = vmax.f32 %v1190, %v1271
  %v1353 = vmax.f32 %v1191, %v1272
  %v1354 = vmax.f32 %v1192, %v1273
  %v1355 = vmax.f32 %v1193, %v1274
  %v1356 = vmax.f32 %v1194, %v1275
  %v1357 = vmax.f32 %v1195, %v1276
  %v1358 = vmax.f32 %v1196, %v1277
  %v1359 = vmax.f32 %v1197, %v1278
  %v1360 = vmax.f32 %v1198, %v1279
  %v1361 = vmax.f32 %v1199, %v1280
  %v1362 = vmax.f32 %v1200, %v1281
  %v1363 = vmax.f32 %v1201, %v1282
  %v1364 = vmax.f32 %v1202, %v1283
  %v1365 = vmax.f32 %v1203, %v1284
  %v1366 = vmax.f32 %v1204, %v1285
  %v1367 = vmax.f32 %v1205, %v1286
  %v1368 = vmax.f32 %v1206, %v1287
  %v1369 = vmax.f32 %v1207, %v1288
  %v1370 = vmax.f32 %v1208, %v1289
  %v1371 = vmax.f32 %v1209, %v1290
  %v1372 = vmax.f32 %v1210, %v1291
  %v1373 = vmax.f32 %v1211, %v1292
  %v1374 = vmax.f32 %v1212, %v1293
  %v1375 = vmax.f32 %v1213, %v1294
  %v1376 = vmax.f32 %v1214, %v1295
  %v1377 = vmax.f32 %v1215, %v1296
  %v1378 = vmax.f32 %v1216, %v1297
  %v1379 = vmax.f32 %v1217, %v1298
  %v1380 = vmax.f32 %v1218, %v1299
  %v1381 = vmax.f32 %v1219, %v1300
  %v1382 = vmax.f32 %v1220, %v1301
  %v1383 = vmax.f32 %v1221, %v1302
  %v1384 = vmax.f32 %v1222, %v1303
  %v1385 = vmax.f32 %v1223, %v1304
  %v1386 = vmax.f32 %v1224, %v1305
  %v1387 = vmax.f32 %v1225, %v1306
  %v1388 = vmax.f32 %v1226, %v1307
  %v1389 = vmax.f32 %v1227, %v1308
  %v1390 = vmax.f32 %v1228, %v1309
  %v1391 = vmax.f32 %v1229, %v1310
  %v1392 = vmax.f32 %v1230, %v1311
  %v1393 = vmax.f32 %v1231, %v1312
  %v1394 = vmax.f32 %v1232, %v1313
  %v1395 = vmax.f32 %v1233, %v1314
  %v1396 = vmax.f32 %v1234, %v1315
  %v1397 = vmax.f32 %v1235, %v1316
  %v1398 = vmax.f32 %v1236, %v1317
  %v1399 = vmax.f32 %v1237, %v1318
  %v1400 = vld [vmem:[#allocation2 + $0x2] sm:$0xff]
  %v1401 = vld [vmem:[#allocation2 + $0xa] sm:$0xff]
  %v1402 = vld [vmem:[#allocation2 + $0x12] sm:$0xff]
  %v1403 = vld [vmem:[#allocation2 + $0x1a] sm:$0xff]
  %v1404 = vld [vmem:[#allocation2 + $0x22] sm:$0xff]
  %v1405 = vld [vmem:[#allocation2 + $0x2a] sm:$0xff]
  %v1406 = vld [vmem:[#allocation2 + $0x32] sm:$0xff]
  %v1407 = vld [vmem:[#allocation2 + $0x3a] sm:$0xff]
  %v1408 = vld [vmem:[#allocation2 + $0x42] sm:$0xff]
  %v1409 = vld [vmem:[#allocation2 + $0x4a] sm:$0xff]
  %v1410 = vld [vmem:[#allocation2 + $0x52] sm:$0xff]
  %v1411 = vld [vmem:[#allocation2 + $0x5a] sm:$0xff]
  %v1412 = vld [vmem:[#allocation2 + $0x62] sm:$0xff]
  %v1413 = vld [vmem:[#allocation2 + $0x6a] sm:$0xff]
  %v1414 = vld [vmem:[#allocation2 + $0x72] sm:$0xff]
  %v1415 = vld [vmem:[#allocation2 + $0x7a] sm:$0xff]
  %v1416 = vld [vmem:[#allocation2 + $0x82] sm:$0xff]
  %v1417 = vld [vmem:[#allocation2 + $0x8a] sm:$0xff]
  %v1418 = vld [vmem:[#allocation2 + $0x92] sm:$0xff]
  %v1419 = vld [vmem:[#allocation2 + $0x9a] sm:$0xff]
  %v1420 = vld [vmem:[#allocation2 + $0xa2] sm:$0xff]
  %v1421 = vld [vmem:[#allocation2 + $0xaa] sm:$0xff]
  %v1422 = vld [vmem:[#allocation2 + $0xb2] sm:$0xff]
  %v1423 = vld [vmem:[#allocation2 + $0xba] sm:$0xff]
  %v1424 = vld [vmem:[#allocation2 + $0xc2] sm:$0xff]
  %v1425 = vld [vmem:[#allocation2 + $0xca] sm:$0xff]
  %v1426 = vld [vmem:[#allocation2 + $0xd2] sm:$0xff]
  %v1427 = vld [vmem:[#allocation2 + $0xda] sm:$0xff]
  %v1428 = vld [vmem:[#allocation2 + $0xe2] sm:$0xff]
  %v1429 = vld [vmem:[#allocation2 + $0xea] sm:$0xff]
  %v1430 = vld [vmem:[#allocation2 + $0xf2] sm:$0xff]
  %v1431 = vld [vmem:[#allocation2 + $0xfa] sm:$0xff]
  %v1432 = vld [vmem:[#allocation2 + $0x102] sm:$0xff]
  %v1433 = vld [vmem:[#allocation2 + $0x10a] sm:$0xff]
  %v1434 = vld [vmem:[#allocation2 + $0x112] sm:$0xff]
  %v1435 = vld [vmem:[#allocation2 + $0x11a] sm:$0xff]
  %v1436 = vld [vmem:[#allocation2 + $0x122] sm:$0xff]
  %v1437 = vld [vmem:[#allocation2 + $0x12a] sm:$0xff]
  %v1438 = vld [vmem:[#allocation2 + $0x132] sm:$0xff]
  %v1439 = vld [vmem:[#allocation2 + $0x13a] sm:$0xff]
  %v1440 = vld [vmem:[#allocation2 + $0x142] sm:$0xff]
  %v1441 = vld [vmem:[#allocation2 + $0x14a] sm:$0xff]
  %v1442 = vld [vmem:[#allocation2 + $0x152] sm:$0xff]
  %v1443 = vld [vmem:[#allocation2 + $0x15a] sm:$0xff]
  %v1444 = vld [vmem:[#allocation2 + $0x162] sm:$0xff]
  %v1445 = vld [vmem:[#allocation2 + $0x16a] sm:$0xff]
  %v1446 = vld [vmem:[#allocation2 + $0x172] sm:$0xff]
  %v1447 = vld [vmem:[#allocation2 + $0x17a] sm:$0xff]
  %v1448 = vld [vmem:[#allocation2 + $0x182] sm:$0xff]
  %v1449 = vld [vmem:[#allocation2 + $0x18a] sm:$0xff]
  %v1450 = vld [vmem:[#allocation2 + $0x192] sm:$0xff]
  %v1451 = vld [vmem:[#allocation2 + $0x19a] sm:$0xff]
  %v1452 = vld [vmem:[#allocation2 + $0x1a2] sm:$0xff]
  %v1453 = vld [vmem:[#allocation2 + $0x1aa] sm:$0xff]
  %v1454 = vld [vmem:[#allocation2 + $0x1b2] sm:$0xff]
  %v1455 = vld [vmem:[#allocation2 + $0x1ba] sm:$0xff]
  %v1456 = vld [vmem:[#allocation2 + $0x1c2] sm:$0xff]
  %v1457 = vld [vmem:[#allocation2 + $0x1ca] sm:$0xff]
  %v1458 = vld [vmem:[#allocation2 + $0x1d2] sm:$0xff]
  %v1459 = vld [vmem:[#allocation2 + $0x1da] sm:$0xff]
  %v1460 = vld [vmem:[#allocation2 + $0x1e2] sm:$0xff]
  %v1461 = vld [vmem:[#allocation2 + $0x1ea] sm:$0xff]
  %v1462 = vld [vmem:[#allocation2 + $0x1f2] sm:$0xff]
  %v1463 = vld [vmem:[#allocation2 + $0x1fa] sm:$0xff]
  %v1464 = vld [vmem:[#allocation2 + $0x202] sm:$0xff]
  %v1465 = vld [vmem:[#allocation2 + $0x20a] sm:$0xff]
  %v1466 = vld [vmem:[#allocation2 + $0x212] sm:$0xff]
  %v1467 = vld [vmem:[#allocation2 + $0x21a] sm:$0xff]
  %v1468 = vld [vmem:[#allocation2 + $0x222] sm:$0xff]
  %v1469 = vld [vmem:[#allocation2 + $0x22a] sm:$0xff]
  %v1470 = vld [vmem:[#allocation2 + $0x232] sm:$0xff]
  %v1471 = vld [vmem:[#allocation2 + $0x23a] sm:$0xff]
  %v1472 = vld [vmem:[#allocation2 + $0x242] sm:$0xff]
  %v1473 = vld [vmem:[#allocation2 + $0x24a] sm:$0xff]
  %v1474 = vld [vmem:[#allocation2 + $0x252] sm:$0xff]
  %v1475 = vld [vmem:[#allocation2 + $0x25a] sm:$0xff]
  %v1476 = vld [vmem:[#allocation2 + $0x262] sm:$0xff]
  %v1477 = vld [vmem:[#allocation2 + $0x26a] sm:$0xff]
  %v1478 = vld [vmem:[#allocation2 + $0x272] sm:$0xff]
  %v1479 = vld [vmem:[#allocation2 + $0x27a] sm:$0xff]
  %v1480 = vld [vmem:[#allocation2 + $0x282] sm:$0xff]
  %v1481 = vmax.f32 %v1319, %v1400
  %v1482 = vmax.f32 %v1320, %v1401
  %v1483 = vmax.f32 %v1321, %v1402
  %v1484 = vmax.f32 %v1322, %v1403
  %v1485 = vmax.f32 %v1323, %v1404
  %v1486 = vmax.f32 %v1324, %v1405
  %v1487 = vmax.f32 %v1325, %v1406
  %v1488 = vmax.f32 %v1326, %v1407
  %v1489 = vmax.f32 %v1327, %v1408
  %v1490 = vmax.f32 %v1328, %v1409
  %v1491 = vmax.f32 %v1329, %v1410
  %v1492 = vmax.f32 %v1330, %v1411
  %v1493 = vmax.f32 %v1331, %v1412
  %v1494 = vmax.f32 %v1332, %v1413
  %v1495 = vmax.f32 %v1333, %v1414
  %v1496 = vmax.f32 %v1334, %v1415
  %v1497 = vmax.f32 %v1335, %v1416
  %v1498 = vmax.f32 %v1336, %v1417
  %v1499 = vmax.f32 %v1337, %v1418
  %v1500 = vmax.f32 %v1338, %v1419
  %v1501 = vmax.f32 %v1339, %v1420
  %v1502 = vmax.f32 %v1340, %v1421
  %v1503 = vmax.f32 %v1341, %v1422
  %v1504 = vmax.f32 %v1342, %v1423
  %v1505 = vmax.f32 %v1343, %v1424
  %v1506 = vmax.f32 %v1344, %v1425
  %v1507 = vmax.f32 %v1345, %v1426
  %v1508 = vmax.f32 %v1346, %v1427
  %v1509 = vmax.f32 %v1347, %v1428
  %v1510 = vmax.f32 %v1348, %v1429
  %v1511 = vmax.f32 %v1349, %v1430
  %v1512 = vmax.f32 %v1350, %v1431
  %v1513 = vmax.f32 %v1351, %v1432
  %v1514 = vmax.f32 %v1352, %v1433
  %v1515 = vmax.f32 %v1353, %v1434
  %v1516 = vmax.f32 %v1354, %v1435
  %v1517 = vmax.f32 %v1355, %v1436
  %v1518 = vmax.f32 %v1356, %v1437
  %v1519 = vmax.f32 %v1357, %v1438
  %v1520 = vmax.f32 %v1358, %v1439
  %v1521 = vmax.f32 %v1359, %v1440
  %v1522 = vmax.f32 %v1360, %v1441
  %v1523 = vmax.f32 %v1361, %v1442
  %v1524 = vmax.f32 %v1362, %v1443
  %v1525 = vmax.f32 %v1363, %v1444
  %v1526 = vmax.f32 %v1364, %v1445
  %v1527 = vmax.f32 %v1365, %v1446
  %v1528 = vmax.f32 %v1366, %v1447
  %v1529 = vmax.f32 %v1367, %v1448
  %v1530 = vmax.f32 %v1368, %v1449
  %v1531 = vmax.f32 %v1369, %v1450
  %v1532 = vmax.f32 %v1370, %v1451
  %v1533 = vmax.f32 %v1371, %v1452
  %v1534 = vmax.f32 %v1372, %v1453
  %v1535 = vmax.f32 %v1373, %v1454
  %v1536 = vmax.f32 %v1374, %v1455
  %v1537 = vmax.f32 %v1375, %v1456
  %v1538 = vmax.f32 %v1376, %v1457
  %v1539 = vmax.f32 %v1377, %v1458
  %v1540 = vmax.f32 %v1378, %v1459
  %v1541 = vmax.f32 %v1379, %v1460
  %v1542 = vmax.f32 %v1380, %v1461
  %v1543 = vmax.f32 %v1381, %v1462
  %v1544 = vmax.f32 %v1382, %v1463
  %v1545 = vmax.f32 %v1383, %v1464
  %v1546 = vmax.f32 %v1384, %v1465
  %v1547 = vmax.f32 %v1385, %v1466
  %v1548 = vmax.f32 %v1386, %v1467
  %v1549 = vmax.f32 %v1387, %v1468
  %v1550 = vmax.f32 %v1388, %v1469
  %v1551 = vmax.f32 %v1389, %v1470
  %v1552 = vmax.f32 %v1390, %v1471
  %v1553 = vmax.f32 %v1391, %v1472
  %v1554 = vmax.f32 %v1392, %v1473
  %v1555 = vmax.f32 %v1393, %v1474
  %v1556 = vmax.f32 %v1394, %v1475
  %v1557 = vmax.f32 %v1395, %v1476
  %v1558 = vmax.f32 %v1396, %v1477
  %v1559 = vmax.f32 %v1397, %v1478
  %v1560 = vmax.f32 %v1398, %v1479
  %v1561 = vmax.f32 %v1399, %v1480
  %v1562 = vld [vmem:[#allocation2 + $0x28a] sm:$0xff]
  %v1563 = vld [vmem:[#allocation2 + $0x292] sm:$0xff]
  %v1564 = vmax.f32 %v1481, %v1402
  %v1565 = vmax.f32 %v1482, %v1403
  %v1566 = vmax.f32 %v1483, %v1404
  %v1567 = vmax.f32 %v1484, %v1405
  %v1568 = vmax.f32 %v1485, %v1406
  %v1569 = vmax.f32 %v1486, %v1407
  %v1570 = vmax.f32 %v1487, %v1408
  %v1571 = vmax.f32 %v1488, %v1409
  %v1572 = vmax.f32 %v1489, %v1410
  %v1573 = vmax.f32 %v1490, %v1411
  %v1574 = vmax.f32 %v1491, %v1412
  %v1575 = vmax.f32 %v1492, %v1413
  %v1576 = vmax.f32 %v1493, %v1414
  %v1577 = vmax.f32 %v1494, %v1415
  %v1578 = vmax.f32 %v1495, %v1416
  %v1579 = vmax.f32 %v1496, %v1417
  %v1580 = vmax.f32 %v1497, %v1418
  %v1581 = vmax.f32 %v1498, %v1419
  %v1582 = vmax.f32 %v1499, %v1420
  %v1583 = vmax.f32 %v1500, %v1421
  %v1584 = vmax.f32 %v1501, %v1422
  %v1585 = vmax.f32 %v1502, %v1423
  %v1586 = vmax.f32 %v1503, %v1424
  %v1587 = vmax.f32 %v1504, %v1425
  %v1588 = vmax.f32 %v1505, %v1426
  %v1589 = vmax.f32 %v1506, %v1427
  %v1590 = vmax.f32 %v1507, %v1428
  %v1591 = vmax.f32 %v1508, %v1429
  %v1592 = vmax.f32 %v1509, %v1430
  %v1593 = vmax.f32 %v1510, %v1431
  %v1594 = vmax.f32 %v1511, %v1432
  %v1595 = vmax.f32 %v1512, %v1433
  %v1596 = vmax.f32 %v1513, %v1434
  %v1597 = vmax.f32 %v1514, %v1435
  %v1598 = vmax.f32 %v1515, %v1436
  %v1599 = vmax.f32 %v1516, %v1437
  %v1600 = vmax.f32 %v1517, %v1438
  %v1601 = vmax.f32 %v1518, %v1439
  %v1602 = vmax.f32 %v1519, %v1440
  %v1603 = vmax.f32 %v1520, %v1441
  %v1604 = vmax.f32 %v1521, %v1442
  %v1605 = vmax.f32 %v1522, %v1443
  %v1606 = vmax.f32 %v1523, %v1444
  %v1607 = vmax.f32 %v1524, %v1445
  %v1608 = vmax.f32 %v1525, %v1446
  %v1609 = vmax.f32 %v1526, %v1447
  %v1610 = vmax.f32 %v1527, %v1448
  %v1611 = vmax.f32 %v1528, %v1449
  %v1612 = vmax.f32 %v1529, %v1450
  %v1613 = vmax.f32 %v1530, %v1451
  %v1614 = vmax.f32 %v1531, %v1452
  %v1615 = vmax.f32 %v1532, %v1453
  %v1616 = vmax.f32 %v1533, %v1454
  %v1617 = vmax.f32 %v1534, %v1455
  %v1618 = vmax.f32 %v1535, %v1456
  %v1619 = vmax.f32 %v1536, %v1457
  %v1620 = vmax.f32 %v1537, %v1458
  %v1621 = vmax.f32 %v1538, %v1459
  %v1622 = vmax.f32 %v1539, %v1460
  %v1623 = vmax.f32 %v1540, %v1461
  %v1624 = vmax.f32 %v1541, %v1462
  %v1625 = vmax.f32 %v1542, %v1463
  %v1626 = vmax.f32 %v1543, %v1464
  %v1627 = vmax.f32 %v1544, %v1465
  %v1628 = vmax.f32 %v1545, %v1466
  %v1629 = vmax.f32 %v1546, %v1467
  %v1630 = vmax.f32 %v1547, %v1468
  %v1631 = vmax.f32 %v1548, %v1469
  %v1632 = vmax.f32 %v1549, %v1470
  %v1633 = vmax.f32 %v1550, %v1471
  %v1634 = vmax.f32 %v1551, %v1472
  %v1635 = vmax.f32 %v1552, %v1473
  %v1636 = vmax.f32 %v1553, %v1474
  %v1637 = vmax.f32 %v1554, %v1475
  %v1638 = vmax.f32 %v1555, %v1476
  %v1639 = vmax.f32 %v1556, %v1477
  %v1640 = vmax.f32 %v1557, %v1478
  %v1641 = vmax.f32 %v1558, %v1479
  %v1642 = vmax.f32 %v1559, %v1480
  %v1643 = vmax.f32 %v1560, %v1562
  %v1644 = vmax.f32 %v1561, %v1563
  %v1645 = vld [vmem:[#allocation2 + $0x13] sm:$0xff]
  %v1646 = vld [vmem:[#allocation2 + $0x1b] sm:$0xff]
  %v1647 = vld [vmem:[#allocation2 + $0x23] sm:$0xff]
  %v1648 = vld [vmem:[#allocation2 + $0x2b] sm:$0xff]
  %v1649 = vld [vmem:[#allocation2 + $0x33] sm:$0xff]
  %v1650 = vld [vmem:[#allocation2 + $0x3b] sm:$0xff]
  %v1651 = vld [vmem:[#allocation2 + $0x43] sm:$0xff]
  %v1652 = vld [vmem:[#allocation2 + $0x4b] sm:$0xff]
  %v1653 = vld [vmem:[#allocation2 + $0x53] sm:$0xff]
  %v1654 = vld [vmem:[#allocation2 + $0x5b] sm:$0xff]
  %v1655 = vld [vmem:[#allocation2 + $0x63] sm:$0xff]
  %v1656 = vld [vmem:[#allocation2 + $0x6b] sm:$0xff]
  %v1657 = vld [vmem:[#allocation2 + $0x73] sm:$0xff]
  %v1658 = vld [vmem:[#allocation2 + $0x7b] sm:$0xff]
  %v1659 = vld [vmem:[#allocation2 + $0x83] sm:$0xff]
  %v1660 = vld [vmem:[#allocation2 + $0x8b] sm:$0xff]
  %v1661 = vld [vmem:[#allocation2 + $0x93] sm:$0xff]
  %v1662 = vld [vmem:[#allocation2 + $0x9b] sm:$0xff]
  %v1663 = vld [vmem:[#allocation2 + $0xa3] sm:$0xff]
  %v1664 = vld [vmem:[#allocation2 + $0xab] sm:$0xff]
  %v1665 = vld [vmem:[#allocation2 + $0xb3] sm:$0xff]
  %v1666 = vld [vmem:[#allocation2 + $0xbb] sm:$0xff]
  %v1667 = vld [vmem:[#allocation2 + $0xc3] sm:$0xff]
  %v1668 = vld [vmem:[#allocation2 + $0xcb] sm:$0xff]
  %v1669 = vld [vmem:[#allocation2 + $0xd3] sm:$0xff]
  %v1670 = vld [vmem:[#allocation2 + $0xdb] sm:$0xff]
  %v1671 = vld [vmem:[#allocation2 + $0xe3] sm:$0xff]
  %v1672 = vld [vmem:[#allocation2 + $0xeb] sm:$0xff]
  %v1673 = vld [vmem:[#allocation2 + $0xf3] sm:$0xff]
  %v1674 = vld [vmem:[#allocation2 + $0xfb] sm:$0xff]
  %v1675 = vld [vmem:[#allocation2 + $0x103] sm:$0xff]
  %v1676 = vld [vmem:[#allocation2 + $0x10b] sm:$0xff]
  %v1677 = vld [vmem:[#allocation2 + $0x113] sm:$0xff]
  %v1678 = vld [vmem:[#allocation2 + $0x11b] sm:$0xff]
  %v1679 = vld [vmem:[#allocation2 + $0x123] sm:$0xff]
  %v1680 = vld [vmem:[#allocation2 + $0x12b] sm:$0xff]
  %v1681 = vld [vmem:[#allocation2 + $0x133] sm:$0xff]
  %v1682 = vld [vmem:[#allocation2 + $0x13b] sm:$0xff]
  %v1683 = vld [vmem:[#allocation2 + $0x143] sm:$0xff]
  %v1684 = vld [vmem:[#allocation2 + $0x14b] sm:$0xff]
  %v1685 = vld [vmem:[#allocation2 + $0x153] sm:$0xff]
  %v1686 = vld [vmem:[#allocation2 + $0x15b] sm:$0xff]
  %v1687 = vld [vmem:[#allocation2 + $0x163] sm:$0xff]
  %v1688 = vld [vmem:[#allocation2 + $0x16b] sm:$0xff]
  %v1689 = vld [vmem:[#allocation2 + $0x173] sm:$0xff]
  %v1690 = vld [vmem:[#allocation2 + $0x17b] sm:$0xff]
  %v1691 = vld [vmem:[#allocation2 + $0x183] sm:$0xff]
  %v1692 = vld [vmem:[#allocation2 + $0x18b] sm:$0xff]
  %v1693 = vld [vmem:[#allocation2 + $0x193] sm:$0xff]
  %v1694 = vld [vmem:[#allocation2 + $0x19b] sm:$0xff]
  %v1695 = vld [vmem:[#allocation2 + $0x1a3] sm:$0xff]
  %v1696 = vld [vmem:[#allocation2 + $0x1ab] sm:$0xff]
  %v1697 = vld [vmem:[#allocation2 + $0x1b3] sm:$0xff]
  %v1698 = vld [vmem:[#allocation2 + $0x1bb] sm:$0xff]
  %v1699 = vld [vmem:[#allocation2 + $0x1c3] sm:$0xff]
  %v1700 = vld [vmem:[#allocation2 + $0x1cb] sm:$0xff]
  %v1701 = vld [vmem:[#allocation2 + $0x1d3] sm:$0xff]
  %v1702 = vld [vmem:[#allocation2 + $0x1db] sm:$0xff]
  %v1703 = vld [vmem:[#allocation2 + $0x1e3] sm:$0xff]
  %v1704 = vld [vmem:[#allocation2 + $0x1eb] sm:$0xff]
  %v1705 = vld [vmem:[#allocation2 + $0x1f3] sm:$0xff]
  %v1706 = vld [vmem:[#allocation2 + $0x1fb] sm:$0xff]
  %v1707 = vld [vmem:[#allocation2 + $0x203] sm:$0xff]
  %v1708 = vld [vmem:[#allocation2 + $0x20b] sm:$0xff]
  %v1709 = vld [vmem:[#allocation2 + $0x213] sm:$0xff]
  %v1710 = vld [vmem:[#allocation2 + $0x21b] sm:$0xff]
  %v1711 = vld [vmem:[#allocation2 + $0x223] sm:$0xff]
  %v1712 = vld [vmem:[#allocation2 + $0x22b] sm:$0xff]
  %v1713 = vld [vmem:[#allocation2 + $0x233] sm:$0xff]
  %v1714 = vld [vmem:[#allocation2 + $0x23b] sm:$0xff]
  %v1715 = vld [vmem:[#allocation2 + $0x243] sm:$0xff]
  %v1716 = vld [vmem:[#allocation2 + $0x24b] sm:$0xff]
  %v1717 = vld [vmem:[#allocation2 + $0x253] sm:$0xff]
  %v1718 = vld [vmem:[#allocation2 + $0x25b] sm:$0xff]
  %v1719 = vld [vmem:[#allocation2 + $0x263] sm:$0xff]
  %v1720 = vld [vmem:[#allocation2 + $0x26b] sm:$0xff]
  %v1721 = vld [vmem:[#allocation2 + $0x273] sm:$0xff]
  %v1722 = vld [vmem:[#allocation2 + $0x27b] sm:$0xff]
  %v1723 = vld [vmem:[#allocation2 + $0x283] sm:$0xff]
  %v1724 = vld [vmem:[#allocation2 + $0x28b] sm:$0xff]
  %v1725 = vld [vmem:[#allocation2 + $0x293] sm:$0xff]
  %v1726 = vmax.f32 %v1564, %v1645
  %v1727 = vmax.f32 %v1565, %v1646
  %v1728 = vmax.f32 %v1566, %v1647
  %v1729 = vmax.f32 %v1567, %v1648
  %v1730 = vmax.f32 %v1568, %v1649
  %v1731 = vmax.f32 %v1569, %v1650
  %v1732 = vmax.f32 %v1570, %v1651
  %v1733 = vmax.f32 %v1571, %v1652
  %v1734 = vmax.f32 %v1572, %v1653
  %v1735 = vmax.f32 %v1573, %v1654
  %v1736 = vmax.f32 %v1574, %v1655
  %v1737 = vmax.f32 %v1575, %v1656
  %v1738 = vmax.f32 %v1576, %v1657
  %v1739 = vmax.f32 %v1577, %v1658
  %v1740 = vmax.f32 %v1578, %v1659
  %v1741 = vmax.f32 %v1579, %v1660
  %v1742 = vmax.f32 %v1580, %v1661
  %v1743 = vmax.f32 %v1581, %v1662
  %v1744 = vmax.f32 %v1582, %v1663
  %v1745 = vmax.f32 %v1583, %v1664
  %v1746 = vmax.f32 %v1584, %v1665
  %v1747 = vmax.f32 %v1585, %v1666
  %v1748 = vmax.f32 %v1586, %v1667
  %v1749 = vmax.f32 %v1587, %v1668
  %v1750 = vmax.f32 %v1588, %v1669
  %v1751 = vmax.f32 %v1589, %v1670
  %v1752 = vmax.f32 %v1590, %v1671
  %v1753 = vmax.f32 %v1591, %v1672
  %v1754 = vmax.f32 %v1592, %v1673
  %v1755 = vmax.f32 %v1593, %v1674
  %v1756 = vmax.f32 %v1594, %v1675
  %v1757 = vmax.f32 %v1595, %v1676
  %v1758 = vmax.f32 %v1596, %v1677
  %v1759 = vmax.f32 %v1597, %v1678
  %v1760 = vmax.f32 %v1598, %v1679
  %v1761 = vmax.f32 %v1599, %v1680
  %v1762 = vmax.f32 %v1600, %v1681
  %v1763 = vmax.f32 %v1601, %v1682
  %v1764 = vmax.f32 %v1602, %v1683
  %v1765 = vmax.f32 %v1603, %v1684
  %v1766 = vmax.f32 %v1604, %v1685
  %v1767 = vmax.f32 %v1605, %v1686
  %v1768 = vmax.f32 %v1606, %v1687
  %v1769 = vmax.f32 %v1607, %v1688
  %v1770 = vmax.f32 %v1608, %v1689
  %v1771 = vmax.f32 %v1609, %v1690
  %v1772 = vmax.f32 %v1610, %v1691
  %v1773 = vmax.f32 %v1611, %v1692
  %v1774 = vmax.f32 %v1612, %v1693
  %v1775 = vmax.f32 %v1613, %v1694
  %v1776 = vmax.f32 %v1614, %v1695
  %v1777 = vmax.f32 %v1615, %v1696
  %v1778 = vmax.f32 %v1616, %v1697
  %v1779 = vmax.f32 %v1617, %v1698
  %v1780 = vmax.f32 %v1618, %v1699
  %v1781 = vmax.f32 %v1619, %v1700
  %v1782 = vmax.f32 %v1620, %v1701
  %v1783 = vmax.f32 %v1621, %v1702
  %v1784 = vmax.f32 %v1622, %v1703
  %v1785 = vmax.f32 %v1623, %v1704
  %v1786 = vmax.f32 %v1624, %v1705
  %v1787 = vmax.f32 %v1625, %v1706
  %v1788 = vmax.f32 %v1626, %v1707
  %v1789 = vmax.f32 %v1627, %v1708
  %v1790 = vmax.f32 %v1628, %v1709
  %v1791 = vmax.f32 %v1629, %v1710
  %v1792 = vmax.f32 %v1630, %v1711
  %v1793 = vmax.f32 %v1631, %v1712
  %v1794 = vmax.f32 %v1632, %v1713
  %v1795 = vmax.f32 %v1633, %v1714
  %v1796 = vmax.f32 %v1634, %v1715
  %v1797 = vmax.f32 %v1635, %v1716
  %v1798 = vmax.f32 %v1636, %v1717
  %v1799 = vmax.f32 %v1637, %v1718
  %v1800 = vmax.f32 %v1638, %v1719
  %v1801 = vmax.f32 %v1639, %v1720
  %v1802 = vmax.f32 %v1640, %v1721
  %v1803 = vmax.f32 %v1641, %v1722
  %v1804 = vmax.f32 %v1642, %v1723
  %v1805 = vmax.f32 %v1643, %v1724
  %v1806 = vmax.f32 %v1644, %v1725
  %v1807 = vld [vmem:[#allocation2 + $0x14] sm:$0xff]
  %v1808 = vld [vmem:[#allocation2 + $0x1c] sm:$0xff]
  %v1809 = vld [vmem:[#allocation2 + $0x24] sm:$0xff]
  %v1810 = vld [vmem:[#allocation2 + $0x2c] sm:$0xff]
  %v1811 = vld [vmem:[#allocation2 + $0x34] sm:$0xff]
  %v1812 = vld [vmem:[#allocation2 + $0x3c] sm:$0xff]
  %v1813 = vld [vmem:[#allocation2 + $0x44] sm:$0xff]
  %v1814 = vld [vmem:[#allocation2 + $0x4c] sm:$0xff]
  %v1815 = vld [vmem:[#allocation2 + $0x54] sm:$0xff]
  %v1816 = vld [vmem:[#allocation2 + $0x5c] sm:$0xff]
  %v1817 = vld [vmem:[#allocation2 + $0x64] sm:$0xff]
  %v1818 = vld [vmem:[#allocation2 + $0x6c] sm:$0xff]
  %v1819 = vld [vmem:[#allocation2 + $0x74] sm:$0xff]
  %v1820 = vld [vmem:[#allocation2 + $0x7c] sm:$0xff]
  %v1821 = vld [vmem:[#allocation2 + $0x84] sm:$0xff]
  %v1822 = vld [vmem:[#allocation2 + $0x8c] sm:$0xff]
  %v1823 = vld [vmem:[#allocation2 + $0x94] sm:$0xff]
  %v1824 = vld [vmem:[#allocation2 + $0x9c] sm:$0xff]
  %v1825 = vld [vmem:[#allocation2 + $0xa4] sm:$0xff]
  %v1826 = vld [vmem:[#allocation2 + $0xac] sm:$0xff]
  %v1827 = vld [vmem:[#allocation2 + $0xb4] sm:$0xff]
  %v1828 = vld [vmem:[#allocation2 + $0xbc] sm:$0xff]
  %v1829 = vld [vmem:[#allocation2 + $0xc4] sm:$0xff]
  %v1830 = vld [vmem:[#allocation2 + $0xcc] sm:$0xff]
  %v1831 = vld [vmem:[#allocation2 + $0xd4] sm:$0xff]
  %v1832 = vld [vmem:[#allocation2 + $0xdc] sm:$0xff]
  %v1833 = vld [vmem:[#allocation2 + $0xe4] sm:$0xff]
  %v1834 = vld [vmem:[#allocation2 + $0xec] sm:$0xff]
  %v1835 = vld [vmem:[#allocation2 + $0xf4] sm:$0xff]
  %v1836 = vld [vmem:[#allocation2 + $0xfc] sm:$0xff]
  %v1837 = vld [vmem:[#allocation2 + $0x104] sm:$0xff]
  %v1838 = vld [vmem:[#allocation2 + $0x10c] sm:$0xff]
  %v1839 = vld [vmem:[#allocation2 + $0x114] sm:$0xff]
  %v1840 = vld [vmem:[#allocation2 + $0x11c] sm:$0xff]
  %v1841 = vld [vmem:[#allocation2 + $0x124] sm:$0xff]
  %v1842 = vld [vmem:[#allocation2 + $0x12c] sm:$0xff]
  %v1843 = vld [vmem:[#allocation2 + $0x134] sm:$0xff]
  %v1844 = vld [vmem:[#allocation2 + $0x13c] sm:$0xff]
  %v1845 = vld [vmem:[#allocation2 + $0x144] sm:$0xff]
  %v1846 = vld [vmem:[#allocation2 + $0x14c] sm:$0xff]
  %v1847 = vld [vmem:[#allocation2 + $0x154] sm:$0xff]
  %v1848 = vld [vmem:[#allocation2 + $0x15c] sm:$0xff]
  %v1849 = vld [vmem:[#allocation2 + $0x164] sm:$0xff]
  %v1850 = vld [vmem:[#allocation2 + $0x16c] sm:$0xff]
  %v1851 = vld [vmem:[#allocation2 + $0x174] sm:$0xff]
  %v1852 = vld [vmem:[#allocation2 + $0x17c] sm:$0xff]
  %v1853 = vld [vmem:[#allocation2 + $0x184] sm:$0xff]
  %v1854 = vld [vmem:[#allocation2 + $0x18c] sm:$0xff]
  %v1855 = vld [vmem:[#allocation2 + $0x194] sm:$0xff]
  %v1856 = vld [vmem:[#allocation2 + $0x19c] sm:$0xff]
  %v1857 = vld [vmem:[#allocation2 + $0x1a4] sm:$0xff]
  %v1858 = vld [vmem:[#allocation2 + $0x1ac] sm:$0xff]
  %v1859 = vld [vmem:[#allocation2 + $0x1b4] sm:$0xff]
  %v1860 = vld [vmem:[#allocation2 + $0x1bc] sm:$0xff]
  %v1861 = vld [vmem:[#allocation2 + $0x1c4] sm:$0xff]
  %v1862 = vld [vmem:[#allocation2 + $0x1cc] sm:$0xff]
  %v1863 = vld [vmem:[#allocation2 + $0x1d4] sm:$0xff]
  %v1864 = vld [vmem:[#allocation2 + $0x1dc] sm:$0xff]
  %v1865 = vld [vmem:[#allocation2 + $0x1e4] sm:$0xff]
  %v1866 = vld [vmem:[#allocation2 + $0x1ec] sm:$0xff]
  %v1867 = vld [vmem:[#allocation2 + $0x1f4] sm:$0xff]
  %v1868 = vld [vmem:[#allocation2 + $0x1fc] sm:$0xff]
  %v1869 = vld [vmem:[#allocation2 + $0x204] sm:$0xff]
  %v1870 = vld [vmem:[#allocation2 + $0x20c] sm:$0xff]
  %v1871 = vld [vmem:[#allocation2 + $0x214] sm:$0xff]
  %v1872 = vld [vmem:[#allocation2 + $0x21c] sm:$0xff]
  %v1873 = vld [vmem:[#allocation2 + $0x224] sm:$0xff]
  %v1874 = vld [vmem:[#allocation2 + $0x22c] sm:$0xff]
  %v1875 = vld [vmem:[#allocation2 + $0x234] sm:$0xff]
  %v1876 = vld [vmem:[#allocation2 + $0x23c] sm:$0xff]
  %v1877 = vld [vmem:[#allocation2 + $0x244] sm:$0xff]
  %v1878 = vld [vmem:[#allocation2 + $0x24c] sm:$0xff]
  %v1879 = vld [vmem:[#allocation2 + $0x254] sm:$0xff]
  %v1880 = vld [vmem:[#allocation2 + $0x25c] sm:$0xff]
  %v1881 = vld [vmem:[#allocation2 + $0x264] sm:$0xff]
  %v1882 = vld [vmem:[#allocation2 + $0x26c] sm:$0xff]
  %v1883 = vld [vmem:[#allocation2 + $0x274] sm:$0xff]
  %v1884 = vld [vmem:[#allocation2 + $0x27c] sm:$0xff]
  %v1885 = vld [vmem:[#allocation2 + $0x284] sm:$0xff]
  %v1886 = vld [vmem:[#allocation2 + $0x28c] sm:$0xff]
  %v1887 = vld [vmem:[#allocation2 + $0x294] sm:$0xff]
  %v1888 = vmax.f32 %v1726, %v1807
  %v1889 = vmax.f32 %v1727, %v1808
  %v1890 = vmax.f32 %v1728, %v1809
  %v1891 = vmax.f32 %v1729, %v1810
  %v1892 = vmax.f32 %v1730, %v1811
  %v1893 = vmax.f32 %v1731, %v1812
  %v1894 = vmax.f32 %v1732, %v1813
  %v1895 = vmax.f32 %v1733, %v1814
  %v1896 = vmax.f32 %v1734, %v1815
  %v1897 = vmax.f32 %v1735, %v1816
  %v1898 = vmax.f32 %v1736, %v1817
  %v1899 = vmax.f32 %v1737, %v1818
  %v1900 = vmax.f32 %v1738, %v1819
  %v1901 = vmax.f32 %v1739, %v1820
  %v1902 = vmax.f32 %v1740, %v1821
  %v1903 = vmax.f32 %v1741, %v1822
  %v1904 = vmax.f32 %v1742, %v1823
  %v1905 = vmax.f32 %v1743, %v1824
  %v1906 = vmax.f32 %v1744, %v1825
  %v1907 = vmax.f32 %v1745, %v1826
  %v1908 = vmax.f32 %v1746, %v1827
  %v1909 = vmax.f32 %v1747, %v1828
  %v1910 = vmax.f32 %v1748, %v1829
  %v1911 = vmax.f32 %v1749, %v1830
  %v1912 = vmax.f32 %v1750, %v1831
  %v1913 = vmax.f32 %v1751, %v1832
  %v1914 = vmax.f32 %v1752, %v1833
  %v1915 = vmax.f32 %v1753, %v1834
  %v1916 = vmax.f32 %v1754, %v1835
  %v1917 = vmax.f32 %v1755, %v1836
  %v1918 = vmax.f32 %v1756, %v1837
  %v1919 = vmax.f32 %v1757, %v1838
  %v1920 = vmax.f32 %v1758, %v1839
  %v1921 = vmax.f32 %v1759, %v1840
  %v1922 = vmax.f32 %v1760, %v1841
  %v1923 = vmax.f32 %v1761, %v1842
  %v1924 = vmax.f32 %v1762, %v1843
  %v1925 = vmax.f32 %v1763, %v1844
  %v1926 = vmax.f32 %v1764, %v1845
  %v1927 = vmax.f32 %v1765, %v1846
  %v1928 = vmax.f32 %v1766, %v1847
  %v1929 = vmax.f32 %v1767, %v1848
  %v1930 = vmax.f32 %v1768, %v1849
  %v1931 = vmax.f32 %v1769, %v1850
  %v1932 = vmax.f32 %v1770, %v1851
  %v1933 = vmax.f32 %v1771, %v1852
  %v1934 = vmax.f32 %v1772, %v1853
  %v1935 = vmax.f32 %v1773, %v1854
  %v1936 = vmax.f32 %v1774, %v1855
  %v1937 = vmax.f32 %v1775, %v1856
  %v1938 = vmax.f32 %v1776, %v1857
  %v1939 = vmax.f32 %v1777, %v1858
  %v1940 = vmax.f32 %v1778, %v1859
  %v1941 = vmax.f32 %v1779, %v1860
  %v1942 = vmax.f32 %v1780, %v1861
  %v1943 = vmax.f32 %v1781, %v1862
  %v1944 = vmax.f32 %v1782, %v1863
  %v1945 = vmax.f32 %v1783, %v1864
  %v1946 = vmax.f32 %v1784, %v1865
  %v1947 = vmax.f32 %v1785, %v1866
  %v1948 = vmax.f32 %v1786, %v1867
  %v1949 = vmax.f32 %v1787, %v1868
  %v1950 = vmax.f32 %v1788, %v1869
  %v1951 = vmax.f32 %v1789, %v1870
  %v1952 = vmax.f32 %v1790, %v1871
  %v1953 = vmax.f32 %v1791, %v1872
  %v1954 = vmax.f32 %v1792, %v1873
  %v1955 = vmax.f32 %v1793, %v1874
  %v1956 = vmax.f32 %v1794, %v1875
  %v1957 = vmax.f32 %v1795, %v1876
  %v1958 = vmax.f32 %v1796, %v1877
  %v1959 = vmax.f32 %v1797, %v1878
  %v1960 = vmax.f32 %v1798, %v1879
  %v1961 = vmax.f32 %v1799, %v1880
  %v1962 = vmax.f32 %v1800, %v1881
  %v1963 = vmax.f32 %v1801, %v1882
  %v1964 = vmax.f32 %v1802, %v1883
  %v1965 = vmax.f32 %v1803, %v1884
  %v1966 = vmax.f32 %v1804, %v1885
  %v1967 = vmax.f32 %v1805, %v1886
  %v1968 = vmax.f32 %v1806, %v1887
  %v1969 = vld [vmem:[#allocation2 + $0x29c] sm:$0xff]
  %v1970 = vld [vmem:[#allocation2 + $0x2a4] sm:$0xff]
  %v1971 = vmax.f32 %v1888, %v1809
  %v1972 = vmax.f32 %v1889, %v1810
  %v1973 = vmax.f32 %v1890, %v1811
  %v1974 = vmax.f32 %v1891, %v1812
  %v1975 = vmax.f32 %v1892, %v1813
  %v1976 = vmax.f32 %v1893, %v1814
  %v1977 = vmax.f32 %v1894, %v1815
  %v1978 = vmax.f32 %v1895, %v1816
  %v1979 = vmax.f32 %v1896, %v1817
  %v1980 = vmax.f32 %v1897, %v1818
  %v1981 = vmax.f32 %v1898, %v1819
  %v1982 = vmax.f32 %v1899, %v1820
  %v1983 = vmax.f32 %v1900, %v1821
  %v1984 = vmax.f32 %v1901, %v1822
  %v1985 = vmax.f32 %v1902, %v1823
  %v1986 = vmax.f32 %v1903, %v1824
  %v1987 = vmax.f32 %v1904, %v1825
  %v1988 = vmax.f32 %v1905, %v1826
  %v1989 = vmax.f32 %v1906, %v1827
  %v1990 = vmax.f32 %v1907, %v1828
  %v1991 = vmax.f32 %v1908, %v1829
  %v1992 = vmax.f32 %v1909, %v1830
  %v1993 = vmax.f32 %v1910, %v1831
  %v1994 = vmax.f32 %v1911, %v1832
  %v1995 = vmax.f32 %v1912, %v1833
  %v1996 = vmax.f32 %v1913, %v1834
  %v1997 = vmax.f32 %v1914, %v1835
  %v1998 = vmax.f32 %v1915, %v1836
  %v1999 = vmax.f32 %v1916, %v1837
  %v2000 = vmax.f32 %v1917, %v1838
  %v2001 = vmax.f32 %v1918, %v1839
  %v2002 = vmax.f32 %v1919, %v1840
  %v2003 = vmax.f32 %v1920, %v1841
  %v2004 = vmax.f32 %v1921, %v1842
  %v2005 = vmax.f32 %v1922, %v1843
  %v2006 = vmax.f32 %v1923, %v1844
  %v2007 = vmax.f32 %v1924, %v1845
  %v2008 = vmax.f32 %v1925, %v1846
  %v2009 = vmax.f32 %v1926, %v1847
  %v2010 = vmax.f32 %v1927, %v1848
  %v2011 = vmax.f32 %v1928, %v1849
  %v2012 = vmax.f32 %v1929, %v1850
  %v2013 = vmax.f32 %v1930, %v1851
  %v2014 = vmax.f32 %v1931, %v1852
  %v2015 = vmax.f32 %v1932, %v1853
  %v2016 = vmax.f32 %v1933, %v1854
  %v2017 = vmax.f32 %v1934, %v1855
  %v2018 = vmax.f32 %v1935, %v1856
  %v2019 = vmax.f32 %v1936, %v1857
  %v2020 = vmax.f32 %v1937, %v1858
  %v2021 = vmax.f32 %v1938, %v1859
  %v2022 = vmax.f32 %v1939, %v1860
  %v2023 = vmax.f32 %v1940, %v1861
  %v2024 = vmax.f32 %v1941, %v1862
  %v2025 = vmax.f32 %v1942, %v1863
  %v2026 = vmax.f32 %v1943, %v1864
  %v2027 = vmax.f32 %v1944, %v1865
  %v2028 = vmax.f32 %v1945, %v1866
  %v2029 = vmax.f32 %v1946, %v1867
  %v2030 = vmax.f32 %v1947, %v1868
  %v2031 = vmax.f32 %v1948, %v1869
  %v2032 = vmax.f32 %v1949, %v1870
  %v2033 = vmax.f32 %v1950, %v1871
  %v2034 = vmax.f32 %v1951, %v1872
  %v2035 = vmax.f32 %v1952, %v1873
  %v2036 = vmax.f32 %v1953, %v1874
  %v2037 = vmax.f32 %v1954, %v1875
  %v2038 = vmax.f32 %v1955, %v1876
  %v2039 = vmax.f32 %v1956, %v1877
  %v2040 = vmax.f32 %v1957, %v1878
  %v2041 = vmax.f32 %v1958, %v1879
  %v2042 = vmax.f32 %v1959, %v1880
  %v2043 = vmax.f32 %v1960, %v1881
  %v2044 = vmax.f32 %v1961, %v1882
  %v2045 = vmax.f32 %v1962, %v1883
  %v2046 = vmax.f32 %v1963, %v1884
  %v2047 = vmax.f32 %v1964, %v1885
  %v2048 = vmax.f32 %v1965, %v1886
  %v2049 = vmax.f32 %v1966, %v1887
  %v2050 = vmax.f32 %v1967, %v1969
  %v2051 = vmax.f32 %v1968, %v1970
  %v2052 = vld [vmem:[#allocation2 + $0x25] sm:$0xff]
  %v2053 = vld [vmem:[#allocation2 + $0x2d] sm:$0xff]
  %v2054 = vld [vmem:[#allocation2 + $0x35] sm:$0xff]
  %v2055 = vld [vmem:[#allocation2 + $0x3d] sm:$0xff]
  %v2056 = vld [vmem:[#allocation2 + $0x45] sm:$0xff]
  %v2057 = vld [vmem:[#allocation2 + $0x4d] sm:$0xff]
  %v2058 = vld [vmem:[#allocation2 + $0x55] sm:$0xff]
  %v2059 = vld [vmem:[#allocation2 + $0x5d] sm:$0xff]
  %v2060 = vld [vmem:[#allocation2 + $0x65] sm:$0xff]
  %v2061 = vld [vmem:[#allocation2 + $0x6d] sm:$0xff]
  %v2062 = vld [vmem:[#allocation2 + $0x75] sm:$0xff]
  %v2063 = vld [vmem:[#allocation2 + $0x7d] sm:$0xff]
  %v2064 = vld [vmem:[#allocation2 + $0x85] sm:$0xff]
  %v2065 = vld [vmem:[#allocation2 + $0x8d] sm:$0xff]
  %v2066 = vld [vmem:[#allocation2 + $0x95] sm:$0xff]
  %v2067 = vld [vmem:[#allocation2 + $0x9d] sm:$0xff]
  %v2068 = vld [vmem:[#allocation2 + $0xa5] sm:$0xff]
  %v2069 = vld [vmem:[#allocation2 + $0xad] sm:$0xff]
  %v2070 = vld [vmem:[#allocation2 + $0xb5] sm:$0xff]
  %v2071 = vld [vmem:[#allocation2 + $0xbd] sm:$0xff]
  %v2072 = vld [vmem:[#allocation2 + $0xc5] sm:$0xff]
  %v2073 = vld [vmem:[#allocation2 + $0xcd] sm:$0xff]
  %v2074 = vld [vmem:[#allocation2 + $0xd5] sm:$0xff]
  %v2075 = vld [vmem:[#allocation2 + $0xdd] sm:$0xff]
  %v2076 = vld [vmem:[#allocation2 + $0xe5] sm:$0xff]
  %v2077 = vld [vmem:[#allocation2 + $0xed] sm:$0xff]
  %v2078 = vld [vmem:[#allocation2 + $0xf5] sm:$0xff]
  %v2079 = vld [vmem:[#allocation2 + $0xfd] sm:$0xff]
  %v2080 = vld [vmem:[#allocation2 + $0x105] sm:$0xff]
  %v2081 = vld [vmem:[#allocation2 + $0x10d] sm:$0xff]
  %v2082 = vld [vmem:[#allocation2 + $0x115] sm:$0xff]
  %v2083 = vld [vmem:[#allocation2 + $0x11d] sm:$0xff]
  %v2084 = vld [vmem:[#allocation2 + $0x125] sm:$0xff]
  %v2085 = vld [vmem:[#allocation2 + $0x12d] sm:$0xff]
  %v2086 = vld [vmem:[#allocation2 + $0x135] sm:$0xff]
  %v2087 = vld [vmem:[#allocation2 + $0x13d] sm:$0xff]
  %v2088 = vld [vmem:[#allocation2 + $0x145] sm:$0xff]
  %v2089 = vld [vmem:[#allocation2 + $0x14d] sm:$0xff]
  %v2090 = vld [vmem:[#allocation2 + $0x155] sm:$0xff]
  %v2091 = vld [vmem:[#allocation2 + $0x15d] sm:$0xff]
  %v2092 = vld [vmem:[#allocation2 + $0x165] sm:$0xff]
  %v2093 = vld [vmem:[#allocation2 + $0x16d] sm:$0xff]
  %v2094 = vld [vmem:[#allocation2 + $0x175] sm:$0xff]
  %v2095 = vld [vmem:[#allocation2 + $0x17d] sm:$0xff]
  %v2096 = vld [vmem:[#allocation2 + $0x185] sm:$0xff]
  %v2097 = vld [vmem:[#allocation2 + $0x18d] sm:$0xff]
  %v2098 = vld [vmem:[#allocation2 + $0x195] sm:$0xff]
  %v2099 = vld [vmem:[#allocation2 + $0x19d] sm:$0xff]
  %v2100 = vld [vmem:[#allocation2 + $0x1a5] sm:$0xff]
  %v2101 = vld [vmem:[#allocation2 + $0x1ad] sm:$0xff]
  %v2102 = vld [vmem:[#allocation2 + $0x1b5] sm:$0xff]
  %v2103 = vld [vmem:[#allocation2 + $0x1bd] sm:$0xff]
  %v2104 = vld [vmem:[#allocation2 + $0x1c5] sm:$0xff]
  %v2105 = vld [vmem:[#allocation2 + $0x1cd] sm:$0xff]
  %v2106 = vld [vmem:[#allocation2 + $0x1d5] sm:$0xff]
  %v2107 = vld [vmem:[#allocation2 + $0x1dd] sm:$0xff]
  %v2108 = vld [vmem:[#allocation2 + $0x1e5] sm:$0xff]
  %v2109 = vld [vmem:[#allocation2 + $0x1ed] sm:$0xff]
  %v2110 = vld [vmem:[#allocation2 + $0x1f5] sm:$0xff]
  %v2111 = vld [vmem:[#allocation2 + $0x1fd] sm:$0xff]
  %v2112 = vld [vmem:[#allocation2 + $0x205] sm:$0xff]
  %v2113 = vld [vmem:[#allocation2 + $0x20d] sm:$0xff]
  %v2114 = vld [vmem:[#allocation2 + $0x215] sm:$0xff]
  %v2115 = vld [vmem:[#allocation2 + $0x21d] sm:$0xff]
  %v2116 = vld [vmem:[#allocation2 + $0x225] sm:$0xff]
  %v2117 = vld [vmem:[#allocation2 + $0x22d] sm:$0xff]
  %v2118 = vld [vmem:[#allocation2 + $0x235] sm:$0xff]
  %v2119 = vld [vmem:[#allocation2 + $0x23d] sm:$0xff]
  %v2120 = vld [vmem:[#allocation2 + $0x245] sm:$0xff]
  %v2121 = vld [vmem:[#allocation2 + $0x24d] sm:$0xff]
  %v2122 = vld [vmem:[#allocation2 + $0x255] sm:$0xff]
  %v2123 = vld [vmem:[#allocation2 + $0x25d] sm:$0xff]
  %v2124 = vld [vmem:[#allocation2 + $0x265] sm:$0xff]
  %v2125 = vld [vmem:[#allocation2 + $0x26d] sm:$0xff]
  %v2126 = vld [vmem:[#allocation2 + $0x275] sm:$0xff]
  %v2127 = vld [vmem:[#allocation2 + $0x27d] sm:$0xff]
  %v2128 = vld [vmem:[#allocation2 + $0x285] sm:$0xff]
  %v2129 = vld [vmem:[#allocation2 + $0x28d] sm:$0xff]
  %v2130 = vld [vmem:[#allocation2 + $0x295] sm:$0xff]
  %v2131 = vld [vmem:[#allocation2 + $0x29d] sm:$0xff]
  %v2132 = vld [vmem:[#allocation2 + $0x2a5] sm:$0xff]
  %v2133 = vmax.f32 %v1971, %v2052
  %v2134 = vmax.f32 %v1972, %v2053
  %v2135 = vmax.f32 %v1973, %v2054
  %v2136 = vmax.f32 %v1974, %v2055
  %v2137 = vmax.f32 %v1975, %v2056
  %v2138 = vmax.f32 %v1976, %v2057
  %v2139 = vmax.f32 %v1977, %v2058
  %v2140 = vmax.f32 %v1978, %v2059
  %v2141 = vmax.f32 %v1979, %v2060
  %v2142 = vmax.f32 %v1980, %v2061
  %v2143 = vmax.f32 %v1981, %v2062
  %v2144 = vmax.f32 %v1982, %v2063
  %v2145 = vmax.f32 %v1983, %v2064
  %v2146 = vmax.f32 %v1984, %v2065
  %v2147 = vmax.f32 %v1985, %v2066
  %v2148 = vmax.f32 %v1986, %v2067
  %v2149 = vmax.f32 %v1987, %v2068
  %v2150 = vmax.f32 %v1988, %v2069
  %v2151 = vmax.f32 %v1989, %v2070
  %v2152 = vmax.f32 %v1990, %v2071
  %v2153 = vmax.f32 %v1991, %v2072
  %v2154 = vmax.f32 %v1992, %v2073
  %v2155 = vmax.f32 %v1993, %v2074
  %v2156 = vmax.f32 %v1994, %v2075
  %v2157 = vmax.f32 %v1995, %v2076
  %v2158 = vmax.f32 %v1996, %v2077
  %v2159 = vmax.f32 %v1997, %v2078
  %v2160 = vmax.f32 %v1998, %v2079
  %v2161 = vmax.f32 %v1999, %v2080
  %v2162 = vmax.f32 %v2000, %v2081
  %v2163 = vmax.f32 %v2001, %v2082
  %v2164 = vmax.f32 %v2002, %v2083
  %v2165 = vmax.f32 %v2003, %v2084
  %v2166 = vmax.f32 %v2004, %v2085
  %v2167 = vmax.f32 %v2005, %v2086
  %v2168 = vmax.f32 %v2006, %v2087
  %v2169 = vmax.f32 %v2007, %v2088
  %v2170 = vmax.f32 %v2008, %v2089
  %v2171 = vmax.f32 %v2009, %v2090
  %v2172 = vmax.f32 %v2010, %v2091
  %v2173 = vmax.f32 %v2011, %v2092
  %v2174 = vmax.f32 %v2012, %v2093
  %v2175 = vmax.f32 %v2013, %v2094
  %v2176 = vmax.f32 %v2014, %v2095
  %v2177 = vmax.f32 %v2015, %v2096
  %v2178 = vmax.f32 %v2016, %v2097
  %v2179 = vmax.f32 %v2017, %v2098
  %v2180 = vmax.f32 %v2018, %v2099
  %v2181 = vmax.f32 %v2019, %v2100
  %v2182 = vmax.f32 %v2020, %v2101
  %v2183 = vmax.f32 %v2021, %v2102
  %v2184 = vmax.f32 %v2022, %v2103
  %v2185 = vmax.f32 %v2023, %v2104
  %v2186 = vmax.f32 %v2024, %v2105
  %v2187 = vmax.f32 %v2025, %v2106
  %v2188 = vmax.f32 %v2026, %v2107
  %v2189 = vmax.f32 %v2027, %v2108
  %v2190 = vmax.f32 %v2028, %v2109
  %v2191 = vmax.f32 %v2029, %v2110
  %v2192 = vmax.f32 %v2030, %v2111
  %v2193 = vmax.f32 %v2031, %v2112
  %v2194 = vmax.f32 %v2032, %v2113
  %v2195 = vmax.f32 %v2033, %v2114
  %v2196 = vmax.f32 %v2034, %v2115
  %v2197 = vmax.f32 %v2035, %v2116
  %v2198 = vmax.f32 %v2036, %v2117
  %v2199 = vmax.f32 %v2037, %v2118
  %v2200 = vmax.f32 %v2038, %v2119
  %v2201 = vmax.f32 %v2039, %v2120
  %v2202 = vmax.f32 %v2040, %v2121
  %v2203 = vmax.f32 %v2041, %v2122
  %v2204 = vmax.f32 %v2042, %v2123
  %v2205 = vmax.f32 %v2043, %v2124
  %v2206 = vmax.f32 %v2044, %v2125
  %v2207 = vmax.f32 %v2045, %v2126
  %v2208 = vmax.f32 %v2046, %v2127
  %v2209 = vmax.f32 %v2047, %v2128
  %v2210 = vmax.f32 %v2048, %v2129
  %v2211 = vmax.f32 %v2049, %v2130
  %v2212 = vmax.f32 %v2050, %v2131
  %v2213 = vmax.f32 %v2051, %v2132
  %v2214 = vld [vmem:[#allocation2 + $0x26] sm:$0xff]
  %v2215 = vld [vmem:[#allocation2 + $0x2e] sm:$0xff]
  %v2216 = vld [vmem:[#allocation2 + $0x36] sm:$0xff]
  %v2217 = vld [vmem:[#allocation2 + $0x3e] sm:$0xff]
  %v2218 = vld [vmem:[#allocation2 + $0x46] sm:$0xff]
  %v2219 = vld [vmem:[#allocation2 + $0x4e] sm:$0xff]
  %v2220 = vld [vmem:[#allocation2 + $0x56] sm:$0xff]
  %v2221 = vld [vmem:[#allocation2 + $0x5e] sm:$0xff]
  %v2222 = vld [vmem:[#allocation2 + $0x66] sm:$0xff]
  %v2223 = vld [vmem:[#allocation2 + $0x6e] sm:$0xff]
  %v2224 = vld [vmem:[#allocation2 + $0x76] sm:$0xff]
  %v2225 = vld [vmem:[#allocation2 + $0x7e] sm:$0xff]
  %v2226 = vld [vmem:[#allocation2 + $0x86] sm:$0xff]
  %v2227 = vld [vmem:[#allocation2 + $0x8e] sm:$0xff]
  %v2228 = vld [vmem:[#allocation2 + $0x96] sm:$0xff]
  %v2229 = vld [vmem:[#allocation2 + $0x9e] sm:$0xff]
  %v2230 = vld [vmem:[#allocation2 + $0xa6] sm:$0xff]
  %v2231 = vld [vmem:[#allocation2 + $0xae] sm:$0xff]
  %v2232 = vld [vmem:[#allocation2 + $0xb6] sm:$0xff]
  %v2233 = vld [vmem:[#allocation2 + $0xbe] sm:$0xff]
  %v2234 = vld [vmem:[#allocation2 + $0xc6] sm:$0xff]
  %v2235 = vld [vmem:[#allocation2 + $0xce] sm:$0xff]
  %v2236 = vld [vmem:[#allocation2 + $0xd6] sm:$0xff]
  %v2237 = vld [vmem:[#allocation2 + $0xde] sm:$0xff]
  %v2238 = vld [vmem:[#allocation2 + $0xe6] sm:$0xff]
  %v2239 = vld [vmem:[#allocation2 + $0xee] sm:$0xff]
  %v2240 = vld [vmem:[#allocation2 + $0xf6] sm:$0xff]
  %v2241 = vld [vmem:[#allocation2 + $0xfe] sm:$0xff]
  %v2242 = vld [vmem:[#allocation2 + $0x106] sm:$0xff]
  %v2243 = vld [vmem:[#allocation2 + $0x10e] sm:$0xff]
  %v2244 = vld [vmem:[#allocation2 + $0x116] sm:$0xff]
  %v2245 = vld [vmem:[#allocation2 + $0x11e] sm:$0xff]
  %v2246 = vld [vmem:[#allocation2 + $0x126] sm:$0xff]
  %v2247 = vld [vmem:[#allocation2 + $0x12e] sm:$0xff]
  %v2248 = vld [vmem:[#allocation2 + $0x136] sm:$0xff]
  %v2249 = vld [vmem:[#allocation2 + $0x13e] sm:$0xff]
  %v2250 = vld [vmem:[#allocation2 + $0x146] sm:$0xff]
  %v2251 = vld [vmem:[#allocation2 + $0x14e] sm:$0xff]
  %v2252 = vld [vmem:[#allocation2 + $0x156] sm:$0xff]
  %v2253 = vld [vmem:[#allocation2 + $0x15e] sm:$0xff]
  %v2254 = vld [vmem:[#allocation2 + $0x166] sm:$0xff]
  %v2255 = vld [vmem:[#allocation2 + $0x16e] sm:$0xff]
  %v2256 = vld [vmem:[#allocation2 + $0x176] sm:$0xff]
  %v2257 = vld [vmem:[#allocation2 + $0x17e] sm:$0xff]
  %v2258 = vld [vmem:[#allocation2 + $0x186] sm:$0xff]
  %v2259 = vld [vmem:[#allocation2 + $0x18e] sm:$0xff]
  %v2260 = vld [vmem:[#allocation2 + $0x196] sm:$0xff]
  %v2261 = vld [vmem:[#allocation2 + $0x19e] sm:$0xff]
  %v2262 = vld [vmem:[#allocation2 + $0x1a6] sm:$0xff]
  %v2263 = vld [vmem:[#allocation2 + $0x1ae] sm:$0xff]
  %v2264 = vld [vmem:[#allocation2 + $0x1b6] sm:$0xff]
  %v2265 = vld [vmem:[#allocation2 + $0x1be] sm:$0xff]
  %v2266 = vld [vmem:[#allocation2 + $0x1c6] sm:$0xff]
  %v2267 = vld [vmem:[#allocation2 + $0x1ce] sm:$0xff]
  %v2268 = vld [vmem:[#allocation2 + $0x1d6] sm:$0xff]
  %v2269 = vld [vmem:[#allocation2 + $0x1de] sm:$0xff]
  %v2270 = vld [vmem:[#allocation2 + $0x1e6] sm:$0xff]
  %v2271 = vld [vmem:[#allocation2 + $0x1ee] sm:$0xff]
  %v2272 = vld [vmem:[#allocation2 + $0x1f6] sm:$0xff]
  %v2273 = vld [vmem:[#allocation2 + $0x1fe] sm:$0xff]
  %v2274 = vld [vmem:[#allocation2 + $0x206] sm:$0xff]
  %v2275 = vld [vmem:[#allocation2 + $0x20e] sm:$0xff]
  %v2276 = vld [vmem:[#allocation2 + $0x216] sm:$0xff]
  %v2277 = vld [vmem:[#allocation2 + $0x21e] sm:$0xff]
  %v2278 = vld [vmem:[#allocation2 + $0x226] sm:$0xff]
  %v2279 = vld [vmem:[#allocation2 + $0x22e] sm:$0xff]
  %v2280 = vld [vmem:[#allocation2 + $0x236] sm:$0xff]
  %v2281 = vld [vmem:[#allocation2 + $0x23e] sm:$0xff]
  %v2282 = vld [vmem:[#allocation2 + $0x246] sm:$0xff]
  %v2283 = vld [vmem:[#allocation2 + $0x24e] sm:$0xff]
  %v2284 = vld [vmem:[#allocation2 + $0x256] sm:$0xff]
  %v2285 = vld [vmem:[#allocation2 + $0x25e] sm:$0xff]
  %v2286 = vld [vmem:[#allocation2 + $0x266] sm:$0xff]
  %v2287 = vld [vmem:[#allocation2 + $0x26e] sm:$0xff]
  %v2288 = vld [vmem:[#allocation2 + $0x276] sm:$0xff]
  %v2289 = vld [vmem:[#allocation2 + $0x27e] sm:$0xff]
  %v2290 = vld [vmem:[#allocation2 + $0x286] sm:$0xff]
  %v2291 = vld [vmem:[#allocation2 + $0x28e] sm:$0xff]
  %v2292 = vld [vmem:[#allocation2 + $0x296] sm:$0xff]
  %v2293 = vld [vmem:[#allocation2 + $0x29e] sm:$0xff]
  %v2294 = vld [vmem:[#allocation2 + $0x2a6] sm:$0xff]
  %v2295 = vmax.f32 %v2133, %v2214
  %v2296 = vmax.f32 %v2134, %v2215
  %v2297 = vmax.f32 %v2135, %v2216
  %v2298 = vmax.f32 %v2136, %v2217
  %v2299 = vmax.f32 %v2137, %v2218
  %v2300 = vmax.f32 %v2138, %v2219
  %v2301 = vmax.f32 %v2139, %v2220
  %v2302 = vmax.f32 %v2140, %v2221
  %v2303 = vmax.f32 %v2141, %v2222
  %v2304 = vmax.f32 %v2142, %v2223
  %v2305 = vmax.f32 %v2143, %v2224
  %v2306 = vmax.f32 %v2144, %v2225
  %v2307 = vmax.f32 %v2145, %v2226
  %v2308 = vmax.f32 %v2146, %v2227
  %v2309 = vmax.f32 %v2147, %v2228
  %v2310 = vmax.f32 %v2148, %v2229
  %v2311 = vmax.f32 %v2149, %v2230
  %v2312 = vmax.f32 %v2150, %v2231
  %v2313 = vmax.f32 %v2151, %v2232
  %v2314 = vmax.f32 %v2152, %v2233
  %v2315 = vmax.f32 %v2153, %v2234
  %v2316 = vmax.f32 %v2154, %v2235
  %v2317 = vmax.f32 %v2155, %v2236
  %v2318 = vmax.f32 %v2156, %v2237
  %v2319 = vmax.f32 %v2157, %v2238
  %v2320 = vmax.f32 %v2158, %v2239
  %v2321 = vmax.f32 %v2159, %v2240
  %v2322 = vmax.f32 %v2160, %v2241
  %v2323 = vmax.f32 %v2161, %v2242
  %v2324 = vmax.f32 %v2162, %v2243
  %v2325 = vmax.f32 %v2163, %v2244
  %v2326 = vmax.f32 %v2164, %v2245
  %v2327 = vmax.f32 %v2165, %v2246
  %v2328 = vmax.f32 %v2166, %v2247
  %v2329 = vmax.f32 %v2167, %v2248
  %v2330 = vmax.f32 %v2168, %v2249
  %v2331 = vmax.f32 %v2169, %v2250
  %v2332 = vmax.f32 %v2170, %v2251
  %v2333 = vmax.f32 %v2171, %v2252
  %v2334 = vmax.f32 %v2172, %v2253
  %v2335 = vmax.f32 %v2173, %v2254
  %v2336 = vmax.f32 %v2174, %v2255
  %v2337 = vmax.f32 %v2175, %v2256
  %v2338 = vmax.f32 %v2176, %v2257
  %v2339 = vmax.f32 %v2177, %v2258
  %v2340 = vmax.f32 %v2178, %v2259
  %v2341 = vmax.f32 %v2179, %v2260
  %v2342 = vmax.f32 %v2180, %v2261
  %v2343 = vmax.f32 %v2181, %v2262
  %v2344 = vmax.f32 %v2182, %v2263
  %v2345 = vmax.f32 %v2183, %v2264
  %v2346 = vmax.f32 %v2184, %v2265
  %v2347 = vmax.f32 %v2185, %v2266
  %v2348 = vmax.f32 %v2186, %v2267
  %v2349 = vmax.f32 %v2187, %v2268
  %v2350 = vmax.f32 %v2188, %v2269
  %v2351 = vmax.f32 %v2189, %v2270
  %v2352 = vmax.f32 %v2190, %v2271
  %v2353 = vmax.f32 %v2191, %v2272
  %v2354 = vmax.f32 %v2192, %v2273
  %v2355 = vmax.f32 %v2193, %v2274
  %v2356 = vmax.f32 %v2194, %v2275
  %v2357 = vmax.f32 %v2195, %v2276
  %v2358 = vmax.f32 %v2196, %v2277
  %v2359 = vmax.f32 %v2197, %v2278
  %v2360 = vmax.f32 %v2198, %v2279
  %v2361 = vmax.f32 %v2199, %v2280
  %v2362 = vmax.f32 %v2200, %v2281
  %v2363 = vmax.f32 %v2201, %v2282
  %v2364 = vmax.f32 %v2202, %v2283
  %v2365 = vmax.f32 %v2203, %v2284
  %v2366 = vmax.f32 %v2204, %v2285
  %v2367 = vmax.f32 %v2205, %v2286
  %v2368 = vmax.f32 %v2206, %v2287
  %v2369 = vmax.f32 %v2207, %v2288
  %v2370 = vmax.f32 %v2208, %v2289
  %v2371 = vmax.f32 %v2209, %v2290
  %v2372 = vmax.f32 %v2210, %v2291
  %v2373 = vmax.f32 %v2211, %v2292
  %v2374 = vmax.f32 %v2212, %v2293
  %v2375 = vmax.f32 %v2213, %v2294
  %v2376 = vpack.c.bf16 %v2296, %v2295
  %v2377 = vpack.c.bf16 %v2298, %v2297
  %v2378 = vpack.c.bf16 %v2300, %v2299
  %v2379 = vpack.c.bf16 %v2302, %v2301
  %v2380 = vpack.c.bf16 %v2304, %v2303
  %v2381 = vpack.c.bf16 %v2306, %v2305
  %v2382 = vpack.c.bf16 %v2308, %v2307
  %v2383 = vpack.c.bf16 %v2310, %v2309
  %v2384 = vpack.c.bf16 %v2312, %v2311
  %v2385 = vpack.c.bf16 %v2314, %v2313
  %v2386 = vpack.c.bf16 %v2316, %v2315
  %v2387 = vpack.c.bf16 %v2318, %v2317
  %v2388 = vpack.c.bf16 %v2320, %v2319
  %v2389 = vpack.c.bf16 %v2322, %v2321
  %v2390 = vpack.c.bf16 %v2324, %v2323
  %v2391 = vpack.c.bf16 %v2326, %v2325
  %v2392 = vpack.c.bf16 %v2328, %v2327
  %v2393 = vpack.c.bf16 %v2330, %v2329
  %v2394 = vpack.c.bf16 %v2332, %v2331
  %v2395 = vpack.c.bf16 %v2334, %v2333
  %v2396 = vpack.c.bf16 %v2336, %v2335
  %v2397 = vpack.c.bf16 %v2338, %v2337
  %v2398 = vpack.c.bf16 %v2340, %v2339
  %v2399 = vpack.c.bf16 %v2342, %v2341
  %v2400 = vpack.c.bf16 %v2344, %v2343
  %v2401 = vpack.c.bf16 %v2346, %v2345
  %v2402 = vpack.c.bf16 %v2348, %v2347
  %v2403 = vpack.c.bf16 %v2350, %v2349
  %v2404 = vpack.c.bf16 %v2352, %v2351
  %v2405 = vpack.c.bf16 %v2354, %v2353
  %v2406 = vpack.c.bf16 %v2356, %v2355
  %v2407 = vpack.c.bf16 %v2358, %v2357
  %v2408 = vpack.c.bf16 %v2360, %v2359
  %v2409 = vpack.c.bf16 %v2362, %v2361
  %v2410 = vpack.c.bf16 %v2364, %v2363
  %v2411 = vpack.c.bf16 %v2366, %v2365
  %v2412 = vpack.c.bf16 %v2368, %v2367
  %v2413 = vpack.c.bf16 %v2370, %v2369
  %v2414 = vpack.c.bf16 %v2372, %v2371
  %v2415 = vpack.c.bf16 %v2374, %v2373
  %v2416 = vpack.c.bf16 %v2375, %v2375
  %v2458 = vunpack.c.l.b16 %v2376
  %v2459 = vunpack.c.h.b16 %v2376
  %v2460 = vunpack.c.l.b16 %v2377
  %v2461 = vunpack.c.h.b16 %v2377
  %v2462 = vunpack.c.l.b16 %v2378
  %v2463 = vunpack.c.h.b16 %v2378
  %v2464 = vunpack.c.l.b16 %v2379
  %v2465 = vunpack.c.h.b16 %v2379
  %v2466 = vunpack.c.l.b16 %v2380
  %v2467 = vunpack.c.h.b16 %v2380
  %v2468 = vunpack.c.l.b16 %v2381
  %v2469 = vunpack.c.h.b16 %v2381
  %v2470 = vunpack.c.l.b16 %v2382
  %v2471 = vunpack.c.h.b16 %v2382
  %v2472 = vunpack.c.l.b16 %v2383
  %v2473 = vunpack.c.h.b16 %v2383
  %v2474 = vunpack.c.l.b16 %v2384
  %v2475 = vunpack.c.h.b16 %v2384
  %v2476 = vunpack.c.l.b16 %v2385
  %v2477 = vunpack.c.h.b16 %v2385
  %v2478 = vunpack.c.l.b16 %v2386
  %v2479 = vunpack.c.h.b16 %v2386
  %v2480 = vunpack.c.l.b16 %v2387
  %v2481 = vunpack.c.h.b16 %v2387
  %v2482 = vunpack.c.l.b16 %v2388
  %v2483 = vunpack.c.h.b16 %v2388
  %v2484 = vunpack.c.l.b16 %v2389
  %v2485 = vunpack.c.h.b16 %v2389
  %v2486 = vunpack.c.l.b16 %v2390
  %v2487 = vunpack.c.h.b16 %v2390
  %v2488 = vunpack.c.l.b16 %v2391
  %v2489 = vunpack.c.h.b16 %v2391
  %v2490 = vunpack.c.l.b16 %v2392
  %v2491 = vunpack.c.h.b16 %v2392
  %v2492 = vunpack.c.l.b16 %v2393
  %v2493 = vunpack.c.h.b16 %v2393
  %v2494 = vunpack.c.l.b16 %v2394
  %v2495 = vunpack.c.h.b16 %v2394
  %v2496 = vunpack.c.l.b16 %v2395
  %v2497 = vunpack.c.h.b16 %v2395
  %v2498 = vunpack.c.l.b16 %v2396
  %v2499 = vunpack.c.h.b16 %v2396
  %v2500 = vunpack.c.l.b16 %v2397
  %v2501 = vunpack.c.h.b16 %v2397
  %v2502 = vunpack.c.l.b16 %v2398
  %v2503 = vunpack.c.h.b16 %v2398
  %v2504 = vunpack.c.l.b16 %v2399
  %v2505 = vunpack.c.h.b16 %v2399
  %v2506 = vunpack.c.l.b16 %v2400
  %v2507 = vunpack.c.h.b16 %v2400
  %v2508 = vunpack.c.l.b16 %v2401
  %v2509 = vunpack.c.h.b16 %v2401
  %v2510 = vunpack.c.l.b16 %v2402
  %v2511 = vunpack.c.h.b16 %v2402
  %v2512 = vunpack.c.l.b16 %v2403
  %v2513 = vunpack.c.h.b16 %v2403
  %v2514 = vunpack.c.l.b16 %v2404
  %v2515 = vunpack.c.h.b16 %v2404
  %v2516 = vunpack.c.l.b16 %v2405
  %v2517 = vunpack.c.h.b16 %v2405
  %v2518 = vunpack.c.l.b16 %v2406
  %v2519 = vunpack.c.h.b16 %v2406
  %v2520 = vunpack.c.l.b16 %v2407
  %v2521 = vunpack.c.h.b16 %v2407
  %v2522 = vunpack.c.l.b16 %v2408
  %v2523 = vunpack.c.h.b16 %v2408
  %v2524 = vunpack.c.l.b16 %v2409
  %v2525 = vunpack.c.h.b16 %v2409
  %v2526 = vunpack.c.l.b16 %v2410
  %v2527 = vunpack.c.h.b16 %v2410
  %v2528 = vunpack.c.l.b16 %v2411
  %v2529 = vunpack.c.h.b16 %v2411
  %v2530 = vunpack.c.l.b16 %v2412
  %v2531 = vunpack.c.h.b16 %v2412
  %v2532 = vunpack.c.l.b16 %v2413
  %v2533 = vunpack.c.h.b16 %v2413
  %v2534 = vunpack.c.l.b16 %v2414
  %v2535 = vunpack.c.h.b16 %v2414
  %v2536 = vunpack.c.l.b16 %v2415
  %v2537 = vunpack.c.h.b16 %v2415
  %v2538 = vunpack.c.l.b16 %v2416
  %v2539 = vpack.c.b16 %v2458, %v2458
  %v2540 = vpack.c.b16 %v2459, %v2459
  %v2541 = vpack.c.b16 %v2460, %v2460
  %v2542 = vpack.c.b16 %v2461, %v2461
  %v2543 = vpack.c.b16 %v2462, %v2462
  %v2544 = vpack.c.b16 %v2463, %v2463
  %v2545 = vpack.c.b16 %v2464, %v2464
  %v2546 = vpack.c.b16 %v2465, %v2465
  %v2547 = vpack.c.b16 %v2466, %v2466
  %v2548 = vpack.c.b16 %v2467, %v2467
  %v2549 = vpack.c.b16 %v2468, %v2468
  %v2550 = vpack.c.b16 %v2469, %v2469
  %v2551 = vpack.c.b16 %v2470, %v2470
  %v2552 = vpack.c.b16 %v2471, %v2471
  %v2553 = vpack.c.b16 %v2472, %v2472
  %v2554 = vpack.c.b16 %v2473, %v2473
  %v2555 = vpack.c.b16 %v2474, %v2474
  %v2556 = vpack.c.b16 %v2475, %v2475
  %v2557 = vpack.c.b16 %v2476, %v2476
  %v2558 = vpack.c.b16 %v2477, %v2477
  %v2559 = vpack.c.b16 %v2478, %v2478
  %v2560 = vpack.c.b16 %v2479, %v2479
  %v2561 = vpack.c.b16 %v2480, %v2480
  %v2562 = vpack.c.b16 %v2481, %v2481
  %v2563 = vpack.c.b16 %v2482, %v2482
  %v2564 = vpack.c.b16 %v2483, %v2483
  %v2565 = vpack.c.b16 %v2484, %v2484
  %v2566 = vpack.c.b16 %v2485, %v2485
  %v2567 = vpack.c.b16 %v2486, %v2486
  %v2568 = vpack.c.b16 %v2487, %v2487
  %v2569 = vpack.c.b16 %v2488, %v2488
  %v2570 = vpack.c.b16 %v2489, %v2489
  %v2571 = vpack.c.b16 %v2490, %v2490
  %v2572 = vpack.c.b16 %v2491, %v2491
  %v2573 = vpack.c.b16 %v2492, %v2492
  %v2574 = vpack.c.b16 %v2493, %v2493
  %v2575 = vpack.c.b16 %v2494, %v2494
  %v2576 = vpack.c.b16 %v2495, %v2495
  %v2577 = vpack.c.b16 %v2496, %v2496
  %v2578 = vpack.c.b16 %v2497, %v2497
  %v2579 = vpack.c.b16 %v2498, %v2498
  %v2580 = vpack.c.b16 %v2499, %v2499
  %v2581 = vpack.c.b16 %v2500, %v2500
  %v2582 = vpack.c.b16 %v2501, %v2501
  %v2583 = vpack.c.b16 %v2502, %v2502
  %v2584 = vpack.c.b16 %v2503, %v2503
  %v2585 = vpack.c.b16 %v2504, %v2504
  %v2586 = vpack.c.b16 %v2505, %v2505
  %v2587 = vpack.c.b16 %v2506, %v2506
  %v2588 = vpack.c.b16 %v2507, %v2507
  %v2589 = vpack.c.b16 %v2508, %v2508
  %v2590 = vpack.c.b16 %v2509, %v2509
  %v2591 = vpack.c.b16 %v2510, %v2510
  %v2592 = vpack.c.b16 %v2511, %v2511
  %v2593 = vpack.c.b16 %v2512, %v2512
  %v2594 = vpack.c.b16 %v2513, %v2513
  %v2595 = vpack.c.b16 %v2514, %v2514
  %v2596 = vpack.c.b16 %v2515, %v2515
  %v2597 = vpack.c.b16 %v2516, %v2516
  %v2598 = vpack.c.b16 %v2517, %v2517
  %v2599 = vpack.c.b16 %v2518, %v2518
  %v2600 = vpack.c.b16 %v2519, %v2519
  %v2601 = vpack.c.b16 %v2520, %v2520
  %v2602 = vpack.c.b16 %v2521, %v2521
  %v2603 = vpack.c.b16 %v2522, %v2522
  %v2604 = vpack.c.b16 %v2523, %v2523
  %v2605 = vpack.c.b16 %v2524, %v2524
  %v2606 = vpack.c.b16 %v2525, %v2525
  %v2607 = vpack.c.b16 %v2526, %v2526
  %v2608 = vpack.c.b16 %v2527, %v2527
  %v2609 = vpack.c.b16 %v2528, %v2528
  %v2610 = vpack.c.b16 %v2529, %v2529
  %v2611 = vpack.c.b16 %v2530, %v2530
  %v2612 = vpack.c.b16 %v2531, %v2531
  %v2613 = vpack.c.b16 %v2532, %v2532
  %v2614 = vpack.c.b16 %v2533, %v2533
  %v2615 = vpack.c.b16 %v2534, %v2534
  %v2616 = vpack.c.b16 %v2535, %v2535
  %v2617 = vpack.c.b16 %v2536, %v2536
  %v2618 = vpack.c.b16 %v2537, %v2537
  %v2619 = vpack.c.b16 %v2538, %v2538
  %vm2701 = vcmask 125952
  %2702 = vst.msk [vmem:[%s4] sm:$0xf] %vm2701, %v2539
  %2703 = vst.msk [vmem:[%s4 + $0x4] sm:$0xf] %vm2701, %v2540
  %2704 = vst.msk [vmem:[%s4 + $0x8] sm:$0xf] %vm2701, %v2541
  %2705 = vst.msk [vmem:[%s4 + $0xc] sm:$0xf] %vm2701, %v2542
  %2706 = vst.msk [vmem:[%s4 + $0x10] sm:$0xf] %vm2701, %v2543
  %2707 = vst.msk [vmem:[%s4 + $0x14] sm:$0xf] %vm2701, %v2544
  %2708 = vst.msk [vmem:[%s4 + $0x18] sm:$0xf] %vm2701, %v2545
  %2709 = vst.msk [vmem:[%s4 + $0x1c] sm:$0xf] %vm2701, %v2546
  %2710 = vst.msk [vmem:[%s4 + $0x20] sm:$0xf] %vm2701, %v2547
  %2711 = vst.msk [vmem:[%s4 + $0x24] sm:$0xf] %vm2701, %v2548
  %2712 = vst.msk [vmem:[%s4 + $0x28] sm:$0xf] %vm2701, %v2549
  %2713 = vst.msk [vmem:[%s4 + $0x2c] sm:$0xf] %vm2701, %v2550
  %2714 = vst.msk [vmem:[%s4 + $0x30] sm:$0xf] %vm2701, %v2551
  %2715 = vst.msk [vmem:[%s4 + $0x34] sm:$0xf] %vm2701, %v2552
  %2716 = vst.msk [vmem:[%s4 + $0x38] sm:$0xf] %vm2701, %v2553
  %2717 = vst.msk [vmem:[%s4 + $0x3c] sm:$0xf] %vm2701, %v2554
  %2718 = vst.msk [vmem:[%s4 + $0x40] sm:$0xf] %vm2701, %v2555
  %2719 = vst.msk [vmem:[%s4 + $0x44] sm:$0xf] %vm2701, %v2556
  %2720 = vst.msk [vmem:[%s4 + $0x48] sm:$0xf] %vm2701, %v2557
  %2721 = vst.msk [vmem:[%s4 + $0x4c] sm:$0xf] %vm2701, %v2558
  %2722 = vst.msk [vmem:[%s4 + $0x50] sm:$0xf] %vm2701, %v2559
  %2723 = vst.msk [vmem:[%s4 + $0x54] sm:$0xf] %vm2701, %v2560
  %2724 = vst.msk [vmem:[%s4 + $0x58] sm:$0xf] %vm2701, %v2561
  %2725 = vst.msk [vmem:[%s4 + $0x5c] sm:$0xf] %vm2701, %v2562
  %2726 = vst.msk [vmem:[%s4 + $0x60] sm:$0xf] %vm2701, %v2563
  %2727 = vst.msk [vmem:[%s4 + $0x64] sm:$0xf] %vm2701, %v2564
  %2728 = vst.msk [vmem:[%s4 + $0x68] sm:$0xf] %vm2701, %v2565
  %2729 = vst.msk [vmem:[%s4 + $0x6c] sm:$0xf] %vm2701, %v2566
  %2730 = vst.msk [vmem:[%s4 + $0x70] sm:$0xf] %vm2701, %v2567
  %2731 = vst.msk [vmem:[%s4 + $0x74] sm:$0xf] %vm2701, %v2568
  %2732 = vst.msk [vmem:[%s4 + $0x78] sm:$0xf] %vm2701, %v2569
  %2733 = vst.msk [vmem:[%s4 + $0x7c] sm:$0xf] %vm2701, %v2570
  %2734 = vst.msk [vmem:[%s4 + $0x80] sm:$0xf] %vm2701, %v2571
  %2735 = vst.msk [vmem:[%s4 + $0x84] sm:$0xf] %vm2701, %v2572
  %2736 = vst.msk [vmem:[%s4 + $0x88] sm:$0xf] %vm2701, %v2573
  %2737 = vst.msk [vmem:[%s4 + $0x8c] sm:$0xf] %vm2701, %v2574
  %2738 = vst.msk [vmem:[%s4 + $0x90] sm:$0xf] %vm2701, %v2575
  %2739 = vst.msk [vmem:[%s4 + $0x94] sm:$0xf] %vm2701, %v2576
  %2740 = vst.msk [vmem:[%s4 + $0x98] sm:$0xf] %vm2701, %v2577
  %2741 = vst.msk [vmem:[%s4 + $0x9c] sm:$0xf] %vm2701, %v2578
  %2742 = vst.msk [vmem:[%s4 + $0xa0] sm:$0xf] %vm2701, %v2579
  %2743 = vst.msk [vmem:[%s4 + $0xa4] sm:$0xf] %vm2701, %v2580
  %2744 = vst.msk [vmem:[%s4 + $0xa8] sm:$0xf] %vm2701, %v2581
  %2745 = vst.msk [vmem:[%s4 + $0xac] sm:$0xf] %vm2701, %v2582
  %2746 = vst.msk [vmem:[%s4 + $0xb0] sm:$0xf] %vm2701, %v2583
  %2747 = vst.msk [vmem:[%s4 + $0xb4] sm:$0xf] %vm2701, %v2584
  %2748 = vst.msk [vmem:[%s4 + $0xb8] sm:$0xf] %vm2701, %v2585
  %2749 = vst.msk [vmem:[%s4 + $0xbc] sm:$0xf] %vm2701, %v2586
  %2750 = vst.msk [vmem:[%s4 + $0xc0] sm:$0xf] %vm2701, %v2587
  %2751 = vst.msk [vmem:[%s4 + $0xc4] sm:$0xf] %vm2701, %v2588
  %2752 = vst.msk [vmem:[%s4 + $0xc8] sm:$0xf] %vm2701, %v2589
  %2753 = vst.msk [vmem:[%s4 + $0xcc] sm:$0xf] %vm2701, %v2590
  %2754 = vst.msk [vmem:[%s4 + $0xd0] sm:$0xf] %vm2701, %v2591
  %2755 = vst.msk [vmem:[%s4 + $0xd4] sm:$0xf] %vm2701, %v2592
  %2756 = vst.msk [vmem:[%s4 + $0xd8] sm:$0xf] %vm2701, %v2593
  %2757 = vst.msk [vmem:[%s4 + $0xdc] sm:$0xf] %vm2701, %v2594
  %2758 = vst.msk [vmem:[%s4 + $0xe0] sm:$0xf] %vm2701, %v2595
  %2759 = vst.msk [vmem:[%s4 + $0xe4] sm:$0xf] %vm2701, %v2596
  %2760 = vst.msk [vmem:[%s4 + $0xe8] sm:$0xf] %vm2701, %v2597
  %2761 = vst.msk [vmem:[%s4 + $0xec] sm:$0xf] %vm2701, %v2598
  %2762 = vst.msk [vmem:[%s4 + $0xf0] sm:$0xf] %vm2701, %v2599
  %2763 = vst.msk [vmem:[%s4 + $0xf4] sm:$0xf] %vm2701, %v2600
  %2764 = vst.msk [vmem:[%s4 + $0xf8] sm:$0xf] %vm2701, %v2601
  %2765 = vst.msk [vmem:[%s4 + $0xfc] sm:$0xf] %vm2701, %v2602
  %2766 = vst.msk [vmem:[%s4 + $0x100] sm:$0xf] %vm2701, %v2603
  %2767 = vst.msk [vmem:[%s4 + $0x104] sm:$0xf] %vm2701, %v2604
  %2768 = vst.msk [vmem:[%s4 + $0x108] sm:$0xf] %vm2701, %v2605
  %2769 = vst.msk [vmem:[%s4 + $0x10c] sm:$0xf] %vm2701, %v2606
  %2770 = vst.msk [vmem:[%s4 + $0x110] sm:$0xf] %vm2701, %v2607
  %2771 = vst.msk [vmem:[%s4 + $0x114] sm:$0xf] %vm2701, %v2608
  %2772 = vst.msk [vmem:[%s4 + $0x118] sm:$0xf] %vm2701, %v2609
  %2773 = vst.msk [vmem:[%s4 + $0x11c] sm:$0xf] %vm2701, %v2610
  %2774 = vst.msk [vmem:[%s4 + $0x120] sm:$0xf] %vm2701, %v2611
  %2775 = vst.msk [vmem:[%s4 + $0x124] sm:$0xf] %vm2701, %v2612
  %2776 = vst.msk [vmem:[%s4 + $0x128] sm:$0xf] %vm2701, %v2613
  %2777 = vst.msk [vmem:[%s4 + $0x12c] sm:$0xf] %vm2701, %v2614
  %2778 = vst.msk [vmem:[%s4 + $0x130] sm:$0xf] %vm2701, %v2615
  %2779 = vst.msk [vmem:[%s4 + $0x134] sm:$0xf] %vm2701, %v2616
  %2780 = vst.msk [vmem:[%s4 + $0x138] sm:$0xf] %vm2701, %v2617
  %2781 = vst.msk [vmem:[%s4 + $0x13c] sm:$0xf] %vm2701, %v2618
  %2782 = vst.msk [vmem:[%s4 + $0x140] sm:$0xf] %vm2701, %v2619
  // Predicated region
  $region18: #{densenet_forward.14} parent=0 // pred_check
    _
  $region19: #{densenet_forward.14} parent=0 // pred_check_branch
    %2784 = sbr.rel (0) target = $region21
  $region20: #{densenet_forward.14} parent=0 // pred_region
    _
  $region21: #{densenet_forward.14} parent=0 // pred_fallthru
    _
  // Predicated region
  $region22: #{densenet_forward.14} parent=0 // pred_check
    _
  $region23: #{densenet_forward.14} parent=0 // pred_check_branch
    %2786 = sbr.rel (0) target = $region25
  $region24: #{densenet_forward.14} parent=0 // pred_region
    _
  $region25: #{densenet_forward.14} parent=0 // pred_fallthru
    _

// kernel: densenet_forward.17
$region0: #{densenet_forward.17}
  #allocation0 [shape = 'u32[]', space=smem, size = 0x4, offset = 0x4, fixed_abs, tag = 'smem constant byte address 0x4 - core index']
  #allocation1 [shape = 'u32[144,128]{1,0:T(1,128)}', space=vmem, size = 0x12000, scoped, tag = 'internal scratch']
  %s0 = inlined_call_operand.vmem [shape: bf16[128,16], index: 0, kind: input, shape index: {}]
  %s1 = inlined_call_operand.vmem [shape: bf16[128,8], index: 1, kind: input, shape index: {}]
  %s2 = inlined_call_operand.vmem [shape: f32[1,16], index: 2, kind: input, shape index: {}]
  %s3 = inlined_call_operand.vmem [shape: f32[1,8], index: 3, kind: input, shape index: {}]
  %s4 = inlined_call_operand.vmem [shape: f32[1,16], index: 4, kind: input, shape index: {}]
  %s5 = inlined_call_operand.vmem [shape: f32[1,8], index: 5, kind: input, shape index: {}]
  %s6 = inlined_call_operand.vmem [shape: bf16[16,16], index: 6, kind: input, shape index: {}]
  %s7 = inlined_call_operand.vmem [shape: bf16[8,16], index: 7, kind: input, shape index: {}]
  %s8 = inlined_call_operand.vmem [shape: bf16[128,16], index: 8, kind: output, shape index: {}]
  %s9 = sld [smem:[#allocation0]]
  $region42: #{densenet_forward.17} parent=0
    _
  %s11 = ssub.s32 1, %s9
  %s12 = scalar_select 0, %s11, %s9
  // Predicated region
  $region2: #{densenet_forward.17} parent=0 // pred_check
    _
  $region3: #{densenet_forward.17} parent=0 // pred_check_branch
    %14 = sbr.rel (0) target = $region5
  $region4: #{densenet_forward.17} parent=0 // pred_region
    _
  $region5: #{densenet_forward.17} parent=0 // pred_fallthru
    _
  // Predicated region
  $region6: #{densenet_forward.17} parent=0 // pred_check
    _
  $region7: #{densenet_forward.17} parent=0 // pred_check_branch
    %16 = sbr.rel (0) target = $region9
  $region8: #{densenet_forward.17} parent=0 // pred_region
    _
  $region9: #{densenet_forward.17} parent=0 // pred_fallthru
    _
  // Predicated region
  $region10: #{densenet_forward.17} parent=0 // pred_check
    _
  $region11: #{densenet_forward.17} parent=0 // pred_check_branch
    %18 = sbr.rel (0) target = $region13
  $region12: #{densenet_forward.17} parent=0 // pred_region
    _
  $region13: #{densenet_forward.17} parent=0 // pred_fallthru
    _
  // Predicated region
  $region14: #{densenet_forward.17} parent=0 // pred_check
    _
  $region15: #{densenet_forward.17} parent=0 // pred_check_branch
    %20 = sbr.rel (0) target = $region17
  $region16: #{densenet_forward.17} parent=0 // pred_region
    _
  $region17: #{densenet_forward.17} parent=0 // pred_fallthru
    _
  // Predicated region
  $region18: #{densenet_forward.17} parent=0 // pred_check
    _
  $region19: #{densenet_forward.17} parent=0 // pred_check_branch
    %22 = sbr.rel (0) target = $region21
  $region20: #{densenet_forward.17} parent=0 // pred_region
    _
  $region21: #{densenet_forward.17} parent=0 // pred_fallthru
    _
  // Predicated region
  $region22: #{densenet_forward.17} parent=0 // pred_check
    _
  $region23: #{densenet_forward.17} parent=0 // pred_check_branch
    %24 = sbr.rel (0) target = $region25
  $region24: #{densenet_forward.17} parent=0 // pred_region
    _
  $region25: #{densenet_forward.17} parent=0 // pred_fallthru
    _
  // Predicated region
  $region26: #{densenet_forward.17} parent=0 // pred_check
    _
  $region27: #{densenet_forward.17} parent=0 // pred_check_branch
    %26 = sbr.rel (0) target = $region29
  $region28: #{densenet_forward.17} parent=0 // pred_region
    _
  $region29: #{densenet_forward.17} parent=0 // pred_fallthru
    _
  // Predicated region
  $region30: #{densenet_forward.17} parent=0 // pred_check
    _
  $region31: #{densenet_forward.17} parent=0 // pred_check_branch
    %28 = sbr.rel (0) target = $region33
  $region32: #{densenet_forward.17} parent=0 // pred_region
    _
  $region33: #{densenet_forward.17} parent=0 // pred_fallthru
    _
  %v30 = vld [vmem:[%s0] sm:$0xf]
  %v31 = vld [vmem:[%s0 + $0x4] sm:$0xf]
  %v32 = vld [vmem:[%s0 + $0x8] sm:$0xf]
  %v33 = vld [vmem:[%s0 + $0xc] sm:$0xf]
  %v34 = vld [vmem:[%s0 + $0x10] sm:$0xf]
  %v35 = vld [vmem:[%s0 + $0x14] sm:$0xf]
  %v36 = vld [vmem:[%s0 + $0x18] sm:$0xf]
  %v37 = vld [vmem:[%s0 + $0x1c] sm:$0xf]
  %v38 = vld [vmem:[%s0 + $0x20] sm:$0xf]
  %v39 = vld [vmem:[%s0 + $0x24] sm:$0xf]
  %v40 = vld [vmem:[%s0 + $0x28] sm:$0xf]
  %v41 = vld [vmem:[%s0 + $0x2c] sm:$0xf]
  %v42 = vld [vmem:[%s0 + $0x30] sm:$0xf]
  %v43 = vld [vmem:[%s0 + $0x34] sm:$0xf]
  %v44 = vld [vmem:[%s0 + $0x38] sm:$0xf]
  %v45 = vld [vmem:[%s0 + $0x3c] sm:$0xf]
  %v46 = vunpack.c.l.bf16 %v30
  %v47 = vunpack.c.l.bf16 %v31
  %v48 = vunpack.c.l.bf16 %v32
  %v49 = vunpack.c.l.bf16 %v33
  %v50 = vunpack.c.l.bf16 %v34
  %v51 = vunpack.c.l.bf16 %v35
  %v52 = vunpack.c.l.bf16 %v36
  %v53 = vunpack.c.l.bf16 %v37
  %v54 = vunpack.c.l.bf16 %v38
  %v55 = vunpack.c.l.bf16 %v39
  %v56 = vunpack.c.l.bf16 %v40
  %v57 = vunpack.c.l.bf16 %v41
  %v58 = vunpack.c.l.bf16 %v42
  %v59 = vunpack.c.l.bf16 %v43
  %v60 = vunpack.c.l.bf16 %v44
  %v61 = vunpack.c.l.bf16 %v45
  %v62 = vld [vmem:[%s2] sm:$0x1]
  %v64 = vlaneseq
  %v65 = vshrl.u32 %v64, 7
  %v66 = vsub.s32 0, %v65
  %v67 = vrot.slane %v62, %v66
  %v69 = vmul.f32 %v46, %v67
  %v70 = vmul.f32 %v47, %v67
  %v71 = vmul.f32 %v48, %v67
  %v72 = vmul.f32 %v49, %v67
  %v73 = vmul.f32 %v50, %v67
  %v74 = vmul.f32 %v51, %v67
  %v75 = vmul.f32 %v52, %v67
  %v76 = vmul.f32 %v53, %v67
  %v77 = vmul.f32 %v54, %v67
  %v78 = vmul.f32 %v55, %v67
  %v79 = vmul.f32 %v56, %v67
  %v80 = vmul.f32 %v57, %v67
  %v81 = vmul.f32 %v58, %v67
  %v82 = vmul.f32 %v59, %v67
  %v83 = vmul.f32 %v60, %v67
  %v84 = vmul.f32 %v61, %v67
  %v85 = vld [vmem:[%s4] sm:$0x1]
  %v87 = vlaneseq
  %v88 = vshrl.u32 %v87, 7
  %v89 = vsub.s32 0, %v88
  %v90 = vrot.slane %v85, %v89
  %v92 = vadd.f32 %v69, %v90
  %v93 = vadd.f32 %v70, %v90
  %v94 = vadd.f32 %v71, %v90
  %v95 = vadd.f32 %v72, %v90
  %v96 = vadd.f32 %v73, %v90
  %v97 = vadd.f32 %v74, %v90
  %v98 = vadd.f32 %v75, %v90
  %v99 = vadd.f32 %v76, %v90
  %v100 = vadd.f32 %v77, %v90
  %v101 = vadd.f32 %v78, %v90
  %v102 = vadd.f32 %v79, %v90
  %v103 = vadd.f32 %v80, %v90
  %v104 = vadd.f32 %v81, %v90
  %v105 = vadd.f32 %v82, %v90
  %v106 = vadd.f32 %v83, %v90
  %v107 = vadd.f32 %v84, %v90
  %v108 = vmax.f32 %v92, 0.0
  %v109 = vmax.f32 %v93, 0.0
  %v110 = vmax.f32 %v94, 0.0
  %v111 = vmax.f32 %v95, 0.0
  %v112 = vmax.f32 %v96, 0.0
  %v113 = vmax.f32 %v97, 0.0
  %v114 = vmax.f32 %v98, 0.0
  %v115 = vmax.f32 %v99, 0.0
  %v116 = vmax.f32 %v100, 0.0
  %v117 = vmax.f32 %v101, 0.0
  %v118 = vmax.f32 %v102, 0.0
  %v119 = vmax.f32 %v103, 0.0
  %v120 = vmax.f32 %v104, 0.0
  %v121 = vmax.f32 %v105, 0.0
  %v122 = vmax.f32 %v106, 0.0
  %v123 = vmax.f32 %v107, 0.0
  %v124 = vpack.c.bf16 %v109, %v108
  %v125 = vpack.c.bf16 %v111, %v110
  %v126 = vpack.c.bf16 %v113, %v112
  %v127 = vpack.c.bf16 %v115, %v114
  %v128 = vpack.c.bf16 %v117, %v116
  %v129 = vpack.c.bf16 %v119, %v118
  %v130 = vpack.c.bf16 %v121, %v120
  %v131 = vpack.c.bf16 %v123, %v122
  %v132 = vld [vmem:[%s6] sm:$0xf]
  %v133 = vld [vmem:[%s6 + $0x4] sm:$0xf]
  %v134 = vld [vmem:[%s1] sm:$0xf]
  %v135 = vld [vmem:[%s1 + $0x4] sm:$0xf]
  %v136 = vld [vmem:[%s1 + $0x8] sm:$0xf]
  %v137 = vld [vmem:[%s1 + $0xc] sm:$0xf]
  %v138 = vld [vmem:[%s1 + $0x10] sm:$0xf]
  %v139 = vld [vmem:[%s1 + $0x14] sm:$0xf]
  %v140 = vld [vmem:[%s1 + $0x18] sm:$0xf]
  %v141 = vld [vmem:[%s1 + $0x1c] sm:$0xf]
  %v142 = vld [vmem:[%s1 + $0x20] sm:$0xf]
  %v143 = vld [vmem:[%s1 + $0x24] sm:$0xf]
  %v144 = vld [vmem:[%s1 + $0x28] sm:$0xf]
  %v145 = vld [vmem:[%s1 + $0x2c] sm:$0xf]
  %v146 = vld [vmem:[%s1 + $0x30] sm:$0xf]
  %v147 = vld [vmem:[%s1 + $0x34] sm:$0xf]
  %v148 = vld [vmem:[%s1 + $0x38] sm:$0xf]
  %v149 = vld [vmem:[%s1 + $0x3c] sm:$0xf]
  %v150 = vunpack.c.l.bf16 %v134
  %v151 = vunpack.c.l.bf16 %v135
  %v152 = vunpack.c.l.bf16 %v136
  %v153 = vunpack.c.l.bf16 %v137
  %v154 = vunpack.c.l.bf16 %v138
  %v155 = vunpack.c.l.bf16 %v139
  %v156 = vunpack.c.l.bf16 %v140
  %v157 = vunpack.c.l.bf16 %v141
  %v158 = vunpack.c.l.bf16 %v142
  %v159 = vunpack.c.l.bf16 %v143
  %v160 = vunpack.c.l.bf16 %v144
  %v161 = vunpack.c.l.bf16 %v145
  %v162 = vunpack.c.l.bf16 %v146
  %v163 = vunpack.c.l.bf16 %v147
  %v164 = vunpack.c.l.bf16 %v148
  %v165 = vunpack.c.l.bf16 %v149
  %v166 = vld [vmem:[%s3] sm:$0x1]
  %v168 = vlaneseq
  %v169 = vshrl.u32 %v168, 7
  %v170 = vsub.s32 0, %v169
  %v171 = vrot.slane %v166, %v170
  %v173 = vmul.f32 %v150, %v171
  %v174 = vmul.f32 %v151, %v171
  %v175 = vmul.f32 %v152, %v171
  %v176 = vmul.f32 %v153, %v171
  %v177 = vmul.f32 %v154, %v171
  %v178 = vmul.f32 %v155, %v171
  %v179 = vmul.f32 %v156, %v171
  %v180 = vmul.f32 %v157, %v171
  %v181 = vmul.f32 %v158, %v171
  %v182 = vmul.f32 %v159, %v171
  %v183 = vmul.f32 %v160, %v171
  %v184 = vmul.f32 %v161, %v171
  %v185 = vmul.f32 %v162, %v171
  %v186 = vmul.f32 %v163, %v171
  %v187 = vmul.f32 %v164, %v171
  %v188 = vmul.f32 %v165, %v171
  %v189 = vld [vmem:[%s5] sm:$0x1]
  %v191 = vlaneseq
  %v192 = vshrl.u32 %v191, 7
  %v193 = vsub.s32 0, %v192
  %v194 = vrot.slane %v189, %v193
  %v196 = vadd.f32 %v173, %v194
  %v197 = vadd.f32 %v174, %v194
  %v198 = vadd.f32 %v175, %v194
  %v199 = vadd.f32 %v176, %v194
  %v200 = vadd.f32 %v177, %v194
  %v201 = vadd.f32 %v178, %v194
  %v202 = vadd.f32 %v179, %v194
  %v203 = vadd.f32 %v180, %v194
  %v204 = vadd.f32 %v181, %v194
  %v205 = vadd.f32 %v182, %v194
  %v206 = vadd.f32 %v183, %v194
  %v207 = vadd.f32 %v184, %v194
  %v208 = vadd.f32 %v185, %v194
  %v209 = vadd.f32 %v186, %v194
  %v210 = vadd.f32 %v187, %v194
  %v211 = vadd.f32 %v188, %v194
  %v212 = vmax.f32 %v196, 0.0
  %v213 = vmax.f32 %v197, 0.0
  %v214 = vmax.f32 %v198, 0.0
  %v215 = vmax.f32 %v199, 0.0
  %v216 = vmax.f32 %v200, 0.0
  %v217 = vmax.f32 %v201, 0.0
  %v218 = vmax.f32 %v202, 0.0
  %v219 = vmax.f32 %v203, 0.0
  %v220 = vmax.f32 %v204, 0.0
  %v221 = vmax.f32 %v205, 0.0
  %v222 = vmax.f32 %v206, 0.0
  %v223 = vmax.f32 %v207, 0.0
  %v224 = vmax.f32 %v208, 0.0
  %v225 = vmax.f32 %v209, 0.0
  %v226 = vmax.f32 %v210, 0.0
  %v227 = vmax.f32 %v211, 0.0
  %v228 = vpack.c.bf16 %v213, %v212
  %v229 = vpack.c.bf16 %v215, %v214
  %v230 = vpack.c.bf16 %v217, %v216
  %v231 = vpack.c.bf16 %v219, %v218
  %v232 = vpack.c.bf16 %v221, %v220
  %v233 = vpack.c.bf16 %v223, %v222
  %v234 = vpack.c.bf16 %v225, %v224
  %v235 = vpack.c.bf16 %v227, %v226
  %v236 = vld [vmem:[%s7] sm:$0xf]
  %vm237 = vcmask 64512
  %v239 = vsel %vm237, %v228, 0
  %v242 = vsel %vm237, %v229, 0
  %v245 = vsel %vm237, %v230, 0
  %v248 = vsel %vm237, %v231, 0
  %v251 = vsel %vm237, %v232, 0
  %v254 = vsel %vm237, %v233, 0
  %v257 = vsel %vm237, %v234, 0
  %v260 = vsel %vm237, %v235, 0
  %vm262 = vcmask 1043456
  %v264 = vsel %vm262, %v236, 0
  %266 = vmatprep.subr.bf16.mxu0 0
  %267 = vmatpush1.bf16.msra.mxu0 %v264
  %268 = vmatprep.subr.bf16.mxu0 0
  %269 = vmatpush1.bf16.msra.mxu0 0
  %270 = vmatprep.subr.bf16.mxu0 0
  %271 = vmatpush1.bf16.msra.mxu0 0
  %272 = vmatprep.subr.bf16.mxu0 0
  %273 = vmatpush1.bf16.msra.mxu0 0
  %274 = vmatprep.subr.bf16.mxu0 0
  %275 = vmatpush1.bf16.msra.mxu0 0
  %276 = vmatprep.subr.bf16.mxu0 0
  %277 = vmatpush1.bf16.msra.mxu0 0
  %278 = vmatprep.subr.bf16.mxu0 0
  %279 = vmatpush1.bf16.msra.mxu0 0
  %280 = vmatprep.subr.bf16.mxu0 0
  %281 = vmatpush1.bf16.msra.mxu0 0
  %282 = vmatprep.subr.bf16.mxu0 0
  %283 = vmatpush1.bf16.msra.mxu0 0
  %284 = vmatprep.subr.bf16.mxu0 0
  %285 = vmatpush1.bf16.msra.mxu0 0
  %286 = vmatprep.subr.bf16.mxu0 0
  %287 = vmatpush1.bf16.msra.mxu0 0
  %288 = vmatprep.subr.bf16.mxu0 0
  %289 = vmatpush1.bf16.msra.mxu0 0
  %290 = vmatprep.subr.bf16.mxu0 0
  %291 = vmatpush1.bf16.msra.mxu0 0
  %292 = vmatprep.subr.bf16.mxu0 0
  %293 = vmatpush1.bf16.msra.mxu0 0
  %294 = vmatprep.subr.bf16.mxu0 0
  %295 = vmatpush1.bf16.msra.mxu0 0
  %296 = vmatprep.subr.bf16.mxu0 0
  %297 = vmatpush1.bf16.msra.mxu0 0
  %298 = vmatprep.mubr.bf16.mxu0 0
  %299 = vmatmul.mubr.bf16.gmra.mrb[0].mxu0 %v239
  %v300 = vpop.f32.mrb[0].mxu0
  %v301 = vadd.f32 0.0, %v300
  %v302 = vpop.f32.mrb[0].mxu0
  %v303 = vpop.f32.mrb[0].mxu0
  %v304 = vadd.f32 0.0, %v303
  %v305 = vpop.f32.mrb[0].mxu0
  %306 = vmatprep.mubr.bf16.mxu0 0
  %307 = vmatmul.mubr.bf16.gmra.mrb[0].mxu0 %v242
  %v308 = vpop.f32.mrb[0].mxu0
  %v309 = vadd.f32 0.0, %v308
  %v310 = vpop.f32.mrb[0].mxu0
  %v311 = vpop.f32.mrb[0].mxu0
  %v312 = vadd.f32 0.0, %v311
  %v313 = vpop.f32.mrb[0].mxu0
  %314 = vmatprep.mubr.bf16.mxu0 0
  %315 = vmatmul.mubr.bf16.gmra.mrb[0].mxu0 %v245
  %v316 = vpop.f32.mrb[0].mxu0
  %v317 = vadd.f32 0.0, %v316
  %v318 = vpop.f32.mrb[0].mxu0
  %v319 = vpop.f32.mrb[0].mxu0
  %v320 = vadd.f32 0.0, %v319
  %v321 = vpop.f32.mrb[0].mxu0
  %322 = vmatprep.mubr.bf16.mxu0 0
  %323 = vmatmul.mubr.bf16.gmra.mrb[0].mxu0 %v248
  %v324 = vpop.f32.mrb[0].mxu0
  %v325 = vadd.f32 0.0, %v324
  %v326 = vpop.f32.mrb[0].mxu0
  %v327 = vpop.f32.mrb[0].mxu0
  %v328 = vadd.f32 0.0, %v327
  %v329 = vpop.f32.mrb[0].mxu0
  %330 = vmatprep.mubr.bf16.mxu0 0
  %331 = vmatmul.mubr.bf16.gmra.mrb[0].mxu0 %v251
  %v332 = vpop.f32.mrb[0].mxu0
  %v333 = vadd.f32 0.0, %v332
  %v334 = vpop.f32.mrb[0].mxu0
  %v335 = vpop.f32.mrb[0].mxu0
  %v336 = vadd.f32 0.0, %v335
  %v337 = vpop.f32.mrb[0].mxu0
  %338 = vmatprep.mubr.bf16.mxu0 0
  %339 = vmatmul.mubr.bf16.gmra.mrb[0].mxu0 %v254
  %v340 = vpop.f32.mrb[0].mxu0
  %v341 = vadd.f32 0.0, %v340
  %v342 = vpop.f32.mrb[0].mxu0
  %v343 = vpop.f32.mrb[0].mxu0
  %v344 = vadd.f32 0.0, %v343
  %v345 = vpop.f32.mrb[0].mxu0
  %346 = vmatprep.mubr.bf16.mxu0 0
  %347 = vmatmul.mubr.bf16.gmra.mrb[0].mxu0 %v257
  %v348 = vpop.f32.mrb[0].mxu0
  %v349 = vadd.f32 0.0, %v348
  %v350 = vpop.f32.mrb[0].mxu0
  %v351 = vpop.f32.mrb[0].mxu0
  %v352 = vadd.f32 0.0, %v351
  %v353 = vpop.f32.mrb[0].mxu0
  %354 = vmatprep.mubr.bf16.mxu0 0
  %355 = vmatmul.mubr.bf16.gmra.mrb[0].mxu0 %v260
  %v356 = vpop.f32.mrb[0].mxu0
  %v357 = vadd.f32 0.0, %v356
  %v358 = vpop.f32.mrb[0].mxu0
  %v359 = vpop.f32.mrb[0].mxu0
  %v360 = vadd.f32 0.0, %v359
  %v361 = vpop.f32.mrb[0].mxu0
  %362 = vdwg.mxu0
  %v365 = vunpack.c.l.b16 %v132
  %v366 = vunpack.c.l.b16 %v133
  %v367 = vpack.c.b16 %v366, %v365
  %vm369 = vcmask 130048
  %v371 = vsel %vm369, %v124, 0
  %v374 = vsel %vm369, %v125, 0
  %v377 = vsel %vm369, %v126, 0
  %v380 = vsel %vm369, %v127, 0
  %v383 = vsel %vm369, %v128, 0
  %v386 = vsel %vm369, %v129, 0
  %v389 = vsel %vm369, %v130, 0
  %v392 = vsel %vm369, %v131, 0
  %394 = vmatprep.subr.bf16.mxu0 0
  %395 = vmatpush1.bf16.msra.mxu0 %v367
  %396 = vmatprep.subr.bf16.mxu0 0
  %397 = vmatpush1.bf16.msra.mxu0 0
  %398 = vmatprep.subr.bf16.mxu0 0
  %399 = vmatpush1.bf16.msra.mxu0 0
  %400 = vmatprep.subr.bf16.mxu0 0
  %401 = vmatpush1.bf16.msra.mxu0 0
  %402 = vmatprep.subr.bf16.mxu0 0
  %403 = vmatpush1.bf16.msra.mxu0 0
  %404 = vmatprep.subr.bf16.mxu0 0
  %405 = vmatpush1.bf16.msra.mxu0 0
  %406 = vmatprep.subr.bf16.mxu0 0
  %407 = vmatpush1.bf16.msra.mxu0 0
  %408 = vmatprep.subr.bf16.mxu0 0
  %409 = vmatpush1.bf16.msra.mxu0 0
  %410 = vmatprep.subr.bf16.mxu0 0
  %411 = vmatpush1.bf16.msra.mxu0 0
  %412 = vmatprep.subr.bf16.mxu0 0
  %413 = vmatpush1.bf16.msra.mxu0 0
  %414 = vmatprep.subr.bf16.mxu0 0
  %415 = vmatpush1.bf16.msra.mxu0 0
  %416 = vmatprep.subr.bf16.mxu0 0
  %417 = vmatpush1.bf16.msra.mxu0 0
  %418 = vmatprep.subr.bf16.mxu0 0
  %419 = vmatpush1.bf16.msra.mxu0 0
  %420 = vmatprep.subr.bf16.mxu0 0
  %421 = vmatpush1.bf16.msra.mxu0 0
  %422 = vmatprep.subr.bf16.mxu0 0
  %423 = vmatpush1.bf16.msra.mxu0 0
  %424 = vmatprep.subr.bf16.mxu0 0
  %425 = vmatpush1.bf16.msra.mxu0 0
  %426 = vmatprep.mubr.bf16.mxu0 0
  %427 = vmatmul.mubr.bf16.gmra.mrb[0].mxu0 %v371
  %v428 = vpop.f32.mrb[0].mxu0
  %v429 = vadd.f32 %v301, %v428
  %v430 = vpop.f32.mrb[0].mxu0
  %v431 = vpop.f32.mrb[0].mxu0
  %v432 = vadd.f32 %v304, %v431
  %v433 = vpop.f32.mrb[0].mxu0
  %434 = vmatprep.mubr.bf16.mxu0 0
  %435 = vmatmul.mubr.bf16.gmra.mrb[0].mxu0 %v374
  %v436 = vpop.f32.mrb[0].mxu0
  %v437 = vadd.f32 %v309, %v436
  %v438 = vpop.f32.mrb[0].mxu0
  %v439 = vpop.f32.mrb[0].mxu0
  %v440 = vadd.f32 %v312, %v439
  %v441 = vpop.f32.mrb[0].mxu0
  %442 = vmatprep.mubr.bf16.mxu0 0
  %443 = vmatmul.mubr.bf16.gmra.mrb[0].mxu0 %v377
  %v444 = vpop.f32.mrb[0].mxu0
  %v445 = vadd.f32 %v317, %v444
  %v446 = vpop.f32.mrb[0].mxu0
  %v447 = vpop.f32.mrb[0].mxu0
  %v448 = vadd.f32 %v320, %v447
  %v449 = vpop.f32.mrb[0].mxu0
  %450 = vmatprep.mubr.bf16.mxu0 0
  %451 = vmatmul.mubr.bf16.gmra.mrb[0].mxu0 %v380
  %v452 = vpop.f32.mrb[0].mxu0
  %v453 = vadd.f32 %v325, %v452
  %v454 = vpop.f32.mrb[0].mxu0
  %v455 = vpop.f32.mrb[0].mxu0
  %v456 = vadd.f32 %v328, %v455
  %v457 = vpop.f32.mrb[0].mxu0
  %458 = vmatprep.mubr.bf16.mxu0 0
  %459 = vmatmul.mubr.bf16.gmra.mrb[0].mxu0 %v383
  %v460 = vpop.f32.mrb[0].mxu0
  %v461 = vadd.f32 %v333, %v460
  %v462 = vpop.f32.mrb[0].mxu0
  %v463 = vpop.f32.mrb[0].mxu0
  %v464 = vadd.f32 %v336, %v463
  %v465 = vpop.f32.mrb[0].mxu0
  %466 = vmatprep.mubr.bf16.mxu0 0
  %467 = vmatmul.mubr.bf16.gmra.mrb[0].mxu0 %v386
  %v468 = vpop.f32.mrb[0].mxu0
  %v469 = vadd.f32 %v341, %v468
  %v470 = vpop.f32.mrb[0].mxu0
  %v471 = vpop.f32.mrb[0].mxu0
  %v472 = vadd.f32 %v344, %v471
  %v473 = vpop.f32.mrb[0].mxu0
  %474 = vmatprep.mubr.bf16.mxu0 0
  %475 = vmatmul.mubr.bf16.gmra.mrb[0].mxu0 %v389
  %v476 = vpop.f32.mrb[0].mxu0
  %v477 = vadd.f32 %v349, %v476
  %v478 = vpop.f32.mrb[0].mxu0
  %v479 = vpop.f32.mrb[0].mxu0
  %v480 = vadd.f32 %v352, %v479
  %v481 = vpop.f32.mrb[0].mxu0
  %482 = vmatprep.mubr.bf16.mxu0 0
  %483 = vmatmul.mubr.bf16.gmra.mrb[0].mxu0 %v392
  %v484 = vpop.f32.mrb[0].mxu0
  %v485 = vadd.f32 %v357, %v484
  %v486 = vpop.f32.mrb[0].mxu0
  %v487 = vpop.f32.mrb[0].mxu0
  %v488 = vadd.f32 %v360, %v487
  %v489 = vpop.f32.mrb[0].mxu0
  %490 = vdwg.mxu0
  %v491 = vpack.c.bf16 %v432, %v429
  %v492 = vpack.c.bf16 %v440, %v437
  %v493 = vpack.c.bf16 %v448, %v445
  %v494 = vpack.c.bf16 %v456, %v453
  %v495 = vpack.c.bf16 %v464, %v461
  %v496 = vpack.c.bf16 %v472, %v469
  %v497 = vpack.c.bf16 %v480, %v477
  %v498 = vpack.c.bf16 %v488, %v485
  %v507 = vunpack.c.l.b16 %v491
  %v508 = vunpack.c.h.b16 %v491
  %v509 = vunpack.c.l.b16 %v492
  %v510 = vunpack.c.h.b16 %v492
  %v511 = vunpack.c.l.b16 %v493
  %v512 = vunpack.c.h.b16 %v493
  %v513 = vunpack.c.l.b16 %v494
  %v514 = vunpack.c.h.b16 %v494
  %v515 = vunpack.c.l.b16 %v495
  %v516 = vunpack.c.h.b16 %v495
  %v517 = vunpack.c.l.b16 %v496
  %v518 = vunpack.c.h.b16 %v496
  %v519 = vunpack.c.l.b16 %v497
  %v520 = vunpack.c.h.b16 %v497
  %v521 = vunpack.c.l.b16 %v498
  %v522 = vunpack.c.h.b16 %v498
  %v523 = vpack.c.b16 %v507, %v507
  %v524 = vpack.c.b16 %v508, %v508
  %v525 = vpack.c.b16 %v509, %v509
  %v526 = vpack.c.b16 %v510, %v510
  %v527 = vpack.c.b16 %v511, %v511
  %v528 = vpack.c.b16 %v512, %v512
  %v529 = vpack.c.b16 %v513, %v513
  %v530 = vpack.c.b16 %v514, %v514
  %v531 = vpack.c.b16 %v515, %v515
  %v532 = vpack.c.b16 %v516, %v516
  %v533 = vpack.c.b16 %v517, %v517
  %v534 = vpack.c.b16 %v518, %v518
  %v535 = vpack.c.b16 %v519, %v519
  %v536 = vpack.c.b16 %v520, %v520
  %v537 = vpack.c.b16 %v521, %v521
  %v538 = vpack.c.b16 %v522, %v522
  %vm555 = vcmask 125952
  %556 = vst.msk [vmem:[%s8] sm:$0xf] %vm555, %v523
  %557 = vst.msk [vmem:[%s8 + $0x4] sm:$0xf] %vm555, %v524
  %558 = vst.msk [vmem:[%s8 + $0x8] sm:$0xf] %vm555, %v525
  %559 = vst.msk [vmem:[%s8 + $0xc] sm:$0xf] %vm555, %v526
  %560 = vst.msk [vmem:[%s8 + $0x10] sm:$0xf] %vm555, %v527
  %561 = vst.msk [vmem:[%s8 + $0x14] sm:$0xf] %vm555, %v528
  %562 = vst.msk [vmem:[%s8 + $0x18] sm:$0xf] %vm555, %v529
  %563 = vst.msk [vmem:[%s8 + $0x1c] sm:$0xf] %vm555, %v530
  %564 = vst.msk [vmem:[%s8 + $0x20] sm:$0xf] %vm555, %v531
  %565 = vst.msk [vmem:[%s8 + $0x24] sm:$0xf] %vm555, %v532
  %566 = vst.msk [vmem:[%s8 + $0x28] sm:$0xf] %vm555, %v533
  %567 = vst.msk [vmem:[%s8 + $0x2c] sm:$0xf] %vm555, %v534
  %568 = vst.msk [vmem:[%s8 + $0x30] sm:$0xf] %vm555, %v535
  %569 = vst.msk [vmem:[%s8 + $0x34] sm:$0xf] %vm555, %v536
  %570 = vst.msk [vmem:[%s8 + $0x38] sm:$0xf] %vm555, %v537
  %571 = vst.msk [vmem:[%s8 + $0x3c] sm:$0xf] %vm555, %v538
  // Predicated region
  $region34: #{densenet_forward.17} parent=0 // pred_check
    _
  $region35: #{densenet_forward.17} parent=0 // pred_check_branch
    %573 = sbr.rel (0) target = $region37
  $region36: #{densenet_forward.17} parent=0 // pred_region
    _
  $region37: #{densenet_forward.17} parent=0 // pred_fallthru
    _
  // Predicated region
  $region38: #{densenet_forward.17} parent=0 // pred_check
    _
  $region39: #{densenet_forward.17} parent=0 // pred_check_branch
    %575 = sbr.rel (0) target = $region41
  $region40: #{densenet_forward.17} parent=0 // pred_region
    _
  $region41: #{densenet_forward.17} parent=0 // pred_fallthru
    _

// kernel: densenet_forward.19
$region0: #{densenet_forward.19}
  #allocation0 [shape = 'u32[]', space=smem, size = 0x4, offset = 0x4, fixed_abs, tag = 'smem constant byte address 0x4 - core index']
  #allocation1 [shape = 'u32[144,128]{1,0:T(1,128)}', space=vmem, size = 0x12000, scoped, tag = 'internal scratch']
  %s0 = inlined_call_operand.vmem [shape: bf16[128,16], index: 0, kind: input, shape index: {}]
  %s1 = inlined_call_operand.vmem [shape: bf16[128,8], index: 1, kind: input, shape index: {}]
  %s2 = inlined_call_operand.vmem [shape: bf16[128,8], index: 2, kind: input, shape index: {}]
  %s3 = inlined_call_operand.vmem [shape: f32[1,16], index: 3, kind: input, shape index: {}]
  %s4 = inlined_call_operand.vmem [shape: f32[1,8], index: 4, kind: input, shape index: {}]
  %s5 = inlined_call_operand.vmem [shape: f32[1,8], index: 5, kind: input, shape index: {}]
  %s6 = inlined_call_operand.vmem [shape: f32[1,16], index: 6, kind: input, shape index: {}]
  %s7 = inlined_call_operand.vmem [shape: f32[1,8], index: 7, kind: input, shape index: {}]
  %s8 = inlined_call_operand.vmem [shape: f32[1,8], index: 8, kind: input, shape index: {}]
  %s9 = inlined_call_operand.vmem [shape: bf16[16,16], index: 9, kind: input, shape index: {}]
  %s10 = inlined_call_operand.vmem [shape: bf16[8,16], index: 10, kind: input, shape index: {}]
  %s11 = inlined_call_operand.vmem [shape: bf16[8,16], index: 11, kind: input, shape index: {}]
  %s12 = inlined_call_operand.vmem [shape: bf16[128,16], index: 12, kind: output, shape index: {}]
  %s13 = sld [smem:[#allocation0]]
  $region58: #{densenet_forward.19} parent=0
    _
  %s15 = ssub.s32 1, %s13
  %s16 = scalar_select 0, %s15, %s13
  // Predicated region
  $region2: #{densenet_forward.19} parent=0 // pred_check
    _
  $region3: #{densenet_forward.19} parent=0 // pred_check_branch
    %18 = sbr.rel (0) target = $region5
  $region4: #{densenet_forward.19} parent=0 // pred_region
    _
  $region5: #{densenet_forward.19} parent=0 // pred_fallthru
    _
  // Predicated region
  $region6: #{densenet_forward.19} parent=0 // pred_check
    _
  $region7: #{densenet_forward.19} parent=0 // pred_check_branch
    %20 = sbr.rel (0) target = $region9
  $region8: #{densenet_forward.19} parent=0 // pred_region
    _
  $region9: #{densenet_forward.19} parent=0 // pred_fallthru
    _
  // Predicated region
  $region10: #{densenet_forward.19} parent=0 // pred_check
    _
  $region11: #{densenet_forward.19} parent=0 // pred_check_branch
    %22 = sbr.rel (0) target = $region13
  $region12: #{densenet_forward.19} parent=0 // pred_region
    _
  $region13: #{densenet_forward.19} parent=0 // pred_fallthru
    _
  // Predicated region
  $region14: #{densenet_forward.19} parent=0 // pred_check
    _
  $region15: #{densenet_forward.19} parent=0 // pred_check_branch
    %24 = sbr.rel (0) target = $region17
  $region16: #{densenet_forward.19} parent=0 // pred_region
    _
  $region17: #{densenet_forward.19} parent=0 // pred_fallthru
    _
  // Predicated region
  $region18: #{densenet_forward.19} parent=0 // pred_check
    _
  $region19: #{densenet_forward.19} parent=0 // pred_check_branch
    %26 = sbr.rel (0) target = $region21
  $region20: #{densenet_forward.19} parent=0 // pred_region
    _
  $region21: #{densenet_forward.19} parent=0 // pred_fallthru
    _
  // Predicated region
  $region22: #{densenet_forward.19} parent=0 // pred_check
    _
  $region23: #{densenet_forward.19} parent=0 // pred_check_branch
    %28 = sbr.rel (0) target = $region25
  $region24: #{densenet_forward.19} parent=0 // pred_region
    _
  $region25: #{densenet_forward.19} parent=0 // pred_fallthru
    _
  // Predicated region
  $region26: #{densenet_forward.19} parent=0 // pred_check
    _
  $region27: #{densenet_forward.19} parent=0 // pred_check_branch
    %30 = sbr.rel (0) target = $region29
  $region28: #{densenet_forward.19} parent=0 // pred_region
    _
  $region29: #{densenet_forward.19} parent=0 // pred_fallthru
    _
  // Predicated region
  $region30: #{densenet_forward.19} parent=0 // pred_check
    _
  $region31: #{densenet_forward.19} parent=0 // pred_check_branch
    %32 = sbr.rel (0) target = $region33
  $region32: #{densenet_forward.19} parent=0 // pred_region
    _
  $region33: #{densenet_forward.19} parent=0 // pred_fallthru
    _
  // Predicated region
  $region34: #{densenet_forward.19} parent=0 // pred_check
    _
  $region35: #{densenet_forward.19} parent=0 // pred_check_branch
    %34 = sbr.rel (0) target = $region37
  $region36: #{densenet_forward.19} parent=0 // pred_region
    _
  $region37: #{densenet_forward.19} parent=0 // pred_fallthru
    _
  // Predicated region
  $region38: #{densenet_forward.19} parent=0 // pred_check
    _
  $region39: #{densenet_forward.19} parent=0 // pred_check_branch
    %36 = sbr.rel (0) target = $region41
  $region40: #{densenet_forward.19} parent=0 // pred_region
    _
  $region41: #{densenet_forward.19} parent=0 // pred_fallthru
    _
  // Predicated region
  $region42: #{densenet_forward.19} parent=0 // pred_check
    _
  $region43: #{densenet_forward.19} parent=0 // pred_check_branch
    %38 = sbr.rel (0) target = $region45
  $region44: #{densenet_forward.19} parent=0 // pred_region
    _
  $region45: #{densenet_forward.19} parent=0 // pred_fallthru
    _
  // Predicated region
  $region46: #{densenet_forward.19} parent=0 // pred_check
    _
  $region47: #{densenet_forward.19} parent=0 // pred_check_branch
    %40 = sbr.rel (0) target = $region49
  $region48: #{densenet_forward.19} parent=0 // pred_region
    _
  $region49: #{densenet_forward.19} parent=0 // pred_fallthru
    _
  %v42 = vld [vmem:[%s0] sm:$0xf]
  %v43 = vld [vmem:[%s0 + $0x4] sm:$0xf]
  %v44 = vld [vmem:[%s0 + $0x8] sm:$0xf]
  %v45 = vld [vmem:[%s0 + $0xc] sm:$0xf]
  %v46 = vld [vmem:[%s0 + $0x10] sm:$0xf]
  %v47 = vld [vmem:[%s0 + $0x14] sm:$0xf]
  %v48 = vld [vmem:[%s0 + $0x18] sm:$0xf]
  %v49 = vld [vmem:[%s0 + $0x1c] sm:$0xf]
  %v50 = vld [vmem:[%s0 + $0x20] sm:$0xf]
  %v51 = vld [vmem:[%s0 + $0x24] sm:$0xf]
  %v52 = vld [vmem:[%s0 + $0x28] sm:$0xf]
  %v53 = vld [vmem:[%s0 + $0x2c] sm:$0xf]
  %v54 = vld [vmem:[%s0 + $0x30] sm:$0xf]
  %v55 = vld [vmem:[%s0 + $0x34] sm:$0xf]
  %v56 = vld [vmem:[%s0 + $0x38] sm:$0xf]
  %v57 = vld [vmem:[%s0 + $0x3c] sm:$0xf]
  %v58 = vunpack.c.l.bf16 %v42
  %v59 = vunpack.c.l.bf16 %v43
  %v60 = vunpack.c.l.bf16 %v44
  %v61 = vunpack.c.l.bf16 %v45
  %v62 = vunpack.c.l.bf16 %v46
  %v63 = vunpack.c.l.bf16 %v47
  %v64 = vunpack.c.l.bf16 %v48
  %v65 = vunpack.c.l.bf16 %v49
  %v66 = vunpack.c.l.bf16 %v50
  %v67 = vunpack.c.l.bf16 %v51
  %v68 = vunpack.c.l.bf16 %v52
  %v69 = vunpack.c.l.bf16 %v53
  %v70 = vunpack.c.l.bf16 %v54
  %v71 = vunpack.c.l.bf16 %v55
  %v72 = vunpack.c.l.bf16 %v56
  %v73 = vunpack.c.l.bf16 %v57
  %v74 = vld [vmem:[%s3] sm:$0x1]
  %v76 = vlaneseq
  %v77 = vshrl.u32 %v76, 7
  %v78 = vsub.s32 0, %v77
  %v79 = vrot.slane %v74, %v78
  %v81 = vmul.f32 %v58, %v79
  %v82 = vmul.f32 %v59, %v79
  %v83 = vmul.f32 %v60, %v79
  %v84 = vmul.f32 %v61, %v79
  %v85 = vmul.f32 %v62, %v79
  %v86 = vmul.f32 %v63, %v79
  %v87 = vmul.f32 %v64, %v79
  %v88 = vmul.f32 %v65, %v79
  %v89 = vmul.f32 %v66, %v79
  %v90 = vmul.f32 %v67, %v79
  %v91 = vmul.f32 %v68, %v79
  %v92 = vmul.f32 %v69, %v79
  %v93 = vmul.f32 %v70, %v79
  %v94 = vmul.f32 %v71, %v79
  %v95 = vmul.f32 %v72, %v79
  %v96 = vmul.f32 %v73, %v79
  %v97 = vld [vmem:[%s6] sm:$0x1]
  %v99 = vlaneseq
  %v100 = vshrl.u32 %v99, 7
  %v101 = vsub.s32 0, %v100
  %v102 = vrot.slane %v97, %v101
  %v104 = vadd.f32 %v81, %v102
  %v105 = vadd.f32 %v82, %v102
  %v106 = vadd.f32 %v83, %v102
  %v107 = vadd.f32 %v84, %v102
  %v108 = vadd.f32 %v85, %v102
  %v109 = vadd.f32 %v86, %v102
  %v110 = vadd.f32 %v87, %v102
  %v111 = vadd.f32 %v88, %v102
  %v112 = vadd.f32 %v89, %v102
  %v113 = vadd.f32 %v90, %v102
  %v114 = vadd.f32 %v91, %v102
  %v115 = vadd.f32 %v92, %v102
  %v116 = vadd.f32 %v93, %v102
  %v117 = vadd.f32 %v94, %v102
  %v118 = vadd.f32 %v95, %v102
  %v119 = vadd.f32 %v96, %v102
  %v120 = vmax.f32 %v104, 0.0
  %v121 = vmax.f32 %v105, 0.0
  %v122 = vmax.f32 %v106, 0.0
  %v123 = vmax.f32 %v107, 0.0
  %v124 = vmax.f32 %v108, 0.0
  %v125 = vmax.f32 %v109, 0.0
  %v126 = vmax.f32 %v110, 0.0
  %v127 = vmax.f32 %v111, 0.0
  %v128 = vmax.f32 %v112, 0.0
  %v129 = vmax.f32 %v113, 0.0
  %v130 = vmax.f32 %v114, 0.0
  %v131 = vmax.f32 %v115, 0.0
  %v132 = vmax.f32 %v116, 0.0
  %v133 = vmax.f32 %v117, 0.0
  %v134 = vmax.f32 %v118, 0.0
  %v135 = vmax.f32 %v119, 0.0
  %v136 = vpack.c.bf16 %v121, %v120
  %v137 = vpack.c.bf16 %v123, %v122
  %v138 = vpack.c.bf16 %v125, %v124
  %v139 = vpack.c.bf16 %v127, %v126
  %v140 = vpack.c.bf16 %v129, %v128
  %v141 = vpack.c.bf16 %v131, %v130
  %v142 = vpack.c.bf16 %v133, %v132
  %v143 = vpack.c.bf16 %v135, %v134
  %v144 = vld [vmem:[%s9] sm:$0xf]
  %v145 = vld [vmem:[%s9 + $0x4] sm:$0xf]
  %v146 = vld [vmem:[%s1] sm:$0xf]
  %v147 = vld [vmem:[%s1 + $0x4] sm:$0xf]
  %v148 = vld [vmem:[%s1 + $0x8] sm:$0xf]
  %v149 = vld [vmem:[%s1 + $0xc] sm:$0xf]
  %v150 = vld [vmem:[%s1 + $0x10] sm:$0xf]
  %v151 = vld [vmem:[%s1 + $0x14] sm:$0xf]
  %v152 = vld [vmem:[%s1 + $0x18] sm:$0xf]
  %v153 = vld [vmem:[%s1 + $0x1c] sm:$0xf]
  %v154 = vld [vmem:[%s1 + $0x20] sm:$0xf]
  %v155 = vld [vmem:[%s1 + $0x24] sm:$0xf]
  %v156 = vld [vmem:[%s1 + $0x28] sm:$0xf]
  %v157 = vld [vmem:[%s1 + $0x2c] sm:$0xf]
  %v158 = vld [vmem:[%s1 + $0x30] sm:$0xf]
  %v159 = vld [vmem:[%s1 + $0x34] sm:$0xf]
  %v160 = vld [vmem:[%s1 + $0x38] sm:$0xf]
  %v161 = vld [vmem:[%s1 + $0x3c] sm:$0xf]
  %v162 = vunpack.c.l.bf16 %v146
  %v163 = vunpack.c.l.bf16 %v147
  %v164 = vunpack.c.l.bf16 %v148
  %v165 = vunpack.c.l.bf16 %v149
  %v166 = vunpack.c.l.bf16 %v150
  %v167 = vunpack.c.l.bf16 %v151
  %v168 = vunpack.c.l.bf16 %v152
  %v169 = vunpack.c.l.bf16 %v153
  %v170 = vunpack.c.l.bf16 %v154
  %v171 = vunpack.c.l.bf16 %v155
  %v172 = vunpack.c.l.bf16 %v156
  %v173 = vunpack.c.l.bf16 %v157
  %v174 = vunpack.c.l.bf16 %v158
  %v175 = vunpack.c.l.bf16 %v159
  %v176 = vunpack.c.l.bf16 %v160
  %v177 = vunpack.c.l.bf16 %v161
  %v178 = vld [vmem:[%s4] sm:$0x1]
  %v180 = vlaneseq
  %v181 = vshrl.u32 %v180, 7
  %v182 = vsub.s32 0, %v181
  %v183 = vrot.slane %v178, %v182
  %v185 = vmul.f32 %v162, %v183
  %v186 = vmul.f32 %v163, %v183
  %v187 = vmul.f32 %v164, %v183
  %v188 = vmul.f32 %v165, %v183
  %v189 = vmul.f32 %v166, %v183
  %v190 = vmul.f32 %v167, %v183
  %v191 = vmul.f32 %v168, %v183
  %v192 = vmul.f32 %v169, %v183
  %v193 = vmul.f32 %v170, %v183
  %v194 = vmul.f32 %v171, %v183
  %v195 = vmul.f32 %v172, %v183
  %v196 = vmul.f32 %v173, %v183
  %v197 = vmul.f32 %v174, %v183
  %v198 = vmul.f32 %v175, %v183
  %v199 = vmul.f32 %v176, %v183
  %v200 = vmul.f32 %v177, %v183
  %v201 = vld [vmem:[%s7] sm:$0x1]
  %v203 = vlaneseq
  %v204 = vshrl.u32 %v203, 7
  %v205 = vsub.s32 0, %v204
  %v206 = vrot.slane %v201, %v205
  %v208 = vadd.f32 %v185, %v206
  %v209 = vadd.f32 %v186, %v206
  %v210 = vadd.f32 %v187, %v206
  %v211 = vadd.f32 %v188, %v206
  %v212 = vadd.f32 %v189, %v206
  %v213 = vadd.f32 %v190, %v206
  %v214 = vadd.f32 %v191, %v206
  %v215 = vadd.f32 %v192, %v206
  %v216 = vadd.f32 %v193, %v206
  %v217 = vadd.f32 %v194, %v206
  %v218 = vadd.f32 %v195, %v206
  %v219 = vadd.f32 %v196, %v206
  %v220 = vadd.f32 %v197, %v206
  %v221 = vadd.f32 %v198, %v206
  %v222 = vadd.f32 %v199, %v206
  %v223 = vadd.f32 %v200, %v206
  %v224 = vmax.f32 %v208, 0.0
  %v225 = vmax.f32 %v209, 0.0
  %v226 = vmax.f32 %v210, 0.0
  %v227 = vmax.f32 %v211, 0.0
  %v228 = vmax.f32 %v212, 0.0
  %v229 = vmax.f32 %v213, 0.0
  %v230 = vmax.f32 %v214, 0.0
  %v231 = vmax.f32 %v215, 0.0
  %v232 = vmax.f32 %v216, 0.0
  %v233 = vmax.f32 %v217, 0.0
  %v234 = vmax.f32 %v218, 0.0
  %v235 = vmax.f32 %v219, 0.0
  %v236 = vmax.f32 %v220, 0.0
  %v237 = vmax.f32 %v221, 0.0
  %v238 = vmax.f32 %v222, 0.0
  %v239 = vmax.f32 %v223, 0.0
  %v240 = vpack.c.bf16 %v225, %v224
  %v241 = vpack.c.bf16 %v227, %v226
  %v242 = vpack.c.bf16 %v229, %v228
  %v243 = vpack.c.bf16 %v231, %v230
  %v244 = vpack.c.bf16 %v233, %v232
  %v245 = vpack.c.bf16 %v235, %v234
  %v246 = vpack.c.bf16 %v237, %v236
  %v247 = vpack.c.bf16 %v239, %v238
  %v248 = vld [vmem:[%s10] sm:$0xf]
  %vm249 = vcmask 64512
  %v251 = vsel %vm249, %v240, 0
  %v254 = vsel %vm249, %v241, 0
  %v257 = vsel %vm249, %v242, 0
  %v260 = vsel %vm249, %v243, 0
  %v263 = vsel %vm249, %v244, 0
  %v266 = vsel %vm249, %v245, 0
  %v269 = vsel %vm249, %v246, 0
  %v272 = vsel %vm249, %v247, 0
  %vm274 = vcmask 1043456
  %v276 = vsel %vm274, %v248, 0
  %278 = vmatprep.subr.bf16.mxu0 0
  %279 = vmatpush1.bf16.msra.mxu0 %v276
  %280 = vmatprep.subr.bf16.mxu0 0
  %281 = vmatpush1.bf16.msra.mxu0 0
  %282 = vmatprep.subr.bf16.mxu0 0
  %283 = vmatpush1.bf16.msra.mxu0 0
  %284 = vmatprep.subr.bf16.mxu0 0
  %285 = vmatpush1.bf16.msra.mxu0 0
  %286 = vmatprep.subr.bf16.mxu0 0
  %287 = vmatpush1.bf16.msra.mxu0 0
  %288 = vmatprep.subr.bf16.mxu0 0
  %289 = vmatpush1.bf16.msra.mxu0 0
  %290 = vmatprep.subr.bf16.mxu0 0
  %291 = vmatpush1.bf16.msra.mxu0 0
  %292 = vmatprep.subr.bf16.mxu0 0
  %293 = vmatpush1.bf16.msra.mxu0 0
  %294 = vmatprep.subr.bf16.mxu0 0
  %295 = vmatpush1.bf16.msra.mxu0 0
  %296 = vmatprep.subr.bf16.mxu0 0
  %297 = vmatpush1.bf16.msra.mxu0 0
  %298 = vmatprep.subr.bf16.mxu0 0
  %299 = vmatpush1.bf16.msra.mxu0 0
  %300 = vmatprep.subr.bf16.mxu0 0
  %301 = vmatpush1.bf16.msra.mxu0 0
  %302 = vmatprep.subr.bf16.mxu0 0
  %303 = vmatpush1.bf16.msra.mxu0 0
  %304 = vmatprep.subr.bf16.mxu0 0
  %305 = vmatpush1.bf16.msra.mxu0 0
  %306 = vmatprep.subr.bf16.mxu0 0
  %307 = vmatpush1.bf16.msra.mxu0 0
  %308 = vmatprep.subr.bf16.mxu0 0
  %309 = vmatpush1.bf16.msra.mxu0 0
  %310 = vmatprep.mubr.bf16.mxu0 0
  %311 = vmatmul.mubr.bf16.gmra.mrb[0].mxu0 %v251
  %v312 = vpop.f32.mrb[0].mxu0
  %v313 = vadd.f32 0.0, %v312
  %v314 = vpop.f32.mrb[0].mxu0
  %v315 = vpop.f32.mrb[0].mxu0
  %v316 = vadd.f32 0.0, %v315
  %v317 = vpop.f32.mrb[0].mxu0
  %318 = vmatprep.mubr.bf16.mxu0 0
  %319 = vmatmul.mubr.bf16.gmra.mrb[0].mxu0 %v254
  %v320 = vpop.f32.mrb[0].mxu0
  %v321 = vadd.f32 0.0, %v320
  %v322 = vpop.f32.mrb[0].mxu0
  %v323 = vpop.f32.mrb[0].mxu0
  %v324 = vadd.f32 0.0, %v323
  %v325 = vpop.f32.mrb[0].mxu0
  %326 = vmatprep.mubr.bf16.mxu0 0
  %327 = vmatmul.mubr.bf16.gmra.mrb[0].mxu0 %v257
  %v328 = vpop.f32.mrb[0].mxu0
  %v329 = vadd.f32 0.0, %v328
  %v330 = vpop.f32.mrb[0].mxu0
  %v331 = vpop.f32.mrb[0].mxu0
  %v332 = vadd.f32 0.0, %v331
  %v333 = vpop.f32.mrb[0].mxu0
  %334 = vmatprep.mubr.bf16.mxu0 0
  %335 = vmatmul.mubr.bf16.gmra.mrb[0].mxu0 %v260
  %v336 = vpop.f32.mrb[0].mxu0
  %v337 = vadd.f32 0.0, %v336
  %v338 = vpop.f32.mrb[0].mxu0
  %v339 = vpop.f32.mrb[0].mxu0
  %v340 = vadd.f32 0.0, %v339
  %v341 = vpop.f32.mrb[0].mxu0
  %342 = vmatprep.mubr.bf16.mxu0 0
  %343 = vmatmul.mubr.bf16.gmra.mrb[0].mxu0 %v263
  %v344 = vpop.f32.mrb[0].mxu0
  %v345 = vadd.f32 0.0, %v344
  %v346 = vpop.f32.mrb[0].mxu0
  %v347 = vpop.f32.mrb[0].mxu0
  %v348 = vadd.f32 0.0, %v347
  %v349 = vpop.f32.mrb[0].mxu0
  %350 = vmatprep.mubr.bf16.mxu0 0
  %351 = vmatmul.mubr.bf16.gmra.mrb[0].mxu0 %v266
  %v352 = vpop.f32.mrb[0].mxu0
  %v353 = vadd.f32 0.0, %v352
  %v354 = vpop.f32.mrb[0].mxu0
  %v355 = vpop.f32.mrb[0].mxu0
  %v356 = vadd.f32 0.0, %v355
  %v357 = vpop.f32.mrb[0].mxu0
  %358 = vmatprep.mubr.bf16.mxu0 0
  %359 = vmatmul.mubr.bf16.gmra.mrb[0].mxu0 %v269
  %v360 = vpop.f32.mrb[0].mxu0
  %v361 = vadd.f32 0.0, %v360
  %v362 = vpop.f32.mrb[0].mxu0
  %v363 = vpop.f32.mrb[0].mxu0
  %v364 = vadd.f32 0.0, %v363
  %v365 = vpop.f32.mrb[0].mxu0
  %366 = vmatprep.mubr.bf16.mxu0 0
  %367 = vmatmul.mubr.bf16.gmra.mrb[0].mxu0 %v272
  %v368 = vpop.f32.mrb[0].mxu0
  %v369 = vadd.f32 0.0, %v368
  %v370 = vpop.f32.mrb[0].mxu0
  %v371 = vpop.f32.mrb[0].mxu0
  %v372 = vadd.f32 0.0, %v371
  %v373 = vpop.f32.mrb[0].mxu0
  %374 = vdwg.mxu0
  %v377 = vunpack.c.l.b16 %v144
  %v378 = vunpack.c.l.b16 %v145
  %v379 = vpack.c.b16 %v378, %v377
  %vm381 = vcmask 130048
  %v383 = vsel %vm381, %v136, 0
  %v386 = vsel %vm381, %v137, 0
  %v389 = vsel %vm381, %v138, 0
  %v392 = vsel %vm381, %v139, 0
  %v395 = vsel %vm381, %v140, 0
  %v398 = vsel %vm381, %v141, 0
  %v401 = vsel %vm381, %v142, 0
  %v404 = vsel %vm381, %v143, 0
  %406 = vmatprep.subr.bf16.mxu0 0
  %407 = vmatpush1.bf16.msra.mxu0 %v379
  %408 = vmatprep.subr.bf16.mxu0 0
  %409 = vmatpush1.bf16.msra.mxu0 0
  %410 = vmatprep.subr.bf16.mxu0 0
  %411 = vmatpush1.bf16.msra.mxu0 0
  %412 = vmatprep.subr.bf16.mxu0 0
  %413 = vmatpush1.bf16.msra.mxu0 0
  %414 = vmatprep.subr.bf16.mxu0 0
  %415 = vmatpush1.bf16.msra.mxu0 0
  %416 = vmatprep.subr.bf16.mxu0 0
  %417 = vmatpush1.bf16.msra.mxu0 0
  %418 = vmatprep.subr.bf16.mxu0 0
  %419 = vmatpush1.bf16.msra.mxu0 0
  %420 = vmatprep.subr.bf16.mxu0 0
  %421 = vmatpush1.bf16.msra.mxu0 0
  %422 = vmatprep.subr.bf16.mxu0 0
  %423 = vmatpush1.bf16.msra.mxu0 0
  %424 = vmatprep.subr.bf16.mxu0 0
  %425 = vmatpush1.bf16.msra.mxu0 0
  %426 = vmatprep.subr.bf16.mxu0 0
  %427 = vmatpush1.bf16.msra.mxu0 0
  %428 = vmatprep.subr.bf16.mxu0 0
  %429 = vmatpush1.bf16.msra.mxu0 0
  %430 = vmatprep.subr.bf16.mxu0 0
  %431 = vmatpush1.bf16.msra.mxu0 0
  %432 = vmatprep.subr.bf16.mxu0 0
  %433 = vmatpush1.bf16.msra.mxu0 0
  %434 = vmatprep.subr.bf16.mxu0 0
  %435 = vmatpush1.bf16.msra.mxu0 0
  %436 = vmatprep.subr.bf16.mxu0 0
  %437 = vmatpush1.bf16.msra.mxu0 0
  %438 = vmatprep.mubr.bf16.mxu0 0
  %439 = vmatmul.mubr.bf16.gmra.mrb[0].mxu0 %v383
  %v440 = vpop.f32.mrb[0].mxu0
  %v441 = vadd.f32 %v313, %v440
  %v442 = vpop.f32.mrb[0].mxu0
  %v443 = vpop.f32.mrb[0].mxu0
  %v444 = vadd.f32 %v316, %v443
  %v445 = vpop.f32.mrb[0].mxu0
  %446 = vmatprep.mubr.bf16.mxu0 0
  %447 = vmatmul.mubr.bf16.gmra.mrb[0].mxu0 %v386
  %v448 = vpop.f32.mrb[0].mxu0
  %v449 = vadd.f32 %v321, %v448
  %v450 = vpop.f32.mrb[0].mxu0
  %v451 = vpop.f32.mrb[0].mxu0
  %v452 = vadd.f32 %v324, %v451
  %v453 = vpop.f32.mrb[0].mxu0
  %454 = vmatprep.mubr.bf16.mxu0 0
  %455 = vmatmul.mubr.bf16.gmra.mrb[0].mxu0 %v389
  %v456 = vpop.f32.mrb[0].mxu0
  %v457 = vadd.f32 %v329, %v456
  %v458 = vpop.f32.mrb[0].mxu0
  %v459 = vpop.f32.mrb[0].mxu0
  %v460 = vadd.f32 %v332, %v459
  %v461 = vpop.f32.mrb[0].mxu0
  %462 = vmatprep.mubr.bf16.mxu0 0
  %463 = vmatmul.mubr.bf16.gmra.mrb[0].mxu0 %v392
  %v464 = vpop.f32.mrb[0].mxu0
  %v465 = vadd.f32 %v337, %v464
  %v466 = vpop.f32.mrb[0].mxu0
  %v467 = vpop.f32.mrb[0].mxu0
  %v468 = vadd.f32 %v340, %v467
  %v469 = vpop.f32.mrb[0].mxu0
  %470 = vmatprep.mubr.bf16.mxu0 0
  %471 = vmatmul.mubr.bf16.gmra.mrb[0].mxu0 %v395
  %v472 = vpop.f32.mrb[0].mxu0
  %v473 = vadd.f32 %v345, %v472
  %v474 = vpop.f32.mrb[0].mxu0
  %v475 = vpop.f32.mrb[0].mxu0
  %v476 = vadd.f32 %v348, %v475
  %v477 = vpop.f32.mrb[0].mxu0
  %478 = vmatprep.mubr.bf16.mxu0 0
  %479 = vmatmul.mubr.bf16.gmra.mrb[0].mxu0 %v398
  %v480 = vpop.f32.mrb[0].mxu0
  %v481 = vadd.f32 %v353, %v480
  %v482 = vpop.f32.mrb[0].mxu0
  %v483 = vpop.f32.mrb[0].mxu0
  %v484 = vadd.f32 %v356, %v483
  %v485 = vpop.f32.mrb[0].mxu0
  %486 = vmatprep.mubr.bf16.mxu0 0
  %487 = vmatmul.mubr.bf16.gmra.mrb[0].mxu0 %v401
  %v488 = vpop.f32.mrb[0].mxu0
  %v489 = vadd.f32 %v361, %v488
  %v490 = vpop.f32.mrb[0].mxu0
  %v491 = vpop.f32.mrb[0].mxu0
  %v492 = vadd.f32 %v364, %v491
  %v493 = vpop.f32.mrb[0].mxu0
  %494 = vmatprep.mubr.bf16.mxu0 0
  %495 = vmatmul.mubr.bf16.gmra.mrb[0].mxu0 %v404
  %v496 = vpop.f32.mrb[0].mxu0
  %v497 = vadd.f32 %v369, %v496
  %v498 = vpop.f32.mrb[0].mxu0
  %v499 = vpop.f32.mrb[0].mxu0
  %v500 = vadd.f32 %v372, %v499
  %v501 = vpop.f32.mrb[0].mxu0
  %502 = vdwg.mxu0
  %v503 = vld [vmem:[%s2] sm:$0xf]
  %v504 = vld [vmem:[%s2 + $0x4] sm:$0xf]
  %v505 = vld [vmem:[%s2 + $0x8] sm:$0xf]
  %v506 = vld [vmem:[%s2 + $0xc] sm:$0xf]
  %v507 = vld [vmem:[%s2 + $0x10] sm:$0xf]
  %v508 = vld [vmem:[%s2 + $0x14] sm:$0xf]
  %v509 = vld [vmem:[%s2 + $0x18] sm:$0xf]
  %v510 = vld [vmem:[%s2 + $0x1c] sm:$0xf]
  %v511 = vld [vmem:[%s2 + $0x20] sm:$0xf]
  %v512 = vld [vmem:[%s2 + $0x24] sm:$0xf]
  %v513 = vld [vmem:[%s2 + $0x28] sm:$0xf]
  %v514 = vld [vmem:[%s2 + $0x2c] sm:$0xf]
  %v515 = vld [vmem:[%s2 + $0x30] sm:$0xf]
  %v516 = vld [vmem:[%s2 + $0x34] sm:$0xf]
  %v517 = vld [vmem:[%s2 + $0x38] sm:$0xf]
  %v518 = vld [vmem:[%s2 + $0x3c] sm:$0xf]
  %v519 = vunpack.c.l.bf16 %v503
  %v520 = vunpack.c.l.bf16 %v504
  %v521 = vunpack.c.l.bf16 %v505
  %v522 = vunpack.c.l.bf16 %v506
  %v523 = vunpack.c.l.bf16 %v507
  %v524 = vunpack.c.l.bf16 %v508
  %v525 = vunpack.c.l.bf16 %v509
  %v526 = vunpack.c.l.bf16 %v510
  %v527 = vunpack.c.l.bf16 %v511
  %v528 = vunpack.c.l.bf16 %v512
  %v529 = vunpack.c.l.bf16 %v513
  %v530 = vunpack.c.l.bf16 %v514
  %v531 = vunpack.c.l.bf16 %v515
  %v532 = vunpack.c.l.bf16 %v516
  %v533 = vunpack.c.l.bf16 %v517
  %v534 = vunpack.c.l.bf16 %v518
  %v535 = vld [vmem:[%s5] sm:$0x1]
  %v537 = vlaneseq
  %v538 = vshrl.u32 %v537, 7
  %v539 = vsub.s32 0, %v538
  %v540 = vrot.slane %v535, %v539
  %v542 = vmul.f32 %v519, %v540
  %v543 = vmul.f32 %v520, %v540
  %v544 = vmul.f32 %v521, %v540
  %v545 = vmul.f32 %v522, %v540
  %v546 = vmul.f32 %v523, %v540
  %v547 = vmul.f32 %v524, %v540
  %v548 = vmul.f32 %v525, %v540
  %v549 = vmul.f32 %v526, %v540
  %v550 = vmul.f32 %v527, %v540
  %v551 = vmul.f32 %v528, %v540
  %v552 = vmul.f32 %v529, %v540
  %v553 = vmul.f32 %v530, %v540
  %v554 = vmul.f32 %v531, %v540
  %v555 = vmul.f32 %v532, %v540
  %v556 = vmul.f32 %v533, %v540
  %v557 = vmul.f32 %v534, %v540
  %v558 = vld [vmem:[%s8] sm:$0x1]
  %v560 = vlaneseq
  %v561 = vshrl.u32 %v560, 7
  %v562 = vsub.s32 0, %v561
  %v563 = vrot.slane %v558, %v562
  %v565 = vadd.f32 %v542, %v563
  %v566 = vadd.f32 %v543, %v563
  %v567 = vadd.f32 %v544, %v563
  %v568 = vadd.f32 %v545, %v563
  %v569 = vadd.f32 %v546, %v563
  %v570 = vadd.f32 %v547, %v563
  %v571 = vadd.f32 %v548, %v563
  %v572 = vadd.f32 %v549, %v563
  %v573 = vadd.f32 %v550, %v563
  %v574 = vadd.f32 %v551, %v563
  %v575 = vadd.f32 %v552, %v563
  %v576 = vadd.f32 %v553, %v563
  %v577 = vadd.f32 %v554, %v563
  %v578 = vadd.f32 %v555, %v563
  %v579 = vadd.f32 %v556, %v563
  %v580 = vadd.f32 %v557, %v563
  %v581 = vmax.f32 %v565, 0.0
  %v582 = vmax.f32 %v566, 0.0
  %v583 = vmax.f32 %v567, 0.0
  %v584 = vmax.f32 %v568, 0.0
  %v585 = vmax.f32 %v569, 0.0
  %v586 = vmax.f32 %v570, 0.0
  %v587 = vmax.f32 %v571, 0.0
  %v588 = vmax.f32 %v572, 0.0
  %v589 = vmax.f32 %v573, 0.0
  %v590 = vmax.f32 %v574, 0.0
  %v591 = vmax.f32 %v575, 0.0
  %v592 = vmax.f32 %v576, 0.0
  %v593 = vmax.f32 %v577, 0.0
  %v594 = vmax.f32 %v578, 0.0
  %v595 = vmax.f32 %v579, 0.0
  %v596 = vmax.f32 %v580, 0.0
  %v597 = vpack.c.bf16 %v582, %v581
  %v598 = vpack.c.bf16 %v584, %v583
  %v599 = vpack.c.bf16 %v586, %v585
  %v600 = vpack.c.bf16 %v588, %v587
  %v601 = vpack.c.bf16 %v590, %v589
  %v602 = vpack.c.bf16 %v592, %v591
  %v603 = vpack.c.bf16 %v594, %v593
  %v604 = vpack.c.bf16 %v596, %v595
  %v605 = vld [vmem:[%s11] sm:$0xf]
  %v607 = vsel %vm249, %v597, 0
  %v610 = vsel %vm249, %v598, 0
  %v613 = vsel %vm249, %v599, 0
  %v616 = vsel %vm249, %v600, 0
  %v619 = vsel %vm249, %v601, 0
  %v622 = vsel %vm249, %v602, 0
  %v625 = vsel %vm249, %v603, 0
  %v628 = vsel %vm249, %v604, 0
  %v631 = vsel %vm274, %v605, 0
  %633 = vmatprep.subr.bf16.mxu0 0
  %634 = vmatpush1.bf16.msra.mxu0 %v631
  %635 = vmatprep.subr.bf16.mxu0 0
  %636 = vmatpush1.bf16.msra.mxu0 0
  %637 = vmatprep.subr.bf16.mxu0 0
  %638 = vmatpush1.bf16.msra.mxu0 0
  %639 = vmatprep.subr.bf16.mxu0 0
  %640 = vmatpush1.bf16.msra.mxu0 0
  %641 = vmatprep.subr.bf16.mxu0 0
  %642 = vmatpush1.bf16.msra.mxu0 0
  %643 = vmatprep.subr.bf16.mxu0 0
  %644 = vmatpush1.bf16.msra.mxu0 0
  %645 = vmatprep.subr.bf16.mxu0 0
  %646 = vmatpush1.bf16.msra.mxu0 0
  %647 = vmatprep.subr.bf16.mxu0 0
  %648 = vmatpush1.bf16.msra.mxu0 0
  %649 = vmatprep.subr.bf16.mxu0 0
  %650 = vmatpush1.bf16.msra.mxu0 0
  %651 = vmatprep.subr.bf16.mxu0 0
  %652 = vmatpush1.bf16.msra.mxu0 0
  %653 = vmatprep.subr.bf16.mxu0 0
  %654 = vmatpush1.bf16.msra.mxu0 0
  %655 = vmatprep.subr.bf16.mxu0 0
  %656 = vmatpush1.bf16.msra.mxu0 0
  %657 = vmatprep.subr.bf16.mxu0 0
  %658 = vmatpush1.bf16.msra.mxu0 0
  %659 = vmatprep.subr.bf16.mxu0 0
  %660 = vmatpush1.bf16.msra.mxu0 0
  %661 = vmatprep.subr.bf16.mxu0 0
  %662 = vmatpush1.bf16.msra.mxu0 0
  %663 = vmatprep.subr.bf16.mxu0 0
  %664 = vmatpush1.bf16.msra.mxu0 0
  %665 = vmatprep.mubr.bf16.mxu0 0
  %666 = vmatmul.mubr.bf16.gmra.mrb[0].mxu0 %v607
  %v667 = vpop.f32.mrb[0].mxu0
  %v668 = vadd.f32 0.0, %v667
  %v669 = vpop.f32.mrb[0].mxu0
  %v670 = vpop.f32.mrb[0].mxu0
  %v671 = vadd.f32 0.0, %v670
  %v672 = vpop.f32.mrb[0].mxu0
  %673 = vmatprep.mubr.bf16.mxu0 0
  %674 = vmatmul.mubr.bf16.gmra.mrb[0].mxu0 %v610
  %v675 = vpop.f32.mrb[0].mxu0
  %v676 = vadd.f32 0.0, %v675
  %v677 = vpop.f32.mrb[0].mxu0
  %v678 = vpop.f32.mrb[0].mxu0
  %v679 = vadd.f32 0.0, %v678
  %v680 = vpop.f32.mrb[0].mxu0
  %681 = vmatprep.mubr.bf16.mxu0 0
  %682 = vmatmul.mubr.bf16.gmra.mrb[0].mxu0 %v613
  %v683 = vpop.f32.mrb[0].mxu0
  %v684 = vadd.f32 0.0, %v683
  %v685 = vpop.f32.mrb[0].mxu0
  %v686 = vpop.f32.mrb[0].mxu0
  %v687 = vadd.f32 0.0, %v686
  %v688 = vpop.f32.mrb[0].mxu0
  %689 = vmatprep.mubr.bf16.mxu0 0
  %690 = vmatmul.mubr.bf16.gmra.mrb[0].mxu0 %v616
  %v691 = vpop.f32.mrb[0].mxu0
  %v692 = vadd.f32 0.0, %v691
  %v693 = vpop.f32.mrb[0].mxu0
  %v694 = vpop.f32.mrb[0].mxu0
  %v695 = vadd.f32 0.0, %v694
  %v696 = vpop.f32.mrb[0].mxu0
  %697 = vmatprep.mubr.bf16.mxu0 0
  %698 = vmatmul.mubr.bf16.gmra.mrb[0].mxu0 %v619
  %v699 = vpop.f32.mrb[0].mxu0
  %v700 = vadd.f32 0.0, %v699
  %v701 = vpop.f32.mrb[0].mxu0
  %v702 = vpop.f32.mrb[0].mxu0
  %v703 = vadd.f32 0.0, %v702
  %v704 = vpop.f32.mrb[0].mxu0
  %705 = vmatprep.mubr.bf16.mxu0 0
  %706 = vmatmul.mubr.bf16.gmra.mrb[0].mxu0 %v622
  %v707 = vpop.f32.mrb[0].mxu0
  %v708 = vadd.f32 0.0, %v707
  %v709 = vpop.f32.mrb[0].mxu0
  %v710 = vpop.f32.mrb[0].mxu0
  %v711 = vadd.f32 0.0, %v710
  %v712 = vpop.f32.mrb[0].mxu0
  %713 = vmatprep.mubr.bf16.mxu0 0
  %714 = vmatmul.mubr.bf16.gmra.mrb[0].mxu0 %v625
  %v715 = vpop.f32.mrb[0].mxu0
  %v716 = vadd.f32 0.0, %v715
  %v717 = vpop.f32.mrb[0].mxu0
  %v718 = vpop.f32.mrb[0].mxu0
  %v719 = vadd.f32 0.0, %v718
  %v720 = vpop.f32.mrb[0].mxu0
  %721 = vmatprep.mubr.bf16.mxu0 0
  %722 = vmatmul.mubr.bf16.gmra.mrb[0].mxu0 %v628
  %v723 = vpop.f32.mrb[0].mxu0
  %v724 = vadd.f32 0.0, %v723
  %v725 = vpop.f32.mrb[0].mxu0
  %v726 = vpop.f32.mrb[0].mxu0
  %v727 = vadd.f32 0.0, %v726
  %v728 = vpop.f32.mrb[0].mxu0
  %729 = vdwg.mxu0
  %v730 = vadd.f32 %v441, %v668
  %v731 = vadd.f32 %v444, %v671
  %v732 = vadd.f32 %v449, %v676
  %v733 = vadd.f32 %v452, %v679
  %v734 = vadd.f32 %v457, %v684
  %v735 = vadd.f32 %v460, %v687
  %v736 = vadd.f32 %v465, %v692
  %v737 = vadd.f32 %v468, %v695
  %v738 = vadd.f32 %v473, %v700
  %v739 = vadd.f32 %v476, %v703
  %v740 = vadd.f32 %v481, %v708
  %v741 = vadd.f32 %v484, %v711
  %v742 = vadd.f32 %v489, %v716
  %v743 = vadd.f32 %v492, %v719
  %v744 = vadd.f32 %v497, %v724
  %v745 = vadd.f32 %v500, %v727
  %v746 = vpack.c.bf16 %v731, %v730
  %v747 = vpack.c.bf16 %v733, %v732
  %v748 = vpack.c.bf16 %v735, %v734
  %v749 = vpack.c.bf16 %v737, %v736
  %v750 = vpack.c.bf16 %v739, %v738
  %v751 = vpack.c.bf16 %v741, %v740
  %v752 = vpack.c.bf16 %v743, %v742
  %v753 = vpack.c.bf16 %v745, %v744
  %v762 = vunpack.c.l.b16 %v746
  %v763 = vunpack.c.h.b16 %v746
  %v764 = vunpack.c.l.b16 %v747
  %v765 = vunpack.c.h.b16 %v747
  %v766 = vunpack.c.l.b16 %v748
  %v767 = vunpack.c.h.b16 %v748
  %v768 = vunpack.c.l.b16 %v749
  %v769 = vunpack.c.h.b16 %v749
  %v770 = vunpack.c.l.b16 %v750
  %v771 = vunpack.c.h.b16 %v750
  %v772 = vunpack.c.l.b16 %v751
  %v773 = vunpack.c.h.b16 %v751
  %v774 = vunpack.c.l.b16 %v752
  %v775 = vunpack.c.h.b16 %v752
  %v776 = vunpack.c.l.b16 %v753
  %v777 = vunpack.c.h.b16 %v753
  %v778 = vpack.c.b16 %v762, %v762
  %v779 = vpack.c.b16 %v763, %v763
  %v780 = vpack.c.b16 %v764, %v764
  %v781 = vpack.c.b16 %v765, %v765
  %v782 = vpack.c.b16 %v766, %v766
  %v783 = vpack.c.b16 %v767, %v767
  %v784 = vpack.c.b16 %v768, %v768
  %v785 = vpack.c.b16 %v769, %v769
  %v786 = vpack.c.b16 %v770, %v770
  %v787 = vpack.c.b16 %v771, %v771
  %v788 = vpack.c.b16 %v772, %v772
  %v789 = vpack.c.b16 %v773, %v773
  %v790 = vpack.c.b16 %v774, %v774
  %v791 = vpack.c.b16 %v775, %v775
  %v792 = vpack.c.b16 %v776, %v776
  %v793 = vpack.c.b16 %v777, %v777
  %vm810 = vcmask 125952
  %811 = vst.msk [vmem:[%s12] sm:$0xf] %vm810, %v778
  %812 = vst.msk [vmem:[%s12 + $0x4] sm:$0xf] %vm810, %v779
  %813 = vst.msk [vmem:[%s12 + $0x8] sm:$0xf] %vm810, %v780
  %814 = vst.msk [vmem:[%s12 + $0xc] sm:$0xf] %vm810, %v781
  %815 = vst.msk [vmem:[%s12 + $0x10] sm:$0xf] %vm810, %v782
  %816 = vst.msk [vmem:[%s12 + $0x14] sm:$0xf] %vm810, %v783
  %817 = vst.msk [vmem:[%s12 + $0x18] sm:$0xf] %vm810, %v784
  %818 = vst.msk [vmem:[%s12 + $0x1c] sm:$0xf] %vm810, %v785
  %819 = vst.msk [vmem:[%s12 + $0x20] sm:$0xf] %vm810, %v786
  %820 = vst.msk [vmem:[%s12 + $0x24] sm:$0xf] %vm810, %v787
  %821 = vst.msk [vmem:[%s12 + $0x28] sm:$0xf] %vm810, %v788
  %822 = vst.msk [vmem:[%s12 + $0x2c] sm:$0xf] %vm810, %v789
  %823 = vst.msk [vmem:[%s12 + $0x30] sm:$0xf] %vm810, %v790
  %824 = vst.msk [vmem:[%s12 + $0x34] sm:$0xf] %vm810, %v791
  %825 = vst.msk [vmem:[%s12 + $0x38] sm:$0xf] %vm810, %v792
  %826 = vst.msk [vmem:[%s12 + $0x3c] sm:$0xf] %vm810, %v793
  // Predicated region
  $region50: #{densenet_forward.19} parent=0 // pred_check
    _
  $region51: #{densenet_forward.19} parent=0 // pred_check_branch
    %828 = sbr.rel (0) target = $region53
  $region52: #{densenet_forward.19} parent=0 // pred_region
    _
  $region53: #{densenet_forward.19} parent=0 // pred_fallthru
    _
  // Predicated region
  $region54: #{densenet_forward.19} parent=0 // pred_check
    _
  $region55: #{densenet_forward.19} parent=0 // pred_check_branch
    %830 = sbr.rel (0) target = $region57
  $region56: #{densenet_forward.19} parent=0 // pred_region
    _
  $region57: #{densenet_forward.19} parent=0 // pred_fallthru
    _

// kernel: densenet_forward.16
$region0: #{densenet_forward.16}
  #allocation0 [shape = 'u32[]', space=smem, size = 0x4, offset = 0x4, fixed_abs, tag = 'smem constant byte address 0x4 - core index']
  #allocation1 [shape = 'u32[144,128]{1,0:T(1,128)}', space=vmem, size = 0x12000, scoped, tag = 'internal scratch']
  #allocation2 [shape = 'f32[222,16]{1,0:T(8,128)}', space=vmem, size = 0x1c000, scoped, tag = 'scratch operand']
  %s0 = inlined_call_operand.vmem [shape: bf16[300,16], index: 0, kind: input, shape index: {}]
  %s1 = inlined_call_operand.vmem [shape: f32[300,1], index: 1, kind: input, shape index: {}]
  %s2 = inlined_call_operand.vmem [shape: f32[1,16], index: 2, kind: input, shape index: {}]
  %s3 = inlined_call_operand.vmem [shape: f32[1,16], index: 3, kind: input, shape index: {}]
  %s4 = inlined_call_operand.vmem [shape: bf16[9,16,8], index: 4, kind: input, shape index: {}]
  %s5 = inlined_call_operand.vmem [shape: bf16[200,8], index: 5, kind: output, shape index: {}]
  %s6 = sld [smem:[#allocation0]]
  $region30: #{densenet_forward.16} parent=0
    _
  %s8 = ssub.s32 1, %s6
  %s9 = scalar_select 0, %s8, %s6
  // Predicated region
  $region2: #{densenet_forward.16} parent=0 // pred_check
    _
  $region3: #{densenet_forward.16} parent=0 // pred_check_branch
    %11 = sbr.rel (0) target = $region5
  $region4: #{densenet_forward.16} parent=0 // pred_region
    _
  $region5: #{densenet_forward.16} parent=0 // pred_fallthru
    _
  // Predicated region
  $region6: #{densenet_forward.16} parent=0 // pred_check
    _
  $region7: #{densenet_forward.16} parent=0 // pred_check_branch
    %13 = sbr.rel (0) target = $region9
  $region8: #{densenet_forward.16} parent=0 // pred_region
    _
  $region9: #{densenet_forward.16} parent=0 // pred_fallthru
    _
  // Predicated region
  $region10: #{densenet_forward.16} parent=0 // pred_check
    _
  $region11: #{densenet_forward.16} parent=0 // pred_check_branch
    %15 = sbr.rel (0) target = $region13
  $region12: #{densenet_forward.16} parent=0 // pred_region
    _
  $region13: #{densenet_forward.16} parent=0 // pred_fallthru
    _
  // Predicated region
  $region14: #{densenet_forward.16} parent=0 // pred_check
    _
  $region15: #{densenet_forward.16} parent=0 // pred_check_branch
    %17 = sbr.rel (0) target = $region17
  $region16: #{densenet_forward.16} parent=0 // pred_region
    _
  $region17: #{densenet_forward.16} parent=0 // pred_fallthru
    _
  // Predicated region
  $region18: #{densenet_forward.16} parent=0 // pred_check
    _
  $region19: #{densenet_forward.16} parent=0 // pred_check_branch
    %19 = sbr.rel (0) target = $region21
  $region20: #{densenet_forward.16} parent=0 // pred_region
    _
  $region21: #{densenet_forward.16} parent=0 // pred_fallthru
    _
  %s21 = smul.u32 0, 200
  %s22 = sshra.s32 %s21, 3
  %s23 = sand.u32 %s21, 7
  %s24 = smul.addr %s22, 4
  %s25 = scalar_lea.vmem %s0, %s24
  %v26 = vld [vmem:[%s25] sm:$0xf]
  %v27 = vld [vmem:[%s25 + $0x4] sm:$0xf]
  %v28 = vld [vmem:[%s25 + $0x8] sm:$0xf]
  %v29 = vld [vmem:[%s25 + $0xc] sm:$0xf]
  %v30 = vld [vmem:[%s25 + $0x10] sm:$0xf]
  %v31 = vld [vmem:[%s25 + $0x14] sm:$0xf]
  %v32 = vld [vmem:[%s25 + $0x18] sm:$0xf]
  %v33 = vld [vmem:[%s25 + $0x1c] sm:$0xf]
  %v34 = vld [vmem:[%s25 + $0x20] sm:$0xf]
  %v35 = vld [vmem:[%s25 + $0x24] sm:$0xf]
  %v36 = vld [vmem:[%s25 + $0x28] sm:$0xf]
  %v37 = vld [vmem:[%s25 + $0x2c] sm:$0xf]
  %v38 = vld [vmem:[%s25 + $0x30] sm:$0xf]
  %v39 = vld [vmem:[%s25 + $0x34] sm:$0xf]
  %v40 = vld [vmem:[%s25 + $0x38] sm:$0xf]
  %v41 = vld [vmem:[%s25 + $0x3c] sm:$0xf]
  %v42 = vld [vmem:[%s25 + $0x40] sm:$0xf]
  %v43 = vld [vmem:[%s25 + $0x44] sm:$0xf]
  %v44 = vld [vmem:[%s25 + $0x48] sm:$0xf]
  %v45 = vld [vmem:[%s25 + $0x4c] sm:$0xf]
  %v46 = vld [vmem:[%s25 + $0x50] sm:$0xf]
  %v47 = vld [vmem:[%s25 + $0x54] sm:$0xf]
  %v48 = vld [vmem:[%s25 + $0x58] sm:$0xf]
  %v49 = vld [vmem:[%s25 + $0x5c] sm:$0xf]
  %v50 = vld [vmem:[%s25 + $0x60] sm:$0xf]
  %v51 = vld [vmem:[%s25 + $0x64] sm:$0xf]
  %v52 = vld [vmem:[%s25 + $0x68] sm:$0xf]
  %v53 = vld [vmem:[%s25 + $0x6c] sm:$0x7]
  %v54 = vunpack.c.l.bf16 %v26
  %v55 = vunpack.c.l.bf16 %v27
  %v56 = vunpack.c.l.bf16 %v28
  %v57 = vunpack.c.l.bf16 %v29
  %v58 = vunpack.c.l.bf16 %v30
  %v59 = vunpack.c.l.bf16 %v31
  %v60 = vunpack.c.l.bf16 %v32
  %v61 = vunpack.c.l.bf16 %v33
  %v62 = vunpack.c.l.bf16 %v34
  %v63 = vunpack.c.l.bf16 %v35
  %v64 = vunpack.c.l.bf16 %v36
  %v65 = vunpack.c.l.bf16 %v37
  %v66 = vunpack.c.l.bf16 %v38
  %v67 = vunpack.c.l.bf16 %v39
  %v68 = vunpack.c.l.bf16 %v40
  %v69 = vunpack.c.l.bf16 %v41
  %v70 = vunpack.c.l.bf16 %v42
  %v71 = vunpack.c.l.bf16 %v43
  %v72 = vunpack.c.l.bf16 %v44
  %v73 = vunpack.c.l.bf16 %v45
  %v74 = vunpack.c.l.bf16 %v46
  %v75 = vunpack.c.l.bf16 %v47
  %v76 = vunpack.c.l.bf16 %v48
  %v77 = vunpack.c.l.bf16 %v49
  %v78 = vunpack.c.l.bf16 %v50
  %v79 = vunpack.c.l.bf16 %v51
  %v80 = vunpack.c.l.bf16 %v52
  %v81 = vunpack.c.l.bf16 %v53
  %s82 = scalar_lea.vmem %s1, %s21
  %v83 = vld [vmem:[%s82] sm:$0xff]
  %v84 = vld [vmem:[%s82 + $0x8] sm:$0xff]
  %v85 = vld [vmem:[%s82 + $0x10] sm:$0xff]
  %v86 = vld [vmem:[%s82 + $0x18] sm:$0xff]
  %v87 = vld [vmem:[%s82 + $0x20] sm:$0xff]
  %v88 = vld [vmem:[%s82 + $0x28] sm:$0xff]
  %v89 = vld [vmem:[%s82 + $0x30] sm:$0xff]
  %v90 = vld [vmem:[%s82 + $0x38] sm:$0xff]
  %v91 = vld [vmem:[%s82 + $0x40] sm:$0xff]
  %v92 = vld [vmem:[%s82 + $0x48] sm:$0xff]
  %v93 = vld [vmem:[%s82 + $0x50] sm:$0xff]
  %v94 = vld [vmem:[%s82 + $0x58] sm:$0xff]
  %v95 = vld [vmem:[%s82 + $0x60] sm:$0xff]
  %v96 = vld [vmem:[%s82 + $0x68] sm:$0xff]
  %v97 = vld [vmem:[%s82 + $0x70] sm:$0xff]
  %v98 = vld [vmem:[%s82 + $0x78] sm:$0xff]
  %v99 = vld [vmem:[%s82 + $0x80] sm:$0xff]
  %v100 = vld [vmem:[%s82 + $0x88] sm:$0xff]
  %v101 = vld [vmem:[%s82 + $0x90] sm:$0xff]
  %v102 = vld [vmem:[%s82 + $0x98] sm:$0xff]
  %v103 = vld [vmem:[%s82 + $0xa0] sm:$0xff]
  %v104 = vld [vmem:[%s82 + $0xa8] sm:$0xff]
  %v105 = vld [vmem:[%s82 + $0xb0] sm:$0xff]
  %v106 = vld [vmem:[%s82 + $0xb8] sm:$0xff]
  %v107 = vld [vmem:[%s82 + $0xc0] sm:$0xff]
  %v108 = vld [vmem:[%s82 + $0xc8] sm:$0xff]
  %v109 = vld [vmem:[%s82 + $0xd0] sm:$0xff]
  %v110 = vld [vmem:[%s82 + $0xd8] sm:$0x3f]
  %v111 = vld [vmem:[%s2] sm:$0x1]
  %v113 = vlaneseq
  %v114 = vshrl.u32 %v113, 7
  %v115 = vsub.s32 0, %v114
  %v116 = vrot.slane %v111, %v115
  %v118 = vmul.f32 %v54, %v116
  %v119 = vmul.f32 %v55, %v116
  %v120 = vmul.f32 %v56, %v116
  %v121 = vmul.f32 %v57, %v116
  %v122 = vmul.f32 %v58, %v116
  %v123 = vmul.f32 %v59, %v116
  %v124 = vmul.f32 %v60, %v116
  %v125 = vmul.f32 %v61, %v116
  %v126 = vmul.f32 %v62, %v116
  %v127 = vmul.f32 %v63, %v116
  %v128 = vmul.f32 %v64, %v116
  %v129 = vmul.f32 %v65, %v116
  %v130 = vmul.f32 %v66, %v116
  %v131 = vmul.f32 %v67, %v116
  %v132 = vmul.f32 %v68, %v116
  %v133 = vmul.f32 %v69, %v116
  %v134 = vmul.f32 %v70, %v116
  %v135 = vmul.f32 %v71, %v116
  %v136 = vmul.f32 %v72, %v116
  %v137 = vmul.f32 %v73, %v116
  %v138 = vmul.f32 %v74, %v116
  %v139 = vmul.f32 %v75, %v116
  %v140 = vmul.f32 %v76, %v116
  %v141 = vmul.f32 %v77, %v116
  %v142 = vmul.f32 %v78, %v116
  %v143 = vmul.f32 %v79, %v116
  %v144 = vmul.f32 %v80, %v116
  %v145 = vmul.f32 %v81, %v116
  %v146 = vld [vmem:[%s3] sm:$0x1]
  %v148 = vlaneseq
  %v149 = vshrl.u32 %v148, 7
  %v150 = vsub.s32 0, %v149
  %v151 = vrot.slane %v146, %v150
  %v153 = vadd.f32 %v118, %v151
  %v154 = vadd.f32 %v119, %v151
  %v155 = vadd.f32 %v120, %v151
  %v156 = vadd.f32 %v121, %v151
  %v157 = vadd.f32 %v122, %v151
  %v158 = vadd.f32 %v123, %v151
  %v159 = vadd.f32 %v124, %v151
  %v160 = vadd.f32 %v125, %v151
  %v161 = vadd.f32 %v126, %v151
  %v162 = vadd.f32 %v127, %v151
  %v163 = vadd.f32 %v128, %v151
  %v164 = vadd.f32 %v129, %v151
  %v165 = vadd.f32 %v130, %v151
  %v166 = vadd.f32 %v131, %v151
  %v167 = vadd.f32 %v132, %v151
  %v168 = vadd.f32 %v133, %v151
  %v169 = vadd.f32 %v134, %v151
  %v170 = vadd.f32 %v135, %v151
  %v171 = vadd.f32 %v136, %v151
  %v172 = vadd.f32 %v137, %v151
  %v173 = vadd.f32 %v138, %v151
  %v174 = vadd.f32 %v139, %v151
  %v175 = vadd.f32 %v140, %v151
  %v176 = vadd.f32 %v141, %v151
  %v177 = vadd.f32 %v142, %v151
  %v178 = vadd.f32 %v143, %v151
  %v179 = vadd.f32 %v144, %v151
  %v180 = vadd.f32 %v145, %v151
  %v181 = vmax.f32 %v153, 0.0
  %v182 = vmax.f32 %v154, 0.0
  %v183 = vmax.f32 %v155, 0.0
  %v184 = vmax.f32 %v156, 0.0
  %v185 = vmax.f32 %v157, 0.0
  %v186 = vmax.f32 %v158, 0.0
  %v187 = vmax.f32 %v159, 0.0
  %v188 = vmax.f32 %v160, 0.0
  %v189 = vmax.f32 %v161, 0.0
  %v190 = vmax.f32 %v162, 0.0
  %v191 = vmax.f32 %v163, 0.0
  %v192 = vmax.f32 %v164, 0.0
  %v193 = vmax.f32 %v165, 0.0
  %v194 = vmax.f32 %v166, 0.0
  %v195 = vmax.f32 %v167, 0.0
  %v196 = vmax.f32 %v168, 0.0
  %v197 = vmax.f32 %v169, 0.0
  %v198 = vmax.f32 %v170, 0.0
  %v199 = vmax.f32 %v171, 0.0
  %v200 = vmax.f32 %v172, 0.0
  %v201 = vmax.f32 %v173, 0.0
  %v202 = vmax.f32 %v174, 0.0
  %v203 = vmax.f32 %v175, 0.0
  %v204 = vmax.f32 %v176, 0.0
  %v205 = vmax.f32 %v177, 0.0
  %v206 = vmax.f32 %v178, 0.0
  %v207 = vmax.f32 %v179, 0.0
  %v208 = vmax.f32 %v180, 0.0
  %210 = vset.pattern.permute.xlu0 0
  %211 = vperm.xlu0 %210, %v83
  %v212 = vpop.permute.xlu0 %211
  %215 = vset.pattern.permute.xlu0 0
  %216 = vperm.xlu0 %215, %v84
  %v217 = vpop.permute.xlu0 %216
  %220 = vset.pattern.permute.xlu0 0
  %221 = vperm.xlu0 %220, %v85
  %v222 = vpop.permute.xlu0 %221
  %225 = vset.pattern.permute.xlu0 0
  %226 = vperm.xlu0 %225, %v86
  %v227 = vpop.permute.xlu0 %226
  %230 = vset.pattern.permute.xlu0 0
  %231 = vperm.xlu0 %230, %v87
  %v232 = vpop.permute.xlu0 %231
  %235 = vset.pattern.permute.xlu0 0
  %236 = vperm.xlu0 %235, %v88
  %v237 = vpop.permute.xlu0 %236
  %240 = vset.pattern.permute.xlu0 0
  %241 = vperm.xlu0 %240, %v89
  %v242 = vpop.permute.xlu0 %241
  %245 = vset.pattern.permute.xlu0 0
  %246 = vperm.xlu0 %245, %v90
  %v247 = vpop.permute.xlu0 %246
  %250 = vset.pattern.permute.xlu0 0
  %251 = vperm.xlu0 %250, %v91
  %v252 = vpop.permute.xlu0 %251
  %255 = vset.pattern.permute.xlu0 0
  %256 = vperm.xlu0 %255, %v92
  %v257 = vpop.permute.xlu0 %256
  %260 = vset.pattern.permute.xlu0 0
  %261 = vperm.xlu0 %260, %v93
  %v262 = vpop.permute.xlu0 %261
  %265 = vset.pattern.permute.xlu0 0
  %266 = vperm.xlu0 %265, %v94
  %v267 = vpop.permute.xlu0 %266
  %270 = vset.pattern.permute.xlu0 0
  %271 = vperm.xlu0 %270, %v95
  %v272 = vpop.permute.xlu0 %271
  %275 = vset.pattern.permute.xlu0 0
  %276 = vperm.xlu0 %275, %v96
  %v277 = vpop.permute.xlu0 %276
  %280 = vset.pattern.permute.xlu0 0
  %281 = vperm.xlu0 %280, %v97
  %v282 = vpop.permute.xlu0 %281
  %285 = vset.pattern.permute.xlu0 0
  %286 = vperm.xlu0 %285, %v98
  %v287 = vpop.permute.xlu0 %286
  %290 = vset.pattern.permute.xlu0 0
  %291 = vperm.xlu0 %290, %v99
  %v292 = vpop.permute.xlu0 %291
  %295 = vset.pattern.permute.xlu0 0
  %296 = vperm.xlu0 %295, %v100
  %v297 = vpop.permute.xlu0 %296
  %300 = vset.pattern.permute.xlu0 0
  %301 = vperm.xlu0 %300, %v101
  %v302 = vpop.permute.xlu0 %301
  %305 = vset.pattern.permute.xlu0 0
  %306 = vperm.xlu0 %305, %v102
  %v307 = vpop.permute.xlu0 %306
  %310 = vset.pattern.permute.xlu0 0
  %311 = vperm.xlu0 %310, %v103
  %v312 = vpop.permute.xlu0 %311
  %315 = vset.pattern.permute.xlu0 0
  %316 = vperm.xlu0 %315, %v104
  %v317 = vpop.permute.xlu0 %316
  %320 = vset.pattern.permute.xlu0 0
  %321 = vperm.xlu0 %320, %v105
  %v322 = vpop.permute.xlu0 %321
  %325 = vset.pattern.permute.xlu0 0
  %326 = vperm.xlu0 %325, %v106
  %v327 = vpop.permute.xlu0 %326
  %330 = vset.pattern.permute.xlu0 0
  %331 = vperm.xlu0 %330, %v107
  %v332 = vpop.permute.xlu0 %331
  %335 = vset.pattern.permute.xlu0 0
  %336 = vperm.xlu0 %335, %v108
  %v337 = vpop.permute.xlu0 %336
  %340 = vset.pattern.permute.xlu0 0
  %341 = vperm.xlu0 %340, %v109
  %v342 = vpop.permute.xlu0 %341
  %345 = vset.pattern.permute.xlu0 0
  %346 = vperm.xlu0 %345, %v110
  %v347 = vpop.permute.xlu0 %346
  %v349 = vmul.f32 %v181, %v212
  %v350 = vmul.f32 %v182, %v217
  %v351 = vmul.f32 %v183, %v222
  %v352 = vmul.f32 %v184, %v227
  %v353 = vmul.f32 %v185, %v232
  %v354 = vmul.f32 %v186, %v237
  %v355 = vmul.f32 %v187, %v242
  %v356 = vmul.f32 %v188, %v247
  %v357 = vmul.f32 %v189, %v252
  %v358 = vmul.f32 %v190, %v257
  %v359 = vmul.f32 %v191, %v262
  %v360 = vmul.f32 %v192, %v267
  %v361 = vmul.f32 %v193, %v272
  %v362 = vmul.f32 %v194, %v277
  %v363 = vmul.f32 %v195, %v282
  %v364 = vmul.f32 %v196, %v287
  %v365 = vmul.f32 %v197, %v292
  %v366 = vmul.f32 %v198, %v297
  %v367 = vmul.f32 %v199, %v302
  %v368 = vmul.f32 %v200, %v307
  %v369 = vmul.f32 %v201, %v312
  %v370 = vmul.f32 %v202, %v317
  %v371 = vmul.f32 %v203, %v322
  %v372 = vmul.f32 %v204, %v327
  %v373 = vmul.f32 %v205, %v332
  %v374 = vmul.f32 %v206, %v337
  %v375 = vmul.f32 %v207, %v342
  %v376 = vmul.f32 %v208, %v347
  %vm377 = vcmask 130048
  %378 = vst.msk [vmem:[#allocation2] sm:$0xff] %vm377, %v349
  %379 = vst.msk [vmem:[#allocation2 + $0x8] sm:$0xff] %vm377, %v350
  %380 = vst.msk [vmem:[#allocation2 + $0x10] sm:$0xff] %vm377, %v351
  %381 = vst.msk [vmem:[#allocation2 + $0x18] sm:$0xff] %vm377, %v352
  %382 = vst.msk [vmem:[#allocation2 + $0x20] sm:$0xff] %vm377, %v353
  %383 = vst.msk [vmem:[#allocation2 + $0x28] sm:$0xff] %vm377, %v354
  %384 = vst.msk [vmem:[#allocation2 + $0x30] sm:$0xff] %vm377, %v355
  %385 = vst.msk [vmem:[#allocation2 + $0x38] sm:$0xff] %vm377, %v356
  %386 = vst.msk [vmem:[#allocation2 + $0x40] sm:$0xff] %vm377, %v357
  %387 = vst.msk [vmem:[#allocation2 + $0x48] sm:$0xff] %vm377, %v358
  %388 = vst.msk [vmem:[#allocation2 + $0x50] sm:$0xff] %vm377, %v359
  %389 = vst.msk [vmem:[#allocation2 + $0x58] sm:$0xff] %vm377, %v360
  %390 = vst.msk [vmem:[#allocation2 + $0x60] sm:$0xff] %vm377, %v361
  %391 = vst.msk [vmem:[#allocation2 + $0x68] sm:$0xff] %vm377, %v362
  %392 = vst.msk [vmem:[#allocation2 + $0x70] sm:$0xff] %vm377, %v363
  %393 = vst.msk [vmem:[#allocation2 + $0x78] sm:$0xff] %vm377, %v364
  %394 = vst.msk [vmem:[#allocation2 + $0x80] sm:$0xff] %vm377, %v365
  %395 = vst.msk [vmem:[#allocation2 + $0x88] sm:$0xff] %vm377, %v366
  %396 = vst.msk [vmem:[#allocation2 + $0x90] sm:$0xff] %vm377, %v367
  %397 = vst.msk [vmem:[#allocation2 + $0x98] sm:$0xff] %vm377, %v368
  %398 = vst.msk [vmem:[#allocation2 + $0xa0] sm:$0xff] %vm377, %v369
  %399 = vst.msk [vmem:[#allocation2 + $0xa8] sm:$0xff] %vm377, %v370
  %400 = vst.msk [vmem:[#allocation2 + $0xb0] sm:$0xff] %vm377, %v371
  %401 = vst.msk [vmem:[#allocation2 + $0xb8] sm:$0xff] %vm377, %v372
  %402 = vst.msk [vmem:[#allocation2 + $0xc0] sm:$0xff] %vm377, %v373
  %403 = vst.msk [vmem:[#allocation2 + $0xc8] sm:$0xff] %vm377, %v374
  %404 = vst.msk [vmem:[#allocation2 + $0xd0] sm:$0xff] %vm377, %v375
  %vm405 = vcmask 128000
  %406 = vst.msk [vmem:[#allocation2 + $0xd8] sm:$0x3f] %vm405, %v376
  %v407 = vld [vmem:[#allocation2] sm:$0xff]
  %v408 = vld [vmem:[#allocation2 + $0x8] sm:$0xff]
  %v409 = vld [vmem:[#allocation2 + $0x10] sm:$0xff]
  %v410 = vld [vmem:[#allocation2 + $0x18] sm:$0xff]
  %v411 = vld [vmem:[#allocation2 + $0x20] sm:$0xff]
  %v412 = vld [vmem:[#allocation2 + $0x28] sm:$0xff]
  %v413 = vld [vmem:[#allocation2 + $0x30] sm:$0xff]
  %v414 = vld [vmem:[#allocation2 + $0x38] sm:$0xff]
  %v415 = vld [vmem:[#allocation2 + $0x40] sm:$0xff]
  %v416 = vld [vmem:[#allocation2 + $0x48] sm:$0xff]
  %v417 = vld [vmem:[#allocation2 + $0x50] sm:$0xff]
  %v418 = vld [vmem:[#allocation2 + $0x58] sm:$0xff]
  %v419 = vld [vmem:[#allocation2 + $0x60] sm:$0xff]
  %v420 = vld [vmem:[#allocation2 + $0x68] sm:$0xff]
  %v421 = vld [vmem:[#allocation2 + $0x70] sm:$0xff]
  %v422 = vld [vmem:[#allocation2 + $0x78] sm:$0xff]
  %v423 = vld [vmem:[#allocation2 + $0x80] sm:$0xff]
  %v424 = vld [vmem:[#allocation2 + $0x88] sm:$0xff]
  %v425 = vld [vmem:[#allocation2 + $0x90] sm:$0xff]
  %v426 = vld [vmem:[#allocation2 + $0x98] sm:$0xff]
  %v427 = vld [vmem:[#allocation2 + $0xa0] sm:$0xff]
  %v428 = vld [vmem:[#allocation2 + $0xa8] sm:$0xff]
  %v429 = vld [vmem:[#allocation2 + $0xb0] sm:$0xff]
  %v430 = vld [vmem:[#allocation2 + $0xb8] sm:$0xff]
  %v431 = vld [vmem:[#allocation2 + $0xc0] sm:$0xff]
  %v432 = vpack.c.bf16 %v408, %v407
  %v433 = vpack.c.bf16 %v410, %v409
  %v434 = vpack.c.bf16 %v412, %v411
  %v435 = vpack.c.bf16 %v414, %v413
  %v436 = vpack.c.bf16 %v416, %v415
  %v437 = vpack.c.bf16 %v418, %v417
  %v438 = vpack.c.bf16 %v420, %v419
  %v439 = vpack.c.bf16 %v422, %v421
  %v440 = vpack.c.bf16 %v424, %v423
  %v441 = vpack.c.bf16 %v426, %v425
  %v442 = vpack.c.bf16 %v428, %v427
  %v443 = vpack.c.bf16 %v430, %v429
  %v444 = vpack.c.bf16 %v431, %v431
  %v445 = vld [vmem:[%s4] sm:$0xf]
  %v446 = vld [vmem:[%s4 + $0x4] sm:$0xf]
  %v447 = vld [vmem:[#allocation2 + $0x1] sm:$0xff]
  %v448 = vld [vmem:[#allocation2 + $0x9] sm:$0xff]
  %v449 = vld [vmem:[#allocation2 + $0x11] sm:$0xff]
  %v450 = vld [vmem:[#allocation2 + $0x19] sm:$0xff]
  %v451 = vld [vmem:[#allocation2 + $0x21] sm:$0xff]
  %v452 = vld [vmem:[#allocation2 + $0x29] sm:$0xff]
  %v453 = vld [vmem:[#allocation2 + $0x31] sm:$0xff]
  %v454 = vld [vmem:[#allocation2 + $0x39] sm:$0xff]
  %v455 = vld [vmem:[#allocation2 + $0x41] sm:$0xff]
  %v456 = vld [vmem:[#allocation2 + $0x49] sm:$0xff]
  %v457 = vld [vmem:[#allocation2 + $0x51] sm:$0xff]
  %v458 = vld [vmem:[#allocation2 + $0x59] sm:$0xff]
  %v459 = vld [vmem:[#allocation2 + $0x61] sm:$0xff]
  %v460 = vld [vmem:[#allocation2 + $0x69] sm:$0xff]
  %v461 = vld [vmem:[#allocation2 + $0x71] sm:$0xff]
  %v462 = vld [vmem:[#allocation2 + $0x79] sm:$0xff]
  %v463 = vld [vmem:[#allocation2 + $0x81] sm:$0xff]
  %v464 = vld [vmem:[#allocation2 + $0x89] sm:$0xff]
  %v465 = vld [vmem:[#allocation2 + $0x91] sm:$0xff]
  %v466 = vld [vmem:[#allocation2 + $0x99] sm:$0xff]
  %v467 = vld [vmem:[#allocation2 + $0xa1] sm:$0xff]
  %v468 = vld [vmem:[#allocation2 + $0xa9] sm:$0xff]
  %v469 = vld [vmem:[#allocation2 + $0xb1] sm:$0xff]
  %v470 = vld [vmem:[#allocation2 + $0xb9] sm:$0xff]
  %v471 = vld [vmem:[#allocation2 + $0xc1] sm:$0xff]
  %v472 = vpack.c.bf16 %v448, %v447
  %v473 = vpack.c.bf16 %v450, %v449
  %v474 = vpack.c.bf16 %v452, %v451
  %v475 = vpack.c.bf16 %v454, %v453
  %v476 = vpack.c.bf16 %v456, %v455
  %v477 = vpack.c.bf16 %v458, %v457
  %v478 = vpack.c.bf16 %v460, %v459
  %v479 = vpack.c.bf16 %v462, %v461
  %v480 = vpack.c.bf16 %v464, %v463
  %v481 = vpack.c.bf16 %v466, %v465
  %v482 = vpack.c.bf16 %v468, %v467
  %v483 = vpack.c.bf16 %v470, %v469
  %v484 = vpack.c.bf16 %v471, %v471
  %s485 = scalar_lea.vmem %s4, 8
  %v486 = vld [vmem:[%s485] sm:$0xf]
  %v487 = vld [vmem:[%s485 + $0x4] sm:$0xf]
  %v490 = vunpack.c.l.b16 %v486
  %v491 = vunpack.c.l.b16 %v487
  %v492 = vpack.c.b16 %v491, %v490
  %v495 = vsel %vm377, %v472, 0
  %v498 = vsel %vm377, %v473, 0
  %v501 = vsel %vm377, %v474, 0
  %v504 = vsel %vm377, %v475, 0
  %v507 = vsel %vm377, %v476, 0
  %v510 = vsel %vm377, %v477, 0
  %v513 = vsel %vm377, %v478, 0
  %v516 = vsel %vm377, %v479, 0
  %v519 = vsel %vm377, %v480, 0
  %v522 = vsel %vm377, %v481, 0
  %v525 = vsel %vm377, %v482, 0
  %v528 = vsel %vm377, %v483, 0
  %v531 = vsel %vm377, %v484, 0
  %533 = vmatprep.subr.bf16.mxu0 0
  %534 = vmatpush1.bf16.msra.mxu0 %v492
  %535 = vmatprep.subr.bf16.mxu0 0
  %536 = vmatpush1.bf16.msra.mxu0 0
  %537 = vmatprep.subr.bf16.mxu0 0
  %538 = vmatpush1.bf16.msra.mxu0 0
  %539 = vmatprep.subr.bf16.mxu0 0
  %540 = vmatpush1.bf16.msra.mxu0 0
  %541 = vmatprep.subr.bf16.mxu0 0
  %542 = vmatpush1.bf16.msra.mxu0 0
  %543 = vmatprep.subr.bf16.mxu0 0
  %544 = vmatpush1.bf16.msra.mxu0 0
  %545 = vmatprep.subr.bf16.mxu0 0
  %546 = vmatpush1.bf16.msra.mxu0 0
  %547 = vmatprep.subr.bf16.mxu0 0
  %548 = vmatpush1.bf16.msra.mxu0 0
  %549 = vmatprep.subr.bf16.mxu0 0
  %550 = vmatpush1.bf16.msra.mxu0 0
  %551 = vmatprep.subr.bf16.mxu0 0
  %552 = vmatpush1.bf16.msra.mxu0 0
  %553 = vmatprep.subr.bf16.mxu0 0
  %554 = vmatpush1.bf16.msra.mxu0 0
  %555 = vmatprep.subr.bf16.mxu0 0
  %556 = vmatpush1.bf16.msra.mxu0 0
  %557 = vmatprep.subr.bf16.mxu0 0
  %558 = vmatpush1.bf16.msra.mxu0 0
  %559 = vmatprep.subr.bf16.mxu0 0
  %560 = vmatpush1.bf16.msra.mxu0 0
  %561 = vmatprep.subr.bf16.mxu0 0
  %562 = vmatpush1.bf16.msra.mxu0 0
  %563 = vmatprep.subr.bf16.mxu0 0
  %564 = vmatpush1.bf16.msra.mxu0 0
  %565 = vmatprep.mubr.bf16.mxu0 0
  %566 = vmatmul.mubr.bf16.gmra.mrb[0].mxu0 %v495
  %v567 = vpop.f32.mrb[0].mxu0
  %v568 = vadd.f32 0.0, %v567
  %v569 = vpop.f32.mrb[0].mxu0
  %v570 = vpop.f32.mrb[0].mxu0
  %v571 = vadd.f32 0.0, %v570
  %v572 = vpop.f32.mrb[0].mxu0
  %573 = vmatprep.mubr.bf16.mxu0 0
  %574 = vmatmul.mubr.bf16.gmra.mrb[0].mxu0 %v498
  %v575 = vpop.f32.mrb[0].mxu0
  %v576 = vadd.f32 0.0, %v575
  %v577 = vpop.f32.mrb[0].mxu0
  %v578 = vpop.f32.mrb[0].mxu0
  %v579 = vadd.f32 0.0, %v578
  %v580 = vpop.f32.mrb[0].mxu0
  %581 = vmatprep.mubr.bf16.mxu0 0
  %582 = vmatmul.mubr.bf16.gmra.mrb[0].mxu0 %v501
  %v583 = vpop.f32.mrb[0].mxu0
  %v584 = vadd.f32 0.0, %v583
  %v585 = vpop.f32.mrb[0].mxu0
  %v586 = vpop.f32.mrb[0].mxu0
  %v587 = vadd.f32 0.0, %v586
  %v588 = vpop.f32.mrb[0].mxu0
  %589 = vmatprep.mubr.bf16.mxu0 0
  %590 = vmatmul.mubr.bf16.gmra.mrb[0].mxu0 %v504
  %v591 = vpop.f32.mrb[0].mxu0
  %v592 = vadd.f32 0.0, %v591
  %v593 = vpop.f32.mrb[0].mxu0
  %v594 = vpop.f32.mrb[0].mxu0
  %v595 = vadd.f32 0.0, %v594
  %v596 = vpop.f32.mrb[0].mxu0
  %597 = vmatprep.mubr.bf16.mxu0 0
  %598 = vmatmul.mubr.bf16.gmra.mrb[0].mxu0 %v507
  %v599 = vpop.f32.mrb[0].mxu0
  %v600 = vadd.f32 0.0, %v599
  %v601 = vpop.f32.mrb[0].mxu0
  %v602 = vpop.f32.mrb[0].mxu0
  %v603 = vadd.f32 0.0, %v602
  %v604 = vpop.f32.mrb[0].mxu0
  %605 = vmatprep.mubr.bf16.mxu0 0
  %606 = vmatmul.mubr.bf16.gmra.mrb[0].mxu0 %v510
  %v607 = vpop.f32.mrb[0].mxu0
  %v608 = vadd.f32 0.0, %v607
  %v609 = vpop.f32.mrb[0].mxu0
  %v610 = vpop.f32.mrb[0].mxu0
  %v611 = vadd.f32 0.0, %v610
  %v612 = vpop.f32.mrb[0].mxu0
  %613 = vmatprep.mubr.bf16.mxu0 0
  %614 = vmatmul.mubr.bf16.gmra.mrb[0].mxu0 %v513
  %v615 = vpop.f32.mrb[0].mxu0
  %v616 = vadd.f32 0.0, %v615
  %v617 = vpop.f32.mrb[0].mxu0
  %v618 = vpop.f32.mrb[0].mxu0
  %v619 = vadd.f32 0.0, %v618
  %v620 = vpop.f32.mrb[0].mxu0
  %621 = vmatprep.mubr.bf16.mxu0 0
  %622 = vmatmul.mubr.bf16.gmra.mrb[0].mxu0 %v516
  %v623 = vpop.f32.mrb[0].mxu0
  %v624 = vadd.f32 0.0, %v623
  %v625 = vpop.f32.mrb[0].mxu0
  %v626 = vpop.f32.mrb[0].mxu0
  %v627 = vadd.f32 0.0, %v626
  %v628 = vpop.f32.mrb[0].mxu0
  %629 = vmatprep.mubr.bf16.mxu0 0
  %630 = vmatmul.mubr.bf16.gmra.mrb[0].mxu0 %v519
  %v631 = vpop.f32.mrb[0].mxu0
  %v632 = vadd.f32 0.0, %v631
  %v633 = vpop.f32.mrb[0].mxu0
  %v634 = vpop.f32.mrb[0].mxu0
  %v635 = vadd.f32 0.0, %v634
  %v636 = vpop.f32.mrb[0].mxu0
  %637 = vmatprep.mubr.bf16.mxu0 0
  %638 = vmatmul.mubr.bf16.gmra.mrb[0].mxu0 %v522
  %v639 = vpop.f32.mrb[0].mxu0
  %v640 = vadd.f32 0.0, %v639
  %v641 = vpop.f32.mrb[0].mxu0
  %v642 = vpop.f32.mrb[0].mxu0
  %v643 = vadd.f32 0.0, %v642
  %v644 = vpop.f32.mrb[0].mxu0
  %645 = vmatprep.mubr.bf16.mxu0 0
  %646 = vmatmul.mubr.bf16.gmra.mrb[0].mxu0 %v525
  %v647 = vpop.f32.mrb[0].mxu0
  %v648 = vadd.f32 0.0, %v647
  %v649 = vpop.f32.mrb[0].mxu0
  %v650 = vpop.f32.mrb[0].mxu0
  %v651 = vadd.f32 0.0, %v650
  %v652 = vpop.f32.mrb[0].mxu0
  %653 = vmatprep.mubr.bf16.mxu0 0
  %654 = vmatmul.mubr.bf16.gmra.mrb[0].mxu0 %v528
  %v655 = vpop.f32.mrb[0].mxu0
  %v656 = vadd.f32 0.0, %v655
  %v657 = vpop.f32.mrb[0].mxu0
  %v658 = vpop.f32.mrb[0].mxu0
  %v659 = vadd.f32 0.0, %v658
  %v660 = vpop.f32.mrb[0].mxu0
  %661 = vmatprep.mubr.bf16.mxu0 0
  %662 = vmatmul.mubr.bf16.gmra.mrb[0].mxu0 %v531
  %v663 = vpop.f32.mrb[0].mxu0
  %v664 = vadd.f32 0.0, %v663
  %v665 = vpop.f32.mrb[0].mxu0
  %v666 = vpop.f32.mrb[0].mxu0
  %v667 = vpop.f32.mrb[0].mxu0
  %668 = vdwg.mxu0
  %v671 = vunpack.c.l.b16 %v445
  %v672 = vunpack.c.l.b16 %v446
  %v673 = vpack.c.b16 %v672, %v671
  %v676 = vsel %vm377, %v432, 0
  %v679 = vsel %vm377, %v433, 0
  %v682 = vsel %vm377, %v434, 0
  %v685 = vsel %vm377, %v435, 0
  %v688 = vsel %vm377, %v436, 0
  %v691 = vsel %vm377, %v437, 0
  %v694 = vsel %vm377, %v438, 0
  %v697 = vsel %vm377, %v439, 0
  %v700 = vsel %vm377, %v440, 0
  %v703 = vsel %vm377, %v441, 0
  %v706 = vsel %vm377, %v442, 0
  %v709 = vsel %vm377, %v443, 0
  %v712 = vsel %vm377, %v444, 0
  %714 = vmatprep.subr.bf16.mxu0 0
  %715 = vmatpush1.bf16.msra.mxu0 %v673
  %716 = vmatprep.subr.bf16.mxu0 0
  %717 = vmatpush1.bf16.msra.mxu0 0
  %718 = vmatprep.subr.bf16.mxu0 0
  %719 = vmatpush1.bf16.msra.mxu0 0
  %720 = vmatprep.subr.bf16.mxu0 0
  %721 = vmatpush1.bf16.msra.mxu0 0
  %722 = vmatprep.subr.bf16.mxu0 0
  %723 = vmatpush1.bf16.msra.mxu0 0
  %724 = vmatprep.subr.bf16.mxu0 0
  %725 = vmatpush1.bf16.msra.mxu0 0
  %726 = vmatprep.subr.bf16.mxu0 0
  %727 = vmatpush1.bf16.msra.mxu0 0
  %728 = vmatprep.subr.bf16.mxu0 0
  %729 = vmatpush1.bf16.msra.mxu0 0
  %730 = vmatprep.subr.bf16.mxu0 0
  %731 = vmatpush1.bf16.msra.mxu0 0
  %732 = vmatprep.subr.bf16.mxu0 0
  %733 = vmatpush1.bf16.msra.mxu0 0
  %734 = vmatprep.subr.bf16.mxu0 0
  %735 = vmatpush1.bf16.msra.mxu0 0
  %736 = vmatprep.subr.bf16.mxu0 0
  %737 = vmatpush1.bf16.msra.mxu0 0
  %738 = vmatprep.subr.bf16.mxu0 0
  %739 = vmatpush1.bf16.msra.mxu0 0
  %740 = vmatprep.subr.bf16.mxu0 0
  %741 = vmatpush1.bf16.msra.mxu0 0
  %742 = vmatprep.subr.bf16.mxu0 0
  %743 = vmatpush1.bf16.msra.mxu0 0
  %744 = vmatprep.subr.bf16.mxu0 0
  %745 = vmatpush1.bf16.msra.mxu0 0
  %746 = vmatprep.mubr.bf16.mxu0 0
  %747 = vmatmul.mubr.bf16.gmra.mrb[0].mxu0 %v676
  %v748 = vpop.f32.mrb[0].mxu0
  %v749 = vadd.f32 %v568, %v748
  %v750 = vpop.f32.mrb[0].mxu0
  %v751 = vpop.f32.mrb[0].mxu0
  %v752 = vadd.f32 %v571, %v751
  %v753 = vpop.f32.mrb[0].mxu0
  %754 = vmatprep.mubr.bf16.mxu0 0
  %755 = vmatmul.mubr.bf16.gmra.mrb[0].mxu0 %v679
  %v756 = vpop.f32.mrb[0].mxu0
  %v757 = vadd.f32 %v576, %v756
  %v758 = vpop.f32.mrb[0].mxu0
  %v759 = vpop.f32.mrb[0].mxu0
  %v760 = vadd.f32 %v579, %v759
  %v761 = vpop.f32.mrb[0].mxu0
  %762 = vmatprep.mubr.bf16.mxu0 0
  %763 = vmatmul.mubr.bf16.gmra.mrb[0].mxu0 %v682
  %v764 = vpop.f32.mrb[0].mxu0
  %v765 = vadd.f32 %v584, %v764
  %v766 = vpop.f32.mrb[0].mxu0
  %v767 = vpop.f32.mrb[0].mxu0
  %v768 = vadd.f32 %v587, %v767
  %v769 = vpop.f32.mrb[0].mxu0
  %770 = vmatprep.mubr.bf16.mxu0 0
  %771 = vmatmul.mubr.bf16.gmra.mrb[0].mxu0 %v685
  %v772 = vpop.f32.mrb[0].mxu0
  %v773 = vadd.f32 %v592, %v772
  %v774 = vpop.f32.mrb[0].mxu0
  %v775 = vpop.f32.mrb[0].mxu0
  %v776 = vadd.f32 %v595, %v775
  %v777 = vpop.f32.mrb[0].mxu0
  %778 = vmatprep.mubr.bf16.mxu0 0
  %779 = vmatmul.mubr.bf16.gmra.mrb[0].mxu0 %v688
  %v780 = vpop.f32.mrb[0].mxu0
  %v781 = vadd.f32 %v600, %v780
  %v782 = vpop.f32.mrb[0].mxu0
  %v783 = vpop.f32.mrb[0].mxu0
  %v784 = vadd.f32 %v603, %v783
  %v785 = vpop.f32.mrb[0].mxu0
  %786 = vmatprep.mubr.bf16.mxu0 0
  %787 = vmatmul.mubr.bf16.gmra.mrb[0].mxu0 %v691
  %v788 = vpop.f32.mrb[0].mxu0
  %v789 = vadd.f32 %v608, %v788
  %v790 = vpop.f32.mrb[0].mxu0
  %v791 = vpop.f32.mrb[0].mxu0
  %v792 = vadd.f32 %v611, %v791
  %v793 = vpop.f32.mrb[0].mxu0
  %794 = vmatprep.mubr.bf16.mxu0 0
  %795 = vmatmul.mubr.bf16.gmra.mrb[0].mxu0 %v694
  %v796 = vpop.f32.mrb[0].mxu0
  %v797 = vadd.f32 %v616, %v796
  %v798 = vpop.f32.mrb[0].mxu0
  %v799 = vpop.f32.mrb[0].mxu0
  %v800 = vadd.f32 %v619, %v799
  %v801 = vpop.f32.mrb[0].mxu0
  %802 = vmatprep.mubr.bf16.mxu0 0
  %803 = vmatmul.mubr.bf16.gmra.mrb[0].mxu0 %v697
  %v804 = vpop.f32.mrb[0].mxu0
  %v805 = vadd.f32 %v624, %v804
  %v806 = vpop.f32.mrb[0].mxu0
  %v807 = vpop.f32.mrb[0].mxu0
  %v808 = vadd.f32 %v627, %v807
  %v809 = vpop.f32.mrb[0].mxu0
  %810 = vmatprep.mubr.bf16.mxu0 0
  %811 = vmatmul.mubr.bf16.gmra.mrb[0].mxu0 %v700
  %v812 = vpop.f32.mrb[0].mxu0
  %v813 = vadd.f32 %v632, %v812
  %v814 = vpop.f32.mrb[0].mxu0
  %v815 = vpop.f32.mrb[0].mxu0
  %v816 = vadd.f32 %v635, %v815
  %v817 = vpop.f32.mrb[0].mxu0
  %818 = vmatprep.mubr.bf16.mxu0 0
  %819 = vmatmul.mubr.bf16.gmra.mrb[0].mxu0 %v703
  %v820 = vpop.f32.mrb[0].mxu0
  %v821 = vadd.f32 %v640, %v820
  %v822 = vpop.f32.mrb[0].mxu0
  %v823 = vpop.f32.mrb[0].mxu0
  %v824 = vadd.f32 %v643, %v823
  %v825 = vpop.f32.mrb[0].mxu0
  %826 = vmatprep.mubr.bf16.mxu0 0
  %827 = vmatmul.mubr.bf16.gmra.mrb[0].mxu0 %v706
  %v828 = vpop.f32.mrb[0].mxu0
  %v829 = vadd.f32 %v648, %v828
  %v830 = vpop.f32.mrb[0].mxu0
  %v831 = vpop.f32.mrb[0].mxu0
  %v832 = vadd.f32 %v651, %v831
  %v833 = vpop.f32.mrb[0].mxu0
  %834 = vmatprep.mubr.bf16.mxu0 0
  %835 = vmatmul.mubr.bf16.gmra.mrb[0].mxu0 %v709
  %v836 = vpop.f32.mrb[0].mxu0
  %v837 = vadd.f32 %v656, %v836
  %v838 = vpop.f32.mrb[0].mxu0
  %v839 = vpop.f32.mrb[0].mxu0
  %v840 = vadd.f32 %v659, %v839
  %v841 = vpop.f32.mrb[0].mxu0
  %842 = vmatprep.mubr.bf16.mxu0 0
  %843 = vmatmul.mubr.bf16.gmra.mrb[0].mxu0 %v712
  %v844 = vpop.f32.mrb[0].mxu0
  %v845 = vadd.f32 %v664, %v844
  %v846 = vpop.f32.mrb[0].mxu0
  %v847 = vpop.f32.mrb[0].mxu0
  %v848 = vpop.f32.mrb[0].mxu0
  %849 = vdwg.mxu0
  %v850 = vld [vmem:[#allocation2 + $0x2] sm:$0xff]
  %v851 = vld [vmem:[#allocation2 + $0xa] sm:$0xff]
  %v852 = vld [vmem:[#allocation2 + $0x12] sm:$0xff]
  %v853 = vld [vmem:[#allocation2 + $0x1a] sm:$0xff]
  %v854 = vld [vmem:[#allocation2 + $0x22] sm:$0xff]
  %v855 = vld [vmem:[#allocation2 + $0x2a] sm:$0xff]
  %v856 = vld [vmem:[#allocation2 + $0x32] sm:$0xff]
  %v857 = vld [vmem:[#allocation2 + $0x3a] sm:$0xff]
  %v858 = vld [vmem:[#allocation2 + $0x42] sm:$0xff]
  %v859 = vld [vmem:[#allocation2 + $0x4a] sm:$0xff]
  %v860 = vld [vmem:[#allocation2 + $0x52] sm:$0xff]
  %v861 = vld [vmem:[#allocation2 + $0x5a] sm:$0xff]
  %v862 = vld [vmem:[#allocation2 + $0x62] sm:$0xff]
  %v863 = vld [vmem:[#allocation2 + $0x6a] sm:$0xff]
  %v864 = vld [vmem:[#allocation2 + $0x72] sm:$0xff]
  %v865 = vld [vmem:[#allocation2 + $0x7a] sm:$0xff]
  %v866 = vld [vmem:[#allocation2 + $0x82] sm:$0xff]
  %v867 = vld [vmem:[#allocation2 + $0x8a] sm:$0xff]
  %v868 = vld [vmem:[#allocation2 + $0x92] sm:$0xff]
  %v869 = vld [vmem:[#allocation2 + $0x9a] sm:$0xff]
  %v870 = vld [vmem:[#allocation2 + $0xa2] sm:$0xff]
  %v871 = vld [vmem:[#allocation2 + $0xaa] sm:$0xff]
  %v872 = vld [vmem:[#allocation2 + $0xb2] sm:$0xff]
  %v873 = vld [vmem:[#allocation2 + $0xba] sm:$0xff]
  %v874 = vld [vmem:[#allocation2 + $0xc2] sm:$0xff]
  %v875 = vpack.c.bf16 %v851, %v850
  %v876 = vpack.c.bf16 %v853, %v852
  %v877 = vpack.c.bf16 %v855, %v854
  %v878 = vpack.c.bf16 %v857, %v856
  %v879 = vpack.c.bf16 %v859, %v858
  %v880 = vpack.c.bf16 %v861, %v860
  %v881 = vpack.c.bf16 %v863, %v862
  %v882 = vpack.c.bf16 %v865, %v864
  %v883 = vpack.c.bf16 %v867, %v866
  %v884 = vpack.c.bf16 %v869, %v868
  %v885 = vpack.c.bf16 %v871, %v870
  %v886 = vpack.c.bf16 %v873, %v872
  %v887 = vpack.c.bf16 %v874, %v874
  %s888 = scalar_lea.vmem %s4, 16
  %v889 = vld [vmem:[%s888] sm:$0xf]
  %v890 = vld [vmem:[%s888 + $0x4] sm:$0xf]
  %v893 = vunpack.c.l.b16 %v889
  %v894 = vunpack.c.l.b16 %v890
  %v895 = vpack.c.b16 %v894, %v893
  %v898 = vsel %vm377, %v875, 0
  %v901 = vsel %vm377, %v876, 0
  %v904 = vsel %vm377, %v877, 0
  %v907 = vsel %vm377, %v878, 0
  %v910 = vsel %vm377, %v879, 0
  %v913 = vsel %vm377, %v880, 0
  %v916 = vsel %vm377, %v881, 0
  %v919 = vsel %vm377, %v882, 0
  %v922 = vsel %vm377, %v883, 0
  %v925 = vsel %vm377, %v884, 0
  %v928 = vsel %vm377, %v885, 0
  %v931 = vsel %vm377, %v886, 0
  %v934 = vsel %vm377, %v887, 0
  %936 = vmatprep.subr.bf16.mxu0 0
  %937 = vmatpush1.bf16.msra.mxu0 %v895
  %938 = vmatprep.subr.bf16.mxu0 0
  %939 = vmatpush1.bf16.msra.mxu0 0
  %940 = vmatprep.subr.bf16.mxu0 0
  %941 = vmatpush1.bf16.msra.mxu0 0
  %942 = vmatprep.subr.bf16.mxu0 0
  %943 = vmatpush1.bf16.msra.mxu0 0
  %944 = vmatprep.subr.bf16.mxu0 0
  %945 = vmatpush1.bf16.msra.mxu0 0
  %946 = vmatprep.subr.bf16.mxu0 0
  %947 = vmatpush1.bf16.msra.mxu0 0
  %948 = vmatprep.subr.bf16.mxu0 0
  %949 = vmatpush1.bf16.msra.mxu0 0
  %950 = vmatprep.subr.bf16.mxu0 0
  %951 = vmatpush1.bf16.msra.mxu0 0
  %952 = vmatprep.subr.bf16.mxu0 0
  %953 = vmatpush1.bf16.msra.mxu0 0
  %954 = vmatprep.subr.bf16.mxu0 0
  %955 = vmatpush1.bf16.msra.mxu0 0
  %956 = vmatprep.subr.bf16.mxu0 0
  %957 = vmatpush1.bf16.msra.mxu0 0
  %958 = vmatprep.subr.bf16.mxu0 0
  %959 = vmatpush1.bf16.msra.mxu0 0
  %960 = vmatprep.subr.bf16.mxu0 0
  %961 = vmatpush1.bf16.msra.mxu0 0
  %962 = vmatprep.subr.bf16.mxu0 0
  %963 = vmatpush1.bf16.msra.mxu0 0
  %964 = vmatprep.subr.bf16.mxu0 0
  %965 = vmatpush1.bf16.msra.mxu0 0
  %966 = vmatprep.subr.bf16.mxu0 0
  %967 = vmatpush1.bf16.msra.mxu0 0
  %968 = vmatprep.mubr.bf16.mxu0 0
  %969 = vmatmul.mubr.bf16.gmra.mrb[0].mxu0 %v898
  %v970 = vpop.f32.mrb[0].mxu0
  %v971 = vadd.f32 0.0, %v970
  %v972 = vpop.f32.mrb[0].mxu0
  %v973 = vpop.f32.mrb[0].mxu0
  %v974 = vadd.f32 0.0, %v973
  %v975 = vpop.f32.mrb[0].mxu0
  %976 = vmatprep.mubr.bf16.mxu0 0
  %977 = vmatmul.mubr.bf16.gmra.mrb[0].mxu0 %v901
  %v978 = vpop.f32.mrb[0].mxu0
  %v979 = vadd.f32 0.0, %v978
  %v980 = vpop.f32.mrb[0].mxu0
  %v981 = vpop.f32.mrb[0].mxu0
  %v982 = vadd.f32 0.0, %v981
  %v983 = vpop.f32.mrb[0].mxu0
  %984 = vmatprep.mubr.bf16.mxu0 0
  %985 = vmatmul.mubr.bf16.gmra.mrb[0].mxu0 %v904
  %v986 = vpop.f32.mrb[0].mxu0
  %v987 = vadd.f32 0.0, %v986
  %v988 = vpop.f32.mrb[0].mxu0
  %v989 = vpop.f32.mrb[0].mxu0
  %v990 = vadd.f32 0.0, %v989
  %v991 = vpop.f32.mrb[0].mxu0
  %992 = vmatprep.mubr.bf16.mxu0 0
  %993 = vmatmul.mubr.bf16.gmra.mrb[0].mxu0 %v907
  %v994 = vpop.f32.mrb[0].mxu0
  %v995 = vadd.f32 0.0, %v994
  %v996 = vpop.f32.mrb[0].mxu0
  %v997 = vpop.f32.mrb[0].mxu0
  %v998 = vadd.f32 0.0, %v997
  %v999 = vpop.f32.mrb[0].mxu0
  %1000 = vmatprep.mubr.bf16.mxu0 0
  %1001 = vmatmul.mubr.bf16.gmra.mrb[0].mxu0 %v910
  %v1002 = vpop.f32.mrb[0].mxu0
  %v1003 = vadd.f32 0.0, %v1002
  %v1004 = vpop.f32.mrb[0].mxu0
  %v1005 = vpop.f32.mrb[0].mxu0
  %v1006 = vadd.f32 0.0, %v1005
  %v1007 = vpop.f32.mrb[0].mxu0
  %1008 = vmatprep.mubr.bf16.mxu0 0
  %1009 = vmatmul.mubr.bf16.gmra.mrb[0].mxu0 %v913
  %v1010 = vpop.f32.mrb[0].mxu0
  %v1011 = vadd.f32 0.0, %v1010
  %v1012 = vpop.f32.mrb[0].mxu0
  %v1013 = vpop.f32.mrb[0].mxu0
  %v1014 = vadd.f32 0.0, %v1013
  %v1015 = vpop.f32.mrb[0].mxu0
  %1016 = vmatprep.mubr.bf16.mxu0 0
  %1017 = vmatmul.mubr.bf16.gmra.mrb[0].mxu0 %v916
  %v1018 = vpop.f32.mrb[0].mxu0
  %v1019 = vadd.f32 0.0, %v1018
  %v1020 = vpop.f32.mrb[0].mxu0
  %v1021 = vpop.f32.mrb[0].mxu0
  %v1022 = vadd.f32 0.0, %v1021
  %v1023 = vpop.f32.mrb[0].mxu0
  %1024 = vmatprep.mubr.bf16.mxu0 0
  %1025 = vmatmul.mubr.bf16.gmra.mrb[0].mxu0 %v919
  %v1026 = vpop.f32.mrb[0].mxu0
  %v1027 = vadd.f32 0.0, %v1026
  %v1028 = vpop.f32.mrb[0].mxu0
  %v1029 = vpop.f32.mrb[0].mxu0
  %v1030 = vadd.f32 0.0, %v1029
  %v1031 = vpop.f32.mrb[0].mxu0
  %1032 = vmatprep.mubr.bf16.mxu0 0
  %1033 = vmatmul.mubr.bf16.gmra.mrb[0].mxu0 %v922
  %v1034 = vpop.f32.mrb[0].mxu0
  %v1035 = vadd.f32 0.0, %v1034
  %v1036 = vpop.f32.mrb[0].mxu0
  %v1037 = vpop.f32.mrb[0].mxu0
  %v1038 = vadd.f32 0.0, %v1037
  %v1039 = vpop.f32.mrb[0].mxu0
  %1040 = vmatprep.mubr.bf16.mxu0 0
  %1041 = vmatmul.mubr.bf16.gmra.mrb[0].mxu0 %v925
  %v1042 = vpop.f32.mrb[0].mxu0
  %v1043 = vadd.f32 0.0, %v1042
  %v1044 = vpop.f32.mrb[0].mxu0
  %v1045 = vpop.f32.mrb[0].mxu0
  %v1046 = vadd.f32 0.0, %v1045
  %v1047 = vpop.f32.mrb[0].mxu0
  %1048 = vmatprep.mubr.bf16.mxu0 0
  %1049 = vmatmul.mubr.bf16.gmra.mrb[0].mxu0 %v928
  %v1050 = vpop.f32.mrb[0].mxu0
  %v1051 = vadd.f32 0.0, %v1050
  %v1052 = vpop.f32.mrb[0].mxu0
  %v1053 = vpop.f32.mrb[0].mxu0
  %v1054 = vadd.f32 0.0, %v1053
  %v1055 = vpop.f32.mrb[0].mxu0
  %1056 = vmatprep.mubr.bf16.mxu0 0
  %1057 = vmatmul.mubr.bf16.gmra.mrb[0].mxu0 %v931
  %v1058 = vpop.f32.mrb[0].mxu0
  %v1059 = vadd.f32 0.0, %v1058
  %v1060 = vpop.f32.mrb[0].mxu0
  %v1061 = vpop.f32.mrb[0].mxu0
  %v1062 = vadd.f32 0.0, %v1061
  %v1063 = vpop.f32.mrb[0].mxu0
  %1064 = vmatprep.mubr.bf16.mxu0 0
  %1065 = vmatmul.mubr.bf16.gmra.mrb[0].mxu0 %v934
  %v1066 = vpop.f32.mrb[0].mxu0
  %v1067 = vadd.f32 0.0, %v1066
  %v1068 = vpop.f32.mrb[0].mxu0
  %v1069 = vpop.f32.mrb[0].mxu0
  %v1070 = vpop.f32.mrb[0].mxu0
  %1071 = vdwg.mxu0
  %v1072 = vadd.f32 %v749, %v971
  %v1073 = vadd.f32 %v752, %v974
  %v1074 = vadd.f32 %v757, %v979
  %v1075 = vadd.f32 %v760, %v982
  %v1076 = vadd.f32 %v765, %v987
  %v1077 = vadd.f32 %v768, %v990
  %v1078 = vadd.f32 %v773, %v995
  %v1079 = vadd.f32 %v776, %v998
  %v1080 = vadd.f32 %v781, %v1003
  %v1081 = vadd.f32 %v784, %v1006
  %v1082 = vadd.f32 %v789, %v1011
  %v1083 = vadd.f32 %v792, %v1014
  %v1084 = vadd.f32 %v797, %v1019
  %v1085 = vadd.f32 %v800, %v1022
  %v1086 = vadd.f32 %v805, %v1027
  %v1087 = vadd.f32 %v808, %v1030
  %v1088 = vadd.f32 %v813, %v1035
  %v1089 = vadd.f32 %v816, %v1038
  %v1090 = vadd.f32 %v821, %v1043
  %v1091 = vadd.f32 %v824, %v1046
  %v1092 = vadd.f32 %v829, %v1051
  %v1093 = vadd.f32 %v832, %v1054
  %v1094 = vadd.f32 %v837, %v1059
  %v1095 = vadd.f32 %v840, %v1062
  %v1096 = vadd.f32 %v845, %v1067
  %v1097 = vld [vmem:[#allocation2 + $0xa] sm:$0xff]
  %v1098 = vld [vmem:[#allocation2 + $0x12] sm:$0xff]
  %v1099 = vld [vmem:[#allocation2 + $0x1a] sm:$0xff]
  %v1100 = vld [vmem:[#allocation2 + $0x22] sm:$0xff]
  %v1101 = vld [vmem:[#allocation2 + $0x2a] sm:$0xff]
  %v1102 = vld [vmem:[#allocation2 + $0x32] sm:$0xff]
  %v1103 = vld [vmem:[#allocation2 + $0x3a] sm:$0xff]
  %v1104 = vld [vmem:[#allocation2 + $0x42] sm:$0xff]
  %v1105 = vld [vmem:[#allocation2 + $0x4a] sm:$0xff]
  %v1106 = vld [vmem:[#allocation2 + $0x52] sm:$0xff]
  %v1107 = vld [vmem:[#allocation2 + $0x5a] sm:$0xff]
  %v1108 = vld [vmem:[#allocation2 + $0x62] sm:$0xff]
  %v1109 = vld [vmem:[#allocation2 + $0x6a] sm:$0xff]
  %v1110 = vld [vmem:[#allocation2 + $0x72] sm:$0xff]
  %v1111 = vld [vmem:[#allocation2 + $0x7a] sm:$0xff]
  %v1112 = vld [vmem:[#allocation2 + $0x82] sm:$0xff]
  %v1113 = vld [vmem:[#allocation2 + $0x8a] sm:$0xff]
  %v1114 = vld [vmem:[#allocation2 + $0x92] sm:$0xff]
  %v1115 = vld [vmem:[#allocation2 + $0x9a] sm:$0xff]
  %v1116 = vld [vmem:[#allocation2 + $0xa2] sm:$0xff]
  %v1117 = vld [vmem:[#allocation2 + $0xaa] sm:$0xff]
  %v1118 = vld [vmem:[#allocation2 + $0xb2] sm:$0xff]
  %v1119 = vld [vmem:[#allocation2 + $0xba] sm:$0xff]
  %v1120 = vld [vmem:[#allocation2 + $0xc2] sm:$0xff]
  %v1121 = vld [vmem:[#allocation2 + $0xca] sm:$0xff]
  %v1122 = vpack.c.bf16 %v1098, %v1097
  %v1123 = vpack.c.bf16 %v1100, %v1099
  %v1124 = vpack.c.bf16 %v1102, %v1101
  %v1125 = vpack.c.bf16 %v1104, %v1103
  %v1126 = vpack.c.bf16 %v1106, %v1105
  %v1127 = vpack.c.bf16 %v1108, %v1107
  %v1128 = vpack.c.bf16 %v1110, %v1109
  %v1129 = vpack.c.bf16 %v1112, %v1111
  %v1130 = vpack.c.bf16 %v1114, %v1113
  %v1131 = vpack.c.bf16 %v1116, %v1115
  %v1132 = vpack.c.bf16 %v1118, %v1117
  %v1133 = vpack.c.bf16 %v1120, %v1119
  %v1134 = vpack.c.bf16 %v1121, %v1121
  %s1135 = scalar_lea.vmem %s4, 24
  %v1136 = vld [vmem:[%s1135] sm:$0xf]
  %v1137 = vld [vmem:[%s1135 + $0x4] sm:$0xf]
  %v1140 = vunpack.c.l.b16 %v1136
  %v1141 = vunpack.c.l.b16 %v1137
  %v1142 = vpack.c.b16 %v1141, %v1140
  %v1145 = vsel %vm377, %v1122, 0
  %v1148 = vsel %vm377, %v1123, 0
  %v1151 = vsel %vm377, %v1124, 0
  %v1154 = vsel %vm377, %v1125, 0
  %v1157 = vsel %vm377, %v1126, 0
  %v1160 = vsel %vm377, %v1127, 0
  %v1163 = vsel %vm377, %v1128, 0
  %v1166 = vsel %vm377, %v1129, 0
  %v1169 = vsel %vm377, %v1130, 0
  %v1172 = vsel %vm377, %v1131, 0
  %v1175 = vsel %vm377, %v1132, 0
  %v1178 = vsel %vm377, %v1133, 0
  %v1181 = vsel %vm377, %v1134, 0
  %1183 = vmatprep.subr.bf16.mxu0 0
  %1184 = vmatpush1.bf16.msra.mxu0 %v1142
  %1185 = vmatprep.subr.bf16.mxu0 0
  %1186 = vmatpush1.bf16.msra.mxu0 0
  %1187 = vmatprep.subr.bf16.mxu0 0
  %1188 = vmatpush1.bf16.msra.mxu0 0
  %1189 = vmatprep.subr.bf16.mxu0 0
  %1190 = vmatpush1.bf16.msra.mxu0 0
  %1191 = vmatprep.subr.bf16.mxu0 0
  %1192 = vmatpush1.bf16.msra.mxu0 0
  %1193 = vmatprep.subr.bf16.mxu0 0
  %1194 = vmatpush1.bf16.msra.mxu0 0
  %1195 = vmatprep.subr.bf16.mxu0 0
  %1196 = vmatpush1.bf16.msra.mxu0 0
  %1197 = vmatprep.subr.bf16.mxu0 0
  %1198 = vmatpush1.bf16.msra.mxu0 0
  %1199 = vmatprep.subr.bf16.mxu0 0
  %1200 = vmatpush1.bf16.msra.mxu0 0
  %1201 = vmatprep.subr.bf16.mxu0 0
  %1202 = vmatpush1.bf16.msra.mxu0 0
  %1203 = vmatprep.subr.bf16.mxu0 0
  %1204 = vmatpush1.bf16.msra.mxu0 0
  %1205 = vmatprep.subr.bf16.mxu0 0
  %1206 = vmatpush1.bf16.msra.mxu0 0
  %1207 = vmatprep.subr.bf16.mxu0 0
  %1208 = vmatpush1.bf16.msra.mxu0 0
  %1209 = vmatprep.subr.bf16.mxu0 0
  %1210 = vmatpush1.bf16.msra.mxu0 0
  %1211 = vmatprep.subr.bf16.mxu0 0
  %1212 = vmatpush1.bf16.msra.mxu0 0
  %1213 = vmatprep.subr.bf16.mxu0 0
  %1214 = vmatpush1.bf16.msra.mxu0 0
  %1215 = vmatprep.mubr.bf16.mxu0 0
  %1216 = vmatmul.mubr.bf16.gmra.mrb[0].mxu0 %v1145
  %v1217 = vpop.f32.mrb[0].mxu0
  %v1218 = vadd.f32 0.0, %v1217
  %v1219 = vpop.f32.mrb[0].mxu0
  %v1220 = vpop.f32.mrb[0].mxu0
  %v1221 = vadd.f32 0.0, %v1220
  %v1222 = vpop.f32.mrb[0].mxu0
  %1223 = vmatprep.mubr.bf16.mxu0 0
  %1224 = vmatmul.mubr.bf16.gmra.mrb[0].mxu0 %v1148
  %v1225 = vpop.f32.mrb[0].mxu0
  %v1226 = vadd.f32 0.0, %v1225
  %v1227 = vpop.f32.mrb[0].mxu0
  %v1228 = vpop.f32.mrb[0].mxu0
  %v1229 = vadd.f32 0.0, %v1228
  %v1230 = vpop.f32.mrb[0].mxu0
  %1231 = vmatprep.mubr.bf16.mxu0 0
  %1232 = vmatmul.mubr.bf16.gmra.mrb[0].mxu0 %v1151
  %v1233 = vpop.f32.mrb[0].mxu0
  %v1234 = vadd.f32 0.0, %v1233
  %v1235 = vpop.f32.mrb[0].mxu0
  %v1236 = vpop.f32.mrb[0].mxu0
  %v1237 = vadd.f32 0.0, %v1236
  %v1238 = vpop.f32.mrb[0].mxu0
  %1239 = vmatprep.mubr.bf16.mxu0 0
  %1240 = vmatmul.mubr.bf16.gmra.mrb[0].mxu0 %v1154
  %v1241 = vpop.f32.mrb[0].mxu0
  %v1242 = vadd.f32 0.0, %v1241
  %v1243 = vpop.f32.mrb[0].mxu0
  %v1244 = vpop.f32.mrb[0].mxu0
  %v1245 = vadd.f32 0.0, %v1244
  %v1246 = vpop.f32.mrb[0].mxu0
  %1247 = vmatprep.mubr.bf16.mxu0 0
  %1248 = vmatmul.mubr.bf16.gmra.mrb[0].mxu0 %v1157
  %v1249 = vpop.f32.mrb[0].mxu0
  %v1250 = vadd.f32 0.0, %v1249
  %v1251 = vpop.f32.mrb[0].mxu0
  %v1252 = vpop.f32.mrb[0].mxu0
  %v1253 = vadd.f32 0.0, %v1252
  %v1254 = vpop.f32.mrb[0].mxu0
  %1255 = vmatprep.mubr.bf16.mxu0 0
  %1256 = vmatmul.mubr.bf16.gmra.mrb[0].mxu0 %v1160
  %v1257 = vpop.f32.mrb[0].mxu0
  %v1258 = vadd.f32 0.0, %v1257
  %v1259 = vpop.f32.mrb[0].mxu0
  %v1260 = vpop.f32.mrb[0].mxu0
  %v1261 = vadd.f32 0.0, %v1260
  %v1262 = vpop.f32.mrb[0].mxu0
  %1263 = vmatprep.mubr.bf16.mxu0 0
  %1264 = vmatmul.mubr.bf16.gmra.mrb[0].mxu0 %v1163
  %v1265 = vpop.f32.mrb[0].mxu0
  %v1266 = vadd.f32 0.0, %v1265
  %v1267 = vpop.f32.mrb[0].mxu0
  %v1268 = vpop.f32.mrb[0].mxu0
  %v1269 = vadd.f32 0.0, %v1268
  %v1270 = vpop.f32.mrb[0].mxu0
  %1271 = vmatprep.mubr.bf16.mxu0 0
  %1272 = vmatmul.mubr.bf16.gmra.mrb[0].mxu0 %v1166
  %v1273 = vpop.f32.mrb[0].mxu0
  %v1274 = vadd.f32 0.0, %v1273
  %v1275 = vpop.f32.mrb[0].mxu0
  %v1276 = vpop.f32.mrb[0].mxu0
  %v1277 = vadd.f32 0.0, %v1276
  %v1278 = vpop.f32.mrb[0].mxu0
  %1279 = vmatprep.mubr.bf16.mxu0 0
  %1280 = vmatmul.mubr.bf16.gmra.mrb[0].mxu0 %v1169
  %v1281 = vpop.f32.mrb[0].mxu0
  %v1282 = vadd.f32 0.0, %v1281
  %v1283 = vpop.f32.mrb[0].mxu0
  %v1284 = vpop.f32.mrb[0].mxu0
  %v1285 = vadd.f32 0.0, %v1284
  %v1286 = vpop.f32.mrb[0].mxu0
  %1287 = vmatprep.mubr.bf16.mxu0 0
  %1288 = vmatmul.mubr.bf16.gmra.mrb[0].mxu0 %v1172
  %v1289 = vpop.f32.mrb[0].mxu0
  %v1290 = vadd.f32 0.0, %v1289
  %v1291 = vpop.f32.mrb[0].mxu0
  %v1292 = vpop.f32.mrb[0].mxu0
  %v1293 = vadd.f32 0.0, %v1292
  %v1294 = vpop.f32.mrb[0].mxu0
  %1295 = vmatprep.mubr.bf16.mxu0 0
  %1296 = vmatmul.mubr.bf16.gmra.mrb[0].mxu0 %v1175
  %v1297 = vpop.f32.mrb[0].mxu0
  %v1298 = vadd.f32 0.0, %v1297
  %v1299 = vpop.f32.mrb[0].mxu0
  %v1300 = vpop.f32.mrb[0].mxu0
  %v1301 = vadd.f32 0.0, %v1300
  %v1302 = vpop.f32.mrb[0].mxu0
  %1303 = vmatprep.mubr.bf16.mxu0 0
  %1304 = vmatmul.mubr.bf16.gmra.mrb[0].mxu0 %v1178
  %v1305 = vpop.f32.mrb[0].mxu0
  %v1306 = vadd.f32 0.0, %v1305
  %v1307 = vpop.f32.mrb[0].mxu0
  %v1308 = vpop.f32.mrb[0].mxu0
  %v1309 = vadd.f32 0.0, %v1308
  %v1310 = vpop.f32.mrb[0].mxu0
  %1311 = vmatprep.mubr.bf16.mxu0 0
  %1312 = vmatmul.mubr.bf16.gmra.mrb[0].mxu0 %v1181
  %v1313 = vpop.f32.mrb[0].mxu0
  %v1314 = vadd.f32 0.0, %v1313
  %v1315 = vpop.f32.mrb[0].mxu0
  %v1316 = vpop.f32.mrb[0].mxu0
  %v1317 = vpop.f32.mrb[0].mxu0
  %1318 = vdwg.mxu0
  %v1319 = vadd.f32 %v1072, %v1218
  %v1320 = vadd.f32 %v1073, %v1221
  %v1321 = vadd.f32 %v1074, %v1226
  %v1322 = vadd.f32 %v1075, %v1229
  %v1323 = vadd.f32 %v1076, %v1234
  %v1324 = vadd.f32 %v1077, %v1237
  %v1325 = vadd.f32 %v1078, %v1242
  %v1326 = vadd.f32 %v1079, %v1245
  %v1327 = vadd.f32 %v1080, %v1250
  %v1328 = vadd.f32 %v1081, %v1253
  %v1329 = vadd.f32 %v1082, %v1258
  %v1330 = vadd.f32 %v1083, %v1261
  %v1331 = vadd.f32 %v1084, %v1266
  %v1332 = vadd.f32 %v1085, %v1269
  %v1333 = vadd.f32 %v1086, %v1274
  %v1334 = vadd.f32 %v1087, %v1277
  %v1335 = vadd.f32 %v1088, %v1282
  %v1336 = vadd.f32 %v1089, %v1285
  %v1337 = vadd.f32 %v1090, %v1290
  %v1338 = vadd.f32 %v1091, %v1293
  %v1339 = vadd.f32 %v1092, %v1298
  %v1340 = vadd.f32 %v1093, %v1301
  %v1341 = vadd.f32 %v1094, %v1306
  %v1342 = vadd.f32 %v1095, %v1309
  %v1343 = vadd.f32 %v1096, %v1314
  %v1344 = vld [vmem:[#allocation2 + $0xb] sm:$0xff]
  %v1345 = vld [vmem:[#allocation2 + $0x13] sm:$0xff]
  %v1346 = vld [vmem:[#allocation2 + $0x1b] sm:$0xff]
  %v1347 = vld [vmem:[#allocation2 + $0x23] sm:$0xff]
  %v1348 = vld [vmem:[#allocation2 + $0x2b] sm:$0xff]
  %v1349 = vld [vmem:[#allocation2 + $0x33] sm:$0xff]
  %v1350 = vld [vmem:[#allocation2 + $0x3b] sm:$0xff]
  %v1351 = vld [vmem:[#allocation2 + $0x43] sm:$0xff]
  %v1352 = vld [vmem:[#allocation2 + $0x4b] sm:$0xff]
  %v1353 = vld [vmem:[#allocation2 + $0x53] sm:$0xff]
  %v1354 = vld [vmem:[#allocation2 + $0x5b] sm:$0xff]
  %v1355 = vld [vmem:[#allocation2 + $0x63] sm:$0xff]
  %v1356 = vld [vmem:[#allocation2 + $0x6b] sm:$0xff]
  %v1357 = vld [vmem:[#allocation2 + $0x73] sm:$0xff]
  %v1358 = vld [vmem:[#allocation2 + $0x7b] sm:$0xff]
  %v1359 = vld [vmem:[#allocation2 + $0x83] sm:$0xff]
  %v1360 = vld [vmem:[#allocation2 + $0x8b] sm:$0xff]
  %v1361 = vld [vmem:[#allocation2 + $0x93] sm:$0xff]
  %v1362 = vld [vmem:[#allocation2 + $0x9b] sm:$0xff]
  %v1363 = vld [vmem:[#allocation2 + $0xa3] sm:$0xff]
  %v1364 = vld [vmem:[#allocation2 + $0xab] sm:$0xff]
  %v1365 = vld [vmem:[#allocation2 + $0xb3] sm:$0xff]
  %v1366 = vld [vmem:[#allocation2 + $0xbb] sm:$0xff]
  %v1367 = vld [vmem:[#allocation2 + $0xc3] sm:$0xff]
  %v1368 = vld [vmem:[#allocation2 + $0xcb] sm:$0xff]
  %v1369 = vpack.c.bf16 %v1345, %v1344
  %v1370 = vpack.c.bf16 %v1347, %v1346
  %v1371 = vpack.c.bf16 %v1349, %v1348
  %v1372 = vpack.c.bf16 %v1351, %v1350
  %v1373 = vpack.c.bf16 %v1353, %v1352
  %v1374 = vpack.c.bf16 %v1355, %v1354
  %v1375 = vpack.c.bf16 %v1357, %v1356
  %v1376 = vpack.c.bf16 %v1359, %v1358
  %v1377 = vpack.c.bf16 %v1361, %v1360
  %v1378 = vpack.c.bf16 %v1363, %v1362
  %v1379 = vpack.c.bf16 %v1365, %v1364
  %v1380 = vpack.c.bf16 %v1367, %v1366
  %v1381 = vpack.c.bf16 %v1368, %v1368
  %s1382 = scalar_lea.vmem %s4, 32
  %v1383 = vld [vmem:[%s1382] sm:$0xf]
  %v1384 = vld [vmem:[%s1382 + $0x4] sm:$0xf]
  %v1387 = vunpack.c.l.b16 %v1383
  %v1388 = vunpack.c.l.b16 %v1384
  %v1389 = vpack.c.b16 %v1388, %v1387
  %v1392 = vsel %vm377, %v1369, 0
  %v1395 = vsel %vm377, %v1370, 0
  %v1398 = vsel %vm377, %v1371, 0
  %v1401 = vsel %vm377, %v1372, 0
  %v1404 = vsel %vm377, %v1373, 0
  %v1407 = vsel %vm377, %v1374, 0
  %v1410 = vsel %vm377, %v1375, 0
  %v1413 = vsel %vm377, %v1376, 0
  %v1416 = vsel %vm377, %v1377, 0
  %v1419 = vsel %vm377, %v1378, 0
  %v1422 = vsel %vm377, %v1379, 0
  %v1425 = vsel %vm377, %v1380, 0
  %v1428 = vsel %vm377, %v1381, 0
  %1430 = vmatprep.subr.bf16.mxu0 0
  %1431 = vmatpush1.bf16.msra.mxu0 %v1389
  %1432 = vmatprep.subr.bf16.mxu0 0
  %1433 = vmatpush1.bf16.msra.mxu0 0
  %1434 = vmatprep.subr.bf16.mxu0 0
  %1435 = vmatpush1.bf16.msra.mxu0 0
  %1436 = vmatprep.subr.bf16.mxu0 0
  %1437 = vmatpush1.bf16.msra.mxu0 0
  %1438 = vmatprep.subr.bf16.mxu0 0
  %1439 = vmatpush1.bf16.msra.mxu0 0
  %1440 = vmatprep.subr.bf16.mxu0 0
  %1441 = vmatpush1.bf16.msra.mxu0 0
  %1442 = vmatprep.subr.bf16.mxu0 0
  %1443 = vmatpush1.bf16.msra.mxu0 0
  %1444 = vmatprep.subr.bf16.mxu0 0
  %1445 = vmatpush1.bf16.msra.mxu0 0
  %1446 = vmatprep.subr.bf16.mxu0 0
  %1447 = vmatpush1.bf16.msra.mxu0 0
  %1448 = vmatprep.subr.bf16.mxu0 0
  %1449 = vmatpush1.bf16.msra.mxu0 0
  %1450 = vmatprep.subr.bf16.mxu0 0
  %1451 = vmatpush1.bf16.msra.mxu0 0
  %1452 = vmatprep.subr.bf16.mxu0 0
  %1453 = vmatpush1.bf16.msra.mxu0 0
  %1454 = vmatprep.subr.bf16.mxu0 0
  %1455 = vmatpush1.bf16.msra.mxu0 0
  %1456 = vmatprep.subr.bf16.mxu0 0
  %1457 = vmatpush1.bf16.msra.mxu0 0
  %1458 = vmatprep.subr.bf16.mxu0 0
  %1459 = vmatpush1.bf16.msra.mxu0 0
  %1460 = vmatprep.subr.bf16.mxu0 0
  %1461 = vmatpush1.bf16.msra.mxu0 0
  %1462 = vmatprep.mubr.bf16.mxu0 0
  %1463 = vmatmul.mubr.bf16.gmra.mrb[0].mxu0 %v1392
  %v1464 = vpop.f32.mrb[0].mxu0
  %v1465 = vadd.f32 0.0, %v1464
  %v1466 = vpop.f32.mrb[0].mxu0
  %v1467 = vpop.f32.mrb[0].mxu0
  %v1468 = vadd.f32 0.0, %v1467
  %v1469 = vpop.f32.mrb[0].mxu0
  %1470 = vmatprep.mubr.bf16.mxu0 0
  %1471 = vmatmul.mubr.bf16.gmra.mrb[0].mxu0 %v1395
  %v1472 = vpop.f32.mrb[0].mxu0
  %v1473 = vadd.f32 0.0, %v1472
  %v1474 = vpop.f32.mrb[0].mxu0
  %v1475 = vpop.f32.mrb[0].mxu0
  %v1476 = vadd.f32 0.0, %v1475
  %v1477 = vpop.f32.mrb[0].mxu0
  %1478 = vmatprep.mubr.bf16.mxu0 0
  %1479 = vmatmul.mubr.bf16.gmra.mrb[0].mxu0 %v1398
  %v1480 = vpop.f32.mrb[0].mxu0
  %v1481 = vadd.f32 0.0, %v1480
  %v1482 = vpop.f32.mrb[0].mxu0
  %v1483 = vpop.f32.mrb[0].mxu0
  %v1484 = vadd.f32 0.0, %v1483
  %v1485 = vpop.f32.mrb[0].mxu0
  %1486 = vmatprep.mubr.bf16.mxu0 0
  %1487 = vmatmul.mubr.bf16.gmra.mrb[0].mxu0 %v1401
  %v1488 = vpop.f32.mrb[0].mxu0
  %v1489 = vadd.f32 0.0, %v1488
  %v1490 = vpop.f32.mrb[0].mxu0
  %v1491 = vpop.f32.mrb[0].mxu0
  %v1492 = vadd.f32 0.0, %v1491
  %v1493 = vpop.f32.mrb[0].mxu0
  %1494 = vmatprep.mubr.bf16.mxu0 0
  %1495 = vmatmul.mubr.bf16.gmra.mrb[0].mxu0 %v1404
  %v1496 = vpop.f32.mrb[0].mxu0
  %v1497 = vadd.f32 0.0, %v1496
  %v1498 = vpop.f32.mrb[0].mxu0
  %v1499 = vpop.f32.mrb[0].mxu0
  %v1500 = vadd.f32 0.0, %v1499
  %v1501 = vpop.f32.mrb[0].mxu0
  %1502 = vmatprep.mubr.bf16.mxu0 0
  %1503 = vmatmul.mubr.bf16.gmra.mrb[0].mxu0 %v1407
  %v1504 = vpop.f32.mrb[0].mxu0
  %v1505 = vadd.f32 0.0, %v1504
  %v1506 = vpop.f32.mrb[0].mxu0
  %v1507 = vpop.f32.mrb[0].mxu0
  %v1508 = vadd.f32 0.0, %v1507
  %v1509 = vpop.f32.mrb[0].mxu0
  %1510 = vmatprep.mubr.bf16.mxu0 0
  %1511 = vmatmul.mubr.bf16.gmra.mrb[0].mxu0 %v1410
  %v1512 = vpop.f32.mrb[0].mxu0
  %v1513 = vadd.f32 0.0, %v1512
  %v1514 = vpop.f32.mrb[0].mxu0
  %v1515 = vpop.f32.mrb[0].mxu0
  %v1516 = vadd.f32 0.0, %v1515
  %v1517 = vpop.f32.mrb[0].mxu0
  %1518 = vmatprep.mubr.bf16.mxu0 0
  %1519 = vmatmul.mubr.bf16.gmra.mrb[0].mxu0 %v1413
  %v1520 = vpop.f32.mrb[0].mxu0
  %v1521 = vadd.f32 0.0, %v1520
  %v1522 = vpop.f32.mrb[0].mxu0
  %v1523 = vpop.f32.mrb[0].mxu0
  %v1524 = vadd.f32 0.0, %v1523
  %v1525 = vpop.f32.mrb[0].mxu0
  %1526 = vmatprep.mubr.bf16.mxu0 0
  %1527 = vmatmul.mubr.bf16.gmra.mrb[0].mxu0 %v1416
  %v1528 = vpop.f32.mrb[0].mxu0
  %v1529 = vadd.f32 0.0, %v1528
  %v1530 = vpop.f32.mrb[0].mxu0
  %v1531 = vpop.f32.mrb[0].mxu0
  %v1532 = vadd.f32 0.0, %v1531
  %v1533 = vpop.f32.mrb[0].mxu0
  %1534 = vmatprep.mubr.bf16.mxu0 0
  %1535 = vmatmul.mubr.bf16.gmra.mrb[0].mxu0 %v1419
  %v1536 = vpop.f32.mrb[0].mxu0
  %v1537 = vadd.f32 0.0, %v1536
  %v1538 = vpop.f32.mrb[0].mxu0
  %v1539 = vpop.f32.mrb[0].mxu0
  %v1540 = vadd.f32 0.0, %v1539
  %v1541 = vpop.f32.mrb[0].mxu0
  %1542 = vmatprep.mubr.bf16.mxu0 0
  %1543 = vmatmul.mubr.bf16.gmra.mrb[0].mxu0 %v1422
  %v1544 = vpop.f32.mrb[0].mxu0
  %v1545 = vadd.f32 0.0, %v1544
  %v1546 = vpop.f32.mrb[0].mxu0
  %v1547 = vpop.f32.mrb[0].mxu0
  %v1548 = vadd.f32 0.0, %v1547
  %v1549 = vpop.f32.mrb[0].mxu0
  %1550 = vmatprep.mubr.bf16.mxu0 0
  %1551 = vmatmul.mubr.bf16.gmra.mrb[0].mxu0 %v1425
  %v1552 = vpop.f32.mrb[0].mxu0
  %v1553 = vadd.f32 0.0, %v1552
  %v1554 = vpop.f32.mrb[0].mxu0
  %v1555 = vpop.f32.mrb[0].mxu0
  %v1556 = vadd.f32 0.0, %v1555
  %v1557 = vpop.f32.mrb[0].mxu0
  %1558 = vmatprep.mubr.bf16.mxu0 0
  %1559 = vmatmul.mubr.bf16.gmra.mrb[0].mxu0 %v1428
  %v1560 = vpop.f32.mrb[0].mxu0
  %v1561 = vadd.f32 0.0, %v1560
  %v1562 = vpop.f32.mrb[0].mxu0
  %v1563 = vpop.f32.mrb[0].mxu0
  %v1564 = vpop.f32.mrb[0].mxu0
  %1565 = vdwg.mxu0
  %v1566 = vadd.f32 %v1319, %v1465
  %v1567 = vadd.f32 %v1320, %v1468
  %v1568 = vadd.f32 %v1321, %v1473
  %v1569 = vadd.f32 %v1322, %v1476
  %v1570 = vadd.f32 %v1323, %v1481
  %v1571 = vadd.f32 %v1324, %v1484
  %v1572 = vadd.f32 %v1325, %v1489
  %v1573 = vadd.f32 %v1326, %v1492
  %v1574 = vadd.f32 %v1327, %v1497
  %v1575 = vadd.f32 %v1328, %v1500
  %v1576 = vadd.f32 %v1329, %v1505
  %v1577 = vadd.f32 %v1330, %v1508
  %v1578 = vadd.f32 %v1331, %v1513
  %v1579 = vadd.f32 %v1332, %v1516
  %v1580 = vadd.f32 %v1333, %v1521
  %v1581 = vadd.f32 %v1334, %v1524
  %v1582 = vadd.f32 %v1335, %v1529
  %v1583 = vadd.f32 %v1336, %v1532
  %v1584 = vadd.f32 %v1337, %v1537
  %v1585 = vadd.f32 %v1338, %v1540
  %v1586 = vadd.f32 %v1339, %v1545
  %v1587 = vadd.f32 %v1340, %v1548
  %v1588 = vadd.f32 %v1341, %v1553
  %v1589 = vadd.f32 %v1342, %v1556
  %v1590 = vadd.f32 %v1343, %v1561
  %v1591 = vld [vmem:[#allocation2 + $0xc] sm:$0xff]
  %v1592 = vld [vmem:[#allocation2 + $0x14] sm:$0xff]
  %v1593 = vld [vmem:[#allocation2 + $0x1c] sm:$0xff]
  %v1594 = vld [vmem:[#allocation2 + $0x24] sm:$0xff]
  %v1595 = vld [vmem:[#allocation2 + $0x2c] sm:$0xff]
  %v1596 = vld [vmem:[#allocation2 + $0x34] sm:$0xff]
  %v1597 = vld [vmem:[#allocation2 + $0x3c] sm:$0xff]
  %v1598 = vld [vmem:[#allocation2 + $0x44] sm:$0xff]
  %v1599 = vld [vmem:[#allocation2 + $0x4c] sm:$0xff]
  %v1600 = vld [vmem:[#allocation2 + $0x54] sm:$0xff]
  %v1601 = vld [vmem:[#allocation2 + $0x5c] sm:$0xff]
  %v1602 = vld [vmem:[#allocation2 + $0x64] sm:$0xff]
  %v1603 = vld [vmem:[#allocation2 + $0x6c] sm:$0xff]
  %v1604 = vld [vmem:[#allocation2 + $0x74] sm:$0xff]
  %v1605 = vld [vmem:[#allocation2 + $0x7c] sm:$0xff]
  %v1606 = vld [vmem:[#allocation2 + $0x84] sm:$0xff]
  %v1607 = vld [vmem:[#allocation2 + $0x8c] sm:$0xff]
  %v1608 = vld [vmem:[#allocation2 + $0x94] sm:$0xff]
  %v1609 = vld [vmem:[#allocation2 + $0x9c] sm:$0xff]
  %v1610 = vld [vmem:[#allocation2 + $0xa4] sm:$0xff]
  %v1611 = vld [vmem:[#allocation2 + $0xac] sm:$0xff]
  %v1612 = vld [vmem:[#allocation2 + $0xb4] sm:$0xff]
  %v1613 = vld [vmem:[#allocation2 + $0xbc] sm:$0xff]
  %v1614 = vld [vmem:[#allocation2 + $0xc4] sm:$0xff]
  %v1615 = vld [vmem:[#allocation2 + $0xcc] sm:$0xff]
  %v1616 = vpack.c.bf16 %v1592, %v1591
  %v1617 = vpack.c.bf16 %v1594, %v1593
  %v1618 = vpack.c.bf16 %v1596, %v1595
  %v1619 = vpack.c.bf16 %v1598, %v1597
  %v1620 = vpack.c.bf16 %v1600, %v1599
  %v1621 = vpack.c.bf16 %v1602, %v1601
  %v1622 = vpack.c.bf16 %v1604, %v1603
  %v1623 = vpack.c.bf16 %v1606, %v1605
  %v1624 = vpack.c.bf16 %v1608, %v1607
  %v1625 = vpack.c.bf16 %v1610, %v1609
  %v1626 = vpack.c.bf16 %v1612, %v1611
  %v1627 = vpack.c.bf16 %v1614, %v1613
  %v1628 = vpack.c.bf16 %v1615, %v1615
  %s1629 = scalar_lea.vmem %s4, 40
  %v1630 = vld [vmem:[%s1629] sm:$0xf]
  %v1631 = vld [vmem:[%s1629 + $0x4] sm:$0xf]
  %v1634 = vunpack.c.l.b16 %v1630
  %v1635 = vunpack.c.l.b16 %v1631
  %v1636 = vpack.c.b16 %v1635, %v1634
  %v1639 = vsel %vm377, %v1616, 0
  %v1642 = vsel %vm377, %v1617, 0
  %v1645 = vsel %vm377, %v1618, 0
  %v1648 = vsel %vm377, %v1619, 0
  %v1651 = vsel %vm377, %v1620, 0
  %v1654 = vsel %vm377, %v1621, 0
  %v1657 = vsel %vm377, %v1622, 0
  %v1660 = vsel %vm377, %v1623, 0
  %v1663 = vsel %vm377, %v1624, 0
  %v1666 = vsel %vm377, %v1625, 0
  %v1669 = vsel %vm377, %v1626, 0
  %v1672 = vsel %vm377, %v1627, 0
  %v1675 = vsel %vm377, %v1628, 0
  %1677 = vmatprep.subr.bf16.mxu0 0
  %1678 = vmatpush1.bf16.msra.mxu0 %v1636
  %1679 = vmatprep.subr.bf16.mxu0 0
  %1680 = vmatpush1.bf16.msra.mxu0 0
  %1681 = vmatprep.subr.bf16.mxu0 0
  %1682 = vmatpush1.bf16.msra.mxu0 0
  %1683 = vmatprep.subr.bf16.mxu0 0
  %1684 = vmatpush1.bf16.msra.mxu0 0
  %1685 = vmatprep.subr.bf16.mxu0 0
  %1686 = vmatpush1.bf16.msra.mxu0 0
  %1687 = vmatprep.subr.bf16.mxu0 0
  %1688 = vmatpush1.bf16.msra.mxu0 0
  %1689 = vmatprep.subr.bf16.mxu0 0
  %1690 = vmatpush1.bf16.msra.mxu0 0
  %1691 = vmatprep.subr.bf16.mxu0 0
  %1692 = vmatpush1.bf16.msra.mxu0 0
  %1693 = vmatprep.subr.bf16.mxu0 0
  %1694 = vmatpush1.bf16.msra.mxu0 0
  %1695 = vmatprep.subr.bf16.mxu0 0
  %1696 = vmatpush1.bf16.msra.mxu0 0
  %1697 = vmatprep.subr.bf16.mxu0 0
  %1698 = vmatpush1.bf16.msra.mxu0 0
  %1699 = vmatprep.subr.bf16.mxu0 0
  %1700 = vmatpush1.bf16.msra.mxu0 0
  %1701 = vmatprep.subr.bf16.mxu0 0
  %1702 = vmatpush1.bf16.msra.mxu0 0
  %1703 = vmatprep.subr.bf16.mxu0 0
  %1704 = vmatpush1.bf16.msra.mxu0 0
  %1705 = vmatprep.subr.bf16.mxu0 0
  %1706 = vmatpush1.bf16.msra.mxu0 0
  %1707 = vmatprep.subr.bf16.mxu0 0
  %1708 = vmatpush1.bf16.msra.mxu0 0
  %1709 = vmatprep.mubr.bf16.mxu0 0
  %1710 = vmatmul.mubr.bf16.gmra.mrb[0].mxu0 %v1639
  %v1711 = vpop.f32.mrb[0].mxu0
  %v1712 = vadd.f32 0.0, %v1711
  %v1713 = vpop.f32.mrb[0].mxu0
  %v1714 = vpop.f32.mrb[0].mxu0
  %v1715 = vadd.f32 0.0, %v1714
  %v1716 = vpop.f32.mrb[0].mxu0
  %1717 = vmatprep.mubr.bf16.mxu0 0
  %1718 = vmatmul.mubr.bf16.gmra.mrb[0].mxu0 %v1642
  %v1719 = vpop.f32.mrb[0].mxu0
  %v1720 = vadd.f32 0.0, %v1719
  %v1721 = vpop.f32.mrb[0].mxu0
  %v1722 = vpop.f32.mrb[0].mxu0
  %v1723 = vadd.f32 0.0, %v1722
  %v1724 = vpop.f32.mrb[0].mxu0
  %1725 = vmatprep.mubr.bf16.mxu0 0
  %1726 = vmatmul.mubr.bf16.gmra.mrb[0].mxu0 %v1645
  %v1727 = vpop.f32.mrb[0].mxu0
  %v1728 = vadd.f32 0.0, %v1727
  %v1729 = vpop.f32.mrb[0].mxu0
  %v1730 = vpop.f32.mrb[0].mxu0
  %v1731 = vadd.f32 0.0, %v1730
  %v1732 = vpop.f32.mrb[0].mxu0
  %1733 = vmatprep.mubr.bf16.mxu0 0
  %1734 = vmatmul.mubr.bf16.gmra.mrb[0].mxu0 %v1648
  %v1735 = vpop.f32.mrb[0].mxu0
  %v1736 = vadd.f32 0.0, %v1735
  %v1737 = vpop.f32.mrb[0].mxu0
  %v1738 = vpop.f32.mrb[0].mxu0
  %v1739 = vadd.f32 0.0, %v1738
  %v1740 = vpop.f32.mrb[0].mxu0
  %1741 = vmatprep.mubr.bf16.mxu0 0
  %1742 = vmatmul.mubr.bf16.gmra.mrb[0].mxu0 %v1651
  %v1743 = vpop.f32.mrb[0].mxu0
  %v1744 = vadd.f32 0.0, %v1743
  %v1745 = vpop.f32.mrb[0].mxu0
  %v1746 = vpop.f32.mrb[0].mxu0
  %v1747 = vadd.f32 0.0, %v1746
  %v1748 = vpop.f32.mrb[0].mxu0
  %1749 = vmatprep.mubr.bf16.mxu0 0
  %1750 = vmatmul.mubr.bf16.gmra.mrb[0].mxu0 %v1654
  %v1751 = vpop.f32.mrb[0].mxu0
  %v1752 = vadd.f32 0.0, %v1751
  %v1753 = vpop.f32.mrb[0].mxu0
  %v1754 = vpop.f32.mrb[0].mxu0
  %v1755 = vadd.f32 0.0, %v1754
  %v1756 = vpop.f32.mrb[0].mxu0
  %1757 = vmatprep.mubr.bf16.mxu0 0
  %1758 = vmatmul.mubr.bf16.gmra.mrb[0].mxu0 %v1657
  %v1759 = vpop.f32.mrb[0].mxu0
  %v1760 = vadd.f32 0.0, %v1759
  %v1761 = vpop.f32.mrb[0].mxu0
  %v1762 = vpop.f32.mrb[0].mxu0
  %v1763 = vadd.f32 0.0, %v1762
  %v1764 = vpop.f32.mrb[0].mxu0
  %1765 = vmatprep.mubr.bf16.mxu0 0
  %1766 = vmatmul.mubr.bf16.gmra.mrb[0].mxu0 %v1660
  %v1767 = vpop.f32.mrb[0].mxu0
  %v1768 = vadd.f32 0.0, %v1767
  %v1769 = vpop.f32.mrb[0].mxu0
  %v1770 = vpop.f32.mrb[0].mxu0
  %v1771 = vadd.f32 0.0, %v1770
  %v1772 = vpop.f32.mrb[0].mxu0
  %1773 = vmatprep.mubr.bf16.mxu0 0
  %1774 = vmatmul.mubr.bf16.gmra.mrb[0].mxu0 %v1663
  %v1775 = vpop.f32.mrb[0].mxu0
  %v1776 = vadd.f32 0.0, %v1775
  %v1777 = vpop.f32.mrb[0].mxu0
  %v1778 = vpop.f32.mrb[0].mxu0
  %v1779 = vadd.f32 0.0, %v1778
  %v1780 = vpop.f32.mrb[0].mxu0
  %1781 = vmatprep.mubr.bf16.mxu0 0
  %1782 = vmatmul.mubr.bf16.gmra.mrb[0].mxu0 %v1666
  %v1783 = vpop.f32.mrb[0].mxu0
  %v1784 = vadd.f32 0.0, %v1783
  %v1785 = vpop.f32.mrb[0].mxu0
  %v1786 = vpop.f32.mrb[0].mxu0
  %v1787 = vadd.f32 0.0, %v1786
  %v1788 = vpop.f32.mrb[0].mxu0
  %1789 = vmatprep.mubr.bf16.mxu0 0
  %1790 = vmatmul.mubr.bf16.gmra.mrb[0].mxu0 %v1669
  %v1791 = vpop.f32.mrb[0].mxu0
  %v1792 = vadd.f32 0.0, %v1791
  %v1793 = vpop.f32.mrb[0].mxu0
  %v1794 = vpop.f32.mrb[0].mxu0
  %v1795 = vadd.f32 0.0, %v1794
  %v1796 = vpop.f32.mrb[0].mxu0
  %1797 = vmatprep.mubr.bf16.mxu0 0
  %1798 = vmatmul.mubr.bf16.gmra.mrb[0].mxu0 %v1672
  %v1799 = vpop.f32.mrb[0].mxu0
  %v1800 = vadd.f32 0.0, %v1799
  %v1801 = vpop.f32.mrb[0].mxu0
  %v1802 = vpop.f32.mrb[0].mxu0
  %v1803 = vadd.f32 0.0, %v1802
  %v1804 = vpop.f32.mrb[0].mxu0
  %1805 = vmatprep.mubr.bf16.mxu0 0
  %1806 = vmatmul.mubr.bf16.gmra.mrb[0].mxu0 %v1675
  %v1807 = vpop.f32.mrb[0].mxu0
  %v1808 = vadd.f32 0.0, %v1807
  %v1809 = vpop.f32.mrb[0].mxu0
  %v1810 = vpop.f32.mrb[0].mxu0
  %v1811 = vpop.f32.mrb[0].mxu0
  %1812 = vdwg.mxu0
  %v1813 = vadd.f32 %v1566, %v1712
  %v1814 = vadd.f32 %v1567, %v1715
  %v1815 = vadd.f32 %v1568, %v1720
  %v1816 = vadd.f32 %v1569, %v1723
  %v1817 = vadd.f32 %v1570, %v1728
  %v1818 = vadd.f32 %v1571, %v1731
  %v1819 = vadd.f32 %v1572, %v1736
  %v1820 = vadd.f32 %v1573, %v1739
  %v1821 = vadd.f32 %v1574, %v1744
  %v1822 = vadd.f32 %v1575, %v1747
  %v1823 = vadd.f32 %v1576, %v1752
  %v1824 = vadd.f32 %v1577, %v1755
  %v1825 = vadd.f32 %v1578, %v1760
  %v1826 = vadd.f32 %v1579, %v1763
  %v1827 = vadd.f32 %v1580, %v1768
  %v1828 = vadd.f32 %v1581, %v1771
  %v1829 = vadd.f32 %v1582, %v1776
  %v1830 = vadd.f32 %v1583, %v1779
  %v1831 = vadd.f32 %v1584, %v1784
  %v1832 = vadd.f32 %v1585, %v1787
  %v1833 = vadd.f32 %v1586, %v1792
  %v1834 = vadd.f32 %v1587, %v1795
  %v1835 = vadd.f32 %v1588, %v1800
  %v1836 = vadd.f32 %v1589, %v1803
  %v1837 = vadd.f32 %v1590, %v1808
  %v1838 = vld [vmem:[#allocation2 + $0x14] sm:$0xff]
  %v1839 = vld [vmem:[#allocation2 + $0x1c] sm:$0xff]
  %v1840 = vld [vmem:[#allocation2 + $0x24] sm:$0xff]
  %v1841 = vld [vmem:[#allocation2 + $0x2c] sm:$0xff]
  %v1842 = vld [vmem:[#allocation2 + $0x34] sm:$0xff]
  %v1843 = vld [vmem:[#allocation2 + $0x3c] sm:$0xff]
  %v1844 = vld [vmem:[#allocation2 + $0x44] sm:$0xff]
  %v1845 = vld [vmem:[#allocation2 + $0x4c] sm:$0xff]
  %v1846 = vld [vmem:[#allocation2 + $0x54] sm:$0xff]
  %v1847 = vld [vmem:[#allocation2 + $0x5c] sm:$0xff]
  %v1848 = vld [vmem:[#allocation2 + $0x64] sm:$0xff]
  %v1849 = vld [vmem:[#allocation2 + $0x6c] sm:$0xff]
  %v1850 = vld [vmem:[#allocation2 + $0x74] sm:$0xff]
  %v1851 = vld [vmem:[#allocation2 + $0x7c] sm:$0xff]
  %v1852 = vld [vmem:[#allocation2 + $0x84] sm:$0xff]
  %v1853 = vld [vmem:[#allocation2 + $0x8c] sm:$0xff]
  %v1854 = vld [vmem:[#allocation2 + $0x94] sm:$0xff]
  %v1855 = vld [vmem:[#allocation2 + $0x9c] sm:$0xff]
  %v1856 = vld [vmem:[#allocation2 + $0xa4] sm:$0xff]
  %v1857 = vld [vmem:[#allocation2 + $0xac] sm:$0xff]
  %v1858 = vld [vmem:[#allocation2 + $0xb4] sm:$0xff]
  %v1859 = vld [vmem:[#allocation2 + $0xbc] sm:$0xff]
  %v1860 = vld [vmem:[#allocation2 + $0xc4] sm:$0xff]
  %v1861 = vld [vmem:[#allocation2 + $0xcc] sm:$0xff]
  %v1862 = vld [vmem:[#allocation2 + $0xd4] sm:$0xff]
  %v1863 = vpack.c.bf16 %v1839, %v1838
  %v1864 = vpack.c.bf16 %v1841, %v1840
  %v1865 = vpack.c.bf16 %v1843, %v1842
  %v1866 = vpack.c.bf16 %v1845, %v1844
  %v1867 = vpack.c.bf16 %v1847, %v1846
  %v1868 = vpack.c.bf16 %v1849, %v1848
  %v1869 = vpack.c.bf16 %v1851, %v1850
  %v1870 = vpack.c.bf16 %v1853, %v1852
  %v1871 = vpack.c.bf16 %v1855, %v1854
  %v1872 = vpack.c.bf16 %v1857, %v1856
  %v1873 = vpack.c.bf16 %v1859, %v1858
  %v1874 = vpack.c.bf16 %v1861, %v1860
  %v1875 = vpack.c.bf16 %v1862, %v1862
  %s1876 = scalar_lea.vmem %s4, 48
  %v1877 = vld [vmem:[%s1876] sm:$0xf]
  %v1878 = vld [vmem:[%s1876 + $0x4] sm:$0xf]
  %v1881 = vunpack.c.l.b16 %v1877
  %v1882 = vunpack.c.l.b16 %v1878
  %v1883 = vpack.c.b16 %v1882, %v1881
  %v1886 = vsel %vm377, %v1863, 0
  %v1889 = vsel %vm377, %v1864, 0
  %v1892 = vsel %vm377, %v1865, 0
  %v1895 = vsel %vm377, %v1866, 0
  %v1898 = vsel %vm377, %v1867, 0
  %v1901 = vsel %vm377, %v1868, 0
  %v1904 = vsel %vm377, %v1869, 0
  %v1907 = vsel %vm377, %v1870, 0
  %v1910 = vsel %vm377, %v1871, 0
  %v1913 = vsel %vm377, %v1872, 0
  %v1916 = vsel %vm377, %v1873, 0
  %v1919 = vsel %vm377, %v1874, 0
  %v1922 = vsel %vm377, %v1875, 0
  %1924 = vmatprep.subr.bf16.mxu0 0
  %1925 = vmatpush1.bf16.msra.mxu0 %v1883
  %1926 = vmatprep.subr.bf16.mxu0 0
  %1927 = vmatpush1.bf16.msra.mxu0 0
  %1928 = vmatprep.subr.bf16.mxu0 0
  %1929 = vmatpush1.bf16.msra.mxu0 0
  %1930 = vmatprep.subr.bf16.mxu0 0
  %1931 = vmatpush1.bf16.msra.mxu0 0
  %1932 = vmatprep.subr.bf16.mxu0 0
  %1933 = vmatpush1.bf16.msra.mxu0 0
  %1934 = vmatprep.subr.bf16.mxu0 0
  %1935 = vmatpush1.bf16.msra.mxu0 0
  %1936 = vmatprep.subr.bf16.mxu0 0
  %1937 = vmatpush1.bf16.msra.mxu0 0
  %1938 = vmatprep.subr.bf16.mxu0 0
  %1939 = vmatpush1.bf16.msra.mxu0 0
  %1940 = vmatprep.subr.bf16.mxu0 0
  %1941 = vmatpush1.bf16.msra.mxu0 0
  %1942 = vmatprep.subr.bf16.mxu0 0
  %1943 = vmatpush1.bf16.msra.mxu0 0
  %1944 = vmatprep.subr.bf16.mxu0 0
  %1945 = vmatpush1.bf16.msra.mxu0 0
  %1946 = vmatprep.subr.bf16.mxu0 0
  %1947 = vmatpush1.bf16.msra.mxu0 0
  %1948 = vmatprep.subr.bf16.mxu0 0
  %1949 = vmatpush1.bf16.msra.mxu0 0
  %1950 = vmatprep.subr.bf16.mxu0 0
  %1951 = vmatpush1.bf16.msra.mxu0 0
  %1952 = vmatprep.subr.bf16.mxu0 0
  %1953 = vmatpush1.bf16.msra.mxu0 0
  %1954 = vmatprep.subr.bf16.mxu0 0
  %1955 = vmatpush1.bf16.msra.mxu0 0
  %1956 = vmatprep.mubr.bf16.mxu0 0
  %1957 = vmatmul.mubr.bf16.gmra.mrb[0].mxu0 %v1886
  %v1958 = vpop.f32.mrb[0].mxu0
  %v1959 = vadd.f32 0.0, %v1958
  %v1960 = vpop.f32.mrb[0].mxu0
  %v1961 = vpop.f32.mrb[0].mxu0
  %v1962 = vadd.f32 0.0, %v1961
  %v1963 = vpop.f32.mrb[0].mxu0
  %1964 = vmatprep.mubr.bf16.mxu0 0
  %1965 = vmatmul.mubr.bf16.gmra.mrb[0].mxu0 %v1889
  %v1966 = vpop.f32.mrb[0].mxu0
  %v1967 = vadd.f32 0.0, %v1966
  %v1968 = vpop.f32.mrb[0].mxu0
  %v1969 = vpop.f32.mrb[0].mxu0
  %v1970 = vadd.f32 0.0, %v1969
  %v1971 = vpop.f32.mrb[0].mxu0
  %1972 = vmatprep.mubr.bf16.mxu0 0
  %1973 = vmatmul.mubr.bf16.gmra.mrb[0].mxu0 %v1892
  %v1974 = vpop.f32.mrb[0].mxu0
  %v1975 = vadd.f32 0.0, %v1974
  %v1976 = vpop.f32.mrb[0].mxu0
  %v1977 = vpop.f32.mrb[0].mxu0
  %v1978 = vadd.f32 0.0, %v1977
  %v1979 = vpop.f32.mrb[0].mxu0
  %1980 = vmatprep.mubr.bf16.mxu0 0
  %1981 = vmatmul.mubr.bf16.gmra.mrb[0].mxu0 %v1895
  %v1982 = vpop.f32.mrb[0].mxu0
  %v1983 = vadd.f32 0.0, %v1982
  %v1984 = vpop.f32.mrb[0].mxu0
  %v1985 = vpop.f32.mrb[0].mxu0
  %v1986 = vadd.f32 0.0, %v1985
  %v1987 = vpop.f32.mrb[0].mxu0
  %1988 = vmatprep.mubr.bf16.mxu0 0
  %1989 = vmatmul.mubr.bf16.gmra.mrb[0].mxu0 %v1898
  %v1990 = vpop.f32.mrb[0].mxu0
  %v1991 = vadd.f32 0.0, %v1990
  %v1992 = vpop.f32.mrb[0].mxu0
  %v1993 = vpop.f32.mrb[0].mxu0
  %v1994 = vadd.f32 0.0, %v1993
  %v1995 = vpop.f32.mrb[0].mxu0
  %1996 = vmatprep.mubr.bf16.mxu0 0
  %1997 = vmatmul.mubr.bf16.gmra.mrb[0].mxu0 %v1901
  %v1998 = vpop.f32.mrb[0].mxu0
  %v1999 = vadd.f32 0.0, %v1998
  %v2000 = vpop.f32.mrb[0].mxu0
  %v2001 = vpop.f32.mrb[0].mxu0
  %v2002 = vadd.f32 0.0, %v2001
  %v2003 = vpop.f32.mrb[0].mxu0
  %2004 = vmatprep.mubr.bf16.mxu0 0
  %2005 = vmatmul.mubr.bf16.gmra.mrb[0].mxu0 %v1904
  %v2006 = vpop.f32.mrb[0].mxu0
  %v2007 = vadd.f32 0.0, %v2006
  %v2008 = vpop.f32.mrb[0].mxu0
  %v2009 = vpop.f32.mrb[0].mxu0
  %v2010 = vadd.f32 0.0, %v2009
  %v2011 = vpop.f32.mrb[0].mxu0
  %2012 = vmatprep.mubr.bf16.mxu0 0
  %2013 = vmatmul.mubr.bf16.gmra.mrb[0].mxu0 %v1907
  %v2014 = vpop.f32.mrb[0].mxu0
  %v2015 = vadd.f32 0.0, %v2014
  %v2016 = vpop.f32.mrb[0].mxu0
  %v2017 = vpop.f32.mrb[0].mxu0
  %v2018 = vadd.f32 0.0, %v2017
  %v2019 = vpop.f32.mrb[0].mxu0
  %2020 = vmatprep.mubr.bf16.mxu0 0
  %2021 = vmatmul.mubr.bf16.gmra.mrb[0].mxu0 %v1910
  %v2022 = vpop.f32.mrb[0].mxu0
  %v2023 = vadd.f32 0.0, %v2022
  %v2024 = vpop.f32.mrb[0].mxu0
  %v2025 = vpop.f32.mrb[0].mxu0
  %v2026 = vadd.f32 0.0, %v2025
  %v2027 = vpop.f32.mrb[0].mxu0
  %2028 = vmatprep.mubr.bf16.mxu0 0
  %2029 = vmatmul.mubr.bf16.gmra.mrb[0].mxu0 %v1913
  %v2030 = vpop.f32.mrb[0].mxu0
  %v2031 = vadd.f32 0.0, %v2030
  %v2032 = vpop.f32.mrb[0].mxu0
  %v2033 = vpop.f32.mrb[0].mxu0
  %v2034 = vadd.f32 0.0, %v2033
  %v2035 = vpop.f32.mrb[0].mxu0
  %2036 = vmatprep.mubr.bf16.mxu0 0
  %2037 = vmatmul.mubr.bf16.gmra.mrb[0].mxu0 %v1916
  %v2038 = vpop.f32.mrb[0].mxu0
  %v2039 = vadd.f32 0.0, %v2038
  %v2040 = vpop.f32.mrb[0].mxu0
  %v2041 = vpop.f32.mrb[0].mxu0
  %v2042 = vadd.f32 0.0, %v2041
  %v2043 = vpop.f32.mrb[0].mxu0
  %2044 = vmatprep.mubr.bf16.mxu0 0
  %2045 = vmatmul.mubr.bf16.gmra.mrb[0].mxu0 %v1919
  %v2046 = vpop.f32.mrb[0].mxu0
  %v2047 = vadd.f32 0.0, %v2046
  %v2048 = vpop.f32.mrb[0].mxu0
  %v2049 = vpop.f32.mrb[0].mxu0
  %v2050 = vadd.f32 0.0, %v2049
  %v2051 = vpop.f32.mrb[0].mxu0
  %2052 = vmatprep.mubr.bf16.mxu0 0
  %2053 = vmatmul.mubr.bf16.gmra.mrb[0].mxu0 %v1922
  %v2054 = vpop.f32.mrb[0].mxu0
  %v2055 = vadd.f32 0.0, %v2054
  %v2056 = vpop.f32.mrb[0].mxu0
  %v2057 = vpop.f32.mrb[0].mxu0
  %v2058 = vpop.f32.mrb[0].mxu0
  %2059 = vdwg.mxu0
  %v2060 = vadd.f32 %v1813, %v1959
  %v2061 = vadd.f32 %v1814, %v1962
  %v2062 = vadd.f32 %v1815, %v1967
  %v2063 = vadd.f32 %v1816, %v1970
  %v2064 = vadd.f32 %v1817, %v1975
  %v2065 = vadd.f32 %v1818, %v1978
  %v2066 = vadd.f32 %v1819, %v1983
  %v2067 = vadd.f32 %v1820, %v1986
  %v2068 = vadd.f32 %v1821, %v1991
  %v2069 = vadd.f32 %v1822, %v1994
  %v2070 = vadd.f32 %v1823, %v1999
  %v2071 = vadd.f32 %v1824, %v2002
  %v2072 = vadd.f32 %v1825, %v2007
  %v2073 = vadd.f32 %v1826, %v2010
  %v2074 = vadd.f32 %v1827, %v2015
  %v2075 = vadd.f32 %v1828, %v2018
  %v2076 = vadd.f32 %v1829, %v2023
  %v2077 = vadd.f32 %v1830, %v2026
  %v2078 = vadd.f32 %v1831, %v2031
  %v2079 = vadd.f32 %v1832, %v2034
  %v2080 = vadd.f32 %v1833, %v2039
  %v2081 = vadd.f32 %v1834, %v2042
  %v2082 = vadd.f32 %v1835, %v2047
  %v2083 = vadd.f32 %v1836, %v2050
  %v2084 = vadd.f32 %v1837, %v2055
  %v2085 = vld [vmem:[#allocation2 + $0x15] sm:$0xff]
  %v2086 = vld [vmem:[#allocation2 + $0x1d] sm:$0xff]
  %v2087 = vld [vmem:[#allocation2 + $0x25] sm:$0xff]
  %v2088 = vld [vmem:[#allocation2 + $0x2d] sm:$0xff]
  %v2089 = vld [vmem:[#allocation2 + $0x35] sm:$0xff]
  %v2090 = vld [vmem:[#allocation2 + $0x3d] sm:$0xff]
  %v2091 = vld [vmem:[#allocation2 + $0x45] sm:$0xff]
  %v2092 = vld [vmem:[#allocation2 + $0x4d] sm:$0xff]
  %v2093 = vld [vmem:[#allocation2 + $0x55] sm:$0xff]
  %v2094 = vld [vmem:[#allocation2 + $0x5d] sm:$0xff]
  %v2095 = vld [vmem:[#allocation2 + $0x65] sm:$0xff]
  %v2096 = vld [vmem:[#allocation2 + $0x6d] sm:$0xff]
  %v2097 = vld [vmem:[#allocation2 + $0x75] sm:$0xff]
  %v2098 = vld [vmem:[#allocation2 + $0x7d] sm:$0xff]
  %v2099 = vld [vmem:[#allocation2 + $0x85] sm:$0xff]
  %v2100 = vld [vmem:[#allocation2 + $0x8d] sm:$0xff]
  %v2101 = vld [vmem:[#allocation2 + $0x95] sm:$0xff]
  %v2102 = vld [vmem:[#allocation2 + $0x9d] sm:$0xff]
  %v2103 = vld [vmem:[#allocation2 + $0xa5] sm:$0xff]
  %v2104 = vld [vmem:[#allocation2 + $0xad] sm:$0xff]
  %v2105 = vld [vmem:[#allocation2 + $0xb5] sm:$0xff]
  %v2106 = vld [vmem:[#allocation2 + $0xbd] sm:$0xff]
  %v2107 = vld [vmem:[#allocation2 + $0xc5] sm:$0xff]
  %v2108 = vld [vmem:[#allocation2 + $0xcd] sm:$0xff]
  %v2109 = vld [vmem:[#allocation2 + $0xd5] sm:$0xff]
  %v2110 = vpack.c.bf16 %v2086, %v2085
  %v2111 = vpack.c.bf16 %v2088, %v2087
  %v2112 = vpack.c.bf16 %v2090, %v2089
  %v2113 = vpack.c.bf16 %v2092, %v2091
  %v2114 = vpack.c.bf16 %v2094, %v2093
  %v2115 = vpack.c.bf16 %v2096, %v2095
  %v2116 = vpack.c.bf16 %v2098, %v2097
  %v2117 = vpack.c.bf16 %v2100, %v2099
  %v2118 = vpack.c.bf16 %v2102, %v2101
  %v2119 = vpack.c.bf16 %v2104, %v2103
  %v2120 = vpack.c.bf16 %v2106, %v2105
  %v2121 = vpack.c.bf16 %v2108, %v2107
  %v2122 = vpack.c.bf16 %v2109, %v2109
  %s2123 = scalar_lea.vmem %s4, 56
  %v2124 = vld [vmem:[%s2123] sm:$0xf]
  %v2125 = vld [vmem:[%s2123 + $0x4] sm:$0xf]
  %v2128 = vunpack.c.l.b16 %v2124
  %v2129 = vunpack.c.l.b16 %v2125
  %v2130 = vpack.c.b16 %v2129, %v2128
  %v2133 = vsel %vm377, %v2110, 0
  %v2136 = vsel %vm377, %v2111, 0
  %v2139 = vsel %vm377, %v2112, 0
  %v2142 = vsel %vm377, %v2113, 0
  %v2145 = vsel %vm377, %v2114, 0
  %v2148 = vsel %vm377, %v2115, 0
  %v2151 = vsel %vm377, %v2116, 0
  %v2154 = vsel %vm377, %v2117, 0
  %v2157 = vsel %vm377, %v2118, 0
  %v2160 = vsel %vm377, %v2119, 0
  %v2163 = vsel %vm377, %v2120, 0
  %v2166 = vsel %vm377, %v2121, 0
  %v2169 = vsel %vm377, %v2122, 0
  %2171 = vmatprep.subr.bf16.mxu0 0
  %2172 = vmatpush1.bf16.msra.mxu0 %v2130
  %2173 = vmatprep.subr.bf16.mxu0 0
  %2174 = vmatpush1.bf16.msra.mxu0 0
  %2175 = vmatprep.subr.bf16.mxu0 0
  %2176 = vmatpush1.bf16.msra.mxu0 0
  %2177 = vmatprep.subr.bf16.mxu0 0
  %2178 = vmatpush1.bf16.msra.mxu0 0
  %2179 = vmatprep.subr.bf16.mxu0 0
  %2180 = vmatpush1.bf16.msra.mxu0 0
  %2181 = vmatprep.subr.bf16.mxu0 0
  %2182 = vmatpush1.bf16.msra.mxu0 0
  %2183 = vmatprep.subr.bf16.mxu0 0
  %2184 = vmatpush1.bf16.msra.mxu0 0
  %2185 = vmatprep.subr.bf16.mxu0 0
  %2186 = vmatpush1.bf16.msra.mxu0 0
  %2187 = vmatprep.subr.bf16.mxu0 0
  %2188 = vmatpush1.bf16.msra.mxu0 0
  %2189 = vmatprep.subr.bf16.mxu0 0
  %2190 = vmatpush1.bf16.msra.mxu0 0
  %2191 = vmatprep.subr.bf16.mxu0 0
  %2192 = vmatpush1.bf16.msra.mxu0 0
  %2193 = vmatprep.subr.bf16.mxu0 0
  %2194 = vmatpush1.bf16.msra.mxu0 0
  %2195 = vmatprep.subr.bf16.mxu0 0
  %2196 = vmatpush1.bf16.msra.mxu0 0
  %2197 = vmatprep.subr.bf16.mxu0 0
  %2198 = vmatpush1.bf16.msra.mxu0 0
  %2199 = vmatprep.subr.bf16.mxu0 0
  %2200 = vmatpush1.bf16.msra.mxu0 0
  %2201 = vmatprep.subr.bf16.mxu0 0
  %2202 = vmatpush1.bf16.msra.mxu0 0
  %2203 = vmatprep.mubr.bf16.mxu0 0
  %2204 = vmatmul.mubr.bf16.gmra.mrb[0].mxu0 %v2133
  %v2205 = vpop.f32.mrb[0].mxu0
  %v2206 = vadd.f32 0.0, %v2205
  %v2207 = vpop.f32.mrb[0].mxu0
  %v2208 = vpop.f32.mrb[0].mxu0
  %v2209 = vadd.f32 0.0, %v2208
  %v2210 = vpop.f32.mrb[0].mxu0
  %2211 = vmatprep.mubr.bf16.mxu0 0
  %2212 = vmatmul.mubr.bf16.gmra.mrb[0].mxu0 %v2136
  %v2213 = vpop.f32.mrb[0].mxu0
  %v2214 = vadd.f32 0.0, %v2213
  %v2215 = vpop.f32.mrb[0].mxu0
  %v2216 = vpop.f32.mrb[0].mxu0
  %v2217 = vadd.f32 0.0, %v2216
  %v2218 = vpop.f32.mrb[0].mxu0
  %2219 = vmatprep.mubr.bf16.mxu0 0
  %2220 = vmatmul.mubr.bf16.gmra.mrb[0].mxu0 %v2139
  %v2221 = vpop.f32.mrb[0].mxu0
  %v2222 = vadd.f32 0.0, %v2221
  %v2223 = vpop.f32.mrb[0].mxu0
  %v2224 = vpop.f32.mrb[0].mxu0
  %v2225 = vadd.f32 0.0, %v2224
  %v2226 = vpop.f32.mrb[0].mxu0
  %2227 = vmatprep.mubr.bf16.mxu0 0
  %2228 = vmatmul.mubr.bf16.gmra.mrb[0].mxu0 %v2142
  %v2229 = vpop.f32.mrb[0].mxu0
  %v2230 = vadd.f32 0.0, %v2229
  %v2231 = vpop.f32.mrb[0].mxu0
  %v2232 = vpop.f32.mrb[0].mxu0
  %v2233 = vadd.f32 0.0, %v2232
  %v2234 = vpop.f32.mrb[0].mxu0
  %2235 = vmatprep.mubr.bf16.mxu0 0
  %2236 = vmatmul.mubr.bf16.gmra.mrb[0].mxu0 %v2145
  %v2237 = vpop.f32.mrb[0].mxu0
  %v2238 = vadd.f32 0.0, %v2237
  %v2239 = vpop.f32.mrb[0].mxu0
  %v2240 = vpop.f32.mrb[0].mxu0
  %v2241 = vadd.f32 0.0, %v2240
  %v2242 = vpop.f32.mrb[0].mxu0
  %2243 = vmatprep.mubr.bf16.mxu0 0
  %2244 = vmatmul.mubr.bf16.gmra.mrb[0].mxu0 %v2148
  %v2245 = vpop.f32.mrb[0].mxu0
  %v2246 = vadd.f32 0.0, %v2245
  %v2247 = vpop.f32.mrb[0].mxu0
  %v2248 = vpop.f32.mrb[0].mxu0
  %v2249 = vadd.f32 0.0, %v2248
  %v2250 = vpop.f32.mrb[0].mxu0
  %2251 = vmatprep.mubr.bf16.mxu0 0
  %2252 = vmatmul.mubr.bf16.gmra.mrb[0].mxu0 %v2151
  %v2253 = vpop.f32.mrb[0].mxu0
  %v2254 = vadd.f32 0.0, %v2253
  %v2255 = vpop.f32.mrb[0].mxu0
  %v2256 = vpop.f32.mrb[0].mxu0
  %v2257 = vadd.f32 0.0, %v2256
  %v2258 = vpop.f32.mrb[0].mxu0
  %2259 = vmatprep.mubr.bf16.mxu0 0
  %2260 = vmatmul.mubr.bf16.gmra.mrb[0].mxu0 %v2154
  %v2261 = vpop.f32.mrb[0].mxu0
  %v2262 = vadd.f32 0.0, %v2261
  %v2263 = vpop.f32.mrb[0].mxu0
  %v2264 = vpop.f32.mrb[0].mxu0
  %v2265 = vadd.f32 0.0, %v2264
  %v2266 = vpop.f32.mrb[0].mxu0
  %2267 = vmatprep.mubr.bf16.mxu0 0
  %2268 = vmatmul.mubr.bf16.gmra.mrb[0].mxu0 %v2157
  %v2269 = vpop.f32.mrb[0].mxu0
  %v2270 = vadd.f32 0.0, %v2269
  %v2271 = vpop.f32.mrb[0].mxu0
  %v2272 = vpop.f32.mrb[0].mxu0
  %v2273 = vadd.f32 0.0, %v2272
  %v2274 = vpop.f32.mrb[0].mxu0
  %2275 = vmatprep.mubr.bf16.mxu0 0
  %2276 = vmatmul.mubr.bf16.gmra.mrb[0].mxu0 %v2160
  %v2277 = vpop.f32.mrb[0].mxu0
  %v2278 = vadd.f32 0.0, %v2277
  %v2279 = vpop.f32.mrb[0].mxu0
  %v2280 = vpop.f32.mrb[0].mxu0
  %v2281 = vadd.f32 0.0, %v2280
  %v2282 = vpop.f32.mrb[0].mxu0
  %2283 = vmatprep.mubr.bf16.mxu0 0
  %2284 = vmatmul.mubr.bf16.gmra.mrb[0].mxu0 %v2163
  %v2285 = vpop.f32.mrb[0].mxu0
  %v2286 = vadd.f32 0.0, %v2285
  %v2287 = vpop.f32.mrb[0].mxu0
  %v2288 = vpop.f32.mrb[0].mxu0
  %v2289 = vadd.f32 0.0, %v2288
  %v2290 = vpop.f32.mrb[0].mxu0
  %2291 = vmatprep.mubr.bf16.mxu0 0
  %2292 = vmatmul.mubr.bf16.gmra.mrb[0].mxu0 %v2166
  %v2293 = vpop.f32.mrb[0].mxu0
  %v2294 = vadd.f32 0.0, %v2293
  %v2295 = vpop.f32.mrb[0].mxu0
  %v2296 = vpop.f32.mrb[0].mxu0
  %v2297 = vadd.f32 0.0, %v2296
  %v2298 = vpop.f32.mrb[0].mxu0
  %2299 = vmatprep.mubr.bf16.mxu0 0
  %2300 = vmatmul.mubr.bf16.gmra.mrb[0].mxu0 %v2169
  %v2301 = vpop.f32.mrb[0].mxu0
  %v2302 = vadd.f32 0.0, %v2301
  %v2303 = vpop.f32.mrb[0].mxu0
  %v2304 = vpop.f32.mrb[0].mxu0
  %v2305 = vpop.f32.mrb[0].mxu0
  %2306 = vdwg.mxu0
  %v2307 = vadd.f32 %v2060, %v2206
  %v2308 = vadd.f32 %v2061, %v2209
  %v2309 = vadd.f32 %v2062, %v2214
  %v2310 = vadd.f32 %v2063, %v2217
  %v2311 = vadd.f32 %v2064, %v2222
  %v2312 = vadd.f32 %v2065, %v2225
  %v2313 = vadd.f32 %v2066, %v2230
  %v2314 = vadd.f32 %v2067, %v2233
  %v2315 = vadd.f32 %v2068, %v2238
  %v2316 = vadd.f32 %v2069, %v2241
  %v2317 = vadd.f32 %v2070, %v2246
  %v2318 = vadd.f32 %v2071, %v2249
  %v2319 = vadd.f32 %v2072, %v2254
  %v2320 = vadd.f32 %v2073, %v2257
  %v2321 = vadd.f32 %v2074, %v2262
  %v2322 = vadd.f32 %v2075, %v2265
  %v2323 = vadd.f32 %v2076, %v2270
  %v2324 = vadd.f32 %v2077, %v2273
  %v2325 = vadd.f32 %v2078, %v2278
  %v2326 = vadd.f32 %v2079, %v2281
  %v2327 = vadd.f32 %v2080, %v2286
  %v2328 = vadd.f32 %v2081, %v2289
  %v2329 = vadd.f32 %v2082, %v2294
  %v2330 = vadd.f32 %v2083, %v2297
  %v2331 = vadd.f32 %v2084, %v2302
  %v2332 = vld [vmem:[#allocation2 + $0x16] sm:$0xff]
  %v2333 = vld [vmem:[#allocation2 + $0x1e] sm:$0xff]
  %v2334 = vld [vmem:[#allocation2 + $0x26] sm:$0xff]
  %v2335 = vld [vmem:[#allocation2 + $0x2e] sm:$0xff]
  %v2336 = vld [vmem:[#allocation2 + $0x36] sm:$0xff]
  %v2337 = vld [vmem:[#allocation2 + $0x3e] sm:$0xff]
  %v2338 = vld [vmem:[#allocation2 + $0x46] sm:$0xff]
  %v2339 = vld [vmem:[#allocation2 + $0x4e] sm:$0xff]
  %v2340 = vld [vmem:[#allocation2 + $0x56] sm:$0xff]
  %v2341 = vld [vmem:[#allocation2 + $0x5e] sm:$0xff]
  %v2342 = vld [vmem:[#allocation2 + $0x66] sm:$0xff]
  %v2343 = vld [vmem:[#allocation2 + $0x6e] sm:$0xff]
  %v2344 = vld [vmem:[#allocation2 + $0x76] sm:$0xff]
  %v2345 = vld [vmem:[#allocation2 + $0x7e] sm:$0xff]
  %v2346 = vld [vmem:[#allocation2 + $0x86] sm:$0xff]
  %v2347 = vld [vmem:[#allocation2 + $0x8e] sm:$0xff]
  %v2348 = vld [vmem:[#allocation2 + $0x96] sm:$0xff]
  %v2349 = vld [vmem:[#allocation2 + $0x9e] sm:$0xff]
  %v2350 = vld [vmem:[#allocation2 + $0xa6] sm:$0xff]
  %v2351 = vld [vmem:[#allocation2 + $0xae] sm:$0xff]
  %v2352 = vld [vmem:[#allocation2 + $0xb6] sm:$0xff]
  %v2353 = vld [vmem:[#allocation2 + $0xbe] sm:$0xff]
  %v2354 = vld [vmem:[#allocation2 + $0xc6] sm:$0xff]
  %v2355 = vld [vmem:[#allocation2 + $0xce] sm:$0xff]
  %v2356 = vld [vmem:[#allocation2 + $0xd6] sm:$0xff]
  %v2357 = vpack.c.bf16 %v2333, %v2332
  %v2358 = vpack.c.bf16 %v2335, %v2334
  %v2359 = vpack.c.bf16 %v2337, %v2336
  %v2360 = vpack.c.bf16 %v2339, %v2338
  %v2361 = vpack.c.bf16 %v2341, %v2340
  %v2362 = vpack.c.bf16 %v2343, %v2342
  %v2363 = vpack.c.bf16 %v2345, %v2344
  %v2364 = vpack.c.bf16 %v2347, %v2346
  %v2365 = vpack.c.bf16 %v2349, %v2348
  %v2366 = vpack.c.bf16 %v2351, %v2350
  %v2367 = vpack.c.bf16 %v2353, %v2352
  %v2368 = vpack.c.bf16 %v2355, %v2354
  %v2369 = vpack.c.bf16 %v2356, %v2356
  %s2370 = scalar_lea.vmem %s4, 64
  %v2371 = vld [vmem:[%s2370] sm:$0xf]
  %v2372 = vld [vmem:[%s2370 + $0x4] sm:$0xf]
  %v2375 = vunpack.c.l.b16 %v2371
  %v2376 = vunpack.c.l.b16 %v2372
  %v2377 = vpack.c.b16 %v2376, %v2375
  %v2380 = vsel %vm377, %v2357, 0
  %v2383 = vsel %vm377, %v2358, 0
  %v2386 = vsel %vm377, %v2359, 0
  %v2389 = vsel %vm377, %v2360, 0
  %v2392 = vsel %vm377, %v2361, 0
  %v2395 = vsel %vm377, %v2362, 0
  %v2398 = vsel %vm377, %v2363, 0
  %v2401 = vsel %vm377, %v2364, 0
  %v2404 = vsel %vm377, %v2365, 0
  %v2407 = vsel %vm377, %v2366, 0
  %v2410 = vsel %vm377, %v2367, 0
  %v2413 = vsel %vm377, %v2368, 0
  %v2416 = vsel %vm377, %v2369, 0
  %2418 = vmatprep.subr.bf16.mxu0 0
  %2419 = vmatpush1.bf16.msra.mxu0 %v2377
  %2420 = vmatprep.subr.bf16.mxu0 0
  %2421 = vmatpush1.bf16.msra.mxu0 0
  %2422 = vmatprep.subr.bf16.mxu0 0
  %2423 = vmatpush1.bf16.msra.mxu0 0
  %2424 = vmatprep.subr.bf16.mxu0 0
  %2425 = vmatpush1.bf16.msra.mxu0 0
  %2426 = vmatprep.subr.bf16.mxu0 0
  %2427 = vmatpush1.bf16.msra.mxu0 0
  %2428 = vmatprep.subr.bf16.mxu0 0
  %2429 = vmatpush1.bf16.msra.mxu0 0
  %2430 = vmatprep.subr.bf16.mxu0 0
  %2431 = vmatpush1.bf16.msra.mxu0 0
  %2432 = vmatprep.subr.bf16.mxu0 0
  %2433 = vmatpush1.bf16.msra.mxu0 0
  %2434 = vmatprep.subr.bf16.mxu0 0
  %2435 = vmatpush1.bf16.msra.mxu0 0
  %2436 = vmatprep.subr.bf16.mxu0 0
  %2437 = vmatpush1.bf16.msra.mxu0 0
  %2438 = vmatprep.subr.bf16.mxu0 0
  %2439 = vmatpush1.bf16.msra.mxu0 0
  %2440 = vmatprep.subr.bf16.mxu0 0
  %2441 = vmatpush1.bf16.msra.mxu0 0
  %2442 = vmatprep.subr.bf16.mxu0 0
  %2443 = vmatpush1.bf16.msra.mxu0 0
  %2444 = vmatprep.subr.bf16.mxu0 0
  %2445 = vmatpush1.bf16.msra.mxu0 0
  %2446 = vmatprep.subr.bf16.mxu0 0
  %2447 = vmatpush1.bf16.msra.mxu0 0
  %2448 = vmatprep.subr.bf16.mxu0 0
  %2449 = vmatpush1.bf16.msra.mxu0 0
  %2450 = vmatprep.mubr.bf16.mxu0 0
  %2451 = vmatmul.mubr.bf16.gmra.mrb[0].mxu0 %v2380
  %v2452 = vpop.f32.mrb[0].mxu0
  %v2453 = vadd.f32 0.0, %v2452
  %v2454 = vpop.f32.mrb[0].mxu0
  %v2455 = vpop.f32.mrb[0].mxu0
  %v2456 = vadd.f32 0.0, %v2455
  %v2457 = vpop.f32.mrb[0].mxu0
  %2458 = vmatprep.mubr.bf16.mxu0 0
  %2459 = vmatmul.mubr.bf16.gmra.mrb[0].mxu0 %v2383
  %v2460 = vpop.f32.mrb[0].mxu0
  %v2461 = vadd.f32 0.0, %v2460
  %v2462 = vpop.f32.mrb[0].mxu0
  %v2463 = vpop.f32.mrb[0].mxu0
  %v2464 = vadd.f32 0.0, %v2463
  %v2465 = vpop.f32.mrb[0].mxu0
  %2466 = vmatprep.mubr.bf16.mxu0 0
  %2467 = vmatmul.mubr.bf16.gmra.mrb[0].mxu0 %v2386
  %v2468 = vpop.f32.mrb[0].mxu0
  %v2469 = vadd.f32 0.0, %v2468
  %v2470 = vpop.f32.mrb[0].mxu0
  %v2471 = vpop.f32.mrb[0].mxu0
  %v2472 = vadd.f32 0.0, %v2471
  %v2473 = vpop.f32.mrb[0].mxu0
  %2474 = vmatprep.mubr.bf16.mxu0 0
  %2475 = vmatmul.mubr.bf16.gmra.mrb[0].mxu0 %v2389
  %v2476 = vpop.f32.mrb[0].mxu0
  %v2477 = vadd.f32 0.0, %v2476
  %v2478 = vpop.f32.mrb[0].mxu0
  %v2479 = vpop.f32.mrb[0].mxu0
  %v2480 = vadd.f32 0.0, %v2479
  %v2481 = vpop.f32.mrb[0].mxu0
  %2482 = vmatprep.mubr.bf16.mxu0 0
  %2483 = vmatmul.mubr.bf16.gmra.mrb[0].mxu0 %v2392
  %v2484 = vpop.f32.mrb[0].mxu0
  %v2485 = vadd.f32 0.0, %v2484
  %v2486 = vpop.f32.mrb[0].mxu0
  %v2487 = vpop.f32.mrb[0].mxu0
  %v2488 = vadd.f32 0.0, %v2487
  %v2489 = vpop.f32.mrb[0].mxu0
  %2490 = vmatprep.mubr.bf16.mxu0 0
  %2491 = vmatmul.mubr.bf16.gmra.mrb[0].mxu0 %v2395
  %v2492 = vpop.f32.mrb[0].mxu0
  %v2493 = vadd.f32 0.0, %v2492
  %v2494 = vpop.f32.mrb[0].mxu0
  %v2495 = vpop.f32.mrb[0].mxu0
  %v2496 = vadd.f32 0.0, %v2495
  %v2497 = vpop.f32.mrb[0].mxu0
  %2498 = vmatprep.mubr.bf16.mxu0 0
  %2499 = vmatmul.mubr.bf16.gmra.mrb[0].mxu0 %v2398
  %v2500 = vpop.f32.mrb[0].mxu0
  %v2501 = vadd.f32 0.0, %v2500
  %v2502 = vpop.f32.mrb[0].mxu0
  %v2503 = vpop.f32.mrb[0].mxu0
  %v2504 = vadd.f32 0.0, %v2503
  %v2505 = vpop.f32.mrb[0].mxu0
  %2506 = vmatprep.mubr.bf16.mxu0 0
  %2507 = vmatmul.mubr.bf16.gmra.mrb[0].mxu0 %v2401
  %v2508 = vpop.f32.mrb[0].mxu0
  %v2509 = vadd.f32 0.0, %v2508
  %v2510 = vpop.f32.mrb[0].mxu0
  %v2511 = vpop.f32.mrb[0].mxu0
  %v2512 = vadd.f32 0.0, %v2511
  %v2513 = vpop.f32.mrb[0].mxu0
  %2514 = vmatprep.mubr.bf16.mxu0 0
  %2515 = vmatmul.mubr.bf16.gmra.mrb[0].mxu0 %v2404
  %v2516 = vpop.f32.mrb[0].mxu0
  %v2517 = vadd.f32 0.0, %v2516
  %v2518 = vpop.f32.mrb[0].mxu0
  %v2519 = vpop.f32.mrb[0].mxu0
  %v2520 = vadd.f32 0.0, %v2519
  %v2521 = vpop.f32.mrb[0].mxu0
  %2522 = vmatprep.mubr.bf16.mxu0 0
  %2523 = vmatmul.mubr.bf16.gmra.mrb[0].mxu0 %v2407
  %v2524 = vpop.f32.mrb[0].mxu0
  %v2525 = vadd.f32 0.0, %v2524
  %v2526 = vpop.f32.mrb[0].mxu0
  %v2527 = vpop.f32.mrb[0].mxu0
  %v2528 = vadd.f32 0.0, %v2527
  %v2529 = vpop.f32.mrb[0].mxu0
  %2530 = vmatprep.mubr.bf16.mxu0 0
  %2531 = vmatmul.mubr.bf16.gmra.mrb[0].mxu0 %v2410
  %v2532 = vpop.f32.mrb[0].mxu0
  %v2533 = vadd.f32 0.0, %v2532
  %v2534 = vpop.f32.mrb[0].mxu0
  %v2535 = vpop.f32.mrb[0].mxu0
  %v2536 = vadd.f32 0.0, %v2535
  %v2537 = vpop.f32.mrb[0].mxu0
  %2538 = vmatprep.mubr.bf16.mxu0 0
  %2539 = vmatmul.mubr.bf16.gmra.mrb[0].mxu0 %v2413
  %v2540 = vpop.f32.mrb[0].mxu0
  %v2541 = vadd.f32 0.0, %v2540
  %v2542 = vpop.f32.mrb[0].mxu0
  %v2543 = vpop.f32.mrb[0].mxu0
  %v2544 = vadd.f32 0.0, %v2543
  %v2545 = vpop.f32.mrb[0].mxu0
  %2546 = vmatprep.mubr.bf16.mxu0 0
  %2547 = vmatmul.mubr.bf16.gmra.mrb[0].mxu0 %v2416
  %v2548 = vpop.f32.mrb[0].mxu0
  %v2549 = vadd.f32 0.0, %v2548
  %v2550 = vpop.f32.mrb[0].mxu0
  %v2551 = vpop.f32.mrb[0].mxu0
  %v2552 = vpop.f32.mrb[0].mxu0
  %2553 = vdwg.mxu0
  %v2554 = vadd.f32 %v2307, %v2453
  %v2555 = vadd.f32 %v2308, %v2456
  %v2556 = vadd.f32 %v2309, %v2461
  %v2557 = vadd.f32 %v2310, %v2464
  %v2558 = vadd.f32 %v2311, %v2469
  %v2559 = vadd.f32 %v2312, %v2472
  %v2560 = vadd.f32 %v2313, %v2477
  %v2561 = vadd.f32 %v2314, %v2480
  %v2562 = vadd.f32 %v2315, %v2485
  %v2563 = vadd.f32 %v2316, %v2488
  %v2564 = vadd.f32 %v2317, %v2493
  %v2565 = vadd.f32 %v2318, %v2496
  %v2566 = vadd.f32 %v2319, %v2501
  %v2567 = vadd.f32 %v2320, %v2504
  %v2568 = vadd.f32 %v2321, %v2509
  %v2569 = vadd.f32 %v2322, %v2512
  %v2570 = vadd.f32 %v2323, %v2517
  %v2571 = vadd.f32 %v2324, %v2520
  %v2572 = vadd.f32 %v2325, %v2525
  %v2573 = vadd.f32 %v2326, %v2528
  %v2574 = vadd.f32 %v2327, %v2533
  %v2575 = vadd.f32 %v2328, %v2536
  %v2576 = vadd.f32 %v2329, %v2541
  %v2577 = vadd.f32 %v2330, %v2544
  %v2578 = vadd.f32 %v2331, %v2549
  %v2579 = vpack.c.bf16 %v2555, %v2554
  %v2580 = vpack.c.bf16 %v2557, %v2556
  %v2581 = vpack.c.bf16 %v2559, %v2558
  %v2582 = vpack.c.bf16 %v2561, %v2560
  %v2583 = vpack.c.bf16 %v2563, %v2562
  %v2584 = vpack.c.bf16 %v2565, %v2564
  %v2585 = vpack.c.bf16 %v2567, %v2566
  %v2586 = vpack.c.bf16 %v2569, %v2568
  %v2587 = vpack.c.bf16 %v2571, %v2570
  %v2588 = vpack.c.bf16 %v2573, %v2572
  %v2589 = vpack.c.bf16 %v2575, %v2574
  %v2590 = vpack.c.bf16 %v2577, %v2576
  %v2591 = vpack.c.bf16 %v2578, %v2578
  %v2605 = vunpack.c.l.b16 %v2579
  %v2606 = vunpack.c.h.b16 %v2579
  %v2607 = vunpack.c.l.b16 %v2580
  %v2608 = vunpack.c.h.b16 %v2580
  %v2609 = vunpack.c.l.b16 %v2581
  %v2610 = vunpack.c.h.b16 %v2581
  %v2611 = vunpack.c.l.b16 %v2582
  %v2612 = vunpack.c.h.b16 %v2582
  %v2613 = vunpack.c.l.b16 %v2583
  %v2614 = vunpack.c.h.b16 %v2583
  %v2615 = vunpack.c.l.b16 %v2584
  %v2616 = vunpack.c.h.b16 %v2584
  %v2617 = vunpack.c.l.b16 %v2585
  %v2618 = vunpack.c.h.b16 %v2585
  %v2619 = vunpack.c.l.b16 %v2586
  %v2620 = vunpack.c.h.b16 %v2586
  %v2621 = vunpack.c.l.b16 %v2587
  %v2622 = vunpack.c.h.b16 %v2587
  %v2623 = vunpack.c.l.b16 %v2588
  %v2624 = vunpack.c.h.b16 %v2588
  %v2625 = vunpack.c.l.b16 %v2589
  %v2626 = vunpack.c.h.b16 %v2589
  %v2627 = vunpack.c.l.b16 %v2590
  %v2628 = vunpack.c.h.b16 %v2590
  %v2629 = vunpack.c.l.b16 %v2591
  %v2630 = vpack.c.b16 %v2605, %v2605
  %v2631 = vpack.c.b16 %v2606, %v2606
  %v2632 = vpack.c.b16 %v2607, %v2607
  %v2633 = vpack.c.b16 %v2608, %v2608
  %v2634 = vpack.c.b16 %v2609, %v2609
  %v2635 = vpack.c.b16 %v2610, %v2610
  %v2636 = vpack.c.b16 %v2611, %v2611
  %v2637 = vpack.c.b16 %v2612, %v2612
  %v2638 = vpack.c.b16 %v2613, %v2613
  %v2639 = vpack.c.b16 %v2614, %v2614
  %v2640 = vpack.c.b16 %v2615, %v2615
  %v2641 = vpack.c.b16 %v2616, %v2616
  %v2642 = vpack.c.b16 %v2617, %v2617
  %v2643 = vpack.c.b16 %v2618, %v2618
  %v2644 = vpack.c.b16 %v2619, %v2619
  %v2645 = vpack.c.b16 %v2620, %v2620
  %v2646 = vpack.c.b16 %v2621, %v2621
  %v2647 = vpack.c.b16 %v2622, %v2622
  %v2648 = vpack.c.b16 %v2623, %v2623
  %v2649 = vpack.c.b16 %v2624, %v2624
  %v2650 = vpack.c.b16 %v2625, %v2625
  %v2651 = vpack.c.b16 %v2626, %v2626
  %v2652 = vpack.c.b16 %v2627, %v2627
  %v2653 = vpack.c.b16 %v2628, %v2628
  %v2654 = vpack.c.b16 %v2629, %v2629
  %vm2680 = vcmask 60416
  %2681 = vst.msk [vmem:[%s5] sm:$0xf] %vm2680, %v2630
  %2682 = vst.msk [vmem:[%s5 + $0x4] sm:$0xf] %vm2680, %v2631
  %2683 = vst.msk [vmem:[%s5 + $0x8] sm:$0xf] %vm2680, %v2632
  %2684 = vst.msk [vmem:[%s5 + $0xc] sm:$0xf] %vm2680, %v2633
  %2685 = vst.msk [vmem:[%s5 + $0x10] sm:$0xf] %vm2680, %v2634
  %2686 = vst.msk [vmem:[%s5 + $0x14] sm:$0xf] %vm2680, %v2635
  %2687 = vst.msk [vmem:[%s5 + $0x18] sm:$0xf] %vm2680, %v2636
  %2688 = vst.msk [vmem:[%s5 + $0x1c] sm:$0xf] %vm2680, %v2637
  %2689 = vst.msk [vmem:[%s5 + $0x20] sm:$0xf] %vm2680, %v2638
  %2690 = vst.msk [vmem:[%s5 + $0x24] sm:$0xf] %vm2680, %v2639
  %2691 = vst.msk [vmem:[%s5 + $0x28] sm:$0xf] %vm2680, %v2640
  %2692 = vst.msk [vmem:[%s5 + $0x2c] sm:$0xf] %vm2680, %v2641
  %2693 = vst.msk [vmem:[%s5 + $0x30] sm:$0xf] %vm2680, %v2642
  %2694 = vst.msk [vmem:[%s5 + $0x34] sm:$0xf] %vm2680, %v2643
  %2695 = vst.msk [vmem:[%s5 + $0x38] sm:$0xf] %vm2680, %v2644
  %2696 = vst.msk [vmem:[%s5 + $0x3c] sm:$0xf] %vm2680, %v2645
  %2697 = vst.msk [vmem:[%s5 + $0x40] sm:$0xf] %vm2680, %v2646
  %2698 = vst.msk [vmem:[%s5 + $0x44] sm:$0xf] %vm2680, %v2647
  %2699 = vst.msk [vmem:[%s5 + $0x48] sm:$0xf] %vm2680, %v2648
  %2700 = vst.msk [vmem:[%s5 + $0x4c] sm:$0xf] %vm2680, %v2649
  %2701 = vst.msk [vmem:[%s5 + $0x50] sm:$0xf] %vm2680, %v2650
  %2702 = vst.msk [vmem:[%s5 + $0x54] sm:$0xf] %vm2680, %v2651
  %2703 = vst.msk [vmem:[%s5 + $0x58] sm:$0xf] %vm2680, %v2652
  %2704 = vst.msk [vmem:[%s5 + $0x5c] sm:$0xf] %vm2680, %v2653
  %2705 = vst.msk [vmem:[%s5 + $0x60] sm:$0xf] %vm2680, %v2654
  // Predicated region
  $region22: #{densenet_forward.16} parent=0 // pred_check
    _
  $region23: #{densenet_forward.16} parent=0 // pred_check_branch
    %2707 = sbr.rel (0) target = $region25
  $region24: #{densenet_forward.16} parent=0 // pred_region
    _
  $region25: #{densenet_forward.16} parent=0 // pred_fallthru
    _
  // Predicated region
  $region26: #{densenet_forward.16} parent=0 // pred_check
    _
  $region27: #{densenet_forward.16} parent=0 // pred_check_branch
    %2709 = sbr.rel (0) target = $region29
  $region28: #{densenet_forward.16} parent=0 // pred_region
    _
  $region29: #{densenet_forward.16} parent=0 // pred_fallthru
    _

// kernel: densenet_forward.21
$region0: #{densenet_forward.21}
  #allocation0 [shape = 'u32[]', space=smem, size = 0x4, offset = 0x4, fixed_abs, tag = 'smem constant byte address 0x4 - core index']
  #allocation1 [shape = 'u32[144,128]{1,0:T(1,128)}', space=vmem, size = 0x12000, scoped, tag = 'internal scratch']
  %s0 = inlined_call_operand.vmem [shape: bf16[32,16], index: 0, kind: input, shape index: {}]
  %s1 = inlined_call_operand.vmem [shape: f32[1,16], index: 1, kind: input, shape index: {}]
  %s2 = inlined_call_operand.vmem [shape: f32[1,16], index: 2, kind: input, shape index: {}]
  %s3 = inlined_call_operand.vmem [shape: bf16[16,16], index: 3, kind: input, shape index: {}]
  %s4 = inlined_call_operand.vmem [shape: bf16[32,16], index: 4, kind: output, shape index: {}]
  %s5 = sld [smem:[#allocation0]]
  $region26: #{densenet_forward.21} parent=0
    _
  %s7 = ssub.s32 1, %s5
  %s8 = scalar_select 0, %s7, %s5
  // Predicated region
  $region2: #{densenet_forward.21} parent=0 // pred_check
    _
  $region3: #{densenet_forward.21} parent=0 // pred_check_branch
    %10 = sbr.rel (0) target = $region5
  $region4: #{densenet_forward.21} parent=0 // pred_region
    _
  $region5: #{densenet_forward.21} parent=0 // pred_fallthru
    _
  // Predicated region
  $region6: #{densenet_forward.21} parent=0 // pred_check
    _
  $region7: #{densenet_forward.21} parent=0 // pred_check_branch
    %12 = sbr.rel (0) target = $region9
  $region8: #{densenet_forward.21} parent=0 // pred_region
    _
  $region9: #{densenet_forward.21} parent=0 // pred_fallthru
    _
  // Predicated region
  $region10: #{densenet_forward.21} parent=0 // pred_check
    _
  $region11: #{densenet_forward.21} parent=0 // pred_check_branch
    %14 = sbr.rel (0) target = $region13
  $region12: #{densenet_forward.21} parent=0 // pred_region
    _
  $region13: #{densenet_forward.21} parent=0 // pred_fallthru
    _
  // Predicated region
  $region14: #{densenet_forward.21} parent=0 // pred_check
    _
  $region15: #{densenet_forward.21} parent=0 // pred_check_branch
    %16 = sbr.rel (0) target = $region17
  $region16: #{densenet_forward.21} parent=0 // pred_region
    _
  $region17: #{densenet_forward.21} parent=0 // pred_fallthru
    _
  %v18 = vld [vmem:[%s0] sm:$0xf]
  %v19 = vld [vmem:[%s0 + $0x4] sm:$0xf]
  %v20 = vld [vmem:[%s0 + $0x8] sm:$0xf]
  %v21 = vld [vmem:[%s0 + $0xc] sm:$0xf]
  %v22 = vunpack.c.l.bf16 %v18
  %v23 = vunpack.c.l.bf16 %v19
  %v24 = vunpack.c.l.bf16 %v20
  %v25 = vunpack.c.l.bf16 %v21
  %v26 = vld [vmem:[%s1] sm:$0x1]
  %v28 = vlaneseq
  %v29 = vshrl.u32 %v28, 7
  %v30 = vsub.s32 0, %v29
  %v31 = vrot.slane %v26, %v30
  %v33 = vmul.f32 %v22, %v31
  %v34 = vmul.f32 %v23, %v31
  %v35 = vmul.f32 %v24, %v31
  %v36 = vmul.f32 %v25, %v31
  %v37 = vld [vmem:[%s2] sm:$0x1]
  %v39 = vlaneseq
  %v40 = vshrl.u32 %v39, 7
  %v41 = vsub.s32 0, %v40
  %v42 = vrot.slane %v37, %v41
  %v44 = vadd.f32 %v33, %v42
  %v45 = vadd.f32 %v34, %v42
  %v46 = vadd.f32 %v35, %v42
  %v47 = vadd.f32 %v36, %v42
  %v48 = vmax.f32 %v44, 0.0
  %v49 = vmax.f32 %v45, 0.0
  %v50 = vmax.f32 %v46, 0.0
  %v51 = vmax.f32 %v47, 0.0
  %v52 = vpack.c.bf16 %v49, %v48
  %v53 = vpack.c.bf16 %v51, %v50
  %v54 = vld [vmem:[%s3] sm:$0xf]
  %v55 = vld [vmem:[%s3 + $0x4] sm:$0xf]
  %v58 = vunpack.c.l.b16 %v54
  %v59 = vunpack.c.l.b16 %v55
  %v60 = vpack.c.b16 %v59, %v58
  %vm62 = vcmask 130048
  %v64 = vsel %vm62, %v52, 0
  %v67 = vsel %vm62, %v53, 0
  %69 = vmatprep.subr.bf16.mxu0 0
  %70 = vmatpush1.bf16.msra.mxu0 %v60
  %71 = vmatprep.subr.bf16.mxu0 0
  %72 = vmatpush1.bf16.msra.mxu0 0
  %73 = vmatprep.subr.bf16.mxu0 0
  %74 = vmatpush1.bf16.msra.mxu0 0
  %75 = vmatprep.subr.bf16.mxu0 0
  %76 = vmatpush1.bf16.msra.mxu0 0
  %77 = vmatprep.subr.bf16.mxu0 0
  %78 = vmatpush1.bf16.msra.mxu0 0
  %79 = vmatprep.subr.bf16.mxu0 0
  %80 = vmatpush1.bf16.msra.mxu0 0
  %81 = vmatprep.subr.bf16.mxu0 0
  %82 = vmatpush1.bf16.msra.mxu0 0
  %83 = vmatprep.subr.bf16.mxu0 0
  %84 = vmatpush1.bf16.msra.mxu0 0
  %85 = vmatprep.subr.bf16.mxu0 0
  %86 = vmatpush1.bf16.msra.mxu0 0
  %87 = vmatprep.subr.bf16.mxu0 0
  %88 = vmatpush1.bf16.msra.mxu0 0
  %89 = vmatprep.subr.bf16.mxu0 0
  %90 = vmatpush1.bf16.msra.mxu0 0
  %91 = vmatprep.subr.bf16.mxu0 0
  %92 = vmatpush1.bf16.msra.mxu0 0
  %93 = vmatprep.subr.bf16.mxu0 0
  %94 = vmatpush1.bf16.msra.mxu0 0
  %95 = vmatprep.subr.bf16.mxu0 0
  %96 = vmatpush1.bf16.msra.mxu0 0
  %97 = vmatprep.subr.bf16.mxu0 0
  %98 = vmatpush1.bf16.msra.mxu0 0
  %99 = vmatprep.subr.bf16.mxu0 0
  %100 = vmatpush1.bf16.msra.mxu0 0
  %101 = vmatprep.mubr.bf16.mxu0 0
  %102 = vmatmul.mubr.bf16.gmra.mrb[0].mxu0 %v64
  %v103 = vpop.f32.mrb[0].mxu0
  %v104 = vadd.f32 0.0, %v103
  %v105 = vpop.f32.mrb[0].mxu0
  %v106 = vpop.f32.mrb[0].mxu0
  %v107 = vadd.f32 0.0, %v106
  %v108 = vpop.f32.mrb[0].mxu0
  %109 = vmatprep.mubr.bf16.mxu0 0
  %110 = vmatmul.mubr.bf16.gmra.mrb[0].mxu0 %v67
  %v111 = vpop.f32.mrb[0].mxu0
  %v112 = vadd.f32 0.0, %v111
  %v113 = vpop.f32.mrb[0].mxu0
  %v114 = vpop.f32.mrb[0].mxu0
  %v115 = vadd.f32 0.0, %v114
  %v116 = vpop.f32.mrb[0].mxu0
  %117 = vdwg.mxu0
  %v118 = vpack.c.bf16 %v107, %v104
  %v119 = vpack.c.bf16 %v115, %v112
  %v122 = vunpack.c.l.b16 %v118
  %v123 = vunpack.c.h.b16 %v118
  %v124 = vunpack.c.l.b16 %v119
  %v125 = vunpack.c.h.b16 %v119
  %v126 = vpack.c.b16 %v122, %v122
  %v127 = vpack.c.b16 %v123, %v123
  %v128 = vpack.c.b16 %v124, %v124
  %v129 = vpack.c.b16 %v125, %v125
  %vm134 = vcmask 125952
  %135 = vst.msk [vmem:[%s4] sm:$0xf] %vm134, %v126
  %136 = vst.msk [vmem:[%s4 + $0x4] sm:$0xf] %vm134, %v127
  %137 = vst.msk [vmem:[%s4 + $0x8] sm:$0xf] %vm134, %v128
  %138 = vst.msk [vmem:[%s4 + $0xc] sm:$0xf] %vm134, %v129
  // Predicated region
  $region18: #{densenet_forward.21} parent=0 // pred_check
    _
  $region19: #{densenet_forward.21} parent=0 // pred_check_branch
    %140 = sbr.rel (0) target = $region21
  $region20: #{densenet_forward.21} parent=0 // pred_region
    _
  $region21: #{densenet_forward.21} parent=0 // pred_fallthru
    _
  // Predicated region
  $region22: #{densenet_forward.21} parent=0 // pred_check
    _
  $region23: #{densenet_forward.21} parent=0 // pred_check_branch
    %142 = sbr.rel (0) target = $region25
  $region24: #{densenet_forward.21} parent=0 // pred_region
    _
  $region25: #{densenet_forward.21} parent=0 // pred_fallthru
    _

// kernel: densenet_forward.20
$region0: #{densenet_forward.20}
  #allocation0 [shape = 'u32[]', space=smem, size = 0x4, offset = 0x4, fixed_abs, tag = 'smem constant byte address 0x4 - core index']
  #allocation1 [shape = 'u32[144,128]{1,0:T(1,128)}', space=vmem, size = 0x12000, scoped, tag = 'internal scratch']
  %s0 = inlined_call_operand.vmem [shape: bf16[32,16], index: 0, kind: input, shape index: {}]
  %s1 = inlined_call_operand.vmem [shape: bf16[32,16], index: 1, kind: input, shape index: {}]
  %s2 = inlined_call_operand.vmem [shape: bf16[32,16], index: 2, kind: input, shape index: {}]
  %s3 = inlined_call_operand.vmem [shape: bf16[32,16], index: 3, kind: input, shape index: {}]
  %s4 = inlined_call_operand.vmem [shape: bf16[32,16], index: 4, kind: output, shape index: {}]
  %s5 = sld [smem:[#allocation0]]
  $region26: #{densenet_forward.20} parent=0
    _
  %s7 = ssub.s32 1, %s5
  %s8 = scalar_select 0, %s7, %s5
  // Predicated region
  $region2: #{densenet_forward.20} parent=0 // pred_check
    _
  $region3: #{densenet_forward.20} parent=0 // pred_check_branch
    %10 = sbr.rel (0) target = $region5
  $region4: #{densenet_forward.20} parent=0 // pred_region
    _
  $region5: #{densenet_forward.20} parent=0 // pred_fallthru
    _
  // Predicated region
  $region6: #{densenet_forward.20} parent=0 // pred_check
    _
  $region7: #{densenet_forward.20} parent=0 // pred_check_branch
    %12 = sbr.rel (0) target = $region9
  $region8: #{densenet_forward.20} parent=0 // pred_region
    _
  $region9: #{densenet_forward.20} parent=0 // pred_fallthru
    _
  // Predicated region
  $region10: #{densenet_forward.20} parent=0 // pred_check
    _
  $region11: #{densenet_forward.20} parent=0 // pred_check_branch
    %14 = sbr.rel (0) target = $region13
  $region12: #{densenet_forward.20} parent=0 // pred_region
    _
  $region13: #{densenet_forward.20} parent=0 // pred_fallthru
    _
  // Predicated region
  $region14: #{densenet_forward.20} parent=0 // pred_check
    _
  $region15: #{densenet_forward.20} parent=0 // pred_check_branch
    %16 = sbr.rel (0) target = $region17
  $region16: #{densenet_forward.20} parent=0 // pred_region
    _
  $region17: #{densenet_forward.20} parent=0 // pred_fallthru
    _
  %v17 = vld [vmem:[%s0] sm:$0xf]
  %v18 = vld [vmem:[%s0 + $0x4] sm:$0xf]
  %v19 = vld [vmem:[%s0 + $0x8] sm:$0xf]
  %v20 = vld [vmem:[%s0 + $0xc] sm:$0xf]
  %v21 = vunpack.c.l.bf16 %v17
  %v22 = vunpack.c.l.bf16 %v18
  %v23 = vunpack.c.l.bf16 %v19
  %v24 = vunpack.c.l.bf16 %v20
  %v25 = vld [vmem:[%s1] sm:$0xf]
  %v26 = vld [vmem:[%s1 + $0x4] sm:$0xf]
  %v27 = vld [vmem:[%s1 + $0x8] sm:$0xf]
  %v28 = vld [vmem:[%s1 + $0xc] sm:$0xf]
  %v29 = vunpack.c.l.bf16 %v25
  %v30 = vunpack.c.l.bf16 %v26
  %v31 = vunpack.c.l.bf16 %v27
  %v32 = vunpack.c.l.bf16 %v28
  %v33 = vadd.f32 %v21, %v29
  %v34 = vadd.f32 %v22, %v30
  %v35 = vadd.f32 %v23, %v31
  %v36 = vadd.f32 %v24, %v32
  %v37 = vld [vmem:[%s2] sm:$0xf]
  %v38 = vld [vmem:[%s2 + $0x4] sm:$0xf]
  %v39 = vld [vmem:[%s2 + $0x8] sm:$0xf]
  %v40 = vld [vmem:[%s2 + $0xc] sm:$0xf]
  %v41 = vunpack.c.l.bf16 %v37
  %v42 = vunpack.c.l.bf16 %v38
  %v43 = vunpack.c.l.bf16 %v39
  %v44 = vunpack.c.l.bf16 %v40
  %v45 = vadd.f32 %v33, %v41
  %v46 = vadd.f32 %v34, %v42
  %v47 = vadd.f32 %v35, %v43
  %v48 = vadd.f32 %v36, %v44
  %v49 = vld [vmem:[%s3] sm:$0xf]
  %v50 = vld [vmem:[%s3 + $0x4] sm:$0xf]
  %v51 = vld [vmem:[%s3 + $0x8] sm:$0xf]
  %v52 = vld [vmem:[%s3 + $0xc] sm:$0xf]
  %v53 = vunpack.c.l.bf16 %v49
  %v54 = vunpack.c.l.bf16 %v50
  %v55 = vunpack.c.l.bf16 %v51
  %v56 = vunpack.c.l.bf16 %v52
  %v57 = vadd.f32 %v45, %v53
  %v58 = vadd.f32 %v46, %v54
  %v59 = vadd.f32 %v47, %v55
  %v60 = vadd.f32 %v48, %v56
  %v61 = vmul.f32 %v57, 0.25
  %v62 = vmul.f32 %v58, 0.25
  %v63 = vmul.f32 %v59, 0.25
  %v64 = vmul.f32 %v60, 0.25
  %v65 = vpack.c.bf16 %v62, %v61
  %v66 = vpack.c.bf16 %v64, %v63
  %v69 = vunpack.c.l.b16 %v65
  %v70 = vunpack.c.h.b16 %v65
  %v71 = vunpack.c.l.b16 %v66
  %v72 = vunpack.c.h.b16 %v66
  %v73 = vpack.c.b16 %v69, %v69
  %v74 = vpack.c.b16 %v70, %v70
  %v75 = vpack.c.b16 %v71, %v71
  %v76 = vpack.c.b16 %v72, %v72
  %vm81 = vcmask 125952
  %82 = vst.msk [vmem:[%s4] sm:$0xf] %vm81, %v73
  %83 = vst.msk [vmem:[%s4 + $0x4] sm:$0xf] %vm81, %v74
  %84 = vst.msk [vmem:[%s4 + $0x8] sm:$0xf] %vm81, %v75
  %85 = vst.msk [vmem:[%s4 + $0xc] sm:$0xf] %vm81, %v76
  // Predicated region
  $region18: #{densenet_forward.20} parent=0 // pred_check
    _
  $region19: #{densenet_forward.20} parent=0 // pred_check_branch
    %87 = sbr.rel (0) target = $region21
  $region20: #{densenet_forward.20} parent=0 // pred_region
    _
  $region21: #{densenet_forward.20} parent=0 // pred_fallthru
    _
  // Predicated region
  $region22: #{densenet_forward.20} parent=0 // pred_check
    _
  $region23: #{densenet_forward.20} parent=0 // pred_check_branch
    %89 = sbr.rel (0) target = $region25
  $region24: #{densenet_forward.20} parent=0 // pred_region
    _
  $region25: #{densenet_forward.20} parent=0 // pred_fallthru
    _

// kernel: densenet_forward.22
$region0: #{densenet_forward.22}
  #allocation0 [shape = 'u32[]', space=smem, size = 0x4, offset = 0x4, fixed_abs, tag = 'smem constant byte address 0x4 - core index']
  #allocation1 [shape = 'u32[144,128]{1,0:T(1,128)}', space=vmem, size = 0x12000, scoped, tag = 'internal scratch']
  #allocation2 [shape = 'f32[86,16]{1,0:T(8,128)}', space=vmem, size = 0xb000, scoped, tag = 'scratch operand']
  %s0 = inlined_call_operand.vmem [shape: bf16[108,16], index: 0, kind: input, shape index: {}]
  %s1 = inlined_call_operand.vmem [shape: f32[108,1], index: 1, kind: input, shape index: {}]
  %s2 = inlined_call_operand.vmem [shape: f32[1,16], index: 2, kind: input, shape index: {}]
  %s3 = inlined_call_operand.vmem [shape: f32[1,16], index: 3, kind: input, shape index: {}]
  %s4 = inlined_call_operand.vmem [shape: bf16[9,16,8], index: 4, kind: input, shape index: {}]
  %s5 = inlined_call_operand.vmem [shape: bf16[72,8], index: 5, kind: output, shape index: {}]
  %s6 = sld [smem:[#allocation0]]
  $region30: #{densenet_forward.22} parent=0
    _
  %s8 = ssub.s32 1, %s6
  %s9 = scalar_select 0, %s8, %s6
  // Predicated region
  $region2: #{densenet_forward.22} parent=0 // pred_check
    _
  $region3: #{densenet_forward.22} parent=0 // pred_check_branch
    %11 = sbr.rel (0) target = $region5
  $region4: #{densenet_forward.22} parent=0 // pred_region
    _
  $region5: #{densenet_forward.22} parent=0 // pred_fallthru
    _
  // Predicated region
  $region6: #{densenet_forward.22} parent=0 // pred_check
    _
  $region7: #{densenet_forward.22} parent=0 // pred_check_branch
    %13 = sbr.rel (0) target = $region9
  $region8: #{densenet_forward.22} parent=0 // pred_region
    _
  $region9: #{densenet_forward.22} parent=0 // pred_fallthru
    _
  // Predicated region
  $region10: #{densenet_forward.22} parent=0 // pred_check
    _
  $region11: #{densenet_forward.22} parent=0 // pred_check_branch
    %15 = sbr.rel (0) target = $region13
  $region12: #{densenet_forward.22} parent=0 // pred_region
    _
  $region13: #{densenet_forward.22} parent=0 // pred_fallthru
    _
  // Predicated region
  $region14: #{densenet_forward.22} parent=0 // pred_check
    _
  $region15: #{densenet_forward.22} parent=0 // pred_check_branch
    %17 = sbr.rel (0) target = $region17
  $region16: #{densenet_forward.22} parent=0 // pred_region
    _
  $region17: #{densenet_forward.22} parent=0 // pred_fallthru
    _
  // Predicated region
  $region18: #{densenet_forward.22} parent=0 // pred_check
    _
  $region19: #{densenet_forward.22} parent=0 // pred_check_branch
    %19 = sbr.rel (0) target = $region21
  $region20: #{densenet_forward.22} parent=0 // pred_region
    _
  $region21: #{densenet_forward.22} parent=0 // pred_fallthru
    _
  %s21 = smul.u32 0, 72
  %s22 = sshra.s32 %s21, 3
  %s23 = sand.u32 %s21, 7
  %s24 = smul.addr %s22, 4
  %s25 = scalar_lea.vmem %s0, %s24
  %v26 = vld [vmem:[%s25] sm:$0xf]
  %v27 = vld [vmem:[%s25 + $0x4] sm:$0xf]
  %v28 = vld [vmem:[%s25 + $0x8] sm:$0xf]
  %v29 = vld [vmem:[%s25 + $0xc] sm:$0xf]
  %v30 = vld [vmem:[%s25 + $0x10] sm:$0xf]
  %v31 = vld [vmem:[%s25 + $0x14] sm:$0xf]
  %v32 = vld [vmem:[%s25 + $0x18] sm:$0xf]
  %v33 = vld [vmem:[%s25 + $0x1c] sm:$0xf]
  %v34 = vld [vmem:[%s25 + $0x20] sm:$0xf]
  %v35 = vld [vmem:[%s25 + $0x24] sm:$0xf]
  %v36 = vld [vmem:[%s25 + $0x28] sm:$0x7]
  %v37 = vunpack.c.l.bf16 %v26
  %v38 = vunpack.c.l.bf16 %v27
  %v39 = vunpack.c.l.bf16 %v28
  %v40 = vunpack.c.l.bf16 %v29
  %v41 = vunpack.c.l.bf16 %v30
  %v42 = vunpack.c.l.bf16 %v31
  %v43 = vunpack.c.l.bf16 %v32
  %v44 = vunpack.c.l.bf16 %v33
  %v45 = vunpack.c.l.bf16 %v34
  %v46 = vunpack.c.l.bf16 %v35
  %v47 = vunpack.c.l.bf16 %v36
  %s48 = scalar_lea.vmem %s1, %s21
  %v49 = vld [vmem:[%s48] sm:$0xff]
  %v50 = vld [vmem:[%s48 + $0x8] sm:$0xff]
  %v51 = vld [vmem:[%s48 + $0x10] sm:$0xff]
  %v52 = vld [vmem:[%s48 + $0x18] sm:$0xff]
  %v53 = vld [vmem:[%s48 + $0x20] sm:$0xff]
  %v54 = vld [vmem:[%s48 + $0x28] sm:$0xff]
  %v55 = vld [vmem:[%s48 + $0x30] sm:$0xff]
  %v56 = vld [vmem:[%s48 + $0x38] sm:$0xff]
  %v57 = vld [vmem:[%s48 + $0x40] sm:$0xff]
  %v58 = vld [vmem:[%s48 + $0x48] sm:$0xff]
  %v59 = vld [vmem:[%s48 + $0x50] sm:$0x3f]
  %v60 = vld [vmem:[%s2] sm:$0x1]
  %v62 = vlaneseq
  %v63 = vshrl.u32 %v62, 7
  %v64 = vsub.s32 0, %v63
  %v65 = vrot.slane %v60, %v64
  %v67 = vmul.f32 %v37, %v65
  %v68 = vmul.f32 %v38, %v65
  %v69 = vmul.f32 %v39, %v65
  %v70 = vmul.f32 %v40, %v65
  %v71 = vmul.f32 %v41, %v65
  %v72 = vmul.f32 %v42, %v65
  %v73 = vmul.f32 %v43, %v65
  %v74 = vmul.f32 %v44, %v65
  %v75 = vmul.f32 %v45, %v65
  %v76 = vmul.f32 %v46, %v65
  %v77 = vmul.f32 %v47, %v65
  %v78 = vld [vmem:[%s3] sm:$0x1]
  %v80 = vlaneseq
  %v81 = vshrl.u32 %v80, 7
  %v82 = vsub.s32 0, %v81
  %v83 = vrot.slane %v78, %v82
  %v85 = vadd.f32 %v67, %v83
  %v86 = vadd.f32 %v68, %v83
  %v87 = vadd.f32 %v69, %v83
  %v88 = vadd.f32 %v70, %v83
  %v89 = vadd.f32 %v71, %v83
  %v90 = vadd.f32 %v72, %v83
  %v91 = vadd.f32 %v73, %v83
  %v92 = vadd.f32 %v74, %v83
  %v93 = vadd.f32 %v75, %v83
  %v94 = vadd.f32 %v76, %v83
  %v95 = vadd.f32 %v77, %v83
  %v96 = vmax.f32 %v85, 0.0
  %v97 = vmax.f32 %v86, 0.0
  %v98 = vmax.f32 %v87, 0.0
  %v99 = vmax.f32 %v88, 0.0
  %v100 = vmax.f32 %v89, 0.0
  %v101 = vmax.f32 %v90, 0.0
  %v102 = vmax.f32 %v91, 0.0
  %v103 = vmax.f32 %v92, 0.0
  %v104 = vmax.f32 %v93, 0.0
  %v105 = vmax.f32 %v94, 0.0
  %v106 = vmax.f32 %v95, 0.0
  %108 = vset.pattern.permute.xlu0 0
  %109 = vperm.xlu0 %108, %v49
  %v110 = vpop.permute.xlu0 %109
  %113 = vset.pattern.permute.xlu0 0
  %114 = vperm.xlu0 %113, %v50
  %v115 = vpop.permute.xlu0 %114
  %118 = vset.pattern.permute.xlu0 0
  %119 = vperm.xlu0 %118, %v51
  %v120 = vpop.permute.xlu0 %119
  %123 = vset.pattern.permute.xlu0 0
  %124 = vperm.xlu0 %123, %v52
  %v125 = vpop.permute.xlu0 %124
  %128 = vset.pattern.permute.xlu0 0
  %129 = vperm.xlu0 %128, %v53
  %v130 = vpop.permute.xlu0 %129
  %133 = vset.pattern.permute.xlu0 0
  %134 = vperm.xlu0 %133, %v54
  %v135 = vpop.permute.xlu0 %134
  %138 = vset.pattern.permute.xlu0 0
  %139 = vperm.xlu0 %138, %v55
  %v140 = vpop.permute.xlu0 %139
  %143 = vset.pattern.permute.xlu0 0
  %144 = vperm.xlu0 %143, %v56
  %v145 = vpop.permute.xlu0 %144
  %148 = vset.pattern.permute.xlu0 0
  %149 = vperm.xlu0 %148, %v57
  %v150 = vpop.permute.xlu0 %149
  %153 = vset.pattern.permute.xlu0 0
  %154 = vperm.xlu0 %153, %v58
  %v155 = vpop.permute.xlu0 %154
  %158 = vset.pattern.permute.xlu0 0
  %159 = vperm.xlu0 %158, %v59
  %v160 = vpop.permute.xlu0 %159
  %v162 = vmul.f32 %v96, %v110
  %v163 = vmul.f32 %v97, %v115
  %v164 = vmul.f32 %v98, %v120
  %v165 = vmul.f32 %v99, %v125
  %v166 = vmul.f32 %v100, %v130
  %v167 = vmul.f32 %v101, %v135
  %v168 = vmul.f32 %v102, %v140
  %v169 = vmul.f32 %v103, %v145
  %v170 = vmul.f32 %v104, %v150
  %v171 = vmul.f32 %v105, %v155
  %v172 = vmul.f32 %v106, %v160
  %vm173 = vcmask 130048
  %174 = vst.msk [vmem:[#allocation2] sm:$0xff] %vm173, %v162
  %175 = vst.msk [vmem:[#allocation2 + $0x8] sm:$0xff] %vm173, %v163
  %176 = vst.msk [vmem:[#allocation2 + $0x10] sm:$0xff] %vm173, %v164
  %177 = vst.msk [vmem:[#allocation2 + $0x18] sm:$0xff] %vm173, %v165
  %178 = vst.msk [vmem:[#allocation2 + $0x20] sm:$0xff] %vm173, %v166
  %179 = vst.msk [vmem:[#allocation2 + $0x28] sm:$0xff] %vm173, %v167
  %180 = vst.msk [vmem:[#allocation2 + $0x30] sm:$0xff] %vm173, %v168
  %181 = vst.msk [vmem:[#allocation2 + $0x38] sm:$0xff] %vm173, %v169
  %182 = vst.msk [vmem:[#allocation2 + $0x40] sm:$0xff] %vm173, %v170
  %183 = vst.msk [vmem:[#allocation2 + $0x48] sm:$0xff] %vm173, %v171
  %vm184 = vcmask 128000
  %185 = vst.msk [vmem:[#allocation2 + $0x50] sm:$0x3f] %vm184, %v172
  %v186 = vld [vmem:[#allocation2] sm:$0xff]
  %v187 = vld [vmem:[#allocation2 + $0x8] sm:$0xff]
  %v188 = vld [vmem:[#allocation2 + $0x10] sm:$0xff]
  %v189 = vld [vmem:[#allocation2 + $0x18] sm:$0xff]
  %v190 = vld [vmem:[#allocation2 + $0x20] sm:$0xff]
  %v191 = vld [vmem:[#allocation2 + $0x28] sm:$0xff]
  %v192 = vld [vmem:[#allocation2 + $0x30] sm:$0xff]
  %v193 = vld [vmem:[#allocation2 + $0x38] sm:$0xff]
  %v194 = vld [vmem:[#allocation2 + $0x40] sm:$0xff]
  %v195 = vpack.c.bf16 %v187, %v186
  %v196 = vpack.c.bf16 %v189, %v188
  %v197 = vpack.c.bf16 %v191, %v190
  %v198 = vpack.c.bf16 %v193, %v192
  %v199 = vpack.c.bf16 %v194, %v194
  %v200 = vld [vmem:[%s4] sm:$0xf]
  %v201 = vld [vmem:[%s4 + $0x4] sm:$0xf]
  %v202 = vld [vmem:[#allocation2 + $0x1] sm:$0xff]
  %v203 = vld [vmem:[#allocation2 + $0x9] sm:$0xff]
  %v204 = vld [vmem:[#allocation2 + $0x11] sm:$0xff]
  %v205 = vld [vmem:[#allocation2 + $0x19] sm:$0xff]
  %v206 = vld [vmem:[#allocation2 + $0x21] sm:$0xff]
  %v207 = vld [vmem:[#allocation2 + $0x29] sm:$0xff]
  %v208 = vld [vmem:[#allocation2 + $0x31] sm:$0xff]
  %v209 = vld [vmem:[#allocation2 + $0x39] sm:$0xff]
  %v210 = vld [vmem:[#allocation2 + $0x41] sm:$0xff]
  %v211 = vpack.c.bf16 %v203, %v202
  %v212 = vpack.c.bf16 %v205, %v204
  %v213 = vpack.c.bf16 %v207, %v206
  %v214 = vpack.c.bf16 %v209, %v208
  %v215 = vpack.c.bf16 %v210, %v210
  %s216 = scalar_lea.vmem %s4, 8
  %v217 = vld [vmem:[%s216] sm:$0xf]
  %v218 = vld [vmem:[%s216 + $0x4] sm:$0xf]
  %v221 = vunpack.c.l.b16 %v217
  %v222 = vunpack.c.l.b16 %v218
  %v223 = vpack.c.b16 %v222, %v221
  %v226 = vsel %vm173, %v211, 0
  %v229 = vsel %vm173, %v212, 0
  %v232 = vsel %vm173, %v213, 0
  %v235 = vsel %vm173, %v214, 0
  %v238 = vsel %vm173, %v215, 0
  %240 = vmatprep.subr.bf16.mxu0 0
  %241 = vmatpush1.bf16.msra.mxu0 %v223
  %242 = vmatprep.subr.bf16.mxu0 0
  %243 = vmatpush1.bf16.msra.mxu0 0
  %244 = vmatprep.subr.bf16.mxu0 0
  %245 = vmatpush1.bf16.msra.mxu0 0
  %246 = vmatprep.subr.bf16.mxu0 0
  %247 = vmatpush1.bf16.msra.mxu0 0
  %248 = vmatprep.subr.bf16.mxu0 0
  %249 = vmatpush1.bf16.msra.mxu0 0
  %250 = vmatprep.subr.bf16.mxu0 0
  %251 = vmatpush1.bf16.msra.mxu0 0
  %252 = vmatprep.subr.bf16.mxu0 0
  %253 = vmatpush1.bf16.msra.mxu0 0
  %254 = vmatprep.subr.bf16.mxu0 0
  %255 = vmatpush1.bf16.msra.mxu0 0
  %256 = vmatprep.subr.bf16.mxu0 0
  %257 = vmatpush1.bf16.msra.mxu0 0
  %258 = vmatprep.subr.bf16.mxu0 0
  %259 = vmatpush1.bf16.msra.mxu0 0
  %260 = vmatprep.subr.bf16.mxu0 0
  %261 = vmatpush1.bf16.msra.mxu0 0
  %262 = vmatprep.subr.bf16.mxu0 0
  %263 = vmatpush1.bf16.msra.mxu0 0
  %264 = vmatprep.subr.bf16.mxu0 0
  %265 = vmatpush1.bf16.msra.mxu0 0
  %266 = vmatprep.subr.bf16.mxu0 0
  %267 = vmatpush1.bf16.msra.mxu0 0
  %268 = vmatprep.subr.bf16.mxu0 0
  %269 = vmatpush1.bf16.msra.mxu0 0
  %270 = vmatprep.subr.bf16.mxu0 0
  %271 = vmatpush1.bf16.msra.mxu0 0
  %272 = vmatprep.mubr.bf16.mxu0 0
  %273 = vmatmul.mubr.bf16.gmra.mrb[0].mxu0 %v226
  %v274 = vpop.f32.mrb[0].mxu0
  %v275 = vadd.f32 0.0, %v274
  %v276 = vpop.f32.mrb[0].mxu0
  %v277 = vpop.f32.mrb[0].mxu0
  %v278 = vadd.f32 0.0, %v277
  %v279 = vpop.f32.mrb[0].mxu0
  %280 = vmatprep.mubr.bf16.mxu0 0
  %281 = vmatmul.mubr.bf16.gmra.mrb[0].mxu0 %v229
  %v282 = vpop.f32.mrb[0].mxu0
  %v283 = vadd.f32 0.0, %v282
  %v284 = vpop.f32.mrb[0].mxu0
  %v285 = vpop.f32.mrb[0].mxu0
  %v286 = vadd.f32 0.0, %v285
  %v287 = vpop.f32.mrb[0].mxu0
  %288 = vmatprep.mubr.bf16.mxu0 0
  %289 = vmatmul.mubr.bf16.gmra.mrb[0].mxu0 %v232
  %v290 = vpop.f32.mrb[0].mxu0
  %v291 = vadd.f32 0.0, %v290
  %v292 = vpop.f32.mrb[0].mxu0
  %v293 = vpop.f32.mrb[0].mxu0
  %v294 = vadd.f32 0.0, %v293
  %v295 = vpop.f32.mrb[0].mxu0
  %296 = vmatprep.mubr.bf16.mxu0 0
  %297 = vmatmul.mubr.bf16.gmra.mrb[0].mxu0 %v235
  %v298 = vpop.f32.mrb[0].mxu0
  %v299 = vadd.f32 0.0, %v298
  %v300 = vpop.f32.mrb[0].mxu0
  %v301 = vpop.f32.mrb[0].mxu0
  %v302 = vadd.f32 0.0, %v301
  %v303 = vpop.f32.mrb[0].mxu0
  %304 = vmatprep.mubr.bf16.mxu0 0
  %305 = vmatmul.mubr.bf16.gmra.mrb[0].mxu0 %v238
  %v306 = vpop.f32.mrb[0].mxu0
  %v307 = vadd.f32 0.0, %v306
  %v308 = vpop.f32.mrb[0].mxu0
  %v309 = vpop.f32.mrb[0].mxu0
  %v310 = vpop.f32.mrb[0].mxu0
  %311 = vdwg.mxu0
  %v314 = vunpack.c.l.b16 %v200
  %v315 = vunpack.c.l.b16 %v201
  %v316 = vpack.c.b16 %v315, %v314
  %v319 = vsel %vm173, %v195, 0
  %v322 = vsel %vm173, %v196, 0
  %v325 = vsel %vm173, %v197, 0
  %v328 = vsel %vm173, %v198, 0
  %v331 = vsel %vm173, %v199, 0
  %333 = vmatprep.subr.bf16.mxu0 0
  %334 = vmatpush1.bf16.msra.mxu0 %v316
  %335 = vmatprep.subr.bf16.mxu0 0
  %336 = vmatpush1.bf16.msra.mxu0 0
  %337 = vmatprep.subr.bf16.mxu0 0
  %338 = vmatpush1.bf16.msra.mxu0 0
  %339 = vmatprep.subr.bf16.mxu0 0
  %340 = vmatpush1.bf16.msra.mxu0 0
  %341 = vmatprep.subr.bf16.mxu0 0
  %342 = vmatpush1.bf16.msra.mxu0 0
  %343 = vmatprep.subr.bf16.mxu0 0
  %344 = vmatpush1.bf16.msra.mxu0 0
  %345 = vmatprep.subr.bf16.mxu0 0
  %346 = vmatpush1.bf16.msra.mxu0 0
  %347 = vmatprep.subr.bf16.mxu0 0
  %348 = vmatpush1.bf16.msra.mxu0 0
  %349 = vmatprep.subr.bf16.mxu0 0
  %350 = vmatpush1.bf16.msra.mxu0 0
  %351 = vmatprep.subr.bf16.mxu0 0
  %352 = vmatpush1.bf16.msra.mxu0 0
  %353 = vmatprep.subr.bf16.mxu0 0
  %354 = vmatpush1.bf16.msra.mxu0 0
  %355 = vmatprep.subr.bf16.mxu0 0
  %356 = vmatpush1.bf16.msra.mxu0 0
  %357 = vmatprep.subr.bf16.mxu0 0
  %358 = vmatpush1.bf16.msra.mxu0 0
  %359 = vmatprep.subr.bf16.mxu0 0
  %360 = vmatpush1.bf16.msra.mxu0 0
  %361 = vmatprep.subr.bf16.mxu0 0
  %362 = vmatpush1.bf16.msra.mxu0 0
  %363 = vmatprep.subr.bf16.mxu0 0
  %364 = vmatpush1.bf16.msra.mxu0 0
  %365 = vmatprep.mubr.bf16.mxu0 0
  %366 = vmatmul.mubr.bf16.gmra.mrb[0].mxu0 %v319
  %v367 = vpop.f32.mrb[0].mxu0
  %v368 = vadd.f32 %v275, %v367
  %v369 = vpop.f32.mrb[0].mxu0
  %v370 = vpop.f32.mrb[0].mxu0
  %v371 = vadd.f32 %v278, %v370
  %v372 = vpop.f32.mrb[0].mxu0
  %373 = vmatprep.mubr.bf16.mxu0 0
  %374 = vmatmul.mubr.bf16.gmra.mrb[0].mxu0 %v322
  %v375 = vpop.f32.mrb[0].mxu0
  %v376 = vadd.f32 %v283, %v375
  %v377 = vpop.f32.mrb[0].mxu0
  %v378 = vpop.f32.mrb[0].mxu0
  %v379 = vadd.f32 %v286, %v378
  %v380 = vpop.f32.mrb[0].mxu0
  %381 = vmatprep.mubr.bf16.mxu0 0
  %382 = vmatmul.mubr.bf16.gmra.mrb[0].mxu0 %v325
  %v383 = vpop.f32.mrb[0].mxu0
  %v384 = vadd.f32 %v291, %v383
  %v385 = vpop.f32.mrb[0].mxu0
  %v386 = vpop.f32.mrb[0].mxu0
  %v387 = vadd.f32 %v294, %v386
  %v388 = vpop.f32.mrb[0].mxu0
  %389 = vmatprep.mubr.bf16.mxu0 0
  %390 = vmatmul.mubr.bf16.gmra.mrb[0].mxu0 %v328
  %v391 = vpop.f32.mrb[0].mxu0
  %v392 = vadd.f32 %v299, %v391
  %v393 = vpop.f32.mrb[0].mxu0
  %v394 = vpop.f32.mrb[0].mxu0
  %v395 = vadd.f32 %v302, %v394
  %v396 = vpop.f32.mrb[0].mxu0
  %397 = vmatprep.mubr.bf16.mxu0 0
  %398 = vmatmul.mubr.bf16.gmra.mrb[0].mxu0 %v331
  %v399 = vpop.f32.mrb[0].mxu0
  %v400 = vadd.f32 %v307, %v399
  %v401 = vpop.f32.mrb[0].mxu0
  %v402 = vpop.f32.mrb[0].mxu0
  %v403 = vpop.f32.mrb[0].mxu0
  %404 = vdwg.mxu0
  %v405 = vld [vmem:[#allocation2 + $0x2] sm:$0xff]
  %v406 = vld [vmem:[#allocation2 + $0xa] sm:$0xff]
  %v407 = vld [vmem:[#allocation2 + $0x12] sm:$0xff]
  %v408 = vld [vmem:[#allocation2 + $0x1a] sm:$0xff]
  %v409 = vld [vmem:[#allocation2 + $0x22] sm:$0xff]
  %v410 = vld [vmem:[#allocation2 + $0x2a] sm:$0xff]
  %v411 = vld [vmem:[#allocation2 + $0x32] sm:$0xff]
  %v412 = vld [vmem:[#allocation2 + $0x3a] sm:$0xff]
  %v413 = vld [vmem:[#allocation2 + $0x42] sm:$0xff]
  %v414 = vpack.c.bf16 %v406, %v405
  %v415 = vpack.c.bf16 %v408, %v407
  %v416 = vpack.c.bf16 %v410, %v409
  %v417 = vpack.c.bf16 %v412, %v411
  %v418 = vpack.c.bf16 %v413, %v413
  %s419 = scalar_lea.vmem %s4, 16
  %v420 = vld [vmem:[%s419] sm:$0xf]
  %v421 = vld [vmem:[%s419 + $0x4] sm:$0xf]
  %v424 = vunpack.c.l.b16 %v420
  %v425 = vunpack.c.l.b16 %v421
  %v426 = vpack.c.b16 %v425, %v424
  %v429 = vsel %vm173, %v414, 0
  %v432 = vsel %vm173, %v415, 0
  %v435 = vsel %vm173, %v416, 0
  %v438 = vsel %vm173, %v417, 0
  %v441 = vsel %vm173, %v418, 0
  %443 = vmatprep.subr.bf16.mxu0 0
  %444 = vmatpush1.bf16.msra.mxu0 %v426
  %445 = vmatprep.subr.bf16.mxu0 0
  %446 = vmatpush1.bf16.msra.mxu0 0
  %447 = vmatprep.subr.bf16.mxu0 0
  %448 = vmatpush1.bf16.msra.mxu0 0
  %449 = vmatprep.subr.bf16.mxu0 0
  %450 = vmatpush1.bf16.msra.mxu0 0
  %451 = vmatprep.subr.bf16.mxu0 0
  %452 = vmatpush1.bf16.msra.mxu0 0
  %453 = vmatprep.subr.bf16.mxu0 0
  %454 = vmatpush1.bf16.msra.mxu0 0
  %455 = vmatprep.subr.bf16.mxu0 0
  %456 = vmatpush1.bf16.msra.mxu0 0
  %457 = vmatprep.subr.bf16.mxu0 0
  %458 = vmatpush1.bf16.msra.mxu0 0
  %459 = vmatprep.subr.bf16.mxu0 0
  %460 = vmatpush1.bf16.msra.mxu0 0
  %461 = vmatprep.subr.bf16.mxu0 0
  %462 = vmatpush1.bf16.msra.mxu0 0
  %463 = vmatprep.subr.bf16.mxu0 0
  %464 = vmatpush1.bf16.msra.mxu0 0
  %465 = vmatprep.subr.bf16.mxu0 0
  %466 = vmatpush1.bf16.msra.mxu0 0
  %467 = vmatprep.subr.bf16.mxu0 0
  %468 = vmatpush1.bf16.msra.mxu0 0
  %469 = vmatprep.subr.bf16.mxu0 0
  %470 = vmatpush1.bf16.msra.mxu0 0
  %471 = vmatprep.subr.bf16.mxu0 0
  %472 = vmatpush1.bf16.msra.mxu0 0
  %473 = vmatprep.subr.bf16.mxu0 0
  %474 = vmatpush1.bf16.msra.mxu0 0
  %475 = vmatprep.mubr.bf16.mxu0 0
  %476 = vmatmul.mubr.bf16.gmra.mrb[0].mxu0 %v429
  %v477 = vpop.f32.mrb[0].mxu0
  %v478 = vadd.f32 0.0, %v477
  %v479 = vpop.f32.mrb[0].mxu0
  %v480 = vpop.f32.mrb[0].mxu0
  %v481 = vadd.f32 0.0, %v480
  %v482 = vpop.f32.mrb[0].mxu0
  %483 = vmatprep.mubr.bf16.mxu0 0
  %484 = vmatmul.mubr.bf16.gmra.mrb[0].mxu0 %v432
  %v485 = vpop.f32.mrb[0].mxu0
  %v486 = vadd.f32 0.0, %v485
  %v487 = vpop.f32.mrb[0].mxu0
  %v488 = vpop.f32.mrb[0].mxu0
  %v489 = vadd.f32 0.0, %v488
  %v490 = vpop.f32.mrb[0].mxu0
  %491 = vmatprep.mubr.bf16.mxu0 0
  %492 = vmatmul.mubr.bf16.gmra.mrb[0].mxu0 %v435
  %v493 = vpop.f32.mrb[0].mxu0
  %v494 = vadd.f32 0.0, %v493
  %v495 = vpop.f32.mrb[0].mxu0
  %v496 = vpop.f32.mrb[0].mxu0
  %v497 = vadd.f32 0.0, %v496
  %v498 = vpop.f32.mrb[0].mxu0
  %499 = vmatprep.mubr.bf16.mxu0 0
  %500 = vmatmul.mubr.bf16.gmra.mrb[0].mxu0 %v438
  %v501 = vpop.f32.mrb[0].mxu0
  %v502 = vadd.f32 0.0, %v501
  %v503 = vpop.f32.mrb[0].mxu0
  %v504 = vpop.f32.mrb[0].mxu0
  %v505 = vadd.f32 0.0, %v504
  %v506 = vpop.f32.mrb[0].mxu0
  %507 = vmatprep.mubr.bf16.mxu0 0
  %508 = vmatmul.mubr.bf16.gmra.mrb[0].mxu0 %v441
  %v509 = vpop.f32.mrb[0].mxu0
  %v510 = vadd.f32 0.0, %v509
  %v511 = vpop.f32.mrb[0].mxu0
  %v512 = vpop.f32.mrb[0].mxu0
  %v513 = vpop.f32.mrb[0].mxu0
  %514 = vdwg.mxu0
  %v515 = vadd.f32 %v368, %v478
  %v516 = vadd.f32 %v371, %v481
  %v517 = vadd.f32 %v376, %v486
  %v518 = vadd.f32 %v379, %v489
  %v519 = vadd.f32 %v384, %v494
  %v520 = vadd.f32 %v387, %v497
  %v521 = vadd.f32 %v392, %v502
  %v522 = vadd.f32 %v395, %v505
  %v523 = vadd.f32 %v400, %v510
  %v524 = vld [vmem:[#allocation2 + $0x6] sm:$0xff]
  %v525 = vld [vmem:[#allocation2 + $0xe] sm:$0xff]
  %v526 = vld [vmem:[#allocation2 + $0x16] sm:$0xff]
  %v527 = vld [vmem:[#allocation2 + $0x1e] sm:$0xff]
  %v528 = vld [vmem:[#allocation2 + $0x26] sm:$0xff]
  %v529 = vld [vmem:[#allocation2 + $0x2e] sm:$0xff]
  %v530 = vld [vmem:[#allocation2 + $0x36] sm:$0xff]
  %v531 = vld [vmem:[#allocation2 + $0x3e] sm:$0xff]
  %v532 = vld [vmem:[#allocation2 + $0x46] sm:$0xff]
  %v533 = vpack.c.bf16 %v525, %v524
  %v534 = vpack.c.bf16 %v527, %v526
  %v535 = vpack.c.bf16 %v529, %v528
  %v536 = vpack.c.bf16 %v531, %v530
  %v537 = vpack.c.bf16 %v532, %v532
  %s538 = scalar_lea.vmem %s4, 24
  %v539 = vld [vmem:[%s538] sm:$0xf]
  %v540 = vld [vmem:[%s538 + $0x4] sm:$0xf]
  %v543 = vunpack.c.l.b16 %v539
  %v544 = vunpack.c.l.b16 %v540
  %v545 = vpack.c.b16 %v544, %v543
  %v548 = vsel %vm173, %v533, 0
  %v551 = vsel %vm173, %v534, 0
  %v554 = vsel %vm173, %v535, 0
  %v557 = vsel %vm173, %v536, 0
  %v560 = vsel %vm173, %v537, 0
  %562 = vmatprep.subr.bf16.mxu0 0
  %563 = vmatpush1.bf16.msra.mxu0 %v545
  %564 = vmatprep.subr.bf16.mxu0 0
  %565 = vmatpush1.bf16.msra.mxu0 0
  %566 = vmatprep.subr.bf16.mxu0 0
  %567 = vmatpush1.bf16.msra.mxu0 0
  %568 = vmatprep.subr.bf16.mxu0 0
  %569 = vmatpush1.bf16.msra.mxu0 0
  %570 = vmatprep.subr.bf16.mxu0 0
  %571 = vmatpush1.bf16.msra.mxu0 0
  %572 = vmatprep.subr.bf16.mxu0 0
  %573 = vmatpush1.bf16.msra.mxu0 0
  %574 = vmatprep.subr.bf16.mxu0 0
  %575 = vmatpush1.bf16.msra.mxu0 0
  %576 = vmatprep.subr.bf16.mxu0 0
  %577 = vmatpush1.bf16.msra.mxu0 0
  %578 = vmatprep.subr.bf16.mxu0 0
  %579 = vmatpush1.bf16.msra.mxu0 0
  %580 = vmatprep.subr.bf16.mxu0 0
  %581 = vmatpush1.bf16.msra.mxu0 0
  %582 = vmatprep.subr.bf16.mxu0 0
  %583 = vmatpush1.bf16.msra.mxu0 0
  %584 = vmatprep.subr.bf16.mxu0 0
  %585 = vmatpush1.bf16.msra.mxu0 0
  %586 = vmatprep.subr.bf16.mxu0 0
  %587 = vmatpush1.bf16.msra.mxu0 0
  %588 = vmatprep.subr.bf16.mxu0 0
  %589 = vmatpush1.bf16.msra.mxu0 0
  %590 = vmatprep.subr.bf16.mxu0 0
  %591 = vmatpush1.bf16.msra.mxu0 0
  %592 = vmatprep.subr.bf16.mxu0 0
  %593 = vmatpush1.bf16.msra.mxu0 0
  %594 = vmatprep.mubr.bf16.mxu0 0
  %595 = vmatmul.mubr.bf16.gmra.mrb[0].mxu0 %v548
  %v596 = vpop.f32.mrb[0].mxu0
  %v597 = vadd.f32 0.0, %v596
  %v598 = vpop.f32.mrb[0].mxu0
  %v599 = vpop.f32.mrb[0].mxu0
  %v600 = vadd.f32 0.0, %v599
  %v601 = vpop.f32.mrb[0].mxu0
  %602 = vmatprep.mubr.bf16.mxu0 0
  %603 = vmatmul.mubr.bf16.gmra.mrb[0].mxu0 %v551
  %v604 = vpop.f32.mrb[0].mxu0
  %v605 = vadd.f32 0.0, %v604
  %v606 = vpop.f32.mrb[0].mxu0
  %v607 = vpop.f32.mrb[0].mxu0
  %v608 = vadd.f32 0.0, %v607
  %v609 = vpop.f32.mrb[0].mxu0
  %610 = vmatprep.mubr.bf16.mxu0 0
  %611 = vmatmul.mubr.bf16.gmra.mrb[0].mxu0 %v554
  %v612 = vpop.f32.mrb[0].mxu0
  %v613 = vadd.f32 0.0, %v612
  %v614 = vpop.f32.mrb[0].mxu0
  %v615 = vpop.f32.mrb[0].mxu0
  %v616 = vadd.f32 0.0, %v615
  %v617 = vpop.f32.mrb[0].mxu0
  %618 = vmatprep.mubr.bf16.mxu0 0
  %619 = vmatmul.mubr.bf16.gmra.mrb[0].mxu0 %v557
  %v620 = vpop.f32.mrb[0].mxu0
  %v621 = vadd.f32 0.0, %v620
  %v622 = vpop.f32.mrb[0].mxu0
  %v623 = vpop.f32.mrb[0].mxu0
  %v624 = vadd.f32 0.0, %v623
  %v625 = vpop.f32.mrb[0].mxu0
  %626 = vmatprep.mubr.bf16.mxu0 0
  %627 = vmatmul.mubr.bf16.gmra.mrb[0].mxu0 %v560
  %v628 = vpop.f32.mrb[0].mxu0
  %v629 = vadd.f32 0.0, %v628
  %v630 = vpop.f32.mrb[0].mxu0
  %v631 = vpop.f32.mrb[0].mxu0
  %v632 = vpop.f32.mrb[0].mxu0
  %633 = vdwg.mxu0
  %v634 = vadd.f32 %v515, %v597
  %v635 = vadd.f32 %v516, %v600
  %v636 = vadd.f32 %v517, %v605
  %v637 = vadd.f32 %v518, %v608
  %v638 = vadd.f32 %v519, %v613
  %v639 = vadd.f32 %v520, %v616
  %v640 = vadd.f32 %v521, %v621
  %v641 = vadd.f32 %v522, %v624
  %v642 = vadd.f32 %v523, %v629
  %v643 = vld [vmem:[#allocation2 + $0x7] sm:$0xff]
  %v644 = vld [vmem:[#allocation2 + $0xf] sm:$0xff]
  %v645 = vld [vmem:[#allocation2 + $0x17] sm:$0xff]
  %v646 = vld [vmem:[#allocation2 + $0x1f] sm:$0xff]
  %v647 = vld [vmem:[#allocation2 + $0x27] sm:$0xff]
  %v648 = vld [vmem:[#allocation2 + $0x2f] sm:$0xff]
  %v649 = vld [vmem:[#allocation2 + $0x37] sm:$0xff]
  %v650 = vld [vmem:[#allocation2 + $0x3f] sm:$0xff]
  %v651 = vld [vmem:[#allocation2 + $0x47] sm:$0xff]
  %v652 = vpack.c.bf16 %v644, %v643
  %v653 = vpack.c.bf16 %v646, %v645
  %v654 = vpack.c.bf16 %v648, %v647
  %v655 = vpack.c.bf16 %v650, %v649
  %v656 = vpack.c.bf16 %v651, %v651
  %s657 = scalar_lea.vmem %s4, 32
  %v658 = vld [vmem:[%s657] sm:$0xf]
  %v659 = vld [vmem:[%s657 + $0x4] sm:$0xf]
  %v662 = vunpack.c.l.b16 %v658
  %v663 = vunpack.c.l.b16 %v659
  %v664 = vpack.c.b16 %v663, %v662
  %v667 = vsel %vm173, %v652, 0
  %v670 = vsel %vm173, %v653, 0
  %v673 = vsel %vm173, %v654, 0
  %v676 = vsel %vm173, %v655, 0
  %v679 = vsel %vm173, %v656, 0
  %681 = vmatprep.subr.bf16.mxu0 0
  %682 = vmatpush1.bf16.msra.mxu0 %v664
  %683 = vmatprep.subr.bf16.mxu0 0
  %684 = vmatpush1.bf16.msra.mxu0 0
  %685 = vmatprep.subr.bf16.mxu0 0
  %686 = vmatpush1.bf16.msra.mxu0 0
  %687 = vmatprep.subr.bf16.mxu0 0
  %688 = vmatpush1.bf16.msra.mxu0 0
  %689 = vmatprep.subr.bf16.mxu0 0
  %690 = vmatpush1.bf16.msra.mxu0 0
  %691 = vmatprep.subr.bf16.mxu0 0
  %692 = vmatpush1.bf16.msra.mxu0 0
  %693 = vmatprep.subr.bf16.mxu0 0
  %694 = vmatpush1.bf16.msra.mxu0 0
  %695 = vmatprep.subr.bf16.mxu0 0
  %696 = vmatpush1.bf16.msra.mxu0 0
  %697 = vmatprep.subr.bf16.mxu0 0
  %698 = vmatpush1.bf16.msra.mxu0 0
  %699 = vmatprep.subr.bf16.mxu0 0
  %700 = vmatpush1.bf16.msra.mxu0 0
  %701 = vmatprep.subr.bf16.mxu0 0
  %702 = vmatpush1.bf16.msra.mxu0 0
  %703 = vmatprep.subr.bf16.mxu0 0
  %704 = vmatpush1.bf16.msra.mxu0 0
  %705 = vmatprep.subr.bf16.mxu0 0
  %706 = vmatpush1.bf16.msra.mxu0 0
  %707 = vmatprep.subr.bf16.mxu0 0
  %708 = vmatpush1.bf16.msra.mxu0 0
  %709 = vmatprep.subr.bf16.mxu0 0
  %710 = vmatpush1.bf16.msra.mxu0 0
  %711 = vmatprep.subr.bf16.mxu0 0
  %712 = vmatpush1.bf16.msra.mxu0 0
  %713 = vmatprep.mubr.bf16.mxu0 0
  %714 = vmatmul.mubr.bf16.gmra.mrb[0].mxu0 %v667
  %v715 = vpop.f32.mrb[0].mxu0
  %v716 = vadd.f32 0.0, %v715
  %v717 = vpop.f32.mrb[0].mxu0
  %v718 = vpop.f32.mrb[0].mxu0
  %v719 = vadd.f32 0.0, %v718
  %v720 = vpop.f32.mrb[0].mxu0
  %721 = vmatprep.mubr.bf16.mxu0 0
  %722 = vmatmul.mubr.bf16.gmra.mrb[0].mxu0 %v670
  %v723 = vpop.f32.mrb[0].mxu0
  %v724 = vadd.f32 0.0, %v723
  %v725 = vpop.f32.mrb[0].mxu0
  %v726 = vpop.f32.mrb[0].mxu0
  %v727 = vadd.f32 0.0, %v726
  %v728 = vpop.f32.mrb[0].mxu0
  %729 = vmatprep.mubr.bf16.mxu0 0
  %730 = vmatmul.mubr.bf16.gmra.mrb[0].mxu0 %v673
  %v731 = vpop.f32.mrb[0].mxu0
  %v732 = vadd.f32 0.0, %v731
  %v733 = vpop.f32.mrb[0].mxu0
  %v734 = vpop.f32.mrb[0].mxu0
  %v735 = vadd.f32 0.0, %v734
  %v736 = vpop.f32.mrb[0].mxu0
  %737 = vmatprep.mubr.bf16.mxu0 0
  %738 = vmatmul.mubr.bf16.gmra.mrb[0].mxu0 %v676
  %v739 = vpop.f32.mrb[0].mxu0
  %v740 = vadd.f32 0.0, %v739
  %v741 = vpop.f32.mrb[0].mxu0
  %v742 = vpop.f32.mrb[0].mxu0
  %v743 = vadd.f32 0.0, %v742
  %v744 = vpop.f32.mrb[0].mxu0
  %745 = vmatprep.mubr.bf16.mxu0 0
  %746 = vmatmul.mubr.bf16.gmra.mrb[0].mxu0 %v679
  %v747 = vpop.f32.mrb[0].mxu0
  %v748 = vadd.f32 0.0, %v747
  %v749 = vpop.f32.mrb[0].mxu0
  %v750 = vpop.f32.mrb[0].mxu0
  %v751 = vpop.f32.mrb[0].mxu0
  %752 = vdwg.mxu0
  %v753 = vadd.f32 %v634, %v716
  %v754 = vadd.f32 %v635, %v719
  %v755 = vadd.f32 %v636, %v724
  %v756 = vadd.f32 %v637, %v727
  %v757 = vadd.f32 %v638, %v732
  %v758 = vadd.f32 %v639, %v735
  %v759 = vadd.f32 %v640, %v740
  %v760 = vadd.f32 %v641, %v743
  %v761 = vadd.f32 %v642, %v748
  %v762 = vld [vmem:[#allocation2 + $0x8] sm:$0xff]
  %v763 = vld [vmem:[#allocation2 + $0x10] sm:$0xff]
  %v764 = vld [vmem:[#allocation2 + $0x18] sm:$0xff]
  %v765 = vld [vmem:[#allocation2 + $0x20] sm:$0xff]
  %v766 = vld [vmem:[#allocation2 + $0x28] sm:$0xff]
  %v767 = vld [vmem:[#allocation2 + $0x30] sm:$0xff]
  %v768 = vld [vmem:[#allocation2 + $0x38] sm:$0xff]
  %v769 = vld [vmem:[#allocation2 + $0x40] sm:$0xff]
  %v770 = vld [vmem:[#allocation2 + $0x48] sm:$0xff]
  %v771 = vpack.c.bf16 %v763, %v762
  %v772 = vpack.c.bf16 %v765, %v764
  %v773 = vpack.c.bf16 %v767, %v766
  %v774 = vpack.c.bf16 %v769, %v768
  %v775 = vpack.c.bf16 %v770, %v770
  %s776 = scalar_lea.vmem %s4, 40
  %v777 = vld [vmem:[%s776] sm:$0xf]
  %v778 = vld [vmem:[%s776 + $0x4] sm:$0xf]
  %v781 = vunpack.c.l.b16 %v777
  %v782 = vunpack.c.l.b16 %v778
  %v783 = vpack.c.b16 %v782, %v781
  %v786 = vsel %vm173, %v771, 0
  %v789 = vsel %vm173, %v772, 0
  %v792 = vsel %vm173, %v773, 0
  %v795 = vsel %vm173, %v774, 0
  %v798 = vsel %vm173, %v775, 0
  %800 = vmatprep.subr.bf16.mxu0 0
  %801 = vmatpush1.bf16.msra.mxu0 %v783
  %802 = vmatprep.subr.bf16.mxu0 0
  %803 = vmatpush1.bf16.msra.mxu0 0
  %804 = vmatprep.subr.bf16.mxu0 0
  %805 = vmatpush1.bf16.msra.mxu0 0
  %806 = vmatprep.subr.bf16.mxu0 0
  %807 = vmatpush1.bf16.msra.mxu0 0
  %808 = vmatprep.subr.bf16.mxu0 0
  %809 = vmatpush1.bf16.msra.mxu0 0
  %810 = vmatprep.subr.bf16.mxu0 0
  %811 = vmatpush1.bf16.msra.mxu0 0
  %812 = vmatprep.subr.bf16.mxu0 0
  %813 = vmatpush1.bf16.msra.mxu0 0
  %814 = vmatprep.subr.bf16.mxu0 0
  %815 = vmatpush1.bf16.msra.mxu0 0
  %816 = vmatprep.subr.bf16.mxu0 0
  %817 = vmatpush1.bf16.msra.mxu0 0
  %818 = vmatprep.subr.bf16.mxu0 0
  %819 = vmatpush1.bf16.msra.mxu0 0
  %820 = vmatprep.subr.bf16.mxu0 0
  %821 = vmatpush1.bf16.msra.mxu0 0
  %822 = vmatprep.subr.bf16.mxu0 0
  %823 = vmatpush1.bf16.msra.mxu0 0
  %824 = vmatprep.subr.bf16.mxu0 0
  %825 = vmatpush1.bf16.msra.mxu0 0
  %826 = vmatprep.subr.bf16.mxu0 0
  %827 = vmatpush1.bf16.msra.mxu0 0
  %828 = vmatprep.subr.bf16.mxu0 0
  %829 = vmatpush1.bf16.msra.mxu0 0
  %830 = vmatprep.subr.bf16.mxu0 0
  %831 = vmatpush1.bf16.msra.mxu0 0
  %832 = vmatprep.mubr.bf16.mxu0 0
  %833 = vmatmul.mubr.bf16.gmra.mrb[0].mxu0 %v786
  %v834 = vpop.f32.mrb[0].mxu0
  %v835 = vadd.f32 0.0, %v834
  %v836 = vpop.f32.mrb[0].mxu0
  %v837 = vpop.f32.mrb[0].mxu0
  %v838 = vadd.f32 0.0, %v837
  %v839 = vpop.f32.mrb[0].mxu0
  %840 = vmatprep.mubr.bf16.mxu0 0
  %841 = vmatmul.mubr.bf16.gmra.mrb[0].mxu0 %v789
  %v842 = vpop.f32.mrb[0].mxu0
  %v843 = vadd.f32 0.0, %v842
  %v844 = vpop.f32.mrb[0].mxu0
  %v845 = vpop.f32.mrb[0].mxu0
  %v846 = vadd.f32 0.0, %v845
  %v847 = vpop.f32.mrb[0].mxu0
  %848 = vmatprep.mubr.bf16.mxu0 0
  %849 = vmatmul.mubr.bf16.gmra.mrb[0].mxu0 %v792
  %v850 = vpop.f32.mrb[0].mxu0
  %v851 = vadd.f32 0.0, %v850
  %v852 = vpop.f32.mrb[0].mxu0
  %v853 = vpop.f32.mrb[0].mxu0
  %v854 = vadd.f32 0.0, %v853
  %v855 = vpop.f32.mrb[0].mxu0
  %856 = vmatprep.mubr.bf16.mxu0 0
  %857 = vmatmul.mubr.bf16.gmra.mrb[0].mxu0 %v795
  %v858 = vpop.f32.mrb[0].mxu0
  %v859 = vadd.f32 0.0, %v858
  %v860 = vpop.f32.mrb[0].mxu0
  %v861 = vpop.f32.mrb[0].mxu0
  %v862 = vadd.f32 0.0, %v861
  %v863 = vpop.f32.mrb[0].mxu0
  %864 = vmatprep.mubr.bf16.mxu0 0
  %865 = vmatmul.mubr.bf16.gmra.mrb[0].mxu0 %v798
  %v866 = vpop.f32.mrb[0].mxu0
  %v867 = vadd.f32 0.0, %v866
  %v868 = vpop.f32.mrb[0].mxu0
  %v869 = vpop.f32.mrb[0].mxu0
  %v870 = vpop.f32.mrb[0].mxu0
  %871 = vdwg.mxu0
  %v872 = vadd.f32 %v753, %v835
  %v873 = vadd.f32 %v754, %v838
  %v874 = vadd.f32 %v755, %v843
  %v875 = vadd.f32 %v756, %v846
  %v876 = vadd.f32 %v757, %v851
  %v877 = vadd.f32 %v758, %v854
  %v878 = vadd.f32 %v759, %v859
  %v879 = vadd.f32 %v760, %v862
  %v880 = vadd.f32 %v761, %v867
  %v881 = vld [vmem:[#allocation2 + $0xc] sm:$0xff]
  %v882 = vld [vmem:[#allocation2 + $0x14] sm:$0xff]
  %v883 = vld [vmem:[#allocation2 + $0x1c] sm:$0xff]
  %v884 = vld [vmem:[#allocation2 + $0x24] sm:$0xff]
  %v885 = vld [vmem:[#allocation2 + $0x2c] sm:$0xff]
  %v886 = vld [vmem:[#allocation2 + $0x34] sm:$0xff]
  %v887 = vld [vmem:[#allocation2 + $0x3c] sm:$0xff]
  %v888 = vld [vmem:[#allocation2 + $0x44] sm:$0xff]
  %v889 = vld [vmem:[#allocation2 + $0x4c] sm:$0xff]
  %v890 = vpack.c.bf16 %v882, %v881
  %v891 = vpack.c.bf16 %v884, %v883
  %v892 = vpack.c.bf16 %v886, %v885
  %v893 = vpack.c.bf16 %v888, %v887
  %v894 = vpack.c.bf16 %v889, %v889
  %s895 = scalar_lea.vmem %s4, 48
  %v896 = vld [vmem:[%s895] sm:$0xf]
  %v897 = vld [vmem:[%s895 + $0x4] sm:$0xf]
  %v900 = vunpack.c.l.b16 %v896
  %v901 = vunpack.c.l.b16 %v897
  %v902 = vpack.c.b16 %v901, %v900
  %v905 = vsel %vm173, %v890, 0
  %v908 = vsel %vm173, %v891, 0
  %v911 = vsel %vm173, %v892, 0
  %v914 = vsel %vm173, %v893, 0
  %v917 = vsel %vm173, %v894, 0
  %919 = vmatprep.subr.bf16.mxu0 0
  %920 = vmatpush1.bf16.msra.mxu0 %v902
  %921 = vmatprep.subr.bf16.mxu0 0
  %922 = vmatpush1.bf16.msra.mxu0 0
  %923 = vmatprep.subr.bf16.mxu0 0
  %924 = vmatpush1.bf16.msra.mxu0 0
  %925 = vmatprep.subr.bf16.mxu0 0
  %926 = vmatpush1.bf16.msra.mxu0 0
  %927 = vmatprep.subr.bf16.mxu0 0
  %928 = vmatpush1.bf16.msra.mxu0 0
  %929 = vmatprep.subr.bf16.mxu0 0
  %930 = vmatpush1.bf16.msra.mxu0 0
  %931 = vmatprep.subr.bf16.mxu0 0
  %932 = vmatpush1.bf16.msra.mxu0 0
  %933 = vmatprep.subr.bf16.mxu0 0
  %934 = vmatpush1.bf16.msra.mxu0 0
  %935 = vmatprep.subr.bf16.mxu0 0
  %936 = vmatpush1.bf16.msra.mxu0 0
  %937 = vmatprep.subr.bf16.mxu0 0
  %938 = vmatpush1.bf16.msra.mxu0 0
  %939 = vmatprep.subr.bf16.mxu0 0
  %940 = vmatpush1.bf16.msra.mxu0 0
  %941 = vmatprep.subr.bf16.mxu0 0
  %942 = vmatpush1.bf16.msra.mxu0 0
  %943 = vmatprep.subr.bf16.mxu0 0
  %944 = vmatpush1.bf16.msra.mxu0 0
  %945 = vmatprep.subr.bf16.mxu0 0
  %946 = vmatpush1.bf16.msra.mxu0 0
  %947 = vmatprep.subr.bf16.mxu0 0
  %948 = vmatpush1.bf16.msra.mxu0 0
  %949 = vmatprep.subr.bf16.mxu0 0
  %950 = vmatpush1.bf16.msra.mxu0 0
  %951 = vmatprep.mubr.bf16.mxu0 0
  %952 = vmatmul.mubr.bf16.gmra.mrb[0].mxu0 %v905
  %v953 = vpop.f32.mrb[0].mxu0
  %v954 = vadd.f32 0.0, %v953
  %v955 = vpop.f32.mrb[0].mxu0
  %v956 = vpop.f32.mrb[0].mxu0
  %v957 = vadd.f32 0.0, %v956
  %v958 = vpop.f32.mrb[0].mxu0
  %959 = vmatprep.mubr.bf16.mxu0 0
  %960 = vmatmul.mubr.bf16.gmra.mrb[0].mxu0 %v908
  %v961 = vpop.f32.mrb[0].mxu0
  %v962 = vadd.f32 0.0, %v961
  %v963 = vpop.f32.mrb[0].mxu0
  %v964 = vpop.f32.mrb[0].mxu0
  %v965 = vadd.f32 0.0, %v964
  %v966 = vpop.f32.mrb[0].mxu0
  %967 = vmatprep.mubr.bf16.mxu0 0
  %968 = vmatmul.mubr.bf16.gmra.mrb[0].mxu0 %v911
  %v969 = vpop.f32.mrb[0].mxu0
  %v970 = vadd.f32 0.0, %v969
  %v971 = vpop.f32.mrb[0].mxu0
  %v972 = vpop.f32.mrb[0].mxu0
  %v973 = vadd.f32 0.0, %v972
  %v974 = vpop.f32.mrb[0].mxu0
  %975 = vmatprep.mubr.bf16.mxu0 0
  %976 = vmatmul.mubr.bf16.gmra.mrb[0].mxu0 %v914
  %v977 = vpop.f32.mrb[0].mxu0
  %v978 = vadd.f32 0.0, %v977
  %v979 = vpop.f32.mrb[0].mxu0
  %v980 = vpop.f32.mrb[0].mxu0
  %v981 = vadd.f32 0.0, %v980
  %v982 = vpop.f32.mrb[0].mxu0
  %983 = vmatprep.mubr.bf16.mxu0 0
  %984 = vmatmul.mubr.bf16.gmra.mrb[0].mxu0 %v917
  %v985 = vpop.f32.mrb[0].mxu0
  %v986 = vadd.f32 0.0, %v985
  %v987 = vpop.f32.mrb[0].mxu0
  %v988 = vpop.f32.mrb[0].mxu0
  %v989 = vpop.f32.mrb[0].mxu0
  %990 = vdwg.mxu0
  %v991 = vadd.f32 %v872, %v954
  %v992 = vadd.f32 %v873, %v957
  %v993 = vadd.f32 %v874, %v962
  %v994 = vadd.f32 %v875, %v965
  %v995 = vadd.f32 %v876, %v970
  %v996 = vadd.f32 %v877, %v973
  %v997 = vadd.f32 %v878, %v978
  %v998 = vadd.f32 %v879, %v981
  %v999 = vadd.f32 %v880, %v986
  %v1000 = vld [vmem:[#allocation2 + $0xd] sm:$0xff]
  %v1001 = vld [vmem:[#allocation2 + $0x15] sm:$0xff]
  %v1002 = vld [vmem:[#allocation2 + $0x1d] sm:$0xff]
  %v1003 = vld [vmem:[#allocation2 + $0x25] sm:$0xff]
  %v1004 = vld [vmem:[#allocation2 + $0x2d] sm:$0xff]
  %v1005 = vld [vmem:[#allocation2 + $0x35] sm:$0xff]
  %v1006 = vld [vmem:[#allocation2 + $0x3d] sm:$0xff]
  %v1007 = vld [vmem:[#allocation2 + $0x45] sm:$0xff]
  %v1008 = vld [vmem:[#allocation2 + $0x4d] sm:$0xff]
  %v1009 = vpack.c.bf16 %v1001, %v1000
  %v1010 = vpack.c.bf16 %v1003, %v1002
  %v1011 = vpack.c.bf16 %v1005, %v1004
  %v1012 = vpack.c.bf16 %v1007, %v1006
  %v1013 = vpack.c.bf16 %v1008, %v1008
  %s1014 = scalar_lea.vmem %s4, 56
  %v1015 = vld [vmem:[%s1014] sm:$0xf]
  %v1016 = vld [vmem:[%s1014 + $0x4] sm:$0xf]
  %v1019 = vunpack.c.l.b16 %v1015
  %v1020 = vunpack.c.l.b16 %v1016
  %v1021 = vpack.c.b16 %v1020, %v1019
  %v1024 = vsel %vm173, %v1009, 0
  %v1027 = vsel %vm173, %v1010, 0
  %v1030 = vsel %vm173, %v1011, 0
  %v1033 = vsel %vm173, %v1012, 0
  %v1036 = vsel %vm173, %v1013, 0
  %1038 = vmatprep.subr.bf16.mxu0 0
  %1039 = vmatpush1.bf16.msra.mxu0 %v1021
  %1040 = vmatprep.subr.bf16.mxu0 0
  %1041 = vmatpush1.bf16.msra.mxu0 0
  %1042 = vmatprep.subr.bf16.mxu0 0
  %1043 = vmatpush1.bf16.msra.mxu0 0
  %1044 = vmatprep.subr.bf16.mxu0 0
  %1045 = vmatpush1.bf16.msra.mxu0 0
  %1046 = vmatprep.subr.bf16.mxu0 0
  %1047 = vmatpush1.bf16.msra.mxu0 0
  %1048 = vmatprep.subr.bf16.mxu0 0
  %1049 = vmatpush1.bf16.msra.mxu0 0
  %1050 = vmatprep.subr.bf16.mxu0 0
  %1051 = vmatpush1.bf16.msra.mxu0 0
  %1052 = vmatprep.subr.bf16.mxu0 0
  %1053 = vmatpush1.bf16.msra.mxu0 0
  %1054 = vmatprep.subr.bf16.mxu0 0
  %1055 = vmatpush1.bf16.msra.mxu0 0
  %1056 = vmatprep.subr.bf16.mxu0 0
  %1057 = vmatpush1.bf16.msra.mxu0 0
  %1058 = vmatprep.subr.bf16.mxu0 0
  %1059 = vmatpush1.bf16.msra.mxu0 0
  %1060 = vmatprep.subr.bf16.mxu0 0
  %1061 = vmatpush1.bf16.msra.mxu0 0
  %1062 = vmatprep.subr.bf16.mxu0 0
  %1063 = vmatpush1.bf16.msra.mxu0 0
  %1064 = vmatprep.subr.bf16.mxu0 0
  %1065 = vmatpush1.bf16.msra.mxu0 0
  %1066 = vmatprep.subr.bf16.mxu0 0
  %1067 = vmatpush1.bf16.msra.mxu0 0
  %1068 = vmatprep.subr.bf16.mxu0 0
  %1069 = vmatpush1.bf16.msra.mxu0 0
  %1070 = vmatprep.mubr.bf16.mxu0 0
  %1071 = vmatmul.mubr.bf16.gmra.mrb[0].mxu0 %v1024
  %v1072 = vpop.f32.mrb[0].mxu0
  %v1073 = vadd.f32 0.0, %v1072
  %v1074 = vpop.f32.mrb[0].mxu0
  %v1075 = vpop.f32.mrb[0].mxu0
  %v1076 = vadd.f32 0.0, %v1075
  %v1077 = vpop.f32.mrb[0].mxu0
  %1078 = vmatprep.mubr.bf16.mxu0 0
  %1079 = vmatmul.mubr.bf16.gmra.mrb[0].mxu0 %v1027
  %v1080 = vpop.f32.mrb[0].mxu0
  %v1081 = vadd.f32 0.0, %v1080
  %v1082 = vpop.f32.mrb[0].mxu0
  %v1083 = vpop.f32.mrb[0].mxu0
  %v1084 = vadd.f32 0.0, %v1083
  %v1085 = vpop.f32.mrb[0].mxu0
  %1086 = vmatprep.mubr.bf16.mxu0 0
  %1087 = vmatmul.mubr.bf16.gmra.mrb[0].mxu0 %v1030
  %v1088 = vpop.f32.mrb[0].mxu0
  %v1089 = vadd.f32 0.0, %v1088
  %v1090 = vpop.f32.mrb[0].mxu0
  %v1091 = vpop.f32.mrb[0].mxu0
  %v1092 = vadd.f32 0.0, %v1091
  %v1093 = vpop.f32.mrb[0].mxu0
  %1094 = vmatprep.mubr.bf16.mxu0 0
  %1095 = vmatmul.mubr.bf16.gmra.mrb[0].mxu0 %v1033
  %v1096 = vpop.f32.mrb[0].mxu0
  %v1097 = vadd.f32 0.0, %v1096
  %v1098 = vpop.f32.mrb[0].mxu0
  %v1099 = vpop.f32.mrb[0].mxu0
  %v1100 = vadd.f32 0.0, %v1099
  %v1101 = vpop.f32.mrb[0].mxu0
  %1102 = vmatprep.mubr.bf16.mxu0 0
  %1103 = vmatmul.mubr.bf16.gmra.mrb[0].mxu0 %v1036
  %v1104 = vpop.f32.mrb[0].mxu0
  %v1105 = vadd.f32 0.0, %v1104
  %v1106 = vpop.f32.mrb[0].mxu0
  %v1107 = vpop.f32.mrb[0].mxu0
  %v1108 = vpop.f32.mrb[0].mxu0
  %1109 = vdwg.mxu0
  %v1110 = vadd.f32 %v991, %v1073
  %v1111 = vadd.f32 %v992, %v1076
  %v1112 = vadd.f32 %v993, %v1081
  %v1113 = vadd.f32 %v994, %v1084
  %v1114 = vadd.f32 %v995, %v1089
  %v1115 = vadd.f32 %v996, %v1092
  %v1116 = vadd.f32 %v997, %v1097
  %v1117 = vadd.f32 %v998, %v1100
  %v1118 = vadd.f32 %v999, %v1105
  %v1119 = vld [vmem:[#allocation2 + $0xe] sm:$0xff]
  %v1120 = vld [vmem:[#allocation2 + $0x16] sm:$0xff]
  %v1121 = vld [vmem:[#allocation2 + $0x1e] sm:$0xff]
  %v1122 = vld [vmem:[#allocation2 + $0x26] sm:$0xff]
  %v1123 = vld [vmem:[#allocation2 + $0x2e] sm:$0xff]
  %v1124 = vld [vmem:[#allocation2 + $0x36] sm:$0xff]
  %v1125 = vld [vmem:[#allocation2 + $0x3e] sm:$0xff]
  %v1126 = vld [vmem:[#allocation2 + $0x46] sm:$0xff]
  %v1127 = vld [vmem:[#allocation2 + $0x4e] sm:$0xff]
  %v1128 = vpack.c.bf16 %v1120, %v1119
  %v1129 = vpack.c.bf16 %v1122, %v1121
  %v1130 = vpack.c.bf16 %v1124, %v1123
  %v1131 = vpack.c.bf16 %v1126, %v1125
  %v1132 = vpack.c.bf16 %v1127, %v1127
  %s1133 = scalar_lea.vmem %s4, 64
  %v1134 = vld [vmem:[%s1133] sm:$0xf]
  %v1135 = vld [vmem:[%s1133 + $0x4] sm:$0xf]
  %v1138 = vunpack.c.l.b16 %v1134
  %v1139 = vunpack.c.l.b16 %v1135
  %v1140 = vpack.c.b16 %v1139, %v1138
  %v1143 = vsel %vm173, %v1128, 0
  %v1146 = vsel %vm173, %v1129, 0
  %v1149 = vsel %vm173, %v1130, 0
  %v1152 = vsel %vm173, %v1131, 0
  %v1155 = vsel %vm173, %v1132, 0
  %1157 = vmatprep.subr.bf16.mxu0 0
  %1158 = vmatpush1.bf16.msra.mxu0 %v1140
  %1159 = vmatprep.subr.bf16.mxu0 0
  %1160 = vmatpush1.bf16.msra.mxu0 0
  %1161 = vmatprep.subr.bf16.mxu0 0
  %1162 = vmatpush1.bf16.msra.mxu0 0
  %1163 = vmatprep.subr.bf16.mxu0 0
  %1164 = vmatpush1.bf16.msra.mxu0 0
  %1165 = vmatprep.subr.bf16.mxu0 0
  %1166 = vmatpush1.bf16.msra.mxu0 0
  %1167 = vmatprep.subr.bf16.mxu0 0
  %1168 = vmatpush1.bf16.msra.mxu0 0
  %1169 = vmatprep.subr.bf16.mxu0 0
  %1170 = vmatpush1.bf16.msra.mxu0 0
  %1171 = vmatprep.subr.bf16.mxu0 0
  %1172 = vmatpush1.bf16.msra.mxu0 0
  %1173 = vmatprep.subr.bf16.mxu0 0
  %1174 = vmatpush1.bf16.msra.mxu0 0
  %1175 = vmatprep.subr.bf16.mxu0 0
  %1176 = vmatpush1.bf16.msra.mxu0 0
  %1177 = vmatprep.subr.bf16.mxu0 0
  %1178 = vmatpush1.bf16.msra.mxu0 0
  %1179 = vmatprep.subr.bf16.mxu0 0
  %1180 = vmatpush1.bf16.msra.mxu0 0
  %1181 = vmatprep.subr.bf16.mxu0 0
  %1182 = vmatpush1.bf16.msra.mxu0 0
  %1183 = vmatprep.subr.bf16.mxu0 0
  %1184 = vmatpush1.bf16.msra.mxu0 0
  %1185 = vmatprep.subr.bf16.mxu0 0
  %1186 = vmatpush1.bf16.msra.mxu0 0
  %1187 = vmatprep.subr.bf16.mxu0 0
  %1188 = vmatpush1.bf16.msra.mxu0 0
  %1189 = vmatprep.mubr.bf16.mxu0 0
  %1190 = vmatmul.mubr.bf16.gmra.mrb[0].mxu0 %v1143
  %v1191 = vpop.f32.mrb[0].mxu0
  %v1192 = vadd.f32 0.0, %v1191
  %v1193 = vpop.f32.mrb[0].mxu0
  %v1194 = vpop.f32.mrb[0].mxu0
  %v1195 = vadd.f32 0.0, %v1194
  %v1196 = vpop.f32.mrb[0].mxu0
  %1197 = vmatprep.mubr.bf16.mxu0 0
  %1198 = vmatmul.mubr.bf16.gmra.mrb[0].mxu0 %v1146
  %v1199 = vpop.f32.mrb[0].mxu0
  %v1200 = vadd.f32 0.0, %v1199
  %v1201 = vpop.f32.mrb[0].mxu0
  %v1202 = vpop.f32.mrb[0].mxu0
  %v1203 = vadd.f32 0.0, %v1202
  %v1204 = vpop.f32.mrb[0].mxu0
  %1205 = vmatprep.mubr.bf16.mxu0 0
  %1206 = vmatmul.mubr.bf16.gmra.mrb[0].mxu0 %v1149
  %v1207 = vpop.f32.mrb[0].mxu0
  %v1208 = vadd.f32 0.0, %v1207
  %v1209 = vpop.f32.mrb[0].mxu0
  %v1210 = vpop.f32.mrb[0].mxu0
  %v1211 = vadd.f32 0.0, %v1210
  %v1212 = vpop.f32.mrb[0].mxu0
  %1213 = vmatprep.mubr.bf16.mxu0 0
  %1214 = vmatmul.mubr.bf16.gmra.mrb[0].mxu0 %v1152
  %v1215 = vpop.f32.mrb[0].mxu0
  %v1216 = vadd.f32 0.0, %v1215
  %v1217 = vpop.f32.mrb[0].mxu0
  %v1218 = vpop.f32.mrb[0].mxu0
  %v1219 = vadd.f32 0.0, %v1218
  %v1220 = vpop.f32.mrb[0].mxu0
  %1221 = vmatprep.mubr.bf16.mxu0 0
  %1222 = vmatmul.mubr.bf16.gmra.mrb[0].mxu0 %v1155
  %v1223 = vpop.f32.mrb[0].mxu0
  %v1224 = vadd.f32 0.0, %v1223
  %v1225 = vpop.f32.mrb[0].mxu0
  %v1226 = vpop.f32.mrb[0].mxu0
  %v1227 = vpop.f32.mrb[0].mxu0
  %1228 = vdwg.mxu0
  %v1229 = vadd.f32 %v1110, %v1192
  %v1230 = vadd.f32 %v1111, %v1195
  %v1231 = vadd.f32 %v1112, %v1200
  %v1232 = vadd.f32 %v1113, %v1203
  %v1233 = vadd.f32 %v1114, %v1208
  %v1234 = vadd.f32 %v1115, %v1211
  %v1235 = vadd.f32 %v1116, %v1216
  %v1236 = vadd.f32 %v1117, %v1219
  %v1237 = vadd.f32 %v1118, %v1224
  %v1238 = vpack.c.bf16 %v1230, %v1229
  %v1239 = vpack.c.bf16 %v1232, %v1231
  %v1240 = vpack.c.bf16 %v1234, %v1233
  %v1241 = vpack.c.bf16 %v1236, %v1235
  %v1242 = vpack.c.bf16 %v1237, %v1237
  %v1248 = vunpack.c.l.b16 %v1238
  %v1249 = vunpack.c.h.b16 %v1238
  %v1250 = vunpack.c.l.b16 %v1239
  %v1251 = vunpack.c.h.b16 %v1239
  %v1252 = vunpack.c.l.b16 %v1240
  %v1253 = vunpack.c.h.b16 %v1240
  %v1254 = vunpack.c.l.b16 %v1241
  %v1255 = vunpack.c.h.b16 %v1241
  %v1256 = vunpack.c.l.b16 %v1242
  %v1257 = vpack.c.b16 %v1248, %v1248
  %v1258 = vpack.c.b16 %v1249, %v1249
  %v1259 = vpack.c.b16 %v1250, %v1250
  %v1260 = vpack.c.b16 %v1251, %v1251
  %v1261 = vpack.c.b16 %v1252, %v1252
  %v1262 = vpack.c.b16 %v1253, %v1253
  %v1263 = vpack.c.b16 %v1254, %v1254
  %v1264 = vpack.c.b16 %v1255, %v1255
  %v1265 = vpack.c.b16 %v1256, %v1256
  %vm1275 = vcmask 60416
  %1276 = vst.msk [vmem:[%s5] sm:$0xf] %vm1275, %v1257
  %1277 = vst.msk [vmem:[%s5 + $0x4] sm:$0xf] %vm1275, %v1258
  %1278 = vst.msk [vmem:[%s5 + $0x8] sm:$0xf] %vm1275, %v1259
  %1279 = vst.msk [vmem:[%s5 + $0xc] sm:$0xf] %vm1275, %v1260
  %1280 = vst.msk [vmem:[%s5 + $0x10] sm:$0xf] %vm1275, %v1261
  %1281 = vst.msk [vmem:[%s5 + $0x14] sm:$0xf] %vm1275, %v1262
  %1282 = vst.msk [vmem:[%s5 + $0x18] sm:$0xf] %vm1275, %v1263
  %1283 = vst.msk [vmem:[%s5 + $0x1c] sm:$0xf] %vm1275, %v1264
  %1284 = vst.msk [vmem:[%s5 + $0x20] sm:$0xf] %vm1275, %v1265
  // Predicated region
  $region22: #{densenet_forward.22} parent=0 // pred_check
    _
  $region23: #{densenet_forward.22} parent=0 // pred_check_branch
    %1286 = sbr.rel (0) target = $region25
  $region24: #{densenet_forward.22} parent=0 // pred_region
    _
  $region25: #{densenet_forward.22} parent=0 // pred_fallthru
    _
  // Predicated region
  $region26: #{densenet_forward.22} parent=0 // pred_check
    _
  $region27: #{densenet_forward.22} parent=0 // pred_check_branch
    %1288 = sbr.rel (0) target = $region29
  $region28: #{densenet_forward.22} parent=0 // pred_region
    _
  $region29: #{densenet_forward.22} parent=0 // pred_fallthru
    _

// kernel: densenet_forward.23
$region0: #{densenet_forward.23}
  #allocation0 [shape = 'u32[]', space=smem, size = 0x4, offset = 0x4, fixed_abs, tag = 'smem constant byte address 0x4 - core index']
  #allocation1 [shape = 'u32[144,128]{1,0:T(1,128)}', space=vmem, size = 0x12000, scoped, tag = 'internal scratch']
  %s0 = inlined_call_operand.vmem [shape: bf16[32,16], index: 0, kind: input, shape index: {}]
  %s1 = inlined_call_operand.vmem [shape: bf16[32,8], index: 1, kind: input, shape index: {}]
  %s2 = inlined_call_operand.vmem [shape: f32[1,16], index: 2, kind: input, shape index: {}]
  %s3 = inlined_call_operand.vmem [shape: f32[1,8], index: 3, kind: input, shape index: {}]
  %s4 = inlined_call_operand.vmem [shape: f32[1,16], index: 4, kind: input, shape index: {}]
  %s5 = inlined_call_operand.vmem [shape: f32[1,8], index: 5, kind: input, shape index: {}]
  %s6 = inlined_call_operand.vmem [shape: bf16[16,16], index: 6, kind: input, shape index: {}]
  %s7 = inlined_call_operand.vmem [shape: bf16[8,16], index: 7, kind: input, shape index: {}]
  %s8 = inlined_call_operand.vmem [shape: bf16[32,16], index: 8, kind: output, shape index: {}]
  %s9 = sld [smem:[#allocation0]]
  $region42: #{densenet_forward.23} parent=0
    _
  %s11 = ssub.s32 1, %s9
  %s12 = scalar_select 0, %s11, %s9
  // Predicated region
  $region2: #{densenet_forward.23} parent=0 // pred_check
    _
  $region3: #{densenet_forward.23} parent=0 // pred_check_branch
    %14 = sbr.rel (0) target = $region5
  $region4: #{densenet_forward.23} parent=0 // pred_region
    _
  $region5: #{densenet_forward.23} parent=0 // pred_fallthru
    _
  // Predicated region
  $region6: #{densenet_forward.23} parent=0 // pred_check
    _
  $region7: #{densenet_forward.23} parent=0 // pred_check_branch
    %16 = sbr.rel (0) target = $region9
  $region8: #{densenet_forward.23} parent=0 // pred_region
    _
  $region9: #{densenet_forward.23} parent=0 // pred_fallthru
    _
  // Predicated region
  $region10: #{densenet_forward.23} parent=0 // pred_check
    _
  $region11: #{densenet_forward.23} parent=0 // pred_check_branch
    %18 = sbr.rel (0) target = $region13
  $region12: #{densenet_forward.23} parent=0 // pred_region
    _
  $region13: #{densenet_forward.23} parent=0 // pred_fallthru
    _
  // Predicated region
  $region14: #{densenet_forward.23} parent=0 // pred_check
    _
  $region15: #{densenet_forward.23} parent=0 // pred_check_branch
    %20 = sbr.rel (0) target = $region17
  $region16: #{densenet_forward.23} parent=0 // pred_region
    _
  $region17: #{densenet_forward.23} parent=0 // pred_fallthru
    _
  // Predicated region
  $region18: #{densenet_forward.23} parent=0 // pred_check
    _
  $region19: #{densenet_forward.23} parent=0 // pred_check_branch
    %22 = sbr.rel (0) target = $region21
  $region20: #{densenet_forward.23} parent=0 // pred_region
    _
  $region21: #{densenet_forward.23} parent=0 // pred_fallthru
    _
  // Predicated region
  $region22: #{densenet_forward.23} parent=0 // pred_check
    _
  $region23: #{densenet_forward.23} parent=0 // pred_check_branch
    %24 = sbr.rel (0) target = $region25
  $region24: #{densenet_forward.23} parent=0 // pred_region
    _
  $region25: #{densenet_forward.23} parent=0 // pred_fallthru
    _
  // Predicated region
  $region26: #{densenet_forward.23} parent=0 // pred_check
    _
  $region27: #{densenet_forward.23} parent=0 // pred_check_branch
    %26 = sbr.rel (0) target = $region29
  $region28: #{densenet_forward.23} parent=0 // pred_region
    _
  $region29: #{densenet_forward.23} parent=0 // pred_fallthru
    _
  // Predicated region
  $region30: #{densenet_forward.23} parent=0 // pred_check
    _
  $region31: #{densenet_forward.23} parent=0 // pred_check_branch
    %28 = sbr.rel (0) target = $region33
  $region32: #{densenet_forward.23} parent=0 // pred_region
    _
  $region33: #{densenet_forward.23} parent=0 // pred_fallthru
    _
  %v30 = vld [vmem:[%s0] sm:$0xf]
  %v31 = vld [vmem:[%s0 + $0x4] sm:$0xf]
  %v32 = vld [vmem:[%s0 + $0x8] sm:$0xf]
  %v33 = vld [vmem:[%s0 + $0xc] sm:$0xf]
  %v34 = vunpack.c.l.bf16 %v30
  %v35 = vunpack.c.l.bf16 %v31
  %v36 = vunpack.c.l.bf16 %v32
  %v37 = vunpack.c.l.bf16 %v33
  %v38 = vld [vmem:[%s2] sm:$0x1]
  %v40 = vlaneseq
  %v41 = vshrl.u32 %v40, 7
  %v42 = vsub.s32 0, %v41
  %v43 = vrot.slane %v38, %v42
  %v45 = vmul.f32 %v34, %v43
  %v46 = vmul.f32 %v35, %v43
  %v47 = vmul.f32 %v36, %v43
  %v48 = vmul.f32 %v37, %v43
  %v49 = vld [vmem:[%s4] sm:$0x1]
  %v51 = vlaneseq
  %v52 = vshrl.u32 %v51, 7
  %v53 = vsub.s32 0, %v52
  %v54 = vrot.slane %v49, %v53
  %v56 = vadd.f32 %v45, %v54
  %v57 = vadd.f32 %v46, %v54
  %v58 = vadd.f32 %v47, %v54
  %v59 = vadd.f32 %v48, %v54
  %v60 = vmax.f32 %v56, 0.0
  %v61 = vmax.f32 %v57, 0.0
  %v62 = vmax.f32 %v58, 0.0
  %v63 = vmax.f32 %v59, 0.0
  %v64 = vpack.c.bf16 %v61, %v60
  %v65 = vpack.c.bf16 %v63, %v62
  %v66 = vld [vmem:[%s6] sm:$0xf]
  %v67 = vld [vmem:[%s6 + $0x4] sm:$0xf]
  %v68 = vld [vmem:[%s1] sm:$0xf]
  %v69 = vld [vmem:[%s1 + $0x4] sm:$0xf]
  %v70 = vld [vmem:[%s1 + $0x8] sm:$0xf]
  %v71 = vld [vmem:[%s1 + $0xc] sm:$0xf]
  %v72 = vunpack.c.l.bf16 %v68
  %v73 = vunpack.c.l.bf16 %v69
  %v74 = vunpack.c.l.bf16 %v70
  %v75 = vunpack.c.l.bf16 %v71
  %v76 = vld [vmem:[%s3] sm:$0x1]
  %v78 = vlaneseq
  %v79 = vshrl.u32 %v78, 7
  %v80 = vsub.s32 0, %v79
  %v81 = vrot.slane %v76, %v80
  %v83 = vmul.f32 %v72, %v81
  %v84 = vmul.f32 %v73, %v81
  %v85 = vmul.f32 %v74, %v81
  %v86 = vmul.f32 %v75, %v81
  %v87 = vld [vmem:[%s5] sm:$0x1]
  %v89 = vlaneseq
  %v90 = vshrl.u32 %v89, 7
  %v91 = vsub.s32 0, %v90
  %v92 = vrot.slane %v87, %v91
  %v94 = vadd.f32 %v83, %v92
  %v95 = vadd.f32 %v84, %v92
  %v96 = vadd.f32 %v85, %v92
  %v97 = vadd.f32 %v86, %v92
  %v98 = vmax.f32 %v94, 0.0
  %v99 = vmax.f32 %v95, 0.0
  %v100 = vmax.f32 %v96, 0.0
  %v101 = vmax.f32 %v97, 0.0
  %v102 = vpack.c.bf16 %v99, %v98
  %v103 = vpack.c.bf16 %v101, %v100
  %v104 = vld [vmem:[%s7] sm:$0xf]
  %vm105 = vcmask 64512
  %v107 = vsel %vm105, %v102, 0
  %v110 = vsel %vm105, %v103, 0
  %vm112 = vcmask 1043456
  %v114 = vsel %vm112, %v104, 0
  %116 = vmatprep.subr.bf16.mxu0 0
  %117 = vmatpush1.bf16.msra.mxu0 %v114
  %118 = vmatprep.subr.bf16.mxu0 0
  %119 = vmatpush1.bf16.msra.mxu0 0
  %120 = vmatprep.subr.bf16.mxu0 0
  %121 = vmatpush1.bf16.msra.mxu0 0
  %122 = vmatprep.subr.bf16.mxu0 0
  %123 = vmatpush1.bf16.msra.mxu0 0
  %124 = vmatprep.subr.bf16.mxu0 0
  %125 = vmatpush1.bf16.msra.mxu0 0
  %126 = vmatprep.subr.bf16.mxu0 0
  %127 = vmatpush1.bf16.msra.mxu0 0
  %128 = vmatprep.subr.bf16.mxu0 0
  %129 = vmatpush1.bf16.msra.mxu0 0
  %130 = vmatprep.subr.bf16.mxu0 0
  %131 = vmatpush1.bf16.msra.mxu0 0
  %132 = vmatprep.subr.bf16.mxu0 0
  %133 = vmatpush1.bf16.msra.mxu0 0
  %134 = vmatprep.subr.bf16.mxu0 0
  %135 = vmatpush1.bf16.msra.mxu0 0
  %136 = vmatprep.subr.bf16.mxu0 0
  %137 = vmatpush1.bf16.msra.mxu0 0
  %138 = vmatprep.subr.bf16.mxu0 0
  %139 = vmatpush1.bf16.msra.mxu0 0
  %140 = vmatprep.subr.bf16.mxu0 0
  %141 = vmatpush1.bf16.msra.mxu0 0
  %142 = vmatprep.subr.bf16.mxu0 0
  %143 = vmatpush1.bf16.msra.mxu0 0
  %144 = vmatprep.subr.bf16.mxu0 0
  %145 = vmatpush1.bf16.msra.mxu0 0
  %146 = vmatprep.subr.bf16.mxu0 0
  %147 = vmatpush1.bf16.msra.mxu0 0
  %148 = vmatprep.mubr.bf16.mxu0 0
  %149 = vmatmul.mubr.bf16.gmra.mrb[0].mxu0 %v107
  %v150 = vpop.f32.mrb[0].mxu0
  %v151 = vadd.f32 0.0, %v150
  %v152 = vpop.f32.mrb[0].mxu0
  %v153 = vpop.f32.mrb[0].mxu0
  %v154 = vadd.f32 0.0, %v153
  %v155 = vpop.f32.mrb[0].mxu0
  %156 = vmatprep.mubr.bf16.mxu0 0
  %157 = vmatmul.mubr.bf16.gmra.mrb[0].mxu0 %v110
  %v158 = vpop.f32.mrb[0].mxu0
  %v159 = vadd.f32 0.0, %v158
  %v160 = vpop.f32.mrb[0].mxu0
  %v161 = vpop.f32.mrb[0].mxu0
  %v162 = vadd.f32 0.0, %v161
  %v163 = vpop.f32.mrb[0].mxu0
  %164 = vdwg.mxu0
  %v167 = vunpack.c.l.b16 %v66
  %v168 = vunpack.c.l.b16 %v67
  %v169 = vpack.c.b16 %v168, %v167
  %vm171 = vcmask 130048
  %v173 = vsel %vm171, %v64, 0
  %v176 = vsel %vm171, %v65, 0
  %178 = vmatprep.subr.bf16.mxu0 0
  %179 = vmatpush1.bf16.msra.mxu0 %v169
  %180 = vmatprep.subr.bf16.mxu0 0
  %181 = vmatpush1.bf16.msra.mxu0 0
  %182 = vmatprep.subr.bf16.mxu0 0
  %183 = vmatpush1.bf16.msra.mxu0 0
  %184 = vmatprep.subr.bf16.mxu0 0
  %185 = vmatpush1.bf16.msra.mxu0 0
  %186 = vmatprep.subr.bf16.mxu0 0
  %187 = vmatpush1.bf16.msra.mxu0 0
  %188 = vmatprep.subr.bf16.mxu0 0
  %189 = vmatpush1.bf16.msra.mxu0 0
  %190 = vmatprep.subr.bf16.mxu0 0
  %191 = vmatpush1.bf16.msra.mxu0 0
  %192 = vmatprep.subr.bf16.mxu0 0
  %193 = vmatpush1.bf16.msra.mxu0 0
  %194 = vmatprep.subr.bf16.mxu0 0
  %195 = vmatpush1.bf16.msra.mxu0 0
  %196 = vmatprep.subr.bf16.mxu0 0
  %197 = vmatpush1.bf16.msra.mxu0 0
  %198 = vmatprep.subr.bf16.mxu0 0
  %199 = vmatpush1.bf16.msra.mxu0 0
  %200 = vmatprep.subr.bf16.mxu0 0
  %201 = vmatpush1.bf16.msra.mxu0 0
  %202 = vmatprep.subr.bf16.mxu0 0
  %203 = vmatpush1.bf16.msra.mxu0 0
  %204 = vmatprep.subr.bf16.mxu0 0
  %205 = vmatpush1.bf16.msra.mxu0 0
  %206 = vmatprep.subr.bf16.mxu0 0
  %207 = vmatpush1.bf16.msra.mxu0 0
  %208 = vmatprep.subr.bf16.mxu0 0
  %209 = vmatpush1.bf16.msra.mxu0 0
  %210 = vmatprep.mubr.bf16.mxu0 0
  %211 = vmatmul.mubr.bf16.gmra.mrb[0].mxu0 %v173
  %v212 = vpop.f32.mrb[0].mxu0
  %v213 = vadd.f32 %v151, %v212
  %v214 = vpop.f32.mrb[0].mxu0
  %v215 = vpop.f32.mrb[0].mxu0
  %v216 = vadd.f32 %v154, %v215
  %v217 = vpop.f32.mrb[0].mxu0
  %218 = vmatprep.mubr.bf16.mxu0 0
  %219 = vmatmul.mubr.bf16.gmra.mrb[0].mxu0 %v176
  %v220 = vpop.f32.mrb[0].mxu0
  %v221 = vadd.f32 %v159, %v220
  %v222 = vpop.f32.mrb[0].mxu0
  %v223 = vpop.f32.mrb[0].mxu0
  %v224 = vadd.f32 %v162, %v223
  %v225 = vpop.f32.mrb[0].mxu0
  %226 = vdwg.mxu0
  %v227 = vpack.c.bf16 %v216, %v213
  %v228 = vpack.c.bf16 %v224, %v221
  %v231 = vunpack.c.l.b16 %v227
  %v232 = vunpack.c.h.b16 %v227
  %v233 = vunpack.c.l.b16 %v228
  %v234 = vunpack.c.h.b16 %v228
  %v235 = vpack.c.b16 %v231, %v231
  %v236 = vpack.c.b16 %v232, %v232
  %v237 = vpack.c.b16 %v233, %v233
  %v238 = vpack.c.b16 %v234, %v234
  %vm243 = vcmask 125952
  %244 = vst.msk [vmem:[%s8] sm:$0xf] %vm243, %v235
  %245 = vst.msk [vmem:[%s8 + $0x4] sm:$0xf] %vm243, %v236
  %246 = vst.msk [vmem:[%s8 + $0x8] sm:$0xf] %vm243, %v237
  %247 = vst.msk [vmem:[%s8 + $0xc] sm:$0xf] %vm243, %v238
  // Predicated region
  $region34: #{densenet_forward.23} parent=0 // pred_check
    _
  $region35: #{densenet_forward.23} parent=0 // pred_check_branch
    %249 = sbr.rel (0) target = $region37
  $region36: #{densenet_forward.23} parent=0 // pred_region
    _
  $region37: #{densenet_forward.23} parent=0 // pred_fallthru
    _
  // Predicated region
  $region38: #{densenet_forward.23} parent=0 // pred_check
    _
  $region39: #{densenet_forward.23} parent=0 // pred_check_branch
    %251 = sbr.rel (0) target = $region41
  $region40: #{densenet_forward.23} parent=0 // pred_region
    _
  $region41: #{densenet_forward.23} parent=0 // pred_fallthru
    _

// kernel: densenet_forward.25
$region0: #{densenet_forward.25}
  #allocation0 [shape = 'u32[]', space=smem, size = 0x4, offset = 0x4, fixed_abs, tag = 'smem constant byte address 0x4 - core index']
  #allocation1 [shape = 'u32[144,128]{1,0:T(1,128)}', space=vmem, size = 0x12000, scoped, tag = 'internal scratch']
  %s0 = inlined_call_operand.vmem [shape: bf16[2,16,32], index: 0, kind: input, shape index: {}]
  %s1 = inlined_call_operand.vmem [shape: f32[1,32], index: 1, kind: input, shape index: {}]
  %s2 = inlined_call_operand.vmem [shape: f32[1,32], index: 2, kind: input, shape index: {}]
  %s3 = inlined_call_operand.vmem [shape: bf16[32,10], index: 3, kind: input, shape index: {}]
  %s4 = inlined_call_operand.vmem [shape: f32[1,10], index: 4, kind: input, shape index: {}]
  %s5 = inlined_call_operand.hbm [shape: f32[2,10], index: 5, kind: output, shape index: {}]
  %s6 = sld [smem:[#allocation0]]
  $region30: #{densenet_forward.25} parent=0
    _
  %s8 = ssub.s32 1, %s6
  %s9 = scalar_select 0, %s8, %s6
  $region1: #{densenet_forward.25} parent=0
    #allocation2 [shape = 'u8[1024]{0}', space=vmem, size = 0x400, scoped, tag = 'output window, operand 0, single buffered']
    #allocation3 [shape = 's32[1]{0}', space=sflag, size = 0x4, scoped, tag = 'scoped memory for densenet_forward.25']
    %10 = vsyncpa [#allocation3], 0
    // Predicated region
    $region2: #{densenet_forward.25} parent=1 // pred_check
      _
    $region3: #{densenet_forward.25} parent=1 // pred_check_branch
      %12 = sbr.rel (0) target = $region5
    $region4: #{densenet_forward.25} parent=1 // pred_region
      _
    $region5: #{densenet_forward.25} parent=1 // pred_fallthru
      _
    // Predicated region
    $region6: #{densenet_forward.25} parent=1 // pred_check
      _
    $region7: #{densenet_forward.25} parent=1 // pred_check_branch
      %14 = sbr.rel (0) target = $region9
    $region8: #{densenet_forward.25} parent=1 // pred_region
      _
    $region9: #{densenet_forward.25} parent=1 // pred_fallthru
      _
    // Predicated region
    $region10: #{densenet_forward.25} parent=1 // pred_check
      _
    $region11: #{densenet_forward.25} parent=1 // pred_check_branch
      %16 = sbr.rel (0) target = $region13
    $region12: #{densenet_forward.25} parent=1 // pred_region
      _
    $region13: #{densenet_forward.25} parent=1 // pred_fallthru
      _
    // Predicated region
    $region14: #{densenet_forward.25} parent=1 // pred_check
      _
    $region15: #{densenet_forward.25} parent=1 // pred_check_branch
      %18 = sbr.rel (0) target = $region17
    $region16: #{densenet_forward.25} parent=1 // pred_region
      _
    $region17: #{densenet_forward.25} parent=1 // pred_fallthru
      _
    // Predicated region
    $region18: #{densenet_forward.25} parent=1 // pred_check
      _
    $region19: #{densenet_forward.25} parent=1 // pred_check_branch
      %20 = sbr.rel (0) target = $region21
    $region20: #{densenet_forward.25} parent=1 // pred_region
      _
    $region21: #{densenet_forward.25} parent=1 // pred_fallthru
      _
    %v22 = vld [vmem:[%s0] sm:$0xf]
    %v23 = vld [vmem:[%s0 + $0x4] sm:$0xf]
    %v24 = vld [vmem:[%s0 + $0x8] sm:$0xf]
    %v25 = vld [vmem:[%s0 + $0xc] sm:$0xf]
    %v26 = vunpack.c.l.bf16 %v22
    %v27 = vunpack.c.l.bf16 %v23
    %v28 = vunpack.c.l.bf16 %v24
    %v29 = vunpack.c.l.bf16 %v25
    %v30 = vld [vmem:[%s1] sm:$0x1]
    %v32 = vlaneseq
    %v33 = vshrl.u32 %v32, 7
    %v34 = vsub.s32 0, %v33
    %v35 = vrot.slane %v30, %v34
    %v37 = vmul.f32 %v26, %v35
    %v38 = vmul.f32 %v27, %v35
    %v39 = vmul.f32 %v28, %v35
    %v40 = vmul.f32 %v29, %v35
    %v41 = vld [vmem:[%s2] sm:$0x1]
    %v43 = vlaneseq
    %v44 = vshrl.u32 %v43, 7
    %v45 = vsub.s32 0, %v44
    %v46 = vrot.slane %v41, %v45
    %v48 = vadd.f32 %v37, %v46
    %v49 = vadd.f32 %v38, %v46
    %v50 = vadd.f32 %v39, %v46
    %v51 = vadd.f32 %v40, %v46
    %v52 = vmax.f32 %v48, 0.0
    %v53 = vmax.f32 %v49, 0.0
    %v54 = vmax.f32 %v50, 0.0
    %v55 = vmax.f32 %v51, 0.0
    %vm56 = vcmask 261120
    %v57 = vsel %vm56, %v52, 0.0
    %v58 = vsel %vm56, %v53, 0.0
    %v59 = vadd.f32 %v57, %v58
    %v60 = vrot.slane %v59, 4
    %v61 = vadd.f32 %v59, %v60
    %v62 = vrot.slane %v61, 2
    %v63 = vadd.f32 %v61, %v62
    %v64 = vrot.slane %v63, 1
    %v65 = vadd.f32 %v63, %v64
    %v66 = vsel %vm56, %v54, 0.0
    %v67 = vsel %vm56, %v55, 0.0
    %v68 = vadd.f32 %v66, %v67
    %v69 = vrot.slane %v68, 4
    %v70 = vadd.f32 %v68, %v69
    %v71 = vrot.slane %v70, 2
    %v72 = vadd.f32 %v70, %v71
    %v73 = vrot.slane %v72, 1
    %v74 = vadd.f32 %v72, %v73
    %v75 = vrcp.pop 16.0
    %v76 = vmul.f32 %v65, %v75
    %v77 = vmul.f32 %v74, %v75
    %v78 = vpack.c.bf16 %v76, %v76
    %v79 = vpack.c.bf16 %v77, %v77
    %v80 = vld [vmem:[%s3] sm:$0xf]
    %v81 = vld [vmem:[%s3 + $0x4] sm:$0xf]
    %v82 = vld [vmem:[%s3 + $0x8] sm:$0xf]
    %v83 = vld [vmem:[%s3 + $0xc] sm:$0xf]
    %v84 = vld [vmem:[%s4] sm:$0x1]
    %v86 = vlaneseq
    %v87 = vshrl.u32 %v86, 7
    %v88 = vsub.s32 0, %v87
    %v89 = vrot.slane %v84, %v88
    %v93 = vunpack.c.l.b16 %v78
    %v94 = vunpack.c.l.b16 %v79
    %vm95 = vcmask 1041409
    %v96 = vsel %vm95, %v94, %v93
    %v97 = vpack.c.b16 %v96, %v96
    %v102 = vunpack.c.l.b16 %v80
    %v103 = vunpack.c.l.b16 %v81
    %v104 = vunpack.c.l.b16 %v82
    %v105 = vunpack.c.l.b16 %v83
    %v106 = vpack.c.b16 %v103, %v102
    %v107 = vpack.c.b16 %v105, %v104
    %v111 = vsel %vm56, %v97, 0
    %113 = vmatprep.subr.bf16.mxu0 0
    %114 = vmatpush1.bf16.msra.mxu0 %v106
    %115 = vmatprep.subr.bf16.mxu0 0
    %116 = vmatpush1.bf16.msra.mxu0 %v107
    %117 = vmatprep.subr.bf16.mxu0 0
    %118 = vmatpush1.bf16.msra.mxu0 0
    %119 = vmatprep.subr.bf16.mxu0 0
    %120 = vmatpush1.bf16.msra.mxu0 0
    %121 = vmatprep.subr.bf16.mxu0 0
    %122 = vmatpush1.bf16.msra.mxu0 0
    %123 = vmatprep.subr.bf16.mxu0 0
    %124 = vmatpush1.bf16.msra.mxu0 0
    %125 = vmatprep.subr.bf16.mxu0 0
    %126 = vmatpush1.bf16.msra.mxu0 0
    %127 = vmatprep.subr.bf16.mxu0 0
    %128 = vmatpush1.bf16.msra.mxu0 0
    %129 = vmatprep.subr.bf16.mxu0 0
    %130 = vmatpush1.bf16.msra.mxu0 0
    %131 = vmatprep.subr.bf16.mxu0 0
    %132 = vmatpush1.bf16.msra.mxu0 0
    %133 = vmatprep.subr.bf16.mxu0 0
    %134 = vmatpush1.bf16.msra.mxu0 0
    %135 = vmatprep.subr.bf16.mxu0 0
    %136 = vmatpush1.bf16.msra.mxu0 0
    %137 = vmatprep.subr.bf16.mxu0 0
    %138 = vmatpush1.bf16.msra.mxu0 0
    %139 = vmatprep.subr.bf16.mxu0 0
    %140 = vmatpush1.bf16.msra.mxu0 0
    %141 = vmatprep.subr.bf16.mxu0 0
    %142 = vmatpush1.bf16.msra.mxu0 0
    %143 = vmatprep.subr.bf16.mxu0 0
    %144 = vmatpush1.bf16.msra.mxu0 0
    %145 = vmatprep.mubr.bf16.mxu0 0
    %146 = vmatmul.mubr.bf16.gmra.mrb[0].mxu0 %v111
    %v147 = vpop.f32.mrb[0].mxu0
    %v148 = vadd.f32 %v89, %v147
    %v149 = vpop.f32.mrb[0].mxu0
    %v150 = vpop.f32.mrb[0].mxu0
    %v151 = vpop.f32.mrb[0].mxu0
    %152 = vdwg.mxu0
    %vm153 = vcmask 74752
    %154 = vst.msk [vmem:[#allocation2] sm:$0x3] %vm153, %v148
    // Predicated region
    $region22: #{densenet_forward.25} parent=1 // pred_check
      _
    $region23: #{densenet_forward.25} parent=1 // pred_check_branch
      %156 = sbr.rel (0) target = $region25
    $region24: #{densenet_forward.25} parent=1 // pred_region
      %s158 = ssub.s32 32, 32
      %159 = vsyncadd [#allocation3], %s158
      %s161 = sshll.u32 [#allocation2], 4
      %s162 = int_to_ptr.vmem [resolvable:$true] %s161
      %164 = dma.vmem_to_hbm [thread:$0]  %s162, 32, %s5, [#allocation3]
    $region25: #{densenet_forward.25} parent=1 // pred_fallthru
      _
    // Predicated region
    $region26: #{densenet_forward.25} parent=1 // pred_check
      _
    $region27: #{densenet_forward.25} parent=1 // pred_check_branch
      %166 = sbr.rel (0) target = $region29
    $region28: #{densenet_forward.25} parent=1 // pred_region
      %167 = dma.done [#allocation3], 32
    $region29: #{densenet_forward.25} parent=1 // pred_fallthru
      _
    %168 = vsyncpa [#allocation3], 1

</llo_original>
